<compile_context>
chip_gen: v6e
topology: v6e:2x2x1
jax: 0.10.0
libtpu: 0.0.40
codegen_flags: <defaults>
</compile_context>

<pallas_src>
import jax
import jax.numpy as jnp
from jax.experimental import pallas as pl
from jax.experimental.pallas import tpu as pltpu

EPS = 1e-6
NEG_INF = -1e9        # matches masked_fill(mask == 0, -1e9)
CROSS_NEG = -1e30     # blocks cross-batch attention in the flattened-batch layout

# Small but structurally consistent dims (module uses d_model=512, N=8, d_ff=64).
BATCH = 2
SEQ = 4                      # matches the 4x4 masks in the reference glue
D_MODEL = 128                # lane-aligned stand-in for 512
NUM_HEADS = 8
D_K = D_MODEL // NUM_HEADS   # 16
D_FF = 64                    # reference d_ff
D_FF_PAD = 128               # lane-dense padded hidden width (zero-padded, exact)
N_LAYERS = 2                 # stand-in for N=8


# ----------------------------- in-kernel helpers -----------------------------

def _layer_norm(x, a, b):
    # a * (x - mean) / (eps + std) + b ; std is the unbiased (N-1) std (torch.std).
    mean = jnp.mean(x, axis=-1, keepdims=True)
    diff = x - mean
    var = jnp.sum(diff * diff, axis=-1, keepdims=True) * (1.0 / (D_MODEL - 1))
    inv = pl.reciprocal(EPS + jnp.sqrt(var), approx=False)   # one reciprocal per row
    return a * (diff * inv) + b


def _attention(q, k, v, bias, wo, bo):
    """q already scaled by 1/sqrt(d_k).  q:(M,D) k,v:(Mk,D) bias:(H,M,Mk) wo:(D,D) bo:(1,D).

    Heads are a static unroll over lane slices of the fused projections; the
    per-head context is folded straight into the output projection (accumulate
    ctx_h @ Wo_h) so no lane-axis concatenate is needed. Batch isolation comes
    from the block-diagonal additive bias (cross-batch entries ~ -1e30)."""
    out = jnp.zeros((q.shape[0], D_MODEL), jnp.float32)
    for h in range(NUM_HEADS):
        sl = slice(h * D_K, (h + 1) * D_K)
        qh, kh, vh = q[:, sl], k[:, sl], v[:, sl]
        # scores[m, n] = sum_d qh[m, d] * kh[n, d]   (contraction on last dims)
        s = jax.lax.dot_general(qh, kh, (((1,), (1,)), ((), ())),
                                preferred_element_type=jnp.float32)
        s = s + bias[h]
        e = jnp.exp(s - jnp.max(s, axis=-1, keepdims=True))
        p = e * pl.reciprocal(jnp.sum(e, axis=-1, keepdims=True), approx=True)
        ctx = jnp.dot(p, vh, preferred_element_type=jnp.float32)          # (M, d_k)
        out = out + jnp.dot(ctx, wo[sl, :], preferred_element_type=jnp.float32)
    return out + bo


def _ffn(x, w1, b1, w2, b2):
    h = jnp.dot(x, w1, preferred_element_type=jnp.float32) + b1
    h = jnp.maximum(h, 0.0)
    return jnp.dot(h, w2, preferred_element_type=jnp.float32) + b2


# ------------------------------- fused kernel --------------------------------

def decoder_stack_kernel(
        # layer-invariant inputs
        x0_ref, mem_ref, tbias_ref, sbias_ref, fnorm_a_ref, fnorm_b_ref,
        # per-layer (stacked along leading layer axis, auto-prefetched by Pallas)
        ln1_a_ref, ln1_b_ref, sa_wqkv_ref, sa_bqkv_ref, sa_wo_ref, sa_bo_ref,
        ln2_a_ref, ln2_b_ref, ca_wq_ref, ca_bq_ref, ca_wkv_ref, ca_bkv_ref,
        ca_wo_ref, ca_bo_ref, ln3_a_ref, ln3_b_ref,
        ff_w1_ref, ff_b1_ref, ff_w2_ref, ff_b2_ref,
        # output (resident across the layer grid axis — carries the activations)
        o_ref):
    layer = pl.program_id(0)

    @pl.when(layer == 0)
    def _():
        o_ref[...] = x0_ref[...]

    x = o_ref[...]                     # (M, D) carry
    mem = mem_ref[...]                 # (Mk, D)
    scale = 1.0 / (float(D_K) ** 0.5)

    # --- sublayer 0: masked self-attention:  x + attn(norm(x), norm(x), norm(x)) ---
    n1 = _layer_norm(x, ln1_a_ref[0], ln1_b_ref[0])
    qkv = jnp.dot(n1, sa_wqkv_ref[0], preferred_element_type=jnp.float32) + sa_bqkv_ref[0]
    x = x + _attention(qkv[:, :D_MODEL] * scale,
                       qkv[:, D_MODEL:2 * D_MODEL],
                       qkv[:, 2 * D_MODEL:],
                       tbias_ref[...], sa_wo_ref[0], sa_bo_ref[0])

    # --- sublayer 1: cross-attention over encoder memory ---
    n2 = _layer_norm(x, ln2_a_ref[0], ln2_b_ref[0])
    q = (jnp.dot(n2, ca_wq_ref[0], preferred_element_type=jnp.float32) + ca_bq_ref[0]) * scale
    kv = jnp.dot(mem, ca_wkv_ref[0], preferred_element_type=jnp.float32) + ca_bkv_ref[0]
    x = x + _attention(q, kv[:, :D_MODEL], kv[:, D_MODEL:],
                       sbias_ref[...], ca_wo_ref[0], ca_bo_ref[0])

    # --- sublayer 2: position-wise feed-forward ---
    n3 = _layer_norm(x, ln3_a_ref[0], ln3_b_ref[0])
    x = x + _ffn(n3, ff_w1_ref[0], ff_b1_ref[0], ff_w2_ref[0], ff_b2_ref[0])

    o_ref[...] = x

    @pl.when(layer == pl.num_programs(0) - 1)
    def _():
        # Decoder's final LayerNorm, fused into the last grid step.
        o_ref[...] = _layer_norm(x, fnorm_a_ref[...], fnorm_b_ref[...])


# ------------------------------ host-side glue --------------------------------

def _masks_to_bias(mask, batch):
    """(H, Sq, Sk) 0/1 float mask -> (H, B*Sq, B*Sk) additive bias.

    In-batch masked positions get -1e9 (== masked_fill value); cross-batch
    positions get -1e30 so they contribute exactly 0 after softmax."""
    h, sq, sk = mask.shape
    inb = jnp.where(mask == 0.0, jnp.float32(NEG_INF), jnp.float32(0.0))
    eye = jnp.eye(batch, dtype=jnp.bool_)
    bias = jnp.where(eye[None, :, None, :, None],
                     inb[:, None, :, None, :],
                     jnp.float32(CROSS_NEG))
    return bias.reshape(h, batch * sq, batch * sk)


def decoder_forward(x, memory, source_mask, target_mask, kp, norm_a, norm_b):
    """x, memory: (B, S, D); masks: (H, S, S); kp: stacked fused per-layer params."""
    b, s, d = x.shape
    sk = memory.shape[1]
    m, mk = b * s, b * sk
    h = target_mask.shape[0]
    l = kp["ln1_a"].shape[0]

    tbias = _masks_to_bias(target_mask, b)       # (H, M, M)
    sbias = _masks_to_bias(source_mask, b)       # (H, M, Mk)

    def const_spec(shape):
        n = len(shape)

        def imap(i):
            return (0,) * n
        return pl.BlockSpec(shape, imap)

    def layer_spec(shape):
        n = len(shape)

        def imap(i):
            return (i,) + (0,) * (n - 1)
        return pl.BlockSpec((1,) + tuple(shape[1:]), imap)

    in_specs = [
        const_spec((m, d)),            # x0
        const_spec((mk, d)),           # memory
        const_spec((h, m, m)),         # target bias
        const_spec((h, m, mk)),        # source bias
        const_spec((1, d)),            # final norm a
        const_spec((1, d)),            # final norm b
        layer_spec((l, 1, d)), layer_spec((l, 1, d)),                      # ln1
        layer_spec((l, d, 3 * d)), layer_spec((l, 1, 3 * d)),              # fused qkv
        layer_spec((l, d, d)), layer_spec((l, 1, d)),                      # self-attn wo/bo
        layer_spec((l, 1, d)), layer_spec((l, 1, d)),                      # ln2
        layer_spec((l, d, d)), layer_spec((l, 1, d)),                      # cross wq/bq
        layer_spec((l, d, 2 * d)), layer_spec((l, 1, 2 * d)),              # fused kv
        layer_spec((l, d, d)), layer_spec((l, 1, d)),                      # cross wo/bo
        layer_spec((l, 1, d)), layer_spec((l, 1, d)),                      # ln3
        layer_spec((l, d, D_FF_PAD)), layer_spec((l, 1, D_FF_PAD)),        # ffn w1/b1
        layer_spec((l, D_FF_PAD, d)), layer_spec((l, 1, d)),               # ffn w2/b2
    ]

    out = pl.pallas_call(
        decoder_stack_kernel,
        out_shape=jax.ShapeDtypeStruct((m, d), jnp.float32),
        grid=(l,),
        in_specs=in_specs,
        out_specs=pl.BlockSpec((m, d), lambda i: (0, 0)),
        compiler_params=pltpu.CompilerParams(
            dimension_semantics=("arbitrary",)),   # sequential carry over layers
    )(x.reshape(m, d), memory.reshape(mk, d), tbias, sbias, norm_a, norm_b,
      kp["ln1_a"], kp["ln1_b"],
      kp["sa_wqkv"], kp["sa_bqkv"], kp["sa_wo"], kp["sa_bo"],
      kp["ln2_a"], kp["ln2_b"],
      kp["ca_wq"], kp["ca_bq"], kp["ca_wkv"], kp["ca_bkv"], kp["ca_wo"], kp["ca_bo"],
      kp["ln3_a"], kp["ln3_b"],
      kp["ff_w1"], kp["ff_b1"], kp["ff_w2"], kp["ff_b2"])
    return out.reshape(b, s, d)


# ----------------------------- deterministic init -----------------------------

def _init_linear(key, d_in, d_out):
    k1, k2 = jax.random.split(key)
    bound = 1.0 / (d_in ** 0.5)
    w = jax.random.uniform(k1, (d_in, d_out), jnp.float32, -bound, bound)
    b = jax.random.uniform(k2, (1, d_out), jnp.float32, -bound, bound)
    return w, b


def init_layer(key):
    """One DecoderLayer's parameters (un-fused, PyTorch layout transposed to (in, out))."""
    ks = jax.random.split(key, 10)
    p = {}
    p["sa_wq"], p["sa_bq"] = _init_linear(ks[0], D_MODEL, D_MODEL)
    p["sa_wk"], p["sa_bk"] = _init_linear(ks[1], D_MODEL, D_MODEL)
    p["sa_wv"], p["sa_bv"] = _init_linear(ks[2], D_MODEL, D_MODEL)
    p["sa_wo"], p["sa_bo"] = _init_linear(ks[3], D_MODEL, D_MODEL)
    p["ca_wq"], p["ca_bq"] = _init_linear(ks[4], D_MODEL, D_MODEL)
    p["ca_wk"], p["ca_bk"] = _init_linear(ks[5], D_MODEL, D_MODEL)
    p["ca_wv"], p["ca_bv"] = _init_linear(ks[6], D_MODEL, D_MODEL)
    p["ca_wo"], p["ca_bo"] = _init_linear(ks[7], D_MODEL, D_MODEL)
    p["ff_w1"], p["ff_b1"] = _init_linear(ks[8], D_MODEL, D_FF)
    p["ff_w2"], p["ff_b2"] = _init_linear(ks[9], D_FF, D_MODEL)
    ones = jnp.ones((1, D_MODEL), jnp.float32)
    zeros = jnp.zeros((1, D_MODEL), jnp.float32)
    for i in (1, 2, 3):
        p[f"ln{i}_a"], p[f"ln{i}_b"] = ones, zeros
    return p


def pack_for_kernel(p, n_layers):
    """Fuse QKV / KV, zero-pad the FFN hidden dim, and stack identical layers
    (clones() deep-copies ONE layer, so all N layers share initial weights)."""
    def stack(a):
        return jnp.stack([a] * n_layers, axis=0)

    pad_cols = D_FF_PAD - D_FF
    kp = {
        "sa_wqkv": stack(jnp.concatenate([p["sa_wq"], p["sa_wk"], p["sa_wv"]], axis=1)),
        "sa_bqkv": stack(jnp.concatenate([p["sa_bq"], p["sa_bk"], p["sa_bv"]], axis=1)),
        "sa_wo": stack(p["sa_wo"]), "sa_bo": stack(p["sa_bo"]),
        "ca_wq": stack(p["ca_wq"]), "ca_bq": stack(p["ca_bq"]),
        "ca_wkv": stack(jnp.concatenate([p["ca_wk"], p["ca_wv"]], axis=1)),
        "ca_bkv": stack(jnp.concatenate([p["ca_bk"], p["ca_bv"]], axis=1)),
        "ca_wo": stack(p["ca_wo"]), "ca_bo": stack(p["ca_bo"]),
        "ff_w1": stack(jnp.pad(p["ff_w1"], ((0, 0), (0, pad_cols)))),
        "ff_b1": stack(jnp.pad(p["ff_b1"], ((0, 0), (0, pad_cols)))),
        "ff_w2": stack(jnp.pad(p["ff_w2"], ((0, pad_cols), (0, 0)))),
        "ff_b2": stack(p["ff_b2"]),
    }
    for i in (1, 2, 3):
        kp[f"ln{i}_a"] = stack(p[f"ln{i}_a"])
        kp[f"ln{i}_b"] = stack(p[f"ln{i}_b"])
    return kp


# ------------------------- pure-JAX reference (checking) ----------------------

def reference_decoder(x, memory, source_mask, target_mask, p, norm_a, norm_b):
    def ln(t, a, b):
        mean = t.mean(-1, keepdims=True)
        diff = t - mean
        std = jnp.sqrt((diff * diff).sum(-1, keepdims=True) / (t.shape[-1] - 1))
        return a * diff / (EPS + std) + b

    def mha(q_in, kv_in, mask, wq, bq, wk, bk, wv, bv, wo, bo):
        bb = q_in.shape[0]
        q, k, v = q_in @ wq + bq, kv_in @ wk + bk, kv_in @ wv + bv

        def split(t):
            return t.reshape(bb, -1, NUM_HEADS, D_K).transpose(0, 2, 1, 3)
        qh, kh, vh = split(q), split(k), split(v)
        s = jnp.einsum("bhqd,bhkd->bhqk", qh, kh) / (D_K ** 0.5)
        s = jnp.where(mask[None] == 0.0, NEG_INF, s)
        pr = jax.nn.softmax(s, axis=-1)
        ctx = jnp.einsum("bhqk,bhkd->bhqd", pr, vh)
        ctx = ctx.transpose(0, 2, 1, 3).reshape(bb, -1, NUM_HEADS * D_K)
        return ctx @ wo + bo

    def ffn(t):
        return jnp.maximum(t @ p["ff_w1"] + p["ff_b1"], 0.0) @ p["ff_w2"] + p["ff_b2"]

    for _ in range(N_LAYERS):
        n1 = ln(x, p["ln1_a"], p["ln1_b"])
        x = x + mha(n1, n1, target_mask, p["sa_wq"], p["sa_bq"], p["sa_wk"], p["sa_bk"],
                    p["sa_wv"], p["sa_bv"], p["sa_wo"], p["sa_bo"])
        n2 = ln(x, p["ln2_a"], p["ln2_b"])
        x = x + mha(n2, memory, source_mask, p["ca_wq"], p["ca_bq"], p["ca_wk"], p["ca_bk"],
                    p["ca_wv"], p["ca_bv"], p["ca_wo"], p["ca_bo"])
        n3 = ln(x, p["ln3_a"], p["ln3_b"])
        x = x + ffn(n3)
    return ln(x, norm_a, norm_b)


# ----------------------------------- main --------------------------------------

if __name__ == "__main__":
    root = jax.random.PRNGKey(0)
    k_layer, k_x, k_mem = jax.random.split(root, 3)

    layer_params = init_layer(k_layer)
    kernel_params = pack_for_kernel(layer_params, N_LAYERS)
    norm_a = jnp.ones((1, D_MODEL), jnp.float32)     # Decoder's final LayerNorm
    norm_b = jnp.zeros((1, D_MODEL), jnp.float32)

    # Decoder.forward(x, memory, source_mask, target_mask)
    x = jax.random.normal(k_x, (BATCH, SEQ, D_MODEL), jnp.float32)
    memory = jax.random.normal(k_mem, (BATCH, SEQ, D_MODEL), jnp.float32)
    source_mask = jnp.ones((NUM_HEADS, SEQ, SEQ), jnp.float32)
    target_mask = jnp.broadcast_to(
        jnp.tril(jnp.ones((SEQ, SEQ), jnp.float32)), (NUM_HEADS, SEQ, SEQ))

    fwd = jax.jit(decoder_forward)
    out = jax.block_until_ready(
        fwd(x, memory, source_mask, target_mask, kernel_params, norm_a, norm_b))

    assert out.shape == (BATCH, SEQ, D_MODEL), out.shape
    assert bool(jnp.all(jnp.isfinite(out)))

    ref = reference_decoder(x, memory, source_mask, target_mask,
                            layer_params, norm_a, norm_b)
    max_err = float(jnp.max(jnp.abs(out - ref)))
    assert max_err < 5e-2, f"mismatch vs reference: {max_err}"

    print("KERNEL_OK")
</pallas_src>

<mosaic_0001>
module attributes {stable_mosaic.version = 11 : i64} {
  func.func @decoder_stack_kernel(%arg0: i32, %arg1: memref<8x128xf32, #tpu.memory_space<vmem>>, %arg2: memref<8x128xf32, #tpu.memory_space<vmem>>, %arg3: memref<8x8x8xf32, #tpu.memory_space<vmem>>, %arg4: memref<8x8x8xf32, #tpu.memory_space<vmem>>, %arg5: memref<1x128xf32, #tpu.memory_space<vmem>>, %arg6: memref<1x128xf32, #tpu.memory_space<vmem>>, %arg7: memref<1x1x128xf32, #tpu.memory_space<vmem>>, %arg8: memref<1x1x128xf32, #tpu.memory_space<vmem>>, %arg9: memref<1x128x384xf32, #tpu.memory_space<vmem>>, %arg10: memref<1x1x384xf32, #tpu.memory_space<vmem>>, %arg11: memref<1x128x128xf32, #tpu.memory_space<vmem>>, %arg12: memref<1x1x128xf32, #tpu.memory_space<vmem>>, %arg13: memref<1x1x128xf32, #tpu.memory_space<vmem>>, %arg14: memref<1x1x128xf32, #tpu.memory_space<vmem>>, %arg15: memref<1x128x128xf32, #tpu.memory_space<vmem>>, %arg16: memref<1x1x128xf32, #tpu.memory_space<vmem>>, %arg17: memref<1x128x256xf32, #tpu.memory_space<vmem>>, %arg18: memref<1x1x256xf32, #tpu.memory_space<vmem>>, %arg19: memref<1x128x128xf32, #tpu.memory_space<vmem>>, %arg20: memref<1x1x128xf32, #tpu.memory_space<vmem>>, %arg21: memref<1x1x128xf32, #tpu.memory_space<vmem>>, %arg22: memref<1x1x128xf32, #tpu.memory_space<vmem>>, %arg23: memref<1x128x128xf32, #tpu.memory_space<vmem>>, %arg24: memref<1x1x128xf32, #tpu.memory_space<vmem>>, %arg25: memref<1x128x128xf32, #tpu.memory_space<vmem>>, %arg26: memref<1x1x128xf32, #tpu.memory_space<vmem>>, %arg27: memref<8x128xf32, #tpu.memory_space<vmem>>) attributes {dimension_semantics = [#tpu.dimension_semantics<arbitrary>], iteration_bounds = array<i64: 2>, scalar_prefetch = 0 : i64, scratch_operands = 0 : i64, tpu.core_type = #tpu.core_type<tc>, window_params = [{pipeline_mode = #tpu.pipeline_mode<synchronous>, transform_indices = @transform_0, window_bounds = array<i64: 8, 128>}, {pipeline_mode = #tpu.pipeline_mode<synchronous>, transform_indices = @transform_1, window_bounds = array<i64: 8, 128>}, {pipeline_mode = #tpu.pipeline_mode<synchronous>, transform_indices = @transform_2, window_bounds = array<i64: 8, 8, 8>}, {pipeline_mode = #tpu.pipeline_mode<synchronous>, transform_indices = @transform_3, window_bounds = array<i64: 8, 8, 8>}, {pipeline_mode = #tpu.pipeline_mode<synchronous>, transform_indices = @transform_4, window_bounds = array<i64: 1, 128>}, {pipeline_mode = #tpu.pipeline_mode<synchronous>, transform_indices = @transform_5, window_bounds = array<i64: 1, 128>}, {transform_indices = @transform_6, window_bounds = array<i64: 1, 1, 128>}, {transform_indices = @transform_7, window_bounds = array<i64: 1, 1, 128>}, {transform_indices = @transform_8, window_bounds = array<i64: 1, 128, 384>}, {transform_indices = @transform_9, window_bounds = array<i64: 1, 1, 384>}, {transform_indices = @transform_10, window_bounds = array<i64: 1, 128, 128>}, {transform_indices = @transform_11, window_bounds = array<i64: 1, 1, 128>}, {transform_indices = @transform_12, window_bounds = array<i64: 1, 1, 128>}, {transform_indices = @transform_13, window_bounds = array<i64: 1, 1, 128>}, {transform_indices = @transform_14, window_bounds = array<i64: 1, 128, 128>}, {transform_indices = @transform_15, window_bounds = array<i64: 1, 1, 128>}, {transform_indices = @transform_16, window_bounds = array<i64: 1, 128, 256>}, {transform_indices = @transform_17, window_bounds = array<i64: 1, 1, 256>}, {transform_indices = @transform_18, window_bounds = array<i64: 1, 128, 128>}, {transform_indices = @transform_19, window_bounds = array<i64: 1, 1, 128>}, {transform_indices = @transform_20, window_bounds = array<i64: 1, 1, 128>}, {transform_indices = @transform_21, window_bounds = array<i64: 1, 1, 128>}, {transform_indices = @transform_22, window_bounds = array<i64: 1, 128, 128>}, {transform_indices = @transform_23, window_bounds = array<i64: 1, 1, 128>}, {transform_indices = @transform_24, window_bounds = array<i64: 1, 128, 128>}, {transform_indices = @transform_25, window_bounds = array<i64: 1, 1, 128>}, {pipeline_mode = #tpu.pipeline_mode<synchronous>, transform_indices = @transform_26, window_bounds = array<i64: 8, 128>}]} {
    %c0_i32 = arith.constant 0 : i32
    %0 = arith.cmpi eq, %arg0, %c0_i32 : i32
    %1 = arith.extui %0 : i1 to i32
    %c0_i32_0 = arith.constant 0 : i32
    %2 = arith.cmpi ne, %1, %c0_i32_0 : i32
    scf.if %2 {
      %c0_177 = arith.constant 0 : index
      %c0_178 = arith.constant 0 : index
      %485 = vector.load %arg1[%c0_177, %c0_178] : memref<8x128xf32, #tpu.memory_space<vmem>>, vector<8x128xf32>
      %c0_179 = arith.constant 0 : index
      %c0_180 = arith.constant 0 : index
      %486 = vector.load %arg27[%c0_179, %c0_180] : memref<8x128xf32, #tpu.memory_space<vmem>>, vector<8x128xf32>
      tpu.vector_store %arg27[%c0_179, %c0_180], %485 {strides = array<i32>} : memref<8x128xf32, #tpu.memory_space<vmem>>, vector<8x128xf32>,
    } else {
    }
    %c0 = arith.constant 0 : index
    %c0_1 = arith.constant 0 : index
    %3 = vector.load %arg27[%c0, %c0_1] : memref<8x128xf32, #tpu.memory_space<vmem>>, vector<8x128xf32>
    %c0_2 = arith.constant 0 : index
    %c0_3 = arith.constant 0 : index
    %4 = vector.load %arg2[%c0_2, %c0_3] : memref<8x128xf32, #tpu.memory_space<vmem>>, vector<8x128xf32>
    %c0_4 = arith.constant 0 : index
    %c0_5 = arith.constant 0 : index
    %c0_6 = arith.constant 0 : index
    %5 = vector.load %arg7[%c0_4, %c0_5, %c0_6] : memref<1x1x128xf32, #tpu.memory_space<vmem>>, vector<1x1x128xf32>
    %6 = vector.shape_cast %5 : vector<1x1x128xf32> to vector<1x128xf32>
    %c0_7 = arith.constant 0 : index
    %c0_8 = arith.constant 0 : index
    %c0_9 = arith.constant 0 : index
    %7 = vector.load %arg8[%c0_7, %c0_8, %c0_9] : memref<1x1x128xf32, #tpu.memory_space<vmem>>, vector<1x1x128xf32>
    %8 = vector.shape_cast %7 : vector<1x1x128xf32> to vector<1x128xf32>
    %cst = arith.constant dense<0.000000e+00> : vector<8xf32>
    %9 = vector.multi_reduction <add>, %3, %cst [1] : vector<8x128xf32> to vector<8xf32>
    %10 = vector.shape_cast %9 : vector<8xf32> to vector<8x1xf32>
    %cst_10 = arith.constant 1.280000e+02 : f32
    %11 = vector.broadcast %cst_10 : f32 to vector<8x1xf32>
    %12 = arith.divf %10, %11 : vector<8x1xf32>
    %13 = vector.broadcast %12 : vector<8x1xf32> to vector<8x128xf32>
    %14 = arith.subf %3, %13 : vector<8x128xf32>
    %15 = arith.mulf %14, %14 : vector<8x128xf32>
    %cst_11 = arith.constant dense<0.000000e+00> : vector<8xf32>
    %16 = vector.multi_reduction <add>, %15, %cst_11 [1] : vector<8x128xf32> to vector<8xf32>
    %17 = vector.shape_cast %16 : vector<8xf32> to vector<8x1xf32>
    %cst_12 = arith.constant 0.00787401571 : f32
    %18 = vector.broadcast %cst_12 : f32 to vector<8x1xf32>
    %19 = arith.mulf %17, %18 : vector<8x1xf32>
    %20 = math.sqrt %19 : vector<8x1xf32>
    %cst_13 = arith.constant 9.99999997E-7 : f32
    %21 = vector.broadcast %cst_13 : f32 to vector<8x1xf32>
    %22 = arith.addf %21, %20 : vector<8x1xf32>
    %23 = tpu.reciprocal %22 : vector<8x1xf32> -> vector<8x1xf32>
    %24 = vector.broadcast %23 : vector<8x1xf32> to vector<8x128xf32>
    %25 = arith.mulf %14, %24 : vector<8x128xf32>
    %26 = vector.broadcast %6 : vector<1x128xf32> to vector<8x128xf32>
    %27 = arith.mulf %26, %25 : vector<8x128xf32>
    %28 = vector.broadcast %8 : vector<1x128xf32> to vector<8x128xf32>
    %29 = arith.addf %27, %28 : vector<8x128xf32>
    %c0_14 = arith.constant 0 : index
    %c0_15 = arith.constant 0 : index
    %c0_16 = arith.constant 0 : index
    %30 = vector.load %arg9[%c0_14, %c0_15, %c0_16] : memref<1x128x384xf32, #tpu.memory_space<vmem>>, vector<1x128x384xf32>
    %31 = vector.shape_cast %30 : vector<1x128x384xf32> to vector<128x384xf32>
    %cst_17 = arith.constant dense<0.000000e+00> : vector<8x384xf32>
    %32 = tpu.matmul %29, %31, %cst_17 {dimension_numbers = #tpu.dot_dimension_numbers<[1], [0], [0], [1], [0, 0, 1, 1], [], []>} : vector<8x128xf32>, vector<128x384xf32>, vector<8x384xf32> -> vector<8x384xf32>
    %c0_18 = arith.constant 0 : index
    %c0_19 = arith.constant 0 : index
    %c0_20 = arith.constant 0 : index
    %33 = vector.load %arg10[%c0_18, %c0_19, %c0_20] : memref<1x1x384xf32, #tpu.memory_space<vmem>>, vector<1x1x384xf32>
    %34 = vector.shape_cast %33 : vector<1x1x384xf32> to vector<1x384xf32>
    %35 = vector.broadcast %34 : vector<1x384xf32> to vector<8x384xf32>
    %36 = arith.addf %32, %35 : vector<8x384xf32>
    %37 = vector.extract_strided_slice %36 {offsets = [0, 0], sizes = [8, 128], strides = [1, 1]} : vector<8x384xf32> to vector<8x128xf32>
    %cst_21 = arith.constant 2.500000e-01 : f32
    %38 = vector.broadcast %cst_21 : f32 to vector<8x128xf32>
    %39 = arith.mulf %37, %38 : vector<8x128xf32>
    %40 = vector.extract_strided_slice %36 {offsets = [0, 128], sizes = [8, 128], strides = [1, 1]} : vector<8x384xf32> to vector<8x128xf32>
    %41 = vector.extract_strided_slice %36 {offsets = [0, 256], sizes = [8, 128], strides = [1, 1]} : vector<8x384xf32> to vector<8x128xf32>
    %c0_22 = arith.constant 0 : index
    %c0_23 = arith.constant 0 : index
    %c0_24 = arith.constant 0 : index
    %42 = vector.load %arg3[%c0_22, %c0_23, %c0_24] : memref<8x8x8xf32, #tpu.memory_space<vmem>>, vector<8x8x8xf32>
    %c0_25 = arith.constant 0 : index
    %c0_26 = arith.constant 0 : index
    %c0_27 = arith.constant 0 : index
    %43 = vector.load %arg11[%c0_25, %c0_26, %c0_27] : memref<1x128x128xf32, #tpu.memory_space<vmem>>, vector<1x128x128xf32>
    %44 = vector.shape_cast %43 : vector<1x128x128xf32> to vector<128x128xf32>
    %c0_28 = arith.constant 0 : index
    %c0_29 = arith.constant 0 : index
    %c0_30 = arith.constant 0 : index
    %45 = vector.load %arg12[%c0_28, %c0_29, %c0_30] : memref<1x1x128xf32, #tpu.memory_space<vmem>>, vector<1x1x128xf32>
    %46 = vector.shape_cast %45 : vector<1x1x128xf32> to vector<1x128xf32>
    %cst_31 = arith.constant 0.000000e+00 : f32
    %47 = vector.broadcast %cst_31 : f32 to vector<8x128xf32>
    %48 = vector.extract_strided_slice %39 {offsets = [0, 0], sizes = [8, 16], strides = [1, 1]} : vector<8x128xf32> to vector<8x16xf32>
    %49 = vector.extract_strided_slice %40 {offsets = [0, 0], sizes = [8, 16], strides = [1, 1]} : vector<8x128xf32> to vector<8x16xf32>
    %50 = vector.extract_strided_slice %41 {offsets = [0, 0], sizes = [8, 16], strides = [1, 1]} : vector<8x128xf32> to vector<8x16xf32>
    %cst_32 = arith.constant dense<0.000000e+00> : vector<8x8xf32>
    %51 = tpu.matmul %48, %49, %cst_32 {dimension_numbers = #tpu.dot_dimension_numbers<[1], [1], [0], [0], [0, 0, 1, 0], [], []>} : vector<8x16xf32>, vector<8x16xf32>, vector<8x8xf32> -> vector<8x8xf32>
    %52 = vector.extract_strided_slice %42 {offsets = [0, 0, 0], sizes = [1, 8, 8], strides = [1, 1, 1]} : vector<8x8x8xf32> to vector<1x8x8xf32>
    %53 = vector.shape_cast %52 : vector<1x8x8xf32> to vector<8x8xf32>
    %54 = arith.addf %51, %53 : vector<8x8xf32>
    %cst_33 = arith.constant dense<0xFF800000> : vector<8xf32>
    %55 = vector.multi_reduction <maximumf>, %54, %cst_33 [1] : vector<8x8xf32> to vector<8xf32>
    %56 = vector.shape_cast %55 : vector<8xf32> to vector<8x1xf32>
    %57 = vector.broadcast %56 : vector<8x1xf32> to vector<8x8xf32>
    %58 = arith.subf %54, %57 : vector<8x8xf32>
    %59 = math.exp %58 : vector<8x8xf32>
    %cst_34 = arith.constant dense<0.000000e+00> : vector<8xf32>
    %60 = vector.multi_reduction <add>, %59, %cst_34 [1] : vector<8x8xf32> to vector<8xf32>
    %61 = vector.shape_cast %60 : vector<8xf32> to vector<8x1xf32>
    %62 = tpu.reciprocal %61 {approx = true} : vector<8x1xf32> -> vector<8x1xf32>
    %63 = vector.broadcast %62 : vector<8x1xf32> to vector<8x8xf32>
    %64 = arith.mulf %59, %63 : vector<8x8xf32>
    %cst_35 = arith.constant dense<0.000000e+00> : vector<8x16xf32>
    %65 = tpu.matmul %64, %50, %cst_35 {dimension_numbers = #tpu.dot_dimension_numbers<[1], [0], [0], [1], [0, 0, 1, 1], [], []>} : vector<8x8xf32>, vector<8x16xf32>, vector<8x16xf32> -> vector<8x16xf32>
    %66 = vector.extract_strided_slice %44 {offsets = [0, 0], sizes = [16, 128], strides = [1, 1]} : vector<128x128xf32> to vector<16x128xf32>
    %cst_36 = arith.constant dense<0.000000e+00> : vector<8x128xf32>
    %67 = tpu.matmul %65, %66, %cst_36 {dimension_numbers = #tpu.dot_dimension_numbers<[1], [0], [0], [1], [0, 0, 1, 1], [], []>} : vector<8x16xf32>, vector<16x128xf32>, vector<8x128xf32> -> vector<8x128xf32>
    %68 = arith.addf %47, %67 : vector<8x128xf32>
    %69 = vector.extract_strided_slice %39 {offsets = [0, 16], sizes = [8, 16], strides = [1, 1]} : vector<8x128xf32> to vector<8x16xf32>
    %70 = vector.extract_strided_slice %40 {offsets = [0, 16], sizes = [8, 16], strides = [1, 1]} : vector<8x128xf32> to vector<8x16xf32>
    %71 = vector.extract_strided_slice %41 {offsets = [0, 16], sizes = [8, 16], strides = [1, 1]} : vector<8x128xf32> to vector<8x16xf32>
    %cst_37 = arith.constant dense<0.000000e+00> : vector<8x8xf32>
    %72 = tpu.matmul %69, %70, %cst_37 {dimension_numbers = #tpu.dot_dimension_numbers<[1], [1], [0], [0], [0, 0, 1, 0], [], []>} : vector<8x16xf32>, vector<8x16xf32>, vector<8x8xf32> -> vector<8x8xf32>
    %73 = vector.extract_strided_slice %42 {offsets = [1, 0, 0], sizes = [1, 8, 8], strides = [1, 1, 1]} : vector<8x8x8xf32> to vector<1x8x8xf32>
    %74 = vector.shape_cast %73 : vector<1x8x8xf32> to vector<8x8xf32>
    %75 = arith.addf %72, %74 : vector<8x8xf32>
    %cst_38 = arith.constant dense<0xFF800000> : vector<8xf32>
    %76 = vector.multi_reduction <maximumf>, %75, %cst_38 [1] : vector<8x8xf32> to vector<8xf32>
    %77 = vector.shape_cast %76 : vector<8xf32> to vector<8x1xf32>
    %78 = vector.broadcast %77 : vector<8x1xf32> to vector<8x8xf32>
    %79 = arith.subf %75, %78 : vector<8x8xf32>
    %80 = math.exp %79 : vector<8x8xf32>
    %cst_39 = arith.constant dense<0.000000e+00> : vector<8xf32>
    %81 = vector.multi_reduction <add>, %80, %cst_39 [1] : vector<8x8xf32> to vector<8xf32>
    %82 = vector.shape_cast %81 : vector<8xf32> to vector<8x1xf32>
    %83 = tpu.reciprocal %82 {approx = true} : vector<8x1xf32> -> vector<8x1xf32>
    %84 = vector.broadcast %83 : vector<8x1xf32> to vector<8x8xf32>
    %85 = arith.mulf %80, %84 : vector<8x8xf32>
    %cst_40 = arith.constant dense<0.000000e+00> : vector<8x16xf32>
    %86 = tpu.matmul %85, %71, %cst_40 {dimension_numbers = #tpu.dot_dimension_numbers<[1], [0], [0], [1], [0, 0, 1, 1], [], []>} : vector<8x8xf32>, vector<8x16xf32>, vector<8x16xf32> -> vector<8x16xf32>
    %87 = vector.extract_strided_slice %44 {offsets = [16, 0], sizes = [16, 128], strides = [1, 1]} : vector<128x128xf32> to vector<16x128xf32>
    %cst_41 = arith.constant dense<0.000000e+00> : vector<8x128xf32>
    %88 = tpu.matmul %86, %87, %cst_41 {dimension_numbers = #tpu.dot_dimension_numbers<[1], [0], [0], [1], [0, 0, 1, 1], [], []>} : vector<8x16xf32>, vector<16x128xf32>, vector<8x128xf32> -> vector<8x128xf32>
    %89 = arith.addf %68, %88 : vector<8x128xf32>
    %90 = vector.extract_strided_slice %39 {offsets = [0, 32], sizes = [8, 16], strides = [1, 1]} : vector<8x128xf32> to vector<8x16xf32>
    %91 = vector.extract_strided_slice %40 {offsets = [0, 32], sizes = [8, 16], strides = [1, 1]} : vector<8x128xf32> to vector<8x16xf32>
    %92 = vector.extract_strided_slice %41 {offsets = [0, 32], sizes = [8, 16], strides = [1, 1]} : vector<8x128xf32> to vector<8x16xf32>
    %cst_42 = arith.constant dense<0.000000e+00> : vector<8x8xf32>
    %93 = tpu.matmul %90, %91, %cst_42 {dimension_numbers = #tpu.dot_dimension_numbers<[1], [1], [0], [0], [0, 0, 1, 0], [], []>} : vector<8x16xf32>, vector<8x16xf32>, vector<8x8xf32> -> vector<8x8xf32>
    %94 = vector.extract_strided_slice %42 {offsets = [2, 0, 0], sizes = [1, 8, 8], strides = [1, 1, 1]} : vector<8x8x8xf32> to vector<1x8x8xf32>
    %95 = vector.shape_cast %94 : vector<1x8x8xf32> to vector<8x8xf32>
    %96 = arith.addf %93, %95 : vector<8x8xf32>
    %cst_43 = arith.constant dense<0xFF800000> : vector<8xf32>
    %97 = vector.multi_reduction <maximumf>, %96, %cst_43 [1] : vector<8x8xf32> to vector<8xf32>
    %98 = vector.shape_cast %97 : vector<8xf32> to vector<8x1xf32>
    %99 = vector.broadcast %98 : vector<8x1xf32> to vector<8x8xf32>
    %100 = arith.subf %96, %99 : vector<8x8xf32>
    %101 = math.exp %100 : vector<8x8xf32>
    %cst_44 = arith.constant dense<0.000000e+00> : vector<8xf32>
    %102 = vector.multi_reduction <add>, %101, %cst_44 [1] : vector<8x8xf32> to vector<8xf32>
    %103 = vector.shape_cast %102 : vector<8xf32> to vector<8x1xf32>
    %104 = tpu.reciprocal %103 {approx = true} : vector<8x1xf32> -> vector<8x1xf32>
    %105 = vector.broadcast %104 : vector<8x1xf32> to vector<8x8xf32>
    %106 = arith.mulf %101, %105 : vector<8x8xf32>
    %cst_45 = arith.constant dense<0.000000e+00> : vector<8x16xf32>
    %107 = tpu.matmul %106, %92, %cst_45 {dimension_numbers = #tpu.dot_dimension_numbers<[1], [0], [0], [1], [0, 0, 1, 1], [], []>} : vector<8x8xf32>, vector<8x16xf32>, vector<8x16xf32> -> vector<8x16xf32>
    %108 = vector.extract_strided_slice %44 {offsets = [32, 0], sizes = [16, 128], strides = [1, 1]} : vector<128x128xf32> to vector<16x128xf32>
    %cst_46 = arith.constant dense<0.000000e+00> : vector<8x128xf32>
    %109 = tpu.matmul %107, %108, %cst_46 {dimension_numbers = #tpu.dot_dimension_numbers<[1], [0], [0], [1], [0, 0, 1, 1], [], []>} : vector<8x16xf32>, vector<16x128xf32>, vector<8x128xf32> -> vector<8x128xf32>
    %110 = arith.addf %89, %109 : vector<8x128xf32>
    %111 = vector.extract_strided_slice %39 {offsets = [0, 48], sizes = [8, 16], strides = [1, 1]} : vector<8x128xf32> to vector<8x16xf32>
    %112 = vector.extract_strided_slice %40 {offsets = [0, 48], sizes = [8, 16], strides = [1, 1]} : vector<8x128xf32> to vector<8x16xf32>
    %113 = vector.extract_strided_slice %41 {offsets = [0, 48], sizes = [8, 16], strides = [1, 1]} : vector<8x128xf32> to vector<8x16xf32>
    %cst_47 = arith.constant dense<0.000000e+00> : vector<8x8xf32>
    %114 = tpu.matmul %111, %112, %cst_47 {dimension_numbers = #tpu.dot_dimension_numbers<[1], [1], [0], [0], [0, 0, 1, 0], [], []>} : vector<8x16xf32>, vector<8x16xf32>, vector<8x8xf32> -> vector<8x8xf32>
    %115 = vector.extract_strided_slice %42 {offsets = [3, 0, 0], sizes = [1, 8, 8], strides = [1, 1, 1]} : vector<8x8x8xf32> to vector<1x8x8xf32>
    %116 = vector.shape_cast %115 : vector<1x8x8xf32> to vector<8x8xf32>
    %117 = arith.addf %114, %116 : vector<8x8xf32>
    %cst_48 = arith.constant dense<0xFF800000> : vector<8xf32>
    %118 = vector.multi_reduction <maximumf>, %117, %cst_48 [1] : vector<8x8xf32> to vector<8xf32>
    %119 = vector.shape_cast %118 : vector<8xf32> to vector<8x1xf32>
    %120 = vector.broadcast %119 : vector<8x1xf32> to vector<8x8xf32>
    %121 = arith.subf %117, %120 : vector<8x8xf32>
    %122 = math.exp %121 : vector<8x8xf32>
    %cst_49 = arith.constant dense<0.000000e+00> : vector<8xf32>
    %123 = vector.multi_reduction <add>, %122, %cst_49 [1] : vector<8x8xf32> to vector<8xf32>
    %124 = vector.shape_cast %123 : vector<8xf32> to vector<8x1xf32>
    %125 = tpu.reciprocal %124 {approx = true} : vector<8x1xf32> -> vector<8x1xf32>
    %126 = vector.broadcast %125 : vector<8x1xf32> to vector<8x8xf32>
    %127 = arith.mulf %122, %126 : vector<8x8xf32>
    %cst_50 = arith.constant dense<0.000000e+00> : vector<8x16xf32>
    %128 = tpu.matmul %127, %113, %cst_50 {dimension_numbers = #tpu.dot_dimension_numbers<[1], [0], [0], [1], [0, 0, 1, 1], [], []>} : vector<8x8xf32>, vector<8x16xf32>, vector<8x16xf32> -> vector<8x16xf32>
    %129 = vector.extract_strided_slice %44 {offsets = [48, 0], sizes = [16, 128], strides = [1, 1]} : vector<128x128xf32> to vector<16x128xf32>
    %cst_51 = arith.constant dense<0.000000e+00> : vector<8x128xf32>
    %130 = tpu.matmul %128, %129, %cst_51 {dimension_numbers = #tpu.dot_dimension_numbers<[1], [0], [0], [1], [0, 0, 1, 1], [], []>} : vector<8x16xf32>, vector<16x128xf32>, vector<8x128xf32> -> vector<8x128xf32>
    %131 = arith.addf %110, %130 : vector<8x128xf32>
    %132 = vector.extract_strided_slice %39 {offsets = [0, 64], sizes = [8, 16], strides = [1, 1]} : vector<8x128xf32> to vector<8x16xf32>
    %133 = vector.extract_strided_slice %40 {offsets = [0, 64], sizes = [8, 16], strides = [1, 1]} : vector<8x128xf32> to vector<8x16xf32>
    %134 = vector.extract_strided_slice %41 {offsets = [0, 64], sizes = [8, 16], strides = [1, 1]} : vector<8x128xf32> to vector<8x16xf32>
    %cst_52 = arith.constant dense<0.000000e+00> : vector<8x8xf32>
    %135 = tpu.matmul %132, %133, %cst_52 {dimension_numbers = #tpu.dot_dimension_numbers<[1], [1], [0], [0], [0, 0, 1, 0], [], []>} : vector<8x16xf32>, vector<8x16xf32>, vector<8x8xf32> -> vector<8x8xf32>
    %136 = vector.extract_strided_slice %42 {offsets = [4, 0, 0], sizes = [1, 8, 8], strides = [1, 1, 1]} : vector<8x8x8xf32> to vector<1x8x8xf32>
    %137 = vector.shape_cast %136 : vector<1x8x8xf32> to vector<8x8xf32>
    %138 = arith.addf %135, %137 : vector<8x8xf32>
    %cst_53 = arith.constant dense<0xFF800000> : vector<8xf32>
    %139 = vector.multi_reduction <maximumf>, %138, %cst_53 [1] : vector<8x8xf32> to vector<8xf32>
    %140 = vector.shape_cast %139 : vector<8xf32> to vector<8x1xf32>
    %141 = vector.broadcast %140 : vector<8x1xf32> to vector<8x8xf32>
    %142 = arith.subf %138, %141 : vector<8x8xf32>
    %143 = math.exp %142 : vector<8x8xf32>
    %cst_54 = arith.constant dense<0.000000e+00> : vector<8xf32>
    %144 = vector.multi_reduction <add>, %143, %cst_54 [1] : vector<8x8xf32> to vector<8xf32>
    %145 = vector.shape_cast %144 : vector<8xf32> to vector<8x1xf32>
    %146 = tpu.reciprocal %145 {approx = true} : vector<8x1xf32> -> vector<8x1xf32>
    %147 = vector.broadcast %146 : vector<8x1xf32> to vector<8x8xf32>
    %148 = arith.mulf %143, %147 : vector<8x8xf32>
    %cst_55 = arith.constant dense<0.000000e+00> : vector<8x16xf32>
    %149 = tpu.matmul %148, %134, %cst_55 {dimension_numbers = #tpu.dot_dimension_numbers<[1], [0], [0], [1], [0, 0, 1, 1], [], []>} : vector<8x8xf32>, vector<8x16xf32>, vector<8x16xf32> -> vector<8x16xf32>
    %150 = vector.extract_strided_slice %44 {offsets = [64, 0], sizes = [16, 128], strides = [1, 1]} : vector<128x128xf32> to vector<16x128xf32>
    %cst_56 = arith.constant dense<0.000000e+00> : vector<8x128xf32>
    %151 = tpu.matmul %149, %150, %cst_56 {dimension_numbers = #tpu.dot_dimension_numbers<[1], [0], [0], [1], [0, 0, 1, 1], [], []>} : vector<8x16xf32>, vector<16x128xf32>, vector<8x128xf32> -> vector<8x128xf32>
    %152 = arith.addf %131, %151 : vector<8x128xf32>
    %153 = vector.extract_strided_slice %39 {offsets = [0, 80], sizes = [8, 16], strides = [1, 1]} : vector<8x128xf32> to vector<8x16xf32>
    %154 = vector.extract_strided_slice %40 {offsets = [0, 80], sizes = [8, 16], strides = [1, 1]} : vector<8x128xf32> to vector<8x16xf32>
    %155 = vector.extract_strided_slice %41 {offsets = [0, 80], sizes = [8, 16], strides = [1, 1]} : vector<8x128xf32> to vector<8x16xf32>
    %cst_57 = arith.constant dense<0.000000e+00> : vector<8x8xf32>
    %156 = tpu.matmul %153, %154, %cst_57 {dimension_numbers = #tpu.dot_dimension_numbers<[1], [1], [0], [0], [0, 0, 1, 0], [], []>} : vector<8x16xf32>, vector<8x16xf32>, vector<8x8xf32> -> vector<8x8xf32>
    %157 = vector.extract_strided_slice %42 {offsets = [5, 0, 0], sizes = [1, 8, 8], strides = [1, 1, 1]} : vector<8x8x8xf32> to vector<1x8x8xf32>
    %158 = vector.shape_cast %157 : vector<1x8x8xf32> to vector<8x8xf32>
    %159 = arith.addf %156, %158 : vector<8x8xf32>
    %cst_58 = arith.constant dense<0xFF800000> : vector<8xf32>
    %160 = vector.multi_reduction <maximumf>, %159, %cst_58 [1] : vector<8x8xf32> to vector<8xf32>
    %161 = vector.shape_cast %160 : vector<8xf32> to vector<8x1xf32>
    %162 = vector.broadcast %161 : vector<8x1xf32> to vector<8x8xf32>
    %163 = arith.subf %159, %162 : vector<8x8xf32>
    %164 = math.exp %163 : vector<8x8xf32>
    %cst_59 = arith.constant dense<0.000000e+00> : vector<8xf32>
    %165 = vector.multi_reduction <add>, %164, %cst_59 [1] : vector<8x8xf32> to vector<8xf32>
    %166 = vector.shape_cast %165 : vector<8xf32> to vector<8x1xf32>
    %167 = tpu.reciprocal %166 {approx = true} : vector<8x1xf32> -> vector<8x1xf32>
    %168 = vector.broadcast %167 : vector<8x1xf32> to vector<8x8xf32>
    %169 = arith.mulf %164, %168 : vector<8x8xf32>
    %cst_60 = arith.constant dense<0.000000e+00> : vector<8x16xf32>
    %170 = tpu.matmul %169, %155, %cst_60 {dimension_numbers = #tpu.dot_dimension_numbers<[1], [0], [0], [1], [0, 0, 1, 1], [], []>} : vector<8x8xf32>, vector<8x16xf32>, vector<8x16xf32> -> vector<8x16xf32>
    %171 = vector.extract_strided_slice %44 {offsets = [80, 0], sizes = [16, 128], strides = [1, 1]} : vector<128x128xf32> to vector<16x128xf32>
    %cst_61 = arith.constant dense<0.000000e+00> : vector<8x128xf32>
    %172 = tpu.matmul %170, %171, %cst_61 {dimension_numbers = #tpu.dot_dimension_numbers<[1], [0], [0], [1], [0, 0, 1, 1], [], []>} : vector<8x16xf32>, vector<16x128xf32>, vector<8x128xf32> -> vector<8x128xf32>
    %173 = arith.addf %152, %172 : vector<8x128xf32>
    %174 = vector.extract_strided_slice %39 {offsets = [0, 96], sizes = [8, 16], strides = [1, 1]} : vector<8x128xf32> to vector<8x16xf32>
    %175 = vector.extract_strided_slice %40 {offsets = [0, 96], sizes = [8, 16], strides = [1, 1]} : vector<8x128xf32> to vector<8x16xf32>
    %176 = vector.extract_strided_slice %41 {offsets = [0, 96], sizes = [8, 16], strides = [1, 1]} : vector<8x128xf32> to vector<8x16xf32>
    %cst_62 = arith.constant dense<0.000000e+00> : vector<8x8xf32>
    %177 = tpu.matmul %174, %175, %cst_62 {dimension_numbers = #tpu.dot_dimension_numbers<[1], [1], [0], [0], [0, 0, 1, 0], [], []>} : vector<8x16xf32>, vector<8x16xf32>, vector<8x8xf32> -> vector<8x8xf32>
    %178 = vector.extract_strided_slice %42 {offsets = [6, 0, 0], sizes = [1, 8, 8], strides = [1, 1, 1]} : vector<8x8x8xf32> to vector<1x8x8xf32>
    %179 = vector.shape_cast %178 : vector<1x8x8xf32> to vector<8x8xf32>
    %180 = arith.addf %177, %179 : vector<8x8xf32>
    %cst_63 = arith.constant dense<0xFF800000> : vector<8xf32>
    %181 = vector.multi_reduction <maximumf>, %180, %cst_63 [1] : vector<8x8xf32> to vector<8xf32>
    %182 = vector.shape_cast %181 : vector<8xf32> to vector<8x1xf32>
    %183 = vector.broadcast %182 : vector<8x1xf32> to vector<8x8xf32>
    %184 = arith.subf %180, %183 : vector<8x8xf32>
    %185 = math.exp %184 : vector<8x8xf32>
    %cst_64 = arith.constant dense<0.000000e+00> : vector<8xf32>
    %186 = vector.multi_reduction <add>, %185, %cst_64 [1] : vector<8x8xf32> to vector<8xf32>
    %187 = vector.shape_cast %186 : vector<8xf32> to vector<8x1xf32>
    %188 = tpu.reciprocal %187 {approx = true} : vector<8x1xf32> -> vector<8x1xf32>
    %189 = vector.broadcast %188 : vector<8x1xf32> to vector<8x8xf32>
    %190 = arith.mulf %185, %189 : vector<8x8xf32>
    %cst_65 = arith.constant dense<0.000000e+00> : vector<8x16xf32>
    %191 = tpu.matmul %190, %176, %cst_65 {dimension_numbers = #tpu.dot_dimension_numbers<[1], [0], [0], [1], [0, 0, 1, 1], [], []>} : vector<8x8xf32>, vector<8x16xf32>, vector<8x16xf32> -> vector<8x16xf32>
    %192 = vector.extract_strided_slice %44 {offsets = [96, 0], sizes = [16, 128], strides = [1, 1]} : vector<128x128xf32> to vector<16x128xf32>
    %cst_66 = arith.constant dense<0.000000e+00> : vector<8x128xf32>
    %193 = tpu.matmul %191, %192, %cst_66 {dimension_numbers = #tpu.dot_dimension_numbers<[1], [0], [0], [1], [0, 0, 1, 1], [], []>} : vector<8x16xf32>, vector<16x128xf32>, vector<8x128xf32> -> vector<8x128xf32>
    %194 = arith.addf %173, %193 : vector<8x128xf32>
    %195 = vector.extract_strided_slice %39 {offsets = [0, 112], sizes = [8, 16], strides = [1, 1]} : vector<8x128xf32> to vector<8x16xf32>
    %196 = vector.extract_strided_slice %40 {offsets = [0, 112], sizes = [8, 16], strides = [1, 1]} : vector<8x128xf32> to vector<8x16xf32>
    %197 = vector.extract_strided_slice %41 {offsets = [0, 112], sizes = [8, 16], strides = [1, 1]} : vector<8x128xf32> to vector<8x16xf32>
    %cst_67 = arith.constant dense<0.000000e+00> : vector<8x8xf32>
    %198 = tpu.matmul %195, %196, %cst_67 {dimension_numbers = #tpu.dot_dimension_numbers<[1], [1], [0], [0], [0, 0, 1, 0], [], []>} : vector<8x16xf32>, vector<8x16xf32>, vector<8x8xf32> -> vector<8x8xf32>
    %199 = vector.extract_strided_slice %42 {offsets = [7, 0, 0], sizes = [1, 8, 8], strides = [1, 1, 1]} : vector<8x8x8xf32> to vector<1x8x8xf32>
    %200 = vector.shape_cast %199 : vector<1x8x8xf32> to vector<8x8xf32>
    %201 = arith.addf %198, %200 : vector<8x8xf32>
    %cst_68 = arith.constant dense<0xFF800000> : vector<8xf32>
    %202 = vector.multi_reduction <maximumf>, %201, %cst_68 [1] : vector<8x8xf32> to vector<8xf32>
    %203 = vector.shape_cast %202 : vector<8xf32> to vector<8x1xf32>
    %204 = vector.broadcast %203 : vector<8x1xf32> to vector<8x8xf32>
    %205 = arith.subf %201, %204 : vector<8x8xf32>
    %206 = math.exp %205 : vector<8x8xf32>
    %cst_69 = arith.constant dense<0.000000e+00> : vector<8xf32>
    %207 = vector.multi_reduction <add>, %206, %cst_69 [1] : vector<8x8xf32> to vector<8xf32>
    %208 = vector.shape_cast %207 : vector<8xf32> to vector<8x1xf32>
    %209 = tpu.reciprocal %208 {approx = true} : vector<8x1xf32> -> vector<8x1xf32>
    %210 = vector.broadcast %209 : vector<8x1xf32> to vector<8x8xf32>
    %211 = arith.mulf %206, %210 : vector<8x8xf32>
    %cst_70 = arith.constant dense<0.000000e+00> : vector<8x16xf32>
    %212 = tpu.matmul %211, %197, %cst_70 {dimension_numbers = #tpu.dot_dimension_numbers<[1], [0], [0], [1], [0, 0, 1, 1], [], []>} : vector<8x8xf32>, vector<8x16xf32>, vector<8x16xf32> -> vector<8x16xf32>
    %213 = vector.extract_strided_slice %44 {offsets = [112, 0], sizes = [16, 128], strides = [1, 1]} : vector<128x128xf32> to vector<16x128xf32>
    %cst_71 = arith.constant dense<0.000000e+00> : vector<8x128xf32>
    %214 = tpu.matmul %212, %213, %cst_71 {dimension_numbers = #tpu.dot_dimension_numbers<[1], [0], [0], [1], [0, 0, 1, 1], [], []>} : vector<8x16xf32>, vector<16x128xf32>, vector<8x128xf32> -> vector<8x128xf32>
    %215 = arith.addf %194, %214 : vector<8x128xf32>
    %216 = vector.broadcast %46 : vector<1x128xf32> to vector<8x128xf32>
    %217 = arith.addf %215, %216 : vector<8x128xf32>
    %218 = arith.addf %3, %217 : vector<8x128xf32>
    %c0_72 = arith.constant 0 : index
    %c0_73 = arith.constant 0 : index
    %c0_74 = arith.constant 0 : index
    %219 = vector.load %arg13[%c0_72, %c0_73, %c0_74] : memref<1x1x128xf32, #tpu.memory_space<vmem>>, vector<1x1x128xf32>
    %220 = vector.shape_cast %219 : vector<1x1x128xf32> to vector<1x128xf32>
    %c0_75 = arith.constant 0 : index
    %c0_76 = arith.constant 0 : index
    %c0_77 = arith.constant 0 : index
    %221 = vector.load %arg14[%c0_75, %c0_76, %c0_77] : memref<1x1x128xf32, #tpu.memory_space<vmem>>, vector<1x1x128xf32>
    %222 = vector.shape_cast %221 : vector<1x1x128xf32> to vector<1x128xf32>
    %cst_78 = arith.constant dense<0.000000e+00> : vector<8xf32>
    %223 = vector.multi_reduction <add>, %218, %cst_78 [1] : vector<8x128xf32> to vector<8xf32>
    %224 = vector.shape_cast %223 : vector<8xf32> to vector<8x1xf32>
    %cst_79 = arith.constant 1.280000e+02 : f32
    %225 = vector.broadcast %cst_79 : f32 to vector<8x1xf32>
    %226 = arith.divf %224, %225 : vector<8x1xf32>
    %227 = vector.broadcast %226 : vector<8x1xf32> to vector<8x128xf32>
    %228 = arith.subf %218, %227 : vector<8x128xf32>
    %229 = arith.mulf %228, %228 : vector<8x128xf32>
    %cst_80 = arith.constant dense<0.000000e+00> : vector<8xf32>
    %230 = vector.multi_reduction <add>, %229, %cst_80 [1] : vector<8x128xf32> to vector<8xf32>
    %231 = vector.shape_cast %230 : vector<8xf32> to vector<8x1xf32>
    %cst_81 = arith.constant 0.00787401571 : f32
    %232 = vector.broadcast %cst_81 : f32 to vector<8x1xf32>
    %233 = arith.mulf %231, %232 : vector<8x1xf32>
    %234 = math.sqrt %233 : vector<8x1xf32>
    %cst_82 = arith.constant 9.99999997E-7 : f32
    %235 = vector.broadcast %cst_82 : f32 to vector<8x1xf32>
    %236 = arith.addf %235, %234 : vector<8x1xf32>
    %237 = tpu.reciprocal %236 : vector<8x1xf32> -> vector<8x1xf32>
    %238 = vector.broadcast %237 : vector<8x1xf32> to vector<8x128xf32>
    %239 = arith.mulf %228, %238 : vector<8x128xf32>
    %240 = vector.broadcast %220 : vector<1x128xf32> to vector<8x128xf32>
    %241 = arith.mulf %240, %239 : vector<8x128xf32>
    %242 = vector.broadcast %222 : vector<1x128xf32> to vector<8x128xf32>
    %243 = arith.addf %241, %242 : vector<8x128xf32>
    %c0_83 = arith.constant 0 : index
    %c0_84 = arith.constant 0 : index
    %c0_85 = arith.constant 0 : index
    %244 = vector.load %arg15[%c0_83, %c0_84, %c0_85] : memref<1x128x128xf32, #tpu.memory_space<vmem>>, vector<1x128x128xf32>
    %245 = vector.shape_cast %244 : vector<1x128x128xf32> to vector<128x128xf32>
    %cst_86 = arith.constant dense<0.000000e+00> : vector<8x128xf32>
    %246 = tpu.matmul %243, %245, %cst_86 {dimension_numbers = #tpu.dot_dimension_numbers<[1], [0], [0], [1], [0, 0, 1, 1], [], []>} : vector<8x128xf32>, vector<128x128xf32>, vector<8x128xf32> -> vector<8x128xf32>
    %c0_87 = arith.constant 0 : index
    %c0_88 = arith.constant 0 : index
    %c0_89 = arith.constant 0 : index
    %247 = vector.load %arg16[%c0_87, %c0_88, %c0_89] : memref<1x1x128xf32, #tpu.memory_space<vmem>>, vector<1x1x128xf32>
    %248 = vector.shape_cast %247 : vector<1x1x128xf32> to vector<1x128xf32>
    %249 = vector.broadcast %248 : vector<1x128xf32> to vector<8x128xf32>
    %250 = arith.addf %246, %249 : vector<8x128xf32>
    %cst_90 = arith.constant 2.500000e-01 : f32
    %251 = vector.broadcast %cst_90 : f32 to vector<8x128xf32>
    %252 = arith.mulf %250, %251 : vector<8x128xf32>
    %c0_91 = arith.constant 0 : index
    %c0_92 = arith.constant 0 : index
    %c0_93 = arith.constant 0 : index
    %253 = vector.load %arg17[%c0_91, %c0_92, %c0_93] : memref<1x128x256xf32, #tpu.memory_space<vmem>>, vector<1x128x256xf32>
    %254 = vector.shape_cast %253 : vector<1x128x256xf32> to vector<128x256xf32>
    %cst_94 = arith.constant dense<0.000000e+00> : vector<8x256xf32>
    %255 = tpu.matmul %4, %254, %cst_94 {dimension_numbers = #tpu.dot_dimension_numbers<[1], [0], [0], [1], [0, 0, 1, 1], [], []>} : vector<8x128xf32>, vector<128x256xf32>, vector<8x256xf32> -> vector<8x256xf32>
    %c0_95 = arith.constant 0 : index
    %c0_96 = arith.constant 0 : index
    %c0_97 = arith.constant 0 : index
    %256 = vector.load %arg18[%c0_95, %c0_96, %c0_97] : memref<1x1x256xf32, #tpu.memory_space<vmem>>, vector<1x1x256xf32>
    %257 = vector.shape_cast %256 : vector<1x1x256xf32> to vector<1x256xf32>
    %258 = vector.broadcast %257 : vector<1x256xf32> to vector<8x256xf32>
    %259 = arith.addf %255, %258 : vector<8x256xf32>
    %260 = vector.extract_strided_slice %259 {offsets = [0, 0], sizes = [8, 128], strides = [1, 1]} : vector<8x256xf32> to vector<8x128xf32>
    %261 = vector.extract_strided_slice %259 {offsets = [0, 128], sizes = [8, 128], strides = [1, 1]} : vector<8x256xf32> to vector<8x128xf32>
    %c0_98 = arith.constant 0 : index
    %c0_99 = arith.constant 0 : index
    %c0_100 = arith.constant 0 : index
    %262 = vector.load %arg4[%c0_98, %c0_99, %c0_100] : memref<8x8x8xf32, #tpu.memory_space<vmem>>, vector<8x8x8xf32>
    %c0_101 = arith.constant 0 : index
    %c0_102 = arith.constant 0 : index
    %c0_103 = arith.constant 0 : index
    %263 = vector.load %arg19[%c0_101, %c0_102, %c0_103] : memref<1x128x128xf32, #tpu.memory_space<vmem>>, vector<1x128x128xf32>
    %264 = vector.shape_cast %263 : vector<1x128x128xf32> to vector<128x128xf32>
    %c0_104 = arith.constant 0 : index
    %c0_105 = arith.constant 0 : index
    %c0_106 = arith.constant 0 : index
    %265 = vector.load %arg20[%c0_104, %c0_105, %c0_106] : memref<1x1x128xf32, #tpu.memory_space<vmem>>, vector<1x1x128xf32>
    %266 = vector.shape_cast %265 : vector<1x1x128xf32> to vector<1x128xf32>
    %cst_107 = arith.constant 0.000000e+00 : f32
    %267 = vector.broadcast %cst_107 : f32 to vector<8x128xf32>
    %268 = vector.extract_strided_slice %252 {offsets = [0, 0], sizes = [8, 16], strides = [1, 1]} : vector<8x128xf32> to vector<8x16xf32>
    %269 = vector.extract_strided_slice %260 {offsets = [0, 0], sizes = [8, 16], strides = [1, 1]} : vector<8x128xf32> to vector<8x16xf32>
    %270 = vector.extract_strided_slice %261 {offsets = [0, 0], sizes = [8, 16], strides = [1, 1]} : vector<8x128xf32> to vector<8x16xf32>
    %cst_108 = arith.constant dense<0.000000e+00> : vector<8x8xf32>
    %271 = tpu.matmul %268, %269, %cst_108 {dimension_numbers = #tpu.dot_dimension_numbers<[1], [1], [0], [0], [0, 0, 1, 0], [], []>} : vector<8x16xf32>, vector<8x16xf32>, vector<8x8xf32> -> vector<8x8xf32>
    %272 = vector.extract_strided_slice %262 {offsets = [0, 0, 0], sizes = [1, 8, 8], strides = [1, 1, 1]} : vector<8x8x8xf32> to vector<1x8x8xf32>
    %273 = vector.shape_cast %272 : vector<1x8x8xf32> to vector<8x8xf32>
    %274 = arith.addf %271, %273 : vector<8x8xf32>
    %cst_109 = arith.constant dense<0xFF800000> : vector<8xf32>
    %275 = vector.multi_reduction <maximumf>, %274, %cst_109 [1] : vector<8x8xf32> to vector<8xf32>
    %276 = vector.shape_cast %275 : vector<8xf32> to vector<8x1xf32>
    %277 = vector.broadcast %276 : vector<8x1xf32> to vector<8x8xf32>
    %278 = arith.subf %274, %277 : vector<8x8xf32>
    %279 = math.exp %278 : vector<8x8xf32>
    %cst_110 = arith.constant dense<0.000000e+00> : vector<8xf32>
    %280 = vector.multi_reduction <add>, %279, %cst_110 [1] : vector<8x8xf32> to vector<8xf32>
    %281 = vector.shape_cast %280 : vector<8xf32> to vector<8x1xf32>
    %282 = tpu.reciprocal %281 {approx = true} : vector<8x1xf32> -> vector<8x1xf32>
    %283 = vector.broadcast %282 : vector<8x1xf32> to vector<8x8xf32>
    %284 = arith.mulf %279, %283 : vector<8x8xf32>
    %cst_111 = arith.constant dense<0.000000e+00> : vector<8x16xf32>
    %285 = tpu.matmul %284, %270, %cst_111 {dimension_numbers = #tpu.dot_dimension_numbers<[1], [0], [0], [1], [0, 0, 1, 1], [], []>} : vector<8x8xf32>, vector<8x16xf32>, vector<8x16xf32> -> vector<8x16xf32>
    %286 = vector.extract_strided_slice %264 {offsets = [0, 0], sizes = [16, 128], strides = [1, 1]} : vector<128x128xf32> to vector<16x128xf32>
    %cst_112 = arith.constant dense<0.000000e+00> : vector<8x128xf32>
    %287 = tpu.matmul %285, %286, %cst_112 {dimension_numbers = #tpu.dot_dimension_numbers<[1], [0], [0], [1], [0, 0, 1, 1], [], []>} : vector<8x16xf32>, vector<16x128xf32>, vector<8x128xf32> -> vector<8x128xf32>
    %288 = arith.addf %267, %287 : vector<8x128xf32>
    %289 = vector.extract_strided_slice %252 {offsets = [0, 16], sizes = [8, 16], strides = [1, 1]} : vector<8x128xf32> to vector<8x16xf32>
    %290 = vector.extract_strided_slice %260 {offsets = [0, 16], sizes = [8, 16], strides = [1, 1]} : vector<8x128xf32> to vector<8x16xf32>
    %291 = vector.extract_strided_slice %261 {offsets = [0, 16], sizes = [8, 16], strides = [1, 1]} : vector<8x128xf32> to vector<8x16xf32>
    %cst_113 = arith.constant dense<0.000000e+00> : vector<8x8xf32>
    %292 = tpu.matmul %289, %290, %cst_113 {dimension_numbers = #tpu.dot_dimension_numbers<[1], [1], [0], [0], [0, 0, 1, 0], [], []>} : vector<8x16xf32>, vector<8x16xf32>, vector<8x8xf32> -> vector<8x8xf32>
    %293 = vector.extract_strided_slice %262 {offsets = [1, 0, 0], sizes = [1, 8, 8], strides = [1, 1, 1]} : vector<8x8x8xf32> to vector<1x8x8xf32>
    %294 = vector.shape_cast %293 : vector<1x8x8xf32> to vector<8x8xf32>
    %295 = arith.addf %292, %294 : vector<8x8xf32>
    %cst_114 = arith.constant dense<0xFF800000> : vector<8xf32>
    %296 = vector.multi_reduction <maximumf>, %295, %cst_114 [1] : vector<8x8xf32> to vector<8xf32>
    %297 = vector.shape_cast %296 : vector<8xf32> to vector<8x1xf32>
    %298 = vector.broadcast %297 : vector<8x1xf32> to vector<8x8xf32>
    %299 = arith.subf %295, %298 : vector<8x8xf32>
    %300 = math.exp %299 : vector<8x8xf32>
    %cst_115 = arith.constant dense<0.000000e+00> : vector<8xf32>
    %301 = vector.multi_reduction <add>, %300, %cst_115 [1] : vector<8x8xf32> to vector<8xf32>
    %302 = vector.shape_cast %301 : vector<8xf32> to vector<8x1xf32>
    %303 = tpu.reciprocal %302 {approx = true} : vector<8x1xf32> -> vector<8x1xf32>
    %304 = vector.broadcast %303 : vector<8x1xf32> to vector<8x8xf32>
    %305 = arith.mulf %300, %304 : vector<8x8xf32>
    %cst_116 = arith.constant dense<0.000000e+00> : vector<8x16xf32>
    %306 = tpu.matmul %305, %291, %cst_116 {dimension_numbers = #tpu.dot_dimension_numbers<[1], [0], [0], [1], [0, 0, 1, 1], [], []>} : vector<8x8xf32>, vector<8x16xf32>, vector<8x16xf32> -> vector<8x16xf32>
    %307 = vector.extract_strided_slice %264 {offsets = [16, 0], sizes = [16, 128], strides = [1, 1]} : vector<128x128xf32> to vector<16x128xf32>
    %cst_117 = arith.constant dense<0.000000e+00> : vector<8x128xf32>
    %308 = tpu.matmul %306, %307, %cst_117 {dimension_numbers = #tpu.dot_dimension_numbers<[1], [0], [0], [1], [0, 0, 1, 1], [], []>} : vector<8x16xf32>, vector<16x128xf32>, vector<8x128xf32> -> vector<8x128xf32>
    %309 = arith.addf %288, %308 : vector<8x128xf32>
    %310 = vector.extract_strided_slice %252 {offsets = [0, 32], sizes = [8, 16], strides = [1, 1]} : vector<8x128xf32> to vector<8x16xf32>
    %311 = vector.extract_strided_slice %260 {offsets = [0, 32], sizes = [8, 16], strides = [1, 1]} : vector<8x128xf32> to vector<8x16xf32>
    %312 = vector.extract_strided_slice %261 {offsets = [0, 32], sizes = [8, 16], strides = [1, 1]} : vector<8x128xf32> to vector<8x16xf32>
    %cst_118 = arith.constant dense<0.000000e+00> : vector<8x8xf32>
    %313 = tpu.matmul %310, %311, %cst_118 {dimension_numbers = #tpu.dot_dimension_numbers<[1], [1], [0], [0], [0, 0, 1, 0], [], []>} : vector<8x16xf32>, vector<8x16xf32>, vector<8x8xf32> -> vector<8x8xf32>
    %314 = vector.extract_strided_slice %262 {offsets = [2, 0, 0], sizes = [1, 8, 8], strides = [1, 1, 1]} : vector<8x8x8xf32> to vector<1x8x8xf32>
    %315 = vector.shape_cast %314 : vector<1x8x8xf32> to vector<8x8xf32>
    %316 = arith.addf %313, %315 : vector<8x8xf32>
    %cst_119 = arith.constant dense<0xFF800000> : vector<8xf32>
    %317 = vector.multi_reduction <maximumf>, %316, %cst_119 [1] : vector<8x8xf32> to vector<8xf32>
    %318 = vector.shape_cast %317 : vector<8xf32> to vector<8x1xf32>
    %319 = vector.broadcast %318 : vector<8x1xf32> to vector<8x8xf32>
    %320 = arith.subf %316, %319 : vector<8x8xf32>
    %321 = math.exp %320 : vector<8x8xf32>
    %cst_120 = arith.constant dense<0.000000e+00> : vector<8xf32>
    %322 = vector.multi_reduction <add>, %321, %cst_120 [1] : vector<8x8xf32> to vector<8xf32>
    %323 = vector.shape_cast %322 : vector<8xf32> to vector<8x1xf32>
    %324 = tpu.reciprocal %323 {approx = true} : vector<8x1xf32> -> vector<8x1xf32>
    %325 = vector.broadcast %324 : vector<8x1xf32> to vector<8x8xf32>
    %326 = arith.mulf %321, %325 : vector<8x8xf32>
    %cst_121 = arith.constant dense<0.000000e+00> : vector<8x16xf32>
    %327 = tpu.matmul %326, %312, %cst_121 {dimension_numbers = #tpu.dot_dimension_numbers<[1], [0], [0], [1], [0, 0, 1, 1], [], []>} : vector<8x8xf32>, vector<8x16xf32>, vector<8x16xf32> -> vector<8x16xf32>
    %328 = vector.extract_strided_slice %264 {offsets = [32, 0], sizes = [16, 128], strides = [1, 1]} : vector<128x128xf32> to vector<16x128xf32>
    %cst_122 = arith.constant dense<0.000000e+00> : vector<8x128xf32>
    %329 = tpu.matmul %327, %328, %cst_122 {dimension_numbers = #tpu.dot_dimension_numbers<[1], [0], [0], [1], [0, 0, 1, 1], [], []>} : vector<8x16xf32>, vector<16x128xf32>, vector<8x128xf32> -> vector<8x128xf32>
    %330 = arith.addf %309, %329 : vector<8x128xf32>
    %331 = vector.extract_strided_slice %252 {offsets = [0, 48], sizes = [8, 16], strides = [1, 1]} : vector<8x128xf32> to vector<8x16xf32>
    %332 = vector.extract_strided_slice %260 {offsets = [0, 48], sizes = [8, 16], strides = [1, 1]} : vector<8x128xf32> to vector<8x16xf32>
    %333 = vector.extract_strided_slice %261 {offsets = [0, 48], sizes = [8, 16], strides = [1, 1]} : vector<8x128xf32> to vector<8x16xf32>
    %cst_123 = arith.constant dense<0.000000e+00> : vector<8x8xf32>
    %334 = tpu.matmul %331, %332, %cst_123 {dimension_numbers = #tpu.dot_dimension_numbers<[1], [1], [0], [0], [0, 0, 1, 0], [], []>} : vector<8x16xf32>, vector<8x16xf32>, vector<8x8xf32> -> vector<8x8xf32>
    %335 = vector.extract_strided_slice %262 {offsets = [3, 0, 0], sizes = [1, 8, 8], strides = [1, 1, 1]} : vector<8x8x8xf32> to vector<1x8x8xf32>
    %336 = vector.shape_cast %335 : vector<1x8x8xf32> to vector<8x8xf32>
    %337 = arith.addf %334, %336 : vector<8x8xf32>
    %cst_124 = arith.constant dense<0xFF800000> : vector<8xf32>
    %338 = vector.multi_reduction <maximumf>, %337, %cst_124 [1] : vector<8x8xf32> to vector<8xf32>
    %339 = vector.shape_cast %338 : vector<8xf32> to vector<8x1xf32>
    %340 = vector.broadcast %339 : vector<8x1xf32> to vector<8x8xf32>
    %341 = arith.subf %337, %340 : vector<8x8xf32>
    %342 = math.exp %341 : vector<8x8xf32>
    %cst_125 = arith.constant dense<0.000000e+00> : vector<8xf32>
    %343 = vector.multi_reduction <add>, %342, %cst_125 [1] : vector<8x8xf32> to vector<8xf32>
    %344 = vector.shape_cast %343 : vector<8xf32> to vector<8x1xf32>
    %345 = tpu.reciprocal %344 {approx = true} : vector<8x1xf32> -> vector<8x1xf32>
    %346 = vector.broadcast %345 : vector<8x1xf32> to vector<8x8xf32>
    %347 = arith.mulf %342, %346 : vector<8x8xf32>
    %cst_126 = arith.constant dense<0.000000e+00> : vector<8x16xf32>
    %348 = tpu.matmul %347, %333, %cst_126 {dimension_numbers = #tpu.dot_dimension_numbers<[1], [0], [0], [1], [0, 0, 1, 1], [], []>} : vector<8x8xf32>, vector<8x16xf32>, vector<8x16xf32> -> vector<8x16xf32>
    %349 = vector.extract_strided_slice %264 {offsets = [48, 0], sizes = [16, 128], strides = [1, 1]} : vector<128x128xf32> to vector<16x128xf32>
    %cst_127 = arith.constant dense<0.000000e+00> : vector<8x128xf32>
    %350 = tpu.matmul %348, %349, %cst_127 {dimension_numbers = #tpu.dot_dimension_numbers<[1], [0], [0], [1], [0, 0, 1, 1], [], []>} : vector<8x16xf32>, vector<16x128xf32>, vector<8x128xf32> -> vector<8x128xf32>
    %351 = arith.addf %330, %350 : vector<8x128xf32>
    %352 = vector.extract_strided_slice %252 {offsets = [0, 64], sizes = [8, 16], strides = [1, 1]} : vector<8x128xf32> to vector<8x16xf32>
    %353 = vector.extract_strided_slice %260 {offsets = [0, 64], sizes = [8, 16], strides = [1, 1]} : vector<8x128xf32> to vector<8x16xf32>
    %354 = vector.extract_strided_slice %261 {offsets = [0, 64], sizes = [8, 16], strides = [1, 1]} : vector<8x128xf32> to vector<8x16xf32>
    %cst_128 = arith.constant dense<0.000000e+00> : vector<8x8xf32>
    %355 = tpu.matmul %352, %353, %cst_128 {dimension_numbers = #tpu.dot_dimension_numbers<[1], [1], [0], [0], [0, 0, 1, 0], [], []>} : vector<8x16xf32>, vector<8x16xf32>, vector<8x8xf32> -> vector<8x8xf32>
    %356 = vector.extract_strided_slice %262 {offsets = [4, 0, 0], sizes = [1, 8, 8], strides = [1, 1, 1]} : vector<8x8x8xf32> to vector<1x8x8xf32>
    %357 = vector.shape_cast %356 : vector<1x8x8xf32> to vector<8x8xf32>
    %358 = arith.addf %355, %357 : vector<8x8xf32>
    %cst_129 = arith.constant dense<0xFF800000> : vector<8xf32>
    %359 = vector.multi_reduction <maximumf>, %358, %cst_129 [1] : vector<8x8xf32> to vector<8xf32>
    %360 = vector.shape_cast %359 : vector<8xf32> to vector<8x1xf32>
    %361 = vector.broadcast %360 : vector<8x1xf32> to vector<8x8xf32>
    %362 = arith.subf %358, %361 : vector<8x8xf32>
    %363 = math.exp %362 : vector<8x8xf32>
    %cst_130 = arith.constant dense<0.000000e+00> : vector<8xf32>
    %364 = vector.multi_reduction <add>, %363, %cst_130 [1] : vector<8x8xf32> to vector<8xf32>
    %365 = vector.shape_cast %364 : vector<8xf32> to vector<8x1xf32>
    %366 = tpu.reciprocal %365 {approx = true} : vector<8x1xf32> -> vector<8x1xf32>
    %367 = vector.broadcast %366 : vector<8x1xf32> to vector<8x8xf32>
    %368 = arith.mulf %363, %367 : vector<8x8xf32>
    %cst_131 = arith.constant dense<0.000000e+00> : vector<8x16xf32>
    %369 = tpu.matmul %368, %354, %cst_131 {dimension_numbers = #tpu.dot_dimension_numbers<[1], [0], [0], [1], [0, 0, 1, 1], [], []>} : vector<8x8xf32>, vector<8x16xf32>, vector<8x16xf32> -> vector<8x16xf32>
    %370 = vector.extract_strided_slice %264 {offsets = [64, 0], sizes = [16, 128], strides = [1, 1]} : vector<128x128xf32> to vector<16x128xf32>
    %cst_132 = arith.constant dense<0.000000e+00> : vector<8x128xf32>
    %371 = tpu.matmul %369, %370, %cst_132 {dimension_numbers = #tpu.dot_dimension_numbers<[1], [0], [0], [1], [0, 0, 1, 1], [], []>} : vector<8x16xf32>, vector<16x128xf32>, vector<8x128xf32> -> vector<8x128xf32>
    %372 = arith.addf %351, %371 : vector<8x128xf32>
    %373 = vector.extract_strided_slice %252 {offsets = [0, 80], sizes = [8, 16], strides = [1, 1]} : vector<8x128xf32> to vector<8x16xf32>
    %374 = vector.extract_strided_slice %260 {offsets = [0, 80], sizes = [8, 16], strides = [1, 1]} : vector<8x128xf32> to vector<8x16xf32>
    %375 = vector.extract_strided_slice %261 {offsets = [0, 80], sizes = [8, 16], strides = [1, 1]} : vector<8x128xf32> to vector<8x16xf32>
    %cst_133 = arith.constant dense<0.000000e+00> : vector<8x8xf32>
    %376 = tpu.matmul %373, %374, %cst_133 {dimension_numbers = #tpu.dot_dimension_numbers<[1], [1], [0], [0], [0, 0, 1, 0], [], []>} : vector<8x16xf32>, vector<8x16xf32>, vector<8x8xf32> -> vector<8x8xf32>
    %377 = vector.extract_strided_slice %262 {offsets = [5, 0, 0], sizes = [1, 8, 8], strides = [1, 1, 1]} : vector<8x8x8xf32> to vector<1x8x8xf32>
    %378 = vector.shape_cast %377 : vector<1x8x8xf32> to vector<8x8xf32>
    %379 = arith.addf %376, %378 : vector<8x8xf32>
    %cst_134 = arith.constant dense<0xFF800000> : vector<8xf32>
    %380 = vector.multi_reduction <maximumf>, %379, %cst_134 [1] : vector<8x8xf32> to vector<8xf32>
    %381 = vector.shape_cast %380 : vector<8xf32> to vector<8x1xf32>
    %382 = vector.broadcast %381 : vector<8x1xf32> to vector<8x8xf32>
    %383 = arith.subf %379, %382 : vector<8x8xf32>
    %384 = math.exp %383 : vector<8x8xf32>
    %cst_135 = arith.constant dense<0.000000e+00> : vector<8xf32>
    %385 = vector.multi_reduction <add>, %384, %cst_135 [1] : vector<8x8xf32> to vector<8xf32>
    %386 = vector.shape_cast %385 : vector<8xf32> to vector<8x1xf32>
    %387 = tpu.reciprocal %386 {approx = true} : vector<8x1xf32> -> vector<8x1xf32>
    %388 = vector.broadcast %387 : vector<8x1xf32> to vector<8x8xf32>
    %389 = arith.mulf %384, %388 : vector<8x8xf32>
    %cst_136 = arith.constant dense<0.000000e+00> : vector<8x16xf32>
    %390 = tpu.matmul %389, %375, %cst_136 {dimension_numbers = #tpu.dot_dimension_numbers<[1], [0], [0], [1], [0, 0, 1, 1], [], []>} : vector<8x8xf32>, vector<8x16xf32>, vector<8x16xf32> -> vector<8x16xf32>
    %391 = vector.extract_strided_slice %264 {offsets = [80, 0], sizes = [16, 128], strides = [1, 1]} : vector<128x128xf32> to vector<16x128xf32>
    %cst_137 = arith.constant dense<0.000000e+00> : vector<8x128xf32>
    %392 = tpu.matmul %390, %391, %cst_137 {dimension_numbers = #tpu.dot_dimension_numbers<[1], [0], [0], [1], [0, 0, 1, 1], [], []>} : vector<8x16xf32>, vector<16x128xf32>, vector<8x128xf32> -> vector<8x128xf32>
    %393 = arith.addf %372, %392 : vector<8x128xf32>
    %394 = vector.extract_strided_slice %252 {offsets = [0, 96], sizes = [8, 16], strides = [1, 1]} : vector<8x128xf32> to vector<8x16xf32>
    %395 = vector.extract_strided_slice %260 {offsets = [0, 96], sizes = [8, 16], strides = [1, 1]} : vector<8x128xf32> to vector<8x16xf32>
    %396 = vector.extract_strided_slice %261 {offsets = [0, 96], sizes = [8, 16], strides = [1, 1]} : vector<8x128xf32> to vector<8x16xf32>
    %cst_138 = arith.constant dense<0.000000e+00> : vector<8x8xf32>
    %397 = tpu.matmul %394, %395, %cst_138 {dimension_numbers = #tpu.dot_dimension_numbers<[1], [1], [0], [0], [0, 0, 1, 0], [], []>} : vector<8x16xf32>, vector<8x16xf32>, vector<8x8xf32> -> vector<8x8xf32>
    %398 = vector.extract_strided_slice %262 {offsets = [6, 0, 0], sizes = [1, 8, 8], strides = [1, 1, 1]} : vector<8x8x8xf32> to vector<1x8x8xf32>
    %399 = vector.shape_cast %398 : vector<1x8x8xf32> to vector<8x8xf32>
    %400 = arith.addf %397, %399 : vector<8x8xf32>
    %cst_139 = arith.constant dense<0xFF800000> : vector<8xf32>
    %401 = vector.multi_reduction <maximumf>, %400, %cst_139 [1] : vector<8x8xf32> to vector<8xf32>
    %402 = vector.shape_cast %401 : vector<8xf32> to vector<8x1xf32>
    %403 = vector.broadcast %402 : vector<8x1xf32> to vector<8x8xf32>
    %404 = arith.subf %400, %403 : vector<8x8xf32>
    %405 = math.exp %404 : vector<8x8xf32>
    %cst_140 = arith.constant dense<0.000000e+00> : vector<8xf32>
    %406 = vector.multi_reduction <add>, %405, %cst_140 [1] : vector<8x8xf32> to vector<8xf32>
    %407 = vector.shape_cast %406 : vector<8xf32> to vector<8x1xf32>
    %408 = tpu.reciprocal %407 {approx = true} : vector<8x1xf32> -> vector<8x1xf32>
    %409 = vector.broadcast %408 : vector<8x1xf32> to vector<8x8xf32>
    %410 = arith.mulf %405, %409 : vector<8x8xf32>
    %cst_141 = arith.constant dense<0.000000e+00> : vector<8x16xf32>
    %411 = tpu.matmul %410, %396, %cst_141 {dimension_numbers = #tpu.dot_dimension_numbers<[1], [0], [0], [1], [0, 0, 1, 1], [], []>} : vector<8x8xf32>, vector<8x16xf32>, vector<8x16xf32> -> vector<8x16xf32>
    %412 = vector.extract_strided_slice %264 {offsets = [96, 0], sizes = [16, 128], strides = [1, 1]} : vector<128x128xf32> to vector<16x128xf32>
    %cst_142 = arith.constant dense<0.000000e+00> : vector<8x128xf32>
    %413 = tpu.matmul %411, %412, %cst_142 {dimension_numbers = #tpu.dot_dimension_numbers<[1], [0], [0], [1], [0, 0, 1, 1], [], []>} : vector<8x16xf32>, vector<16x128xf32>, vector<8x128xf32> -> vector<8x128xf32>
    %414 = arith.addf %393, %413 : vector<8x128xf32>
    %415 = vector.extract_strided_slice %252 {offsets = [0, 112], sizes = [8, 16], strides = [1, 1]} : vector<8x128xf32> to vector<8x16xf32>
    %416 = vector.extract_strided_slice %260 {offsets = [0, 112], sizes = [8, 16], strides = [1, 1]} : vector<8x128xf32> to vector<8x16xf32>
    %417 = vector.extract_strided_slice %261 {offsets = [0, 112], sizes = [8, 16], strides = [1, 1]} : vector<8x128xf32> to vector<8x16xf32>
    %cst_143 = arith.constant dense<0.000000e+00> : vector<8x8xf32>
    %418 = tpu.matmul %415, %416, %cst_143 {dimension_numbers = #tpu.dot_dimension_numbers<[1], [1], [0], [0], [0, 0, 1, 0], [], []>} : vector<8x16xf32>, vector<8x16xf32>, vector<8x8xf32> -> vector<8x8xf32>
    %419 = vector.extract_strided_slice %262 {offsets = [7, 0, 0], sizes = [1, 8, 8], strides = [1, 1, 1]} : vector<8x8x8xf32> to vector<1x8x8xf32>
    %420 = vector.shape_cast %419 : vector<1x8x8xf32> to vector<8x8xf32>
    %421 = arith.addf %418, %420 : vector<8x8xf32>
    %cst_144 = arith.constant dense<0xFF800000> : vector<8xf32>
    %422 = vector.multi_reduction <maximumf>, %421, %cst_144 [1] : vector<8x8xf32> to vector<8xf32>
    %423 = vector.shape_cast %422 : vector<8xf32> to vector<8x1xf32>
    %424 = vector.broadcast %423 : vector<8x1xf32> to vector<8x8xf32>
    %425 = arith.subf %421, %424 : vector<8x8xf32>
    %426 = math.exp %425 : vector<8x8xf32>
    %cst_145 = arith.constant dense<0.000000e+00> : vector<8xf32>
    %427 = vector.multi_reduction <add>, %426, %cst_145 [1] : vector<8x8xf32> to vector<8xf32>
    %428 = vector.shape_cast %427 : vector<8xf32> to vector<8x1xf32>
    %429 = tpu.reciprocal %428 {approx = true} : vector<8x1xf32> -> vector<8x1xf32>
    %430 = vector.broadcast %429 : vector<8x1xf32> to vector<8x8xf32>
    %431 = arith.mulf %426, %430 : vector<8x8xf32>
    %cst_146 = arith.constant dense<0.000000e+00> : vector<8x16xf32>
    %432 = tpu.matmul %431, %417, %cst_146 {dimension_numbers = #tpu.dot_dimension_numbers<[1], [0], [0], [1], [0, 0, 1, 1], [], []>} : vector<8x8xf32>, vector<8x16xf32>, vector<8x16xf32> -> vector<8x16xf32>
    %433 = vector.extract_strided_slice %264 {offsets = [112, 0], sizes = [16, 128], strides = [1, 1]} : vector<128x128xf32> to vector<16x128xf32>
    %cst_147 = arith.constant dense<0.000000e+00> : vector<8x128xf32>
    %434 = tpu.matmul %432, %433, %cst_147 {dimension_numbers = #tpu.dot_dimension_numbers<[1], [0], [0], [1], [0, 0, 1, 1], [], []>} : vector<8x16xf32>, vector<16x128xf32>, vector<8x128xf32> -> vector<8x128xf32>
    %435 = arith.addf %414, %434 : vector<8x128xf32>
    %436 = vector.broadcast %266 : vector<1x128xf32> to vector<8x128xf32>
    %437 = arith.addf %435, %436 : vector<8x128xf32>
    %438 = arith.addf %218, %437 : vector<8x128xf32>
    %c0_148 = arith.constant 0 : index
    %c0_149 = arith.constant 0 : index
    %c0_150 = arith.constant 0 : index
    %439 = vector.load %arg21[%c0_148, %c0_149, %c0_150] : memref<1x1x128xf32, #tpu.memory_space<vmem>>, vector<1x1x128xf32>
    %440 = vector.shape_cast %439 : vector<1x1x128xf32> to vector<1x128xf32>
    %c0_151 = arith.constant 0 : index
    %c0_152 = arith.constant 0 : index
    %c0_153 = arith.constant 0 : index
    %441 = vector.load %arg22[%c0_151, %c0_152, %c0_153] : memref<1x1x128xf32, #tpu.memory_space<vmem>>, vector<1x1x128xf32>
    %442 = vector.shape_cast %441 : vector<1x1x128xf32> to vector<1x128xf32>
    %cst_154 = arith.constant dense<0.000000e+00> : vector<8xf32>
    %443 = vector.multi_reduction <add>, %438, %cst_154 [1] : vector<8x128xf32> to vector<8xf32>
    %444 = vector.shape_cast %443 : vector<8xf32> to vector<8x1xf32>
    %cst_155 = arith.constant 1.280000e+02 : f32
    %445 = vector.broadcast %cst_155 : f32 to vector<8x1xf32>
    %446 = arith.divf %444, %445 : vector<8x1xf32>
    %447 = vector.broadcast %446 : vector<8x1xf32> to vector<8x128xf32>
    %448 = arith.subf %438, %447 : vector<8x128xf32>
    %449 = arith.mulf %448, %448 : vector<8x128xf32>
    %cst_156 = arith.constant dense<0.000000e+00> : vector<8xf32>
    %450 = vector.multi_reduction <add>, %449, %cst_156 [1] : vector<8x128xf32> to vector<8xf32>
    %451 = vector.shape_cast %450 : vector<8xf32> to vector<8x1xf32>
    %cst_157 = arith.constant 0.00787401571 : f32
    %452 = vector.broadcast %cst_157 : f32 to vector<8x1xf32>
    %453 = arith.mulf %451, %452 : vector<8x1xf32>
    %454 = math.sqrt %453 : vector<8x1xf32>
    %cst_158 = arith.constant 9.99999997E-7 : f32
    %455 = vector.broadcast %cst_158 : f32 to vector<8x1xf32>
    %456 = arith.addf %455, %454 : vector<8x1xf32>
    %457 = tpu.reciprocal %456 : vector<8x1xf32> -> vector<8x1xf32>
    %458 = vector.broadcast %457 : vector<8x1xf32> to vector<8x128xf32>
    %459 = arith.mulf %448, %458 : vector<8x128xf32>
    %460 = vector.broadcast %440 : vector<1x128xf32> to vector<8x128xf32>
    %461 = arith.mulf %460, %459 : vector<8x128xf32>
    %462 = vector.broadcast %442 : vector<1x128xf32> to vector<8x128xf32>
    %463 = arith.addf %461, %462 : vector<8x128xf32>
    %c0_159 = arith.constant 0 : index
    %c0_160 = arith.constant 0 : index
    %c0_161 = arith.constant 0 : index
    %464 = vector.load %arg23[%c0_159, %c0_160, %c0_161] : memref<1x128x128xf32, #tpu.memory_space<vmem>>, vector<1x128x128xf32>
    %465 = vector.shape_cast %464 : vector<1x128x128xf32> to vector<128x128xf32>
    %c0_162 = arith.constant 0 : index
    %c0_163 = arith.constant 0 : index
    %c0_164 = arith.constant 0 : index
    %466 = vector.load %arg24[%c0_162, %c0_163, %c0_164] : memref<1x1x128xf32, #tpu.memory_space<vmem>>, vector<1x1x128xf32>
    %467 = vector.shape_cast %466 : vector<1x1x128xf32> to vector<1x128xf32>
    %c0_165 = arith.constant 0 : index
    %c0_166 = arith.constant 0 : index
    %c0_167 = arith.constant 0 : index
    %468 = vector.load %arg25[%c0_165, %c0_166, %c0_167] : memref<1x128x128xf32, #tpu.memory_space<vmem>>, vector<1x128x128xf32>
    %469 = vector.shape_cast %468 : vector<1x128x128xf32> to vector<128x128xf32>
    %c0_168 = arith.constant 0 : index
    %c0_169 = arith.constant 0 : index
    %c0_170 = arith.constant 0 : index
    %470 = vector.load %arg26[%c0_168, %c0_169, %c0_170] : memref<1x1x128xf32, #tpu.memory_space<vmem>>, vector<1x1x128xf32>
    %471 = vector.shape_cast %470 : vector<1x1x128xf32> to vector<1x128xf32>
    %cst_171 = arith.constant dense<0.000000e+00> : vector<8x128xf32>
    %472 = tpu.matmul %463, %465, %cst_171 {dimension_numbers = #tpu.dot_dimension_numbers<[1], [0], [0], [1], [0, 0, 1, 1], [], []>} : vector<8x128xf32>, vector<128x128xf32>, vector<8x128xf32> -> vector<8x128xf32>
    %473 = vector.broadcast %467 : vector<1x128xf32> to vector<8x128xf32>
    %474 = arith.addf %472, %473 : vector<8x128xf32>
    %cst_172 = arith.constant 0.000000e+00 : f32
    %475 = vector.broadcast %cst_172 : f32 to vector<8x128xf32>
    %476 = arith.maximumf %474, %475 : vector<8x128xf32>
    %cst_173 = arith.constant dense<0.000000e+00> : vector<8x128xf32>
    %477 = tpu.matmul %476, %469, %cst_173 {dimension_numbers = #tpu.dot_dimension_numbers<[1], [0], [0], [1], [0, 0, 1, 1], [], []>} : vector<8x128xf32>, vector<128x128xf32>, vector<8x128xf32> -> vector<8x128xf32>
    %478 = vector.broadcast %471 : vector<1x128xf32> to vector<8x128xf32>
    %479 = arith.addf %477, %478 : vector<8x128xf32>
    %480 = arith.addf %438, %479 : vector<8x128xf32>
    %c0_174 = arith.constant 0 : index
    %c0_175 = arith.constant 0 : index
    %481 = vector.load %arg27[%c0_174, %c0_175] : memref<8x128xf32, #tpu.memory_space<vmem>>, vector<8x128xf32>
    tpu.vector_store %arg27[%c0_174, %c0_175], %480 {strides = array<i32>} : memref<8x128xf32, #tpu.memory_space<vmem>>, vector<8x128xf32>,
    %c1_i32 = arith.constant 1 : i32
    %482 = arith.cmpi eq, %arg0, %c1_i32 : i32
    %483 = arith.extui %482 : i1 to i32
    %c0_i32_176 = arith.constant 0 : i32
    %484 = arith.cmpi ne, %483, %c0_i32_176 : i32
    scf.if %484 {
      %c0_177 = arith.constant 0 : index
      %c0_178 = arith.constant 0 : index
      %485 = vector.load %arg5[%c0_177, %c0_178] : memref<1x128xf32, #tpu.memory_space<vmem>>, vector<1x128xf32>
      %c0_179 = arith.constant 0 : index
      %c0_180 = arith.constant 0 : index
      %486 = vector.load %arg6[%c0_179, %c0_180] : memref<1x128xf32, #tpu.memory_space<vmem>>, vector<1x128xf32>
      %cst_181 = arith.constant dense<0.000000e+00> : vector<8xf32>
      %487 = vector.multi_reduction <add>, %480, %cst_181 [1] : vector<8x128xf32> to vector<8xf32>
      %488 = vector.shape_cast %487 : vector<8xf32> to vector<8x1xf32>
      %cst_182 = arith.constant 1.280000e+02 : f32
      %489 = vector.broadcast %cst_182 : f32 to vector<8x1xf32>
      %490 = arith.divf %488, %489 : vector<8x1xf32>
      %491 = vector.broadcast %490 : vector<8x1xf32> to vector<8x128xf32>
      %492 = arith.subf %480, %491 : vector<8x128xf32>
      %493 = arith.mulf %492, %492 : vector<8x128xf32>
      %cst_183 = arith.constant dense<0.000000e+00> : vector<8xf32>
      %494 = vector.multi_reduction <add>, %493, %cst_183 [1] : vector<8x128xf32> to vector<8xf32>
      %495 = vector.shape_cast %494 : vector<8xf32> to vector<8x1xf32>
      %cst_184 = arith.constant 0.00787401571 : f32
      %496 = vector.broadcast %cst_184 : f32 to vector<8x1xf32>
      %497 = arith.mulf %495, %496 : vector<8x1xf32>
      %498 = math.sqrt %497 : vector<8x1xf32>
      %cst_185 = arith.constant 9.99999997E-7 : f32
      %499 = vector.broadcast %cst_185 : f32 to vector<8x1xf32>
      %500 = arith.addf %499, %498 : vector<8x1xf32>
      %501 = tpu.reciprocal %500 : vector<8x1xf32> -> vector<8x1xf32>
      %502 = vector.broadcast %501 : vector<8x1xf32> to vector<8x128xf32>
      %503 = arith.mulf %492, %502 : vector<8x128xf32>
      %504 = vector.broadcast %485 : vector<1x128xf32> to vector<8x128xf32>
      %505 = arith.mulf %504, %503 : vector<8x128xf32>
      %506 = vector.broadcast %486 : vector<1x128xf32> to vector<8x128xf32>
      %507 = arith.addf %505, %506 : vector<8x128xf32>
      %c0_186 = arith.constant 0 : index
      %c0_187 = arith.constant 0 : index
      %508 = vector.load %arg27[%c0_186, %c0_187] : memref<8x128xf32, #tpu.memory_space<vmem>>, vector<8x128xf32>
      tpu.vector_store %arg27[%c0_186, %c0_187], %507 {strides = array<i32>} : memref<8x128xf32, #tpu.memory_space<vmem>>, vector<8x128xf32>,
    } else {
    }
    return
  }
  func.func @transform_0(%arg0: i32) -> (i32, i32) {
    %c0_i32 = arith.constant 0 : i32
    %c0_i32_0 = arith.constant 0 : i32
    %c0_i32_1 = arith.constant 0 : i32
    return %c0_i32, %c0_i32_0 : i32, i32
  }
  func.func @transform_1(%arg0: i32) -> (i32, i32) {
    %c0_i32 = arith.constant 0 : i32
    %c0_i32_0 = arith.constant 0 : i32
    %c0_i32_1 = arith.constant 0 : i32
    return %c0_i32, %c0_i32_0 : i32, i32
  }
  func.func @transform_2(%arg0: i32) -> (i32, i32, i32) {
    %c0_i32 = arith.constant 0 : i32
    %c0_i32_0 = arith.constant 0 : i32
    %c0_i32_1 = arith.constant 0 : i32
    %c0_i32_2 = arith.constant 0 : i32
    return %c0_i32, %c0_i32_0, %c0_i32_1 : i32, i32, i32
  }
  func.func @transform_3(%arg0: i32) -> (i32, i32, i32) {
    %c0_i32 = arith.constant 0 : i32
    %c0_i32_0 = arith.constant 0 : i32
    %c0_i32_1 = arith.constant 0 : i32
    %c0_i32_2 = arith.constant 0 : i32
    return %c0_i32, %c0_i32_0, %c0_i32_1 : i32, i32, i32
  }
  func.func @transform_4(%arg0: i32) -> (i32, i32) {
    %c0_i32 = arith.constant 0 : i32
    %c0_i32_0 = arith.constant 0 : i32
    %c0_i32_1 = arith.constant 0 : i32
    return %c0_i32, %c0_i32_0 : i32, i32
  }
  func.func @transform_5(%arg0: i32) -> (i32, i32) {
    %c0_i32 = arith.constant 0 : i32
    %c0_i32_0 = arith.constant 0 : i32
    %c0_i32_1 = arith.constant 0 : i32
    return %c0_i32, %c0_i32_0 : i32, i32
  }
  func.func @transform_6(%arg0: i32) -> (i32, i32, i32) {
    %c0_i32 = arith.constant 0 : i32
    %c0_i32_0 = arith.constant 0 : i32
    %c0_i32_1 = arith.constant 0 : i32
    return %arg0, %c0_i32, %c0_i32_0 : i32, i32, i32
  }
  func.func @transform_7(%arg0: i32) -> (i32, i32, i32) {
    %c0_i32 = arith.constant 0 : i32
    %c0_i32_0 = arith.constant 0 : i32
    %c0_i32_1 = arith.constant 0 : i32
    return %arg0, %c0_i32, %c0_i32_0 : i32, i32, i32
  }
  func.func @transform_8(%arg0: i32) -> (i32, i32, i32) {
    %c0_i32 = arith.constant 0 : i32
    %c0_i32_0 = arith.constant 0 : i32
    %c0_i32_1 = arith.constant 0 : i32
    return %arg0, %c0_i32, %c0_i32_0 : i32, i32, i32
  }
  func.func @transform_9(%arg0: i32) -> (i32, i32, i32) {
    %c0_i32 = arith.constant 0 : i32
    %c0_i32_0 = arith.constant 0 : i32
    %c0_i32_1 = arith.constant 0 : i32
    return %arg0, %c0_i32, %c0_i32_0 : i32, i32, i32
  }
  func.func @transform_10(%arg0: i32) -> (i32, i32, i32) {
    %c0_i32 = arith.constant 0 : i32
    %c0_i32_0 = arith.constant 0 : i32
    %c0_i32_1 = arith.constant 0 : i32
    return %arg0, %c0_i32, %c0_i32_0 : i32, i32, i32
  }
  func.func @transform_11(%arg0: i32) -> (i32, i32, i32) {
    %c0_i32 = arith.constant 0 : i32
    %c0_i32_0 = arith.constant 0 : i32
    %c0_i32_1 = arith.constant 0 : i32
    return %arg0, %c0_i32, %c0_i32_0 : i32, i32, i32
  }
  func.func @transform_12(%arg0: i32) -> (i32, i32, i32) {
    %c0_i32 = arith.constant 0 : i32
    %c0_i32_0 = arith.constant 0 : i32
    %c0_i32_1 = arith.constant 0 : i32
    return %arg0, %c0_i32, %c0_i32_0 : i32, i32, i32
  }
  func.func @transform_13(%arg0: i32) -> (i32, i32, i32) {
    %c0_i32 = arith.constant 0 : i32
    %c0_i32_0 = arith.constant 0 : i32
    %c0_i32_1 = arith.constant 0 : i32
    return %arg0, %c0_i32, %c0_i32_0 : i32, i32, i32
  }
  func.func @transform_14(%arg0: i32) -> (i32, i32, i32) {
    %c0_i32 = arith.constant 0 : i32
    %c0_i32_0 = arith.constant 0 : i32
    %c0_i32_1 = arith.constant 0 : i32
    return %arg0, %c0_i32, %c0_i32_0 : i32, i32, i32
  }
  func.func @transform_15(%arg0: i32) -> (i32, i32, i32) {
    %c0_i32 = arith.constant 0 : i32
    %c0_i32_0 = arith.constant 0 : i32
    %c0_i32_1 = arith.constant 0 : i32
    return %arg0, %c0_i32, %c0_i32_0 : i32, i32, i32
  }
  func.func @transform_16(%arg0: i32) -> (i32, i32, i32) {
    %c0_i32 = arith.constant 0 : i32
    %c0_i32_0 = arith.constant 0 : i32
    %c0_i32_1 = arith.constant 0 : i32
    return %arg0, %c0_i32, %c0_i32_0 : i32, i32, i32
  }
  func.func @transform_17(%arg0: i32) -> (i32, i32, i32) {
    %c0_i32 = arith.constant 0 : i32
    %c0_i32_0 = arith.constant 0 : i32
    %c0_i32_1 = arith.constant 0 : i32
    return %arg0, %c0_i32, %c0_i32_0 : i32, i32, i32
  }
  func.func @transform_18(%arg0: i32) -> (i32, i32, i32) {
    %c0_i32 = arith.constant 0 : i32
    %c0_i32_0 = arith.constant 0 : i32
    %c0_i32_1 = arith.constant 0 : i32
    return %arg0, %c0_i32, %c0_i32_0 : i32, i32, i32
  }
  func.func @transform_19(%arg0: i32) -> (i32, i32, i32) {
    %c0_i32 = arith.constant 0 : i32
    %c0_i32_0 = arith.constant 0 : i32
    %c0_i32_1 = arith.constant 0 : i32
    return %arg0, %c0_i32, %c0_i32_0 : i32, i32, i32
  }
  func.func @transform_20(%arg0: i32) -> (i32, i32, i32) {
    %c0_i32 = arith.constant 0 : i32
    %c0_i32_0 = arith.constant 0 : i32
    %c0_i32_1 = arith.constant 0 : i32
    return %arg0, %c0_i32, %c0_i32_0 : i32, i32, i32
  }
  func.func @transform_21(%arg0: i32) -> (i32, i32, i32) {
    %c0_i32 = arith.constant 0 : i32
    %c0_i32_0 = arith.constant 0 : i32
    %c0_i32_1 = arith.constant 0 : i32
    return %arg0, %c0_i32, %c0_i32_0 : i32, i32, i32
  }
  func.func @transform_22(%arg0: i32) -> (i32, i32, i32) {
    %c0_i32 = arith.constant 0 : i32
    %c0_i32_0 = arith.constant 0 : i32
    %c0_i32_1 = arith.constant 0 : i32
    return %arg0, %c0_i32, %c0_i32_0 : i32, i32, i32
  }
  func.func @transform_23(%arg0: i32) -> (i32, i32, i32) {
    %c0_i32 = arith.constant 0 : i32
    %c0_i32_0 = arith.constant 0 : i32
    %c0_i32_1 = arith.constant 0 : i32
    return %arg0, %c0_i32, %c0_i32_0 : i32, i32, i32
  }
  func.func @transform_24(%arg0: i32) -> (i32, i32, i32) {
    %c0_i32 = arith.constant 0 : i32
    %c0_i32_0 = arith.constant 0 : i32
    %c0_i32_1 = arith.constant 0 : i32
    return %arg0, %c0_i32, %c0_i32_0 : i32, i32, i32
  }
  func.func @transform_25(%arg0: i32) -> (i32, i32, i32) {
    %c0_i32 = arith.constant 0 : i32
    %c0_i32_0 = arith.constant 0 : i32
    %c0_i32_1 = arith.constant 0 : i32
    return %arg0, %c0_i32, %c0_i32_0 : i32, i32, i32
  }
  func.func @transform_26(%arg0: i32) -> (i32, i32) {
    %c0_i32 = arith.constant 0 : i32
    %c0_i32_0 = arith.constant 0 : i32
    %c0_i32_1 = arith.constant 0 : i32
    return %c0_i32, %c0_i32_0 : i32, i32
  }
}

</mosaic_0001>

<llo_original>
// kernel: decoder_forward.1
$region0: #{decoder_forward.1}
  #allocation0 [shape = 'u32[]', space=smem, size = 0x4, offset = 0x4, fixed_abs, tag = 'smem constant byte address 0x4 - core index']
  #allocation1 [shape = 'u32[144,128]{1,0:T(1,128)}', space=vmem, size = 0x12000, scoped, tag = 'internal scratch']
  %s0 = inlined_call_operand.hbm [shape: f32[8,128], index: 0, kind: input, shape index: {}]
  %s1 = inlined_call_operand.hbm [shape: f32[8,128], index: 1, kind: input, shape index: {}]
  %s2 = inlined_call_operand.vmem [shape: f32[8,8,8], index: 2, kind: input, shape index: {}]
  %s3 = inlined_call_operand.vmem [shape: f32[8,8,8], index: 3, kind: input, shape index: {}]
  %s4 = inlined_call_operand.hbm [shape: f32[1,128], index: 4, kind: input, shape index: {}]
  %s5 = inlined_call_operand.hbm [shape: f32[1,128], index: 5, kind: input, shape index: {}]
  %s6 = inlined_call_operand.vmem [shape: f32[2,1,128], index: 6, kind: input, shape index: {}]
  %s7 = inlined_call_operand.hbm [shape: f32[2,1,128], index: 7, kind: input, shape index: {}]
  %s8 = inlined_call_operand.vmem [shape: f32[2,128,384], index: 8, kind: input, shape index: {}]
  %s9 = inlined_call_operand.hbm [shape: f32[2,1,384], index: 9, kind: input, shape index: {}]
  %s10 = inlined_call_operand.hbm [shape: f32[2,128,128], index: 10, kind: input, shape index: {}]
  %s11 = inlined_call_operand.hbm [shape: f32[2,1,128], index: 11, kind: input, shape index: {}]
  %s12 = inlined_call_operand.hbm [shape: f32[2,1,128], index: 12, kind: input, shape index: {}]
  %s13 = inlined_call_operand.hbm [shape: f32[2,1,128], index: 13, kind: input, shape index: {}]
  %s14 = inlined_call_operand.hbm [shape: f32[2,128,128], index: 14, kind: input, shape index: {}]
  %s15 = inlined_call_operand.hbm [shape: f32[2,1,128], index: 15, kind: input, shape index: {}]
  %s16 = inlined_call_operand.hbm [shape: f32[2,128,256], index: 16, kind: input, shape index: {}]
  %s17 = inlined_call_operand.vmem [shape: f32[2,1,256], index: 17, kind: input, shape index: {}]
  %s18 = inlined_call_operand.hbm [shape: f32[2,128,128], index: 18, kind: input, shape index: {}]
  %s19 = inlined_call_operand.hbm [shape: f32[2,1,128], index: 19, kind: input, shape index: {}]
  %s20 = inlined_call_operand.hbm [shape: f32[2,1,128], index: 20, kind: input, shape index: {}]
  %s21 = inlined_call_operand.hbm [shape: f32[2,1,128], index: 21, kind: input, shape index: {}]
  %s22 = inlined_call_operand.hbm [shape: f32[2,128,128], index: 22, kind: input, shape index: {}]
  %s23 = inlined_call_operand.hbm [shape: f32[2,1,128], index: 23, kind: input, shape index: {}]
  %s24 = inlined_call_operand.hbm [shape: f32[2,128,128], index: 24, kind: input, shape index: {}]
  %s25 = inlined_call_operand.hbm [shape: f32[2,1,128], index: 25, kind: input, shape index: {}]
  %s26 = inlined_call_operand.hbm [shape: f32[8,128], index: 26, kind: output, shape index: {}]
  %s27 = sld [smem:[#allocation0]]
  $region229: #{decoder_forward.1} parent=0
    _
  %s29 = ssub.s32 1, %s27
  %s30 = scalar_select 0, %s29, %s27
  $region1: #{decoder_forward.1} parent=0
    #allocation2 [shape = 'u8[4096]{0}', space=vmem, size = 0x1000, scoped, tag = 'input window, operand 0, single buffered']
    #allocation3 [shape = 's32[2]{0}', space=sflag, size = 0x8, scoped, tag = 'scoped memory for decoder_forward.1']
    #allocation4 [shape = 's32[2]{0}', space=sflag, size = 0x8, scoped, tag = 'scoped memory for decoder_forward.1']
    #allocation5 [shape = 'u8[4096]{0}', space=vmem, size = 0x1000, scoped, tag = 'input window, operand 1, single buffered']
    #allocation6 [shape = 's32[1]{0}', space=sflag, size = 0x4, scoped, tag = 'scoped memory for decoder_forward.1']
    #allocation7 [shape = 'u8[512]{0}', space=vmem, size = 0x400, scoped, tag = 'input window, operand 4, single buffered']
    #allocation8 [shape = 'u8[512]{0}', space=vmem, size = 0x400, scoped, tag = 'input window, operand 5, single buffered']
    #allocation9 [shape = 's32[1]{0}', space=sflag, size = 0x4, scoped, tag = 'scoped memory for decoder_forward.1']
    #allocation10 [shape = 'u8[1024]{0}', space=vmem, size = 0x400, scoped, tag = 'input window, operand 7']
    #allocation11 [shape = 'u8[3072]{0}', space=vmem, size = 0xc00, scoped, tag = 'input window, operand 9']
    #allocation12 [shape = 'u8[131072]{0}', space=vmem, size = 0x20000, scoped, tag = 'input window, operand 10']
    #allocation13 [shape = 'u8[1024]{0}', space=vmem, size = 0x400, scoped, tag = 'input window, operand 11']
    #allocation14 [shape = 'u8[1024]{0}', space=vmem, size = 0x400, scoped, tag = 'input window, operand 12']
    #allocation15 [shape = 'u8[1024]{0}', space=vmem, size = 0x400, scoped, tag = 'input window, operand 13']
    #allocation16 [shape = 'u8[131072]{0}', space=vmem, size = 0x20000, scoped, tag = 'input window, operand 14']
    #allocation17 [shape = 'u8[1024]{0}', space=vmem, size = 0x400, scoped, tag = 'input window, operand 15']
    #allocation18 [shape = 'u8[262144]{0}', space=vmem, size = 0x40000, scoped, tag = 'input window, operand 16']
    #allocation19 [shape = 'u8[131072]{0}', space=vmem, size = 0x20000, scoped, tag = 'input window, operand 18']
    #allocation20 [shape = 'u8[1024]{0}', space=vmem, size = 0x400, scoped, tag = 'input window, operand 19']
    #allocation21 [shape = 'u8[1024]{0}', space=vmem, size = 0x400, scoped, tag = 'input window, operand 20']
    #allocation22 [shape = 'u8[1024]{0}', space=vmem, size = 0x400, scoped, tag = 'input window, operand 21']
    #allocation23 [shape = 'u8[131072]{0}', space=vmem, size = 0x20000, scoped, tag = 'input window, operand 22']
    #allocation24 [shape = 'u8[1024]{0}', space=vmem, size = 0x400, scoped, tag = 'input window, operand 23']
    #allocation25 [shape = 'u8[131072]{0}', space=vmem, size = 0x20000, scoped, tag = 'input window, operand 24']
    #allocation26 [shape = 'u8[1024]{0}', space=vmem, size = 0x400, scoped, tag = 'input window, operand 25']
    #allocation27 [shape = 'u8[4096]{0}', space=vmem, size = 0x1000, scoped, tag = 'output window, operand 0, single buffered']
    %31 = vsyncpa [#allocation3], 0
    %32 = vsyncpa [#allocation6], 0
    %33 = vsyncpa [#allocation9], 0
    %34 = vsyncpa [#allocation4], 0
    loop: start=0, step=1, limit=4
    $region2: #{decoder_forward.1} parent=1 // loop_pre_header
      _
    $region3: #{decoder_forward.1} parent=1 // loop_header
      %s36 = sphi 0, %s40
      %p37 = scmp.ge.s32.totalorder %s36, 4
      %s44 = sphi 0, %s44
      %s46 = sphi 0, %s44
      %s47 = sphi 0, %s46
      %s61 = sphi 0, %s47
      %s65 = sphi 0, %s65
      %s67 = sphi 0, %s65
      %s68 = sphi 0, %s67
      %s82 = sphi 0, %s68
      %s86 = sphi 0, %s86
      %s88 = sphi 0, %s86
      %s89 = sphi 0, %s88
      %s103 = sphi 0, %s89
      %s107 = sphi 0, %s107
      %s109 = sphi 0, %s107
      %s110 = sphi 0, %s109
      %s124 = sphi 0, %s110
      %s128 = sphi 0, %s128
      %s130 = sphi 0, %s128
      %s131 = sphi 0, %s130
      %s145 = sphi 0, %s131
      %s149 = sphi 0, %s149
      %s151 = sphi 0, %s149
      %s152 = sphi 0, %s151
      %s166 = sphi 0, %s152
      %s172 = sphi 0, %s174
      %s175 = sphi 0, %s172
      %s176 = sphi 0, %s175
      %s192 = sphi 0, %s176
      %s198 = sphi 0, %s200
      %s201 = sphi 0, %s198
      %s202 = sphi 0, %s201
      %s218 = sphi 0, %s202
      %s224 = sphi 0, %s226
      %s227 = sphi 0, %s224
      %s228 = sphi 0, %s227
      %s244 = sphi 0, %s228
      %s250 = sphi 0, %s252
      %s253 = sphi 0, %s250
      %s254 = sphi 0, %s253
      %s270 = sphi 0, %s254
      %s276 = sphi 0, %s278
      %s279 = sphi 0, %s276
      %s280 = sphi 0, %s279
      %s296 = sphi 0, %s280
      %s302 = sphi 0, %s304
      %s305 = sphi 0, %s302
      %s306 = sphi 0, %s305
      %s322 = sphi 0, %s306
      %s328 = sphi 0, %s330
      %s331 = sphi 0, %s328
      %s332 = sphi 0, %s331
      %s348 = sphi 0, %s332
      %s354 = sphi 0, %s356
      %s357 = sphi 0, %s354
      %s358 = sphi 0, %s357
      %s374 = sphi 0, %s358
      %s380 = sphi 0, %s382
      %s383 = sphi 0, %s380
      %s384 = sphi 0, %s383
      %s400 = sphi 0, %s384
      %s406 = sphi 0, %s408
      %s409 = sphi 0, %s406
      %s410 = sphi 0, %s409
      %s426 = sphi 0, %s410
      %s432 = sphi 0, %s434
      %s435 = sphi 0, %s432
      %s436 = sphi 0, %s435
      %s452 = sphi 0, %s436
      %s458 = sphi 0, %s460
      %s461 = sphi 0, %s458
      %s462 = sphi 0, %s461
      %s478 = sphi 0, %s462
      %s484 = sphi 0, %s486
      %s487 = sphi 0, %s484
      %s488 = sphi 0, %s487
      %s504 = sphi 0, %s488
      %s510 = sphi 0, %s512
      %s513 = sphi 0, %s510
      %s514 = sphi 0, %s513
      %s530 = sphi 0, %s514
      %s536 = sphi 0, %s538
      %s539 = sphi 0, %s536
      %s540 = sphi 0, %s539
      %s556 = sphi 0, %s540
      %s562 = sphi 0, %s564
      %s565 = sphi 0, %s562
      %s566 = sphi 0, %s565
      %s582 = sphi 0, %s566
      %s588 = sphi 0, %s590
      %s591 = sphi 0, %s588
      %s592 = sphi 0, %s591
      %s608 = sphi 0, %s592
      %s614 = sphi 0, %s616
      %s617 = sphi 0, %s614
      %s618 = sphi 0, %s617
      %s634 = sphi 0, %s618
      %s640 = sphi 0, %s642
      %s643 = sphi 0, %s640
      %s644 = sphi 0, %s643
      %s660 = sphi 0, %s644
      %s666 = sphi 0, %s668
      %s669 = sphi 0, %s666
      %s670 = sphi 0, %s669
      %s686 = sphi 0, %s670
      %s690 = sphi 0, %s690
      %s692 = sphi 0, %s690
      %s693 = sphi 0, %s692
      %s707 = sphi 0, %s693
    $region4: #{decoder_forward.1} parent=1 // loop_header_branch
      %39 = sbr.rel (%p37) target = $region8
    $region5: #{decoder_forward.1} parent=1 // loop_body
      %s41 = ssub.s32 %s36, 1
      %s42 = ssub.s32 %s36, 2
      %s43 = sadd.s32 %s36, 1
      %s45 = sadd.s32 %s44, 1
      %p48 = scmp.eq.s32.totalorder %s36, 1
      %p49 = scmp.ne.s32.totalorder %s44, %s46
      %p50 = scmp.eq.s32.totalorder %s36, 0
      %p51 = por %p49, %p50
      %p52 = scmp.ne.s32.totalorder %s44, %s46
      %p53 = scmp.eq.s32.totalorder %s41, 1
      %p54 = por %p52, %p53
      %p55 = scmp.ne.s32.totalorder %s46, %s47
      %p56 = scmp.eq.s32.totalorder %s41, 0
      %p57 = por %p55, %p56
      %p58 = scmp.ne.s32.totalorder %s46, %s47
      %p59 = scmp.eq.s32.totalorder %s42, 1
      %p60 = por %p58, %p59
      %p62 = scmp.ne.s32.totalorder %s47, %s61
      %p63 = scmp.eq.s32.totalorder %s42, 0
      %p64 = por %p62, %p63
      %s66 = sadd.s32 %s65, 1
      %p69 = scmp.eq.s32.totalorder %s36, 1
      %p70 = scmp.ne.s32.totalorder %s65, %s67
      %p71 = scmp.eq.s32.totalorder %s36, 0
      %p72 = por %p70, %p71
      %p73 = scmp.ne.s32.totalorder %s65, %s67
      %p74 = scmp.eq.s32.totalorder %s41, 1
      %p75 = por %p73, %p74
      %p76 = scmp.ne.s32.totalorder %s67, %s68
      %p77 = scmp.eq.s32.totalorder %s41, 0
      %p78 = por %p76, %p77
      %p79 = scmp.ne.s32.totalorder %s67, %s68
      %p80 = scmp.eq.s32.totalorder %s42, 1
      %p81 = por %p79, %p80
      %p83 = scmp.ne.s32.totalorder %s68, %s82
      %p84 = scmp.eq.s32.totalorder %s42, 0
      %p85 = por %p83, %p84
      %s87 = sadd.s32 %s86, 1
      %p90 = scmp.eq.s32.totalorder %s36, 1
      %p91 = scmp.ne.s32.totalorder %s86, %s88
      %p92 = scmp.eq.s32.totalorder %s36, 0
      %p93 = por %p91, %p92
      %p94 = scmp.ne.s32.totalorder %s86, %s88
      %p95 = scmp.eq.s32.totalorder %s41, 1
      %p96 = por %p94, %p95
      %p97 = scmp.ne.s32.totalorder %s88, %s89
      %p98 = scmp.eq.s32.totalorder %s41, 0
      %p99 = por %p97, %p98
      %p100 = scmp.ne.s32.totalorder %s88, %s89
      %p101 = scmp.eq.s32.totalorder %s42, 1
      %p102 = por %p100, %p101
      %p104 = scmp.ne.s32.totalorder %s89, %s103
      %p105 = scmp.eq.s32.totalorder %s42, 0
      %p106 = por %p104, %p105
      %s108 = sadd.s32 %s107, 1
      %p111 = scmp.eq.s32.totalorder %s36, 1
      %p112 = scmp.ne.s32.totalorder %s107, %s109
      %p113 = scmp.eq.s32.totalorder %s36, 0
      %p114 = por %p112, %p113
      %p115 = scmp.ne.s32.totalorder %s107, %s109
      %p116 = scmp.eq.s32.totalorder %s41, 1
      %p117 = por %p115, %p116
      %p118 = scmp.ne.s32.totalorder %s109, %s110
      %p119 = scmp.eq.s32.totalorder %s41, 0
      %p120 = por %p118, %p119
      %p121 = scmp.ne.s32.totalorder %s109, %s110
      %p122 = scmp.eq.s32.totalorder %s42, 1
      %p123 = por %p121, %p122
      %p125 = scmp.ne.s32.totalorder %s110, %s124
      %p126 = scmp.eq.s32.totalorder %s42, 0
      %p127 = por %p125, %p126
      %s129 = sadd.s32 %s128, 1
      %p132 = scmp.eq.s32.totalorder %s36, 1
      %p133 = scmp.ne.s32.totalorder %s128, %s130
      %p134 = scmp.eq.s32.totalorder %s36, 0
      %p135 = por %p133, %p134
      %p136 = scmp.ne.s32.totalorder %s128, %s130
      %p137 = scmp.eq.s32.totalorder %s41, 1
      %p138 = por %p136, %p137
      %p139 = scmp.ne.s32.totalorder %s130, %s131
      %p140 = scmp.eq.s32.totalorder %s41, 0
      %p141 = por %p139, %p140
      %p142 = scmp.ne.s32.totalorder %s130, %s131
      %p143 = scmp.eq.s32.totalorder %s42, 1
      %p144 = por %p142, %p143
      %p146 = scmp.ne.s32.totalorder %s131, %s145
      %p147 = scmp.eq.s32.totalorder %s42, 0
      %p148 = por %p146, %p147
      %s150 = sadd.s32 %s149, 1
      %p153 = scmp.eq.s32.totalorder %s36, 1
      %p154 = scmp.ne.s32.totalorder %s149, %s151
      %p155 = scmp.eq.s32.totalorder %s36, 0
      %p156 = por %p154, %p155
      %p157 = scmp.ne.s32.totalorder %s149, %s151
      %p158 = scmp.eq.s32.totalorder %s41, 1
      %p159 = por %p157, %p158
      %p160 = scmp.ne.s32.totalorder %s151, %s152
      %p161 = scmp.eq.s32.totalorder %s41, 0
      %p162 = por %p160, %p161
      %p163 = scmp.ne.s32.totalorder %s151, %s152
      %p164 = scmp.eq.s32.totalorder %s42, 1
      %p165 = por %p163, %p164
      %p167 = scmp.ne.s32.totalorder %s152, %s166
      %p168 = scmp.eq.s32.totalorder %s42, 0
      %p169 = por %p167, %p168
      %s170 = ssub.s32 %s36, %s43
      %p171 = scmp.eq.s32.totalorder %s170, 0
      %s173 = sadd.s32 %s172, 1
      %s174 = scalar_select %p171, %s172, %s173
      %p177 = pneg %p171
      %p178 = scmp.eq.s32.totalorder %s36, 1
      %p179 = por %p177, %p178
      %p180 = scmp.ne.s32.totalorder %s172, %s175
      %p181 = scmp.eq.s32.totalorder %s36, 0
      %p182 = por %p180, %p181
      %p183 = scmp.ne.s32.totalorder %s172, %s175
      %p184 = scmp.eq.s32.totalorder %s41, 1
      %p185 = por %p183, %p184
      %p186 = scmp.ne.s32.totalorder %s175, %s176
      %p187 = scmp.eq.s32.totalorder %s41, 0
      %p188 = por %p186, %p187
      %p189 = scmp.ne.s32.totalorder %s175, %s176
      %p190 = scmp.eq.s32.totalorder %s42, 1
      %p191 = por %p189, %p190
      %p193 = scmp.ne.s32.totalorder %s176, %s192
      %p194 = scmp.eq.s32.totalorder %s42, 0
      %p195 = por %p193, %p194
      %s196 = ssub.s32 %s36, %s43
      %p197 = scmp.eq.s32.totalorder %s196, 0
      %s199 = sadd.s32 %s198, 1
      %s200 = scalar_select %p197, %s198, %s199
      %p203 = pneg %p197
      %p204 = scmp.eq.s32.totalorder %s36, 1
      %p205 = por %p203, %p204
      %p206 = scmp.ne.s32.totalorder %s198, %s201
      %p207 = scmp.eq.s32.totalorder %s36, 0
      %p208 = por %p206, %p207
      %p209 = scmp.ne.s32.totalorder %s198, %s201
      %p210 = scmp.eq.s32.totalorder %s41, 1
      %p211 = por %p209, %p210
      %p212 = scmp.ne.s32.totalorder %s201, %s202
      %p213 = scmp.eq.s32.totalorder %s41, 0
      %p214 = por %p212, %p213
      %p215 = scmp.ne.s32.totalorder %s201, %s202
      %p216 = scmp.eq.s32.totalorder %s42, 1
      %p217 = por %p215, %p216
      %p219 = scmp.ne.s32.totalorder %s202, %s218
      %p220 = scmp.eq.s32.totalorder %s42, 0
      %p221 = por %p219, %p220
      %s222 = ssub.s32 %s36, %s43
      %p223 = scmp.eq.s32.totalorder %s222, 0
      %s225 = sadd.s32 %s224, 1
      %s226 = scalar_select %p223, %s224, %s225
      %p229 = pneg %p223
      %p230 = scmp.eq.s32.totalorder %s36, 1
      %p231 = por %p229, %p230
      %p232 = scmp.ne.s32.totalorder %s224, %s227
      %p233 = scmp.eq.s32.totalorder %s36, 0
      %p234 = por %p232, %p233
      %p235 = scmp.ne.s32.totalorder %s224, %s227
      %p236 = scmp.eq.s32.totalorder %s41, 1
      %p237 = por %p235, %p236
      %p238 = scmp.ne.s32.totalorder %s227, %s228
      %p239 = scmp.eq.s32.totalorder %s41, 0
      %p240 = por %p238, %p239
      %p241 = scmp.ne.s32.totalorder %s227, %s228
      %p242 = scmp.eq.s32.totalorder %s42, 1
      %p243 = por %p241, %p242
      %p245 = scmp.ne.s32.totalorder %s228, %s244
      %p246 = scmp.eq.s32.totalorder %s42, 0
      %p247 = por %p245, %p246
      %s248 = ssub.s32 %s36, %s43
      %p249 = scmp.eq.s32.totalorder %s248, 0
      %s251 = sadd.s32 %s250, 1
      %s252 = scalar_select %p249, %s250, %s251
      %p255 = pneg %p249
      %p256 = scmp.eq.s32.totalorder %s36, 1
      %p257 = por %p255, %p256
      %p258 = scmp.ne.s32.totalorder %s250, %s253
      %p259 = scmp.eq.s32.totalorder %s36, 0
      %p260 = por %p258, %p259
      %p261 = scmp.ne.s32.totalorder %s250, %s253
      %p262 = scmp.eq.s32.totalorder %s41, 1
      %p263 = por %p261, %p262
      %p264 = scmp.ne.s32.totalorder %s253, %s254
      %p265 = scmp.eq.s32.totalorder %s41, 0
      %p266 = por %p264, %p265
      %p267 = scmp.ne.s32.totalorder %s253, %s254
      %p268 = scmp.eq.s32.totalorder %s42, 1
      %p269 = por %p267, %p268
      %p271 = scmp.ne.s32.totalorder %s254, %s270
      %p272 = scmp.eq.s32.totalorder %s42, 0
      %p273 = por %p271, %p272
      %s274 = ssub.s32 %s36, %s43
      %p275 = scmp.eq.s32.totalorder %s274, 0
      %s277 = sadd.s32 %s276, 1
      %s278 = scalar_select %p275, %s276, %s277
      %p281 = pneg %p275
      %p282 = scmp.eq.s32.totalorder %s36, 1
      %p283 = por %p281, %p282
      %p284 = scmp.ne.s32.totalorder %s276, %s279
      %p285 = scmp.eq.s32.totalorder %s36, 0
      %p286 = por %p284, %p285
      %p287 = scmp.ne.s32.totalorder %s276, %s279
      %p288 = scmp.eq.s32.totalorder %s41, 1
      %p289 = por %p287, %p288
      %p290 = scmp.ne.s32.totalorder %s279, %s280
      %p291 = scmp.eq.s32.totalorder %s41, 0
      %p292 = por %p290, %p291
      %p293 = scmp.ne.s32.totalorder %s279, %s280
      %p294 = scmp.eq.s32.totalorder %s42, 1
      %p295 = por %p293, %p294
      %p297 = scmp.ne.s32.totalorder %s280, %s296
      %p298 = scmp.eq.s32.totalorder %s42, 0
      %p299 = por %p297, %p298
      %s300 = ssub.s32 %s36, %s43
      %p301 = scmp.eq.s32.totalorder %s300, 0
      %s303 = sadd.s32 %s302, 1
      %s304 = scalar_select %p301, %s302, %s303
      %p307 = pneg %p301
      %p308 = scmp.eq.s32.totalorder %s36, 1
      %p309 = por %p307, %p308
      %p310 = scmp.ne.s32.totalorder %s302, %s305
      %p311 = scmp.eq.s32.totalorder %s36, 0
      %p312 = por %p310, %p311
      %p313 = scmp.ne.s32.totalorder %s302, %s305
      %p314 = scmp.eq.s32.totalorder %s41, 1
      %p315 = por %p313, %p314
      %p316 = scmp.ne.s32.totalorder %s305, %s306
      %p317 = scmp.eq.s32.totalorder %s41, 0
      %p318 = por %p316, %p317
      %p319 = scmp.ne.s32.totalorder %s305, %s306
      %p320 = scmp.eq.s32.totalorder %s42, 1
      %p321 = por %p319, %p320
      %p323 = scmp.ne.s32.totalorder %s306, %s322
      %p324 = scmp.eq.s32.totalorder %s42, 0
      %p325 = por %p323, %p324
      %s326 = ssub.s32 %s36, %s43
      %p327 = scmp.eq.s32.totalorder %s326, 0
      %s329 = sadd.s32 %s328, 1
      %s330 = scalar_select %p327, %s328, %s329
      %p333 = pneg %p327
      %p334 = scmp.eq.s32.totalorder %s36, 1
      %p335 = por %p333, %p334
      %p336 = scmp.ne.s32.totalorder %s328, %s331
      %p337 = scmp.eq.s32.totalorder %s36, 0
      %p338 = por %p336, %p337
      %p339 = scmp.ne.s32.totalorder %s328, %s331
      %p340 = scmp.eq.s32.totalorder %s41, 1
      %p341 = por %p339, %p340
      %p342 = scmp.ne.s32.totalorder %s331, %s332
      %p343 = scmp.eq.s32.totalorder %s41, 0
      %p344 = por %p342, %p343
      %p345 = scmp.ne.s32.totalorder %s331, %s332
      %p346 = scmp.eq.s32.totalorder %s42, 1
      %p347 = por %p345, %p346
      %p349 = scmp.ne.s32.totalorder %s332, %s348
      %p350 = scmp.eq.s32.totalorder %s42, 0
      %p351 = por %p349, %p350
      %s352 = ssub.s32 %s36, %s43
      %p353 = scmp.eq.s32.totalorder %s352, 0
      %s355 = sadd.s32 %s354, 1
      %s356 = scalar_select %p353, %s354, %s355
      %p359 = pneg %p353
      %p360 = scmp.eq.s32.totalorder %s36, 1
      %p361 = por %p359, %p360
      %p362 = scmp.ne.s32.totalorder %s354, %s357
      %p363 = scmp.eq.s32.totalorder %s36, 0
      %p364 = por %p362, %p363
      %p365 = scmp.ne.s32.totalorder %s354, %s357
      %p366 = scmp.eq.s32.totalorder %s41, 1
      %p367 = por %p365, %p366
      %p368 = scmp.ne.s32.totalorder %s357, %s358
      %p369 = scmp.eq.s32.totalorder %s41, 0
      %p370 = por %p368, %p369
      %p371 = scmp.ne.s32.totalorder %s357, %s358
      %p372 = scmp.eq.s32.totalorder %s42, 1
      %p373 = por %p371, %p372
      %p375 = scmp.ne.s32.totalorder %s358, %s374
      %p376 = scmp.eq.s32.totalorder %s42, 0
      %p377 = por %p375, %p376
      %s378 = ssub.s32 %s36, %s43
      %p379 = scmp.eq.s32.totalorder %s378, 0
      %s381 = sadd.s32 %s380, 1
      %s382 = scalar_select %p379, %s380, %s381
      %p385 = pneg %p379
      %p386 = scmp.eq.s32.totalorder %s36, 1
      %p387 = por %p385, %p386
      %p388 = scmp.ne.s32.totalorder %s380, %s383
      %p389 = scmp.eq.s32.totalorder %s36, 0
      %p390 = por %p388, %p389
      %p391 = scmp.ne.s32.totalorder %s380, %s383
      %p392 = scmp.eq.s32.totalorder %s41, 1
      %p393 = por %p391, %p392
      %p394 = scmp.ne.s32.totalorder %s383, %s384
      %p395 = scmp.eq.s32.totalorder %s41, 0
      %p396 = por %p394, %p395
      %p397 = scmp.ne.s32.totalorder %s383, %s384
      %p398 = scmp.eq.s32.totalorder %s42, 1
      %p399 = por %p397, %p398
      %p401 = scmp.ne.s32.totalorder %s384, %s400
      %p402 = scmp.eq.s32.totalorder %s42, 0
      %p403 = por %p401, %p402
      %s404 = ssub.s32 %s36, %s43
      %p405 = scmp.eq.s32.totalorder %s404, 0
      %s407 = sadd.s32 %s406, 1
      %s408 = scalar_select %p405, %s406, %s407
      %p411 = pneg %p405
      %p412 = scmp.eq.s32.totalorder %s36, 1
      %p413 = por %p411, %p412
      %p414 = scmp.ne.s32.totalorder %s406, %s409
      %p415 = scmp.eq.s32.totalorder %s36, 0
      %p416 = por %p414, %p415
      %p417 = scmp.ne.s32.totalorder %s406, %s409
      %p418 = scmp.eq.s32.totalorder %s41, 1
      %p419 = por %p417, %p418
      %p420 = scmp.ne.s32.totalorder %s409, %s410
      %p421 = scmp.eq.s32.totalorder %s41, 0
      %p422 = por %p420, %p421
      %p423 = scmp.ne.s32.totalorder %s409, %s410
      %p424 = scmp.eq.s32.totalorder %s42, 1
      %p425 = por %p423, %p424
      %p427 = scmp.ne.s32.totalorder %s410, %s426
      %p428 = scmp.eq.s32.totalorder %s42, 0
      %p429 = por %p427, %p428
      %s430 = ssub.s32 %s36, %s43
      %p431 = scmp.eq.s32.totalorder %s430, 0
      %s433 = sadd.s32 %s432, 1
      %s434 = scalar_select %p431, %s432, %s433
      %p437 = pneg %p431
      %p438 = scmp.eq.s32.totalorder %s36, 1
      %p439 = por %p437, %p438
      %p440 = scmp.ne.s32.totalorder %s432, %s435
      %p441 = scmp.eq.s32.totalorder %s36, 0
      %p442 = por %p440, %p441
      %p443 = scmp.ne.s32.totalorder %s432, %s435
      %p444 = scmp.eq.s32.totalorder %s41, 1
      %p445 = por %p443, %p444
      %p446 = scmp.ne.s32.totalorder %s435, %s436
      %p447 = scmp.eq.s32.totalorder %s41, 0
      %p448 = por %p446, %p447
      %p449 = scmp.ne.s32.totalorder %s435, %s436
      %p450 = scmp.eq.s32.totalorder %s42, 1
      %p451 = por %p449, %p450
      %p453 = scmp.ne.s32.totalorder %s436, %s452
      %p454 = scmp.eq.s32.totalorder %s42, 0
      %p455 = por %p453, %p454
      %s456 = ssub.s32 %s36, %s43
      %p457 = scmp.eq.s32.totalorder %s456, 0
      %s459 = sadd.s32 %s458, 1
      %s460 = scalar_select %p457, %s458, %s459
      %p463 = pneg %p457
      %p464 = scmp.eq.s32.totalorder %s36, 1
      %p465 = por %p463, %p464
      %p466 = scmp.ne.s32.totalorder %s458, %s461
      %p467 = scmp.eq.s32.totalorder %s36, 0
      %p468 = por %p466, %p467
      %p469 = scmp.ne.s32.totalorder %s458, %s461
      %p470 = scmp.eq.s32.totalorder %s41, 1
      %p471 = por %p469, %p470
      %p472 = scmp.ne.s32.totalorder %s461, %s462
      %p473 = scmp.eq.s32.totalorder %s41, 0
      %p474 = por %p472, %p473
      %p475 = scmp.ne.s32.totalorder %s461, %s462
      %p476 = scmp.eq.s32.totalorder %s42, 1
      %p477 = por %p475, %p476
      %p479 = scmp.ne.s32.totalorder %s462, %s478
      %p480 = scmp.eq.s32.totalorder %s42, 0
      %p481 = por %p479, %p480
      %s482 = ssub.s32 %s36, %s43
      %p483 = scmp.eq.s32.totalorder %s482, 0
      %s485 = sadd.s32 %s484, 1
      %s486 = scalar_select %p483, %s484, %s485
      %p489 = pneg %p483
      %p490 = scmp.eq.s32.totalorder %s36, 1
      %p491 = por %p489, %p490
      %p492 = scmp.ne.s32.totalorder %s484, %s487
      %p493 = scmp.eq.s32.totalorder %s36, 0
      %p494 = por %p492, %p493
      %p495 = scmp.ne.s32.totalorder %s484, %s487
      %p496 = scmp.eq.s32.totalorder %s41, 1
      %p497 = por %p495, %p496
      %p498 = scmp.ne.s32.totalorder %s487, %s488
      %p499 = scmp.eq.s32.totalorder %s41, 0
      %p500 = por %p498, %p499
      %p501 = scmp.ne.s32.totalorder %s487, %s488
      %p502 = scmp.eq.s32.totalorder %s42, 1
      %p503 = por %p501, %p502
      %p505 = scmp.ne.s32.totalorder %s488, %s504
      %p506 = scmp.eq.s32.totalorder %s42, 0
      %p507 = por %p505, %p506
      %s508 = ssub.s32 %s36, %s43
      %p509 = scmp.eq.s32.totalorder %s508, 0
      %s511 = sadd.s32 %s510, 1
      %s512 = scalar_select %p509, %s510, %s511
      %p515 = pneg %p509
      %p516 = scmp.eq.s32.totalorder %s36, 1
      %p517 = por %p515, %p516
      %p518 = scmp.ne.s32.totalorder %s510, %s513
      %p519 = scmp.eq.s32.totalorder %s36, 0
      %p520 = por %p518, %p519
      %p521 = scmp.ne.s32.totalorder %s510, %s513
      %p522 = scmp.eq.s32.totalorder %s41, 1
      %p523 = por %p521, %p522
      %p524 = scmp.ne.s32.totalorder %s513, %s514
      %p525 = scmp.eq.s32.totalorder %s41, 0
      %p526 = por %p524, %p525
      %p527 = scmp.ne.s32.totalorder %s513, %s514
      %p528 = scmp.eq.s32.totalorder %s42, 1
      %p529 = por %p527, %p528
      %p531 = scmp.ne.s32.totalorder %s514, %s530
      %p532 = scmp.eq.s32.totalorder %s42, 0
      %p533 = por %p531, %p532
      %s534 = ssub.s32 %s36, %s43
      %p535 = scmp.eq.s32.totalorder %s534, 0
      %s537 = sadd.s32 %s536, 1
      %s538 = scalar_select %p535, %s536, %s537
      %p541 = pneg %p535
      %p542 = scmp.eq.s32.totalorder %s36, 1
      %p543 = por %p541, %p542
      %p544 = scmp.ne.s32.totalorder %s536, %s539
      %p545 = scmp.eq.s32.totalorder %s36, 0
      %p546 = por %p544, %p545
      %p547 = scmp.ne.s32.totalorder %s536, %s539
      %p548 = scmp.eq.s32.totalorder %s41, 1
      %p549 = por %p547, %p548
      %p550 = scmp.ne.s32.totalorder %s539, %s540
      %p551 = scmp.eq.s32.totalorder %s41, 0
      %p552 = por %p550, %p551
      %p553 = scmp.ne.s32.totalorder %s539, %s540
      %p554 = scmp.eq.s32.totalorder %s42, 1
      %p555 = por %p553, %p554
      %p557 = scmp.ne.s32.totalorder %s540, %s556
      %p558 = scmp.eq.s32.totalorder %s42, 0
      %p559 = por %p557, %p558
      %s560 = ssub.s32 %s36, %s43
      %p561 = scmp.eq.s32.totalorder %s560, 0
      %s563 = sadd.s32 %s562, 1
      %s564 = scalar_select %p561, %s562, %s563
      %p567 = pneg %p561
      %p568 = scmp.eq.s32.totalorder %s36, 1
      %p569 = por %p567, %p568
      %p570 = scmp.ne.s32.totalorder %s562, %s565
      %p571 = scmp.eq.s32.totalorder %s36, 0
      %p572 = por %p570, %p571
      %p573 = scmp.ne.s32.totalorder %s562, %s565
      %p574 = scmp.eq.s32.totalorder %s41, 1
      %p575 = por %p573, %p574
      %p576 = scmp.ne.s32.totalorder %s565, %s566
      %p577 = scmp.eq.s32.totalorder %s41, 0
      %p578 = por %p576, %p577
      %p579 = scmp.ne.s32.totalorder %s565, %s566
      %p580 = scmp.eq.s32.totalorder %s42, 1
      %p581 = por %p579, %p580
      %p583 = scmp.ne.s32.totalorder %s566, %s582
      %p584 = scmp.eq.s32.totalorder %s42, 0
      %p585 = por %p583, %p584
      %s586 = ssub.s32 %s36, %s43
      %p587 = scmp.eq.s32.totalorder %s586, 0
      %s589 = sadd.s32 %s588, 1
      %s590 = scalar_select %p587, %s588, %s589
      %p593 = pneg %p587
      %p594 = scmp.eq.s32.totalorder %s36, 1
      %p595 = por %p593, %p594
      %p596 = scmp.ne.s32.totalorder %s588, %s591
      %p597 = scmp.eq.s32.totalorder %s36, 0
      %p598 = por %p596, %p597
      %p599 = scmp.ne.s32.totalorder %s588, %s591
      %p600 = scmp.eq.s32.totalorder %s41, 1
      %p601 = por %p599, %p600
      %p602 = scmp.ne.s32.totalorder %s591, %s592
      %p603 = scmp.eq.s32.totalorder %s41, 0
      %p604 = por %p602, %p603
      %p605 = scmp.ne.s32.totalorder %s591, %s592
      %p606 = scmp.eq.s32.totalorder %s42, 1
      %p607 = por %p605, %p606
      %p609 = scmp.ne.s32.totalorder %s592, %s608
      %p610 = scmp.eq.s32.totalorder %s42, 0
      %p611 = por %p609, %p610
      %s612 = ssub.s32 %s36, %s43
      %p613 = scmp.eq.s32.totalorder %s612, 0
      %s615 = sadd.s32 %s614, 1
      %s616 = scalar_select %p613, %s614, %s615
      %p619 = pneg %p613
      %p620 = scmp.eq.s32.totalorder %s36, 1
      %p621 = por %p619, %p620
      %p622 = scmp.ne.s32.totalorder %s614, %s617
      %p623 = scmp.eq.s32.totalorder %s36, 0
      %p624 = por %p622, %p623
      %p625 = scmp.ne.s32.totalorder %s614, %s617
      %p626 = scmp.eq.s32.totalorder %s41, 1
      %p627 = por %p625, %p626
      %p628 = scmp.ne.s32.totalorder %s617, %s618
      %p629 = scmp.eq.s32.totalorder %s41, 0
      %p630 = por %p628, %p629
      %p631 = scmp.ne.s32.totalorder %s617, %s618
      %p632 = scmp.eq.s32.totalorder %s42, 1
      %p633 = por %p631, %p632
      %p635 = scmp.ne.s32.totalorder %s618, %s634
      %p636 = scmp.eq.s32.totalorder %s42, 0
      %p637 = por %p635, %p636
      %s638 = ssub.s32 %s36, %s43
      %p639 = scmp.eq.s32.totalorder %s638, 0
      %s641 = sadd.s32 %s640, 1
      %s642 = scalar_select %p639, %s640, %s641
      %p645 = pneg %p639
      %p646 = scmp.eq.s32.totalorder %s36, 1
      %p647 = por %p645, %p646
      %p648 = scmp.ne.s32.totalorder %s640, %s643
      %p649 = scmp.eq.s32.totalorder %s36, 0
      %p650 = por %p648, %p649
      %p651 = scmp.ne.s32.totalorder %s640, %s643
      %p652 = scmp.eq.s32.totalorder %s41, 1
      %p653 = por %p651, %p652
      %p654 = scmp.ne.s32.totalorder %s643, %s644
      %p655 = scmp.eq.s32.totalorder %s41, 0
      %p656 = por %p654, %p655
      %p657 = scmp.ne.s32.totalorder %s643, %s644
      %p658 = scmp.eq.s32.totalorder %s42, 1
      %p659 = por %p657, %p658
      %p661 = scmp.ne.s32.totalorder %s644, %s660
      %p662 = scmp.eq.s32.totalorder %s42, 0
      %p663 = por %p661, %p662
      %s664 = ssub.s32 %s36, %s43
      %p665 = scmp.eq.s32.totalorder %s664, 0
      %s667 = sadd.s32 %s666, 1
      %s668 = scalar_select %p665, %s666, %s667
      %p671 = pneg %p665
      %p672 = scmp.eq.s32.totalorder %s36, 1
      %p673 = por %p671, %p672
      %p674 = scmp.ne.s32.totalorder %s666, %s669
      %p675 = scmp.eq.s32.totalorder %s36, 0
      %p676 = por %p674, %p675
      %p677 = scmp.ne.s32.totalorder %s666, %s669
      %p678 = scmp.eq.s32.totalorder %s41, 1
      %p679 = por %p677, %p678
      %p680 = scmp.ne.s32.totalorder %s669, %s670
      %p681 = scmp.eq.s32.totalorder %s41, 0
      %p682 = por %p680, %p681
      %p683 = scmp.ne.s32.totalorder %s669, %s670
      %p684 = scmp.eq.s32.totalorder %s42, 1
      %p685 = por %p683, %p684
      %p687 = scmp.ne.s32.totalorder %s670, %s686
      %p688 = scmp.eq.s32.totalorder %s42, 0
      %p689 = por %p687, %p688
      %s691 = sadd.s32 %s690, 1
      %p694 = scmp.eq.s32.totalorder %s36, 1
      %p695 = scmp.ne.s32.totalorder %s690, %s692
      %p696 = scmp.eq.s32.totalorder %s36, 0
      %p697 = por %p695, %p696
      %p698 = scmp.ne.s32.totalorder %s690, %s692
      %p699 = scmp.eq.s32.totalorder %s41, 1
      %p700 = por %p698, %p699
      %p701 = scmp.ne.s32.totalorder %s692, %s693
      %p702 = scmp.eq.s32.totalorder %s41, 0
      %p703 = por %p701, %p702
      %p704 = scmp.ne.s32.totalorder %s692, %s693
      %p705 = scmp.eq.s32.totalorder %s42, 1
      %p706 = por %p704, %p705
      %p708 = scmp.ne.s32.totalorder %s693, %s707
      %p709 = scmp.eq.s32.totalorder %s42, 0
      %p710 = por %p708, %p709
      %p711 = scmp.le.s32.totalorder 1, %s36
      %p712 = scmp.lt.s32.totalorder %s36, 3
      %p713 = pnand %p711, %p712
      %p714 = pneg %p713
      // Predicated region
      $region9: #{decoder_forward.1} parent=5 // pred_check
        _
      $region10: #{decoder_forward.1} parent=5 // pred_check_branch
        %716 = sbr.rel (%p713) target = $region12
      $region11: #{decoder_forward.1} parent=5 // pred_region
        %s717 = ssub.s32 %s36, 1
        // Predicated region
        $region13: #{decoder_forward.1} parent=11 // pred_check
          %p718 = pneg %p57
        $region14: #{decoder_forward.1} parent=11 // pred_check_branch
          %720 = sbr.rel (%p718) target = $region16
        $region15: #{decoder_forward.1} parent=11 // pred_region
          %s722 = ssub.s32 128, 128
          %723 = vsyncadd [#allocation3], %s722
          %s725 = sshll.u32 [#allocation2], 4
          %s726 = int_to_ptr.vmem [resolvable:$true] %s725
          %728 = dma.hbm_to_vmem [thread:$0]  %s0, 128, %s726, [#allocation3]
        $region16: #{decoder_forward.1} parent=11 // pred_fallthru
          _
        // Predicated region
        $region17: #{decoder_forward.1} parent=11 // pred_check
          %p729 = pneg %p78
        $region18: #{decoder_forward.1} parent=11 // pred_check_branch
          %731 = sbr.rel (%p729) target = $region20
        $region19: #{decoder_forward.1} parent=11 // pred_region
          %s733 = ssub.s32 128, 128
          %734 = vsyncadd [#allocation6], %s733
          %s736 = sshll.u32 [#allocation5], 4
          %s737 = int_to_ptr.vmem [resolvable:$true] %s736
          %739 = dma.hbm_to_vmem [thread:$0]  %s1, 128, %s737, [#allocation6]
        $region20: #{decoder_forward.1} parent=11 // pred_fallthru
          _
        // Predicated region
        $region21: #{decoder_forward.1} parent=11 // pred_check
          %p740 = pneg %p99
        $region22: #{decoder_forward.1} parent=11 // pred_check_branch
          %742 = sbr.rel (%p740) target = $region24
        $region23: #{decoder_forward.1} parent=11 // pred_region
          _
        $region24: #{decoder_forward.1} parent=11 // pred_fallthru
          _
        // Predicated region
        $region25: #{decoder_forward.1} parent=11 // pred_check
          %p743 = pneg %p120
        $region26: #{decoder_forward.1} parent=11 // pred_check_branch
          %745 = sbr.rel (%p743) target = $region28
        $region27: #{decoder_forward.1} parent=11 // pred_region
          _
        $region28: #{decoder_forward.1} parent=11 // pred_fallthru
          _
        // Predicated region
        $region29: #{decoder_forward.1} parent=11 // pred_check
          %p746 = pneg %p141
        $region30: #{decoder_forward.1} parent=11 // pred_check_branch
          %748 = sbr.rel (%p746) target = $region32
        $region31: #{decoder_forward.1} parent=11 // pred_region
          %s750 = ssub.s32 16, 16
          %751 = vsyncadd [#allocation6], %s750
          %s753 = sshll.u32 [#allocation7], 4
          %s754 = int_to_ptr.vmem [resolvable:$true] %s753
          %756 = dma.hbm_to_vmem [thread:$0]  %s4, 16, %s754, [#allocation6]
        $region32: #{decoder_forward.1} parent=11 // pred_fallthru
          _
        // Predicated region
        $region33: #{decoder_forward.1} parent=11 // pred_check
          %p757 = pneg %p162
        $region34: #{decoder_forward.1} parent=11 // pred_check_branch
          %759 = sbr.rel (%p757) target = $region36
        $region35: #{decoder_forward.1} parent=11 // pred_region
          %s761 = ssub.s32 16, 16
          %762 = vsyncadd [#allocation9], %s761
          %s764 = sshll.u32 [#allocation8], 4
          %s765 = int_to_ptr.vmem [resolvable:$true] %s764
          %767 = dma.hbm_to_vmem [thread:$0]  %s5, 16, %s765, [#allocation9]
        $region36: #{decoder_forward.1} parent=11 // pred_fallthru
          _
      $region12: #{decoder_forward.1} parent=5 // pred_fallthru
        _
      %p768 = scmp.lt.s32.totalorder %s36, 2
      // Predicated region
      $region37: #{decoder_forward.1} parent=5 // pred_check
        %p769 = pneg %p768
      $region38: #{decoder_forward.1} parent=5 // pred_check_branch
        %771 = sbr.rel (%p769) target = $region40
      $region39: #{decoder_forward.1} parent=5 // pred_region
        // Predicated region
        $region41: #{decoder_forward.1} parent=39 // pred_check
          %p772 = pneg %p182
        $region42: #{decoder_forward.1} parent=39 // pred_check_branch
          %774 = sbr.rel (%p772) target = $region44
        $region43: #{decoder_forward.1} parent=39 // pred_region
          %p775 = scmp.lt.s32.totalorder %s36, 1
          %s776 = scalar_select %p775, %s36, 1
          %s777 = scalar_lea.vmem %s6, %s776
        $region44: #{decoder_forward.1} parent=39 // pred_fallthru
          _
        // Predicated region
        $region45: #{decoder_forward.1} parent=39 // pred_check
          %p778 = pneg %p208
        $region46: #{decoder_forward.1} parent=39 // pred_check_branch
          %780 = sbr.rel (%p778) target = $region48
        $region47: #{decoder_forward.1} parent=39 // pred_region
          %s781 = sand.u32 %s36, 1
          %s782 = scalar_lea.sflag [#allocation3], %s781
          %s783 = sand.u32 %s198, 1
          %s784 = scalar_lea.vmem [#allocation10], %s783
          %s786 = ssub.s32 16, 16
          %787 = vsyncadd %s782, %s786
          %s788 = smul.addr %s36, 16
          %s789 = scalar_lea.hbm %s7, %s788
          %s791 = sshll.u32 %s784, 4
          %s792 = int_to_ptr.vmem [resolvable:$true] %s791
          %794 = dma.hbm_to_vmem [thread:$0]  %s789, 16, %s792, %s782
        $region48: #{decoder_forward.1} parent=39 // pred_fallthru
          _
        // Predicated region
        $region49: #{decoder_forward.1} parent=39 // pred_check
          %p795 = pneg %p234
        $region50: #{decoder_forward.1} parent=39 // pred_check_branch
          %797 = sbr.rel (%p795) target = $region52
        $region51: #{decoder_forward.1} parent=39 // pred_region
          %p798 = scmp.lt.s32.totalorder %s36, 1
          %s799 = scalar_select %p798, %s36, 1
          %s800 = smul.addr %s799, 48
          %s801 = smul.addr %s800, 8
          %s802 = scalar_lea.vmem %s8, %s801
        $region52: #{decoder_forward.1} parent=39 // pred_fallthru
          _
        // Predicated region
        $region53: #{decoder_forward.1} parent=39 // pred_check
          %p803 = pneg %p260
        $region54: #{decoder_forward.1} parent=39 // pred_check_branch
          %805 = sbr.rel (%p803) target = $region56
        $region55: #{decoder_forward.1} parent=39 // pred_region
          %s806 = sand.u32 %s36, 1
          %s807 = scalar_lea.sflag [#allocation3], %s806
          %s808 = sand.u32 %s250, 1
          %s809 = smul.addr %s808, 3
          %s810 = scalar_lea.vmem [#allocation11], %s809
          %s812 = ssub.s32 48, 48
          %813 = vsyncadd %s807, %s812
          %s814 = smul.addr %s36, 3
          %s815 = smul.addr %s814, 16
          %s816 = scalar_lea.hbm %s9, %s815
          %s818 = sshll.u32 %s810, 4
          %s819 = int_to_ptr.vmem [resolvable:$true] %s818
          %821 = dma.hbm_to_vmem [thread:$0]  %s816, 48, %s819, %s807
        $region56: #{decoder_forward.1} parent=39 // pred_fallthru
          _
        // Predicated region
        $region57: #{decoder_forward.1} parent=39 // pred_check
          %p822 = pneg %p286
        $region58: #{decoder_forward.1} parent=39 // pred_check_branch
          %824 = sbr.rel (%p822) target = $region60
        $region59: #{decoder_forward.1} parent=39 // pred_region
          %s825 = sand.u32 %s36, 1
          %s826 = scalar_lea.sflag [#allocation3], %s825
          %s827 = sand.u32 %s276, 1
          %s828 = smul.addr %s827, 128
          %s829 = scalar_lea.vmem [#allocation12], %s828
          %s831 = ssub.s32 2048, 2048
          %832 = vsyncadd %s826, %s831
          %s833 = smul.addr %s36, 16
          %s834 = smul.addr %s833, 128
          %s835 = scalar_lea.hbm %s10, %s834
          %s836 = sshll.u32 %s829, 4
          %s837 = int_to_ptr.vmem [resolvable:$true] %s836
          %842 = dma.hbm_to_vmem [thread:$0]  %s835, 2048, %s837, %s826, 128, 128, 8
        $region60: #{decoder_forward.1} parent=39 // pred_fallthru
          _
        // Predicated region
        $region61: #{decoder_forward.1} parent=39 // pred_check
          %p843 = pneg %p312
        $region62: #{decoder_forward.1} parent=39 // pred_check_branch
          %845 = sbr.rel (%p843) target = $region64
        $region63: #{decoder_forward.1} parent=39 // pred_region
          %s846 = sand.u32 %s36, 1
          %s847 = scalar_lea.sflag [#allocation3], %s846
          %s848 = sand.u32 %s302, 1
          %s849 = scalar_lea.vmem [#allocation13], %s848
          %s851 = ssub.s32 16, 16
          %852 = vsyncadd %s847, %s851
          %s853 = smul.addr %s36, 16
          %s854 = scalar_lea.hbm %s11, %s853
          %s856 = sshll.u32 %s849, 4
          %s857 = int_to_ptr.vmem [resolvable:$true] %s856
          %859 = dma.hbm_to_vmem [thread:$0]  %s854, 16, %s857, %s847
        $region64: #{decoder_forward.1} parent=39 // pred_fallthru
          _
        // Predicated region
        $region65: #{decoder_forward.1} parent=39 // pred_check
          %p860 = pneg %p338
        $region66: #{decoder_forward.1} parent=39 // pred_check_branch
          %862 = sbr.rel (%p860) target = $region68
        $region67: #{decoder_forward.1} parent=39 // pred_region
          %s863 = sand.u32 %s36, 1
          %s864 = scalar_lea.sflag [#allocation3], %s863
          %s865 = sand.u32 %s328, 1
          %s866 = scalar_lea.vmem [#allocation14], %s865
          %s868 = ssub.s32 16, 16
          %869 = vsyncadd %s864, %s868
          %s870 = smul.addr %s36, 16
          %s871 = scalar_lea.hbm %s12, %s870
          %s873 = sshll.u32 %s866, 4
          %s874 = int_to_ptr.vmem [resolvable:$true] %s873
          %876 = dma.hbm_to_vmem [thread:$0]  %s871, 16, %s874, %s864
        $region68: #{decoder_forward.1} parent=39 // pred_fallthru
          _
        // Predicated region
        $region69: #{decoder_forward.1} parent=39 // pred_check
          %p877 = pneg %p364
        $region70: #{decoder_forward.1} parent=39 // pred_check_branch
          %879 = sbr.rel (%p877) target = $region72
        $region71: #{decoder_forward.1} parent=39 // pred_region
          %s880 = sand.u32 %s36, 1
          %s881 = scalar_lea.sflag [#allocation3], %s880
          %s882 = sand.u32 %s354, 1
          %s883 = scalar_lea.vmem [#allocation15], %s882
          %s885 = ssub.s32 16, 16
          %886 = vsyncadd %s881, %s885
          %s887 = smul.addr %s36, 16
          %s888 = scalar_lea.hbm %s13, %s887
          %s890 = sshll.u32 %s883, 4
          %s891 = int_to_ptr.vmem [resolvable:$true] %s890
          %893 = dma.hbm_to_vmem [thread:$0]  %s888, 16, %s891, %s881
        $region72: #{decoder_forward.1} parent=39 // pred_fallthru
          _
        // Predicated region
        $region73: #{decoder_forward.1} parent=39 // pred_check
          %p894 = pneg %p390
        $region74: #{decoder_forward.1} parent=39 // pred_check_branch
          %896 = sbr.rel (%p894) target = $region76
        $region75: #{decoder_forward.1} parent=39 // pred_region
          %s897 = sand.u32 %s36, 1
          %s898 = scalar_lea.sflag [#allocation3], %s897
          %s899 = sand.u32 %s380, 1
          %s900 = smul.addr %s899, 128
          %s901 = scalar_lea.vmem [#allocation16], %s900
          %s903 = ssub.s32 2048, 2048
          %904 = vsyncadd %s898, %s903
          %s905 = smul.addr %s36, 16
          %s906 = smul.addr %s905, 128
          %s907 = scalar_lea.hbm %s14, %s906
          %s908 = sshll.u32 %s901, 4
          %s909 = int_to_ptr.vmem [resolvable:$true] %s908
          %914 = dma.hbm_to_vmem [thread:$0]  %s907, 2048, %s909, %s898, 128, 128, 8
        $region76: #{decoder_forward.1} parent=39 // pred_fallthru
          _
        // Predicated region
        $region77: #{decoder_forward.1} parent=39 // pred_check
          %p915 = pneg %p416
        $region78: #{decoder_forward.1} parent=39 // pred_check_branch
          %917 = sbr.rel (%p915) target = $region80
        $region79: #{decoder_forward.1} parent=39 // pred_region
          %s918 = sand.u32 %s36, 1
          %s919 = scalar_lea.sflag [#allocation3], %s918
          %s920 = sand.u32 %s406, 1
          %s921 = scalar_lea.vmem [#allocation17], %s920
          %s923 = ssub.s32 16, 16
          %924 = vsyncadd %s919, %s923
          %s925 = smul.addr %s36, 16
          %s926 = scalar_lea.hbm %s15, %s925
          %s928 = sshll.u32 %s921, 4
          %s929 = int_to_ptr.vmem [resolvable:$true] %s928
          %931 = dma.hbm_to_vmem [thread:$0]  %s926, 16, %s929, %s919
        $region80: #{decoder_forward.1} parent=39 // pred_fallthru
          _
        // Predicated region
        $region81: #{decoder_forward.1} parent=39 // pred_check
          %p932 = pneg %p442
        $region82: #{decoder_forward.1} parent=39 // pred_check_branch
          %934 = sbr.rel (%p932) target = $region84
        $region83: #{decoder_forward.1} parent=39 // pred_region
          %s935 = sand.u32 %s36, 1
          %s936 = scalar_lea.sflag [#allocation3], %s935
          %s937 = sand.u32 %s432, 1
          %s938 = smul.addr %s937, 256
          %s939 = scalar_lea.vmem [#allocation18], %s938
          %s941 = ssub.s32 4096, 4096
          %942 = vsyncadd %s936, %s941
          %s943 = smul.addr %s36, 32
          %s944 = smul.addr %s943, 128
          %s945 = scalar_lea.hbm %s16, %s944
          %s946 = sshll.u32 %s939, 4
          %s947 = int_to_ptr.vmem [resolvable:$true] %s946
          %952 = dma.hbm_to_vmem [thread:$0]  %s945, 4096, %s947, %s936, 256, 256, 16
        $region84: #{decoder_forward.1} parent=39 // pred_fallthru
          _
        // Predicated region
        $region85: #{decoder_forward.1} parent=39 // pred_check
          %p953 = pneg %p468
        $region86: #{decoder_forward.1} parent=39 // pred_check_branch
          %955 = sbr.rel (%p953) target = $region88
        $region87: #{decoder_forward.1} parent=39 // pred_region
          %p956 = scmp.lt.s32.totalorder %s36, 1
          %s957 = scalar_select %p956, %s36, 1
          %s958 = smul.addr %s957, 2
          %s959 = scalar_lea.vmem %s17, %s958
        $region88: #{decoder_forward.1} parent=39 // pred_fallthru
          _
        // Predicated region
        $region89: #{decoder_forward.1} parent=39 // pred_check
          %p960 = pneg %p494
        $region90: #{decoder_forward.1} parent=39 // pred_check_branch
          %962 = sbr.rel (%p960) target = $region92
        $region91: #{decoder_forward.1} parent=39 // pred_region
          %s963 = sand.u32 %s36, 1
          %s964 = scalar_lea.sflag [#allocation3], %s963
          %s965 = sand.u32 %s484, 1
          %s966 = smul.addr %s965, 128
          %s967 = scalar_lea.vmem [#allocation19], %s966
          %s969 = ssub.s32 2048, 2048
          %970 = vsyncadd %s964, %s969
          %s971 = smul.addr %s36, 16
          %s972 = smul.addr %s971, 128
          %s973 = scalar_lea.hbm %s18, %s972
          %s974 = sshll.u32 %s967, 4
          %s975 = int_to_ptr.vmem [resolvable:$true] %s974
          %980 = dma.hbm_to_vmem [thread:$0]  %s973, 2048, %s975, %s964, 128, 128, 8
        $region92: #{decoder_forward.1} parent=39 // pred_fallthru
          _
        // Predicated region
        $region93: #{decoder_forward.1} parent=39 // pred_check
          %p981 = pneg %p520
        $region94: #{decoder_forward.1} parent=39 // pred_check_branch
          %983 = sbr.rel (%p981) target = $region96
        $region95: #{decoder_forward.1} parent=39 // pred_region
          %s984 = sand.u32 %s36, 1
          %s985 = scalar_lea.sflag [#allocation3], %s984
          %s986 = sand.u32 %s510, 1
          %s987 = scalar_lea.vmem [#allocation20], %s986
          %s989 = ssub.s32 16, 16
          %990 = vsyncadd %s985, %s989
          %s991 = smul.addr %s36, 16
          %s992 = scalar_lea.hbm %s19, %s991
          %s994 = sshll.u32 %s987, 4
          %s995 = int_to_ptr.vmem [resolvable:$true] %s994
          %997 = dma.hbm_to_vmem [thread:$0]  %s992, 16, %s995, %s985
        $region96: #{decoder_forward.1} parent=39 // pred_fallthru
          _
        // Predicated region
        $region97: #{decoder_forward.1} parent=39 // pred_check
          %p998 = pneg %p546
        $region98: #{decoder_forward.1} parent=39 // pred_check_branch
          %1000 = sbr.rel (%p998) target = $region100
        $region99: #{decoder_forward.1} parent=39 // pred_region
          %s1001 = sand.u32 %s36, 1
          %s1002 = scalar_lea.sflag [#allocation3], %s1001
          %s1003 = sand.u32 %s536, 1
          %s1004 = scalar_lea.vmem [#allocation21], %s1003
          %s1006 = ssub.s32 16, 16
          %1007 = vsyncadd %s1002, %s1006
          %s1008 = smul.addr %s36, 16
          %s1009 = scalar_lea.hbm %s20, %s1008
          %s1011 = sshll.u32 %s1004, 4
          %s1012 = int_to_ptr.vmem [resolvable:$true] %s1011
          %1014 = dma.hbm_to_vmem [thread:$0]  %s1009, 16, %s1012, %s1002
        $region100: #{decoder_forward.1} parent=39 // pred_fallthru
          _
        // Predicated region
        $region101: #{decoder_forward.1} parent=39 // pred_check
          %p1015 = pneg %p572
        $region102: #{decoder_forward.1} parent=39 // pred_check_branch
          %1017 = sbr.rel (%p1015) target = $region104
        $region103: #{decoder_forward.1} parent=39 // pred_region
          %s1018 = sand.u32 %s36, 1
          %s1019 = scalar_lea.sflag [#allocation3], %s1018
          %s1020 = sand.u32 %s562, 1
          %s1021 = scalar_lea.vmem [#allocation22], %s1020
          %s1023 = ssub.s32 16, 16
          %1024 = vsyncadd %s1019, %s1023
          %s1025 = smul.addr %s36, 16
          %s1026 = scalar_lea.hbm %s21, %s1025
          %s1028 = sshll.u32 %s1021, 4
          %s1029 = int_to_ptr.vmem [resolvable:$true] %s1028
          %1031 = dma.hbm_to_vmem [thread:$0]  %s1026, 16, %s1029, %s1019
        $region104: #{decoder_forward.1} parent=39 // pred_fallthru
          _
        // Predicated region
        $region105: #{decoder_forward.1} parent=39 // pred_check
          %p1032 = pneg %p598
        $region106: #{decoder_forward.1} parent=39 // pred_check_branch
          %1034 = sbr.rel (%p1032) target = $region108
        $region107: #{decoder_forward.1} parent=39 // pred_region
          %s1035 = sand.u32 %s36, 1
          %s1036 = scalar_lea.sflag [#allocation3], %s1035
          %s1037 = sand.u32 %s588, 1
          %s1038 = smul.addr %s1037, 128
          %s1039 = scalar_lea.vmem [#allocation23], %s1038
          %s1041 = ssub.s32 2048, 2048
          %1042 = vsyncadd %s1036, %s1041
          %s1043 = smul.addr %s36, 16
          %s1044 = smul.addr %s1043, 128
          %s1045 = scalar_lea.hbm %s22, %s1044
          %s1046 = sshll.u32 %s1039, 4
          %s1047 = int_to_ptr.vmem [resolvable:$true] %s1046
          %1052 = dma.hbm_to_vmem [thread:$0]  %s1045, 2048, %s1047, %s1036, 128, 128, 8
        $region108: #{decoder_forward.1} parent=39 // pred_fallthru
          _
        // Predicated region
        $region109: #{decoder_forward.1} parent=39 // pred_check
          %p1053 = pneg %p624
        $region110: #{decoder_forward.1} parent=39 // pred_check_branch
          %1055 = sbr.rel (%p1053) target = $region112
        $region111: #{decoder_forward.1} parent=39 // pred_region
          %s1056 = sand.u32 %s36, 1
          %s1057 = scalar_lea.sflag [#allocation3], %s1056
          %s1058 = sand.u32 %s614, 1
          %s1059 = scalar_lea.vmem [#allocation24], %s1058
          %s1061 = ssub.s32 16, 16
          %1062 = vsyncadd %s1057, %s1061
          %s1063 = smul.addr %s36, 16
          %s1064 = scalar_lea.hbm %s23, %s1063
          %s1066 = sshll.u32 %s1059, 4
          %s1067 = int_to_ptr.vmem [resolvable:$true] %s1066
          %1069 = dma.hbm_to_vmem [thread:$0]  %s1064, 16, %s1067, %s1057
        $region112: #{decoder_forward.1} parent=39 // pred_fallthru
          _
        // Predicated region
        $region113: #{decoder_forward.1} parent=39 // pred_check
          %p1070 = pneg %p650
        $region114: #{decoder_forward.1} parent=39 // pred_check_branch
          %1072 = sbr.rel (%p1070) target = $region116
        $region115: #{decoder_forward.1} parent=39 // pred_region
          %s1073 = sand.u32 %s36, 1
          %s1074 = scalar_lea.sflag [#allocation3], %s1073
          %s1075 = sand.u32 %s640, 1
          %s1076 = smul.addr %s1075, 128
          %s1077 = scalar_lea.vmem [#allocation25], %s1076
          %s1079 = ssub.s32 2048, 2048
          %1080 = vsyncadd %s1074, %s1079
          %s1081 = smul.addr %s36, 16
          %s1082 = smul.addr %s1081, 128
          %s1083 = scalar_lea.hbm %s24, %s1082
          %s1084 = sshll.u32 %s1077, 4
          %s1085 = int_to_ptr.vmem [resolvable:$true] %s1084
          %1090 = dma.hbm_to_vmem [thread:$0]  %s1083, 2048, %s1085, %s1074, 128, 128, 8
        $region116: #{decoder_forward.1} parent=39 // pred_fallthru
          _
        // Predicated region
        $region117: #{decoder_forward.1} parent=39 // pred_check
          %p1091 = pneg %p676
        $region118: #{decoder_forward.1} parent=39 // pred_check_branch
          %1093 = sbr.rel (%p1091) target = $region120
        $region119: #{decoder_forward.1} parent=39 // pred_region
          %s1094 = sand.u32 %s36, 1
          %s1095 = scalar_lea.sflag [#allocation3], %s1094
          %s1096 = sand.u32 %s666, 1
          %s1097 = scalar_lea.vmem [#allocation26], %s1096
          %s1099 = ssub.s32 16, 16
          %1100 = vsyncadd %s1095, %s1099
          %s1101 = smul.addr %s36, 16
          %s1102 = scalar_lea.hbm %s25, %s1101
          %s1104 = sshll.u32 %s1097, 4
          %s1105 = int_to_ptr.vmem [resolvable:$true] %s1104
          %1107 = dma.hbm_to_vmem [thread:$0]  %s1102, 16, %s1105, %s1095
        $region120: #{decoder_forward.1} parent=39 // pred_fallthru
          _
      $region40: #{decoder_forward.1} parent=5 // pred_fallthru
        _
      %p1108 = scmp.le.s32.totalorder 1, %s36
      %p1109 = scmp.lt.s32.totalorder %s36, 3
      %p1110 = pnand %p1108, %p1109
      %p1111 = pneg %p1110
      // Predicated region
      $region121: #{decoder_forward.1} parent=5 // pred_check
        _
      $region122: #{decoder_forward.1} parent=5 // pred_check_branch
        %1113 = sbr.rel (%p1110) target = $region124
      $region123: #{decoder_forward.1} parent=5 // pred_region
        %s1114 = ssub.s32 %s36, 1
        // Predicated region
        $region125: #{decoder_forward.1} parent=123 // pred_check
          %p1115 = pneg %p57
        $region126: #{decoder_forward.1} parent=123 // pred_check_branch
          %1117 = sbr.rel (%p1115) target = $region128
        $region127: #{decoder_forward.1} parent=123 // pred_region
          %1118 = dma.done [#allocation3], 128
        $region128: #{decoder_forward.1} parent=123 // pred_fallthru
          _
        // Predicated region
        $region129: #{decoder_forward.1} parent=123 // pred_check
          %p1119 = pneg %p78
        $region130: #{decoder_forward.1} parent=123 // pred_check_branch
          %1121 = sbr.rel (%p1119) target = $region132
        $region131: #{decoder_forward.1} parent=123 // pred_region
          %1122 = dma.done [#allocation6], 128
        $region132: #{decoder_forward.1} parent=123 // pred_fallthru
          _
        // Predicated region
        $region133: #{decoder_forward.1} parent=123 // pred_check
          %p1123 = pneg %p141
        $region134: #{decoder_forward.1} parent=123 // pred_check_branch
          %1125 = sbr.rel (%p1123) target = $region136
        $region135: #{decoder_forward.1} parent=123 // pred_region
          %1126 = dma.done [#allocation6], 16
        $region136: #{decoder_forward.1} parent=123 // pred_fallthru
          _
        // Predicated region
        $region137: #{decoder_forward.1} parent=123 // pred_check
          %p1127 = pneg %p162
        $region138: #{decoder_forward.1} parent=123 // pred_check_branch
          %1129 = sbr.rel (%p1127) target = $region140
        $region139: #{decoder_forward.1} parent=123 // pred_region
          %1130 = dma.done [#allocation9], 16
        $region140: #{decoder_forward.1} parent=123 // pred_fallthru
          _
        %s1131 = sand.u32 %s41, 1
        %s1132 = scalar_lea.sflag [#allocation3], %s1131
        %s1133 = sand.u32 %s201, 1
        %s1134 = scalar_lea.vmem [#allocation10], %s1133
        // Predicated region
        $region141: #{decoder_forward.1} parent=123 // pred_check
          %p1135 = pneg %p214
        $region142: #{decoder_forward.1} parent=123 // pred_check_branch
          %1137 = sbr.rel (%p1135) target = $region144
        $region143: #{decoder_forward.1} parent=123 // pred_region
          %1138 = dma.done %s1132, 16
        $region144: #{decoder_forward.1} parent=123 // pred_fallthru
          _
        %s1139 = sand.u32 %s41, 1
        %s1140 = scalar_lea.sflag [#allocation3], %s1139
        %s1141 = sand.u32 %s253, 1
        %s1142 = smul.addr %s1141, 3
        %s1143 = scalar_lea.vmem [#allocation11], %s1142
        // Predicated region
        $region145: #{decoder_forward.1} parent=123 // pred_check
          %p1144 = pneg %p266
        $region146: #{decoder_forward.1} parent=123 // pred_check_branch
          %1146 = sbr.rel (%p1144) target = $region148
        $region147: #{decoder_forward.1} parent=123 // pred_region
          %1147 = dma.done %s1140, 48
        $region148: #{decoder_forward.1} parent=123 // pred_fallthru
          _
        %s1148 = sand.u32 %s41, 1
        %s1149 = scalar_lea.sflag [#allocation3], %s1148
        %s1150 = sand.u32 %s279, 1
        %s1151 = smul.addr %s1150, 128
        %s1152 = scalar_lea.vmem [#allocation12], %s1151
        // Predicated region
        $region149: #{decoder_forward.1} parent=123 // pred_check
          %p1153 = pneg %p292
        $region150: #{decoder_forward.1} parent=123 // pred_check_branch
          %1155 = sbr.rel (%p1153) target = $region152
        $region151: #{decoder_forward.1} parent=123 // pred_region
          %1156 = dma.done %s1149, 2048
        $region152: #{decoder_forward.1} parent=123 // pred_fallthru
          _
        %s1157 = sand.u32 %s41, 1
        %s1158 = scalar_lea.sflag [#allocation3], %s1157
        %s1159 = sand.u32 %s305, 1
        %s1160 = scalar_lea.vmem [#allocation13], %s1159
        // Predicated region
        $region153: #{decoder_forward.1} parent=123 // pred_check
          %p1161 = pneg %p318
        $region154: #{decoder_forward.1} parent=123 // pred_check_branch
          %1163 = sbr.rel (%p1161) target = $region156
        $region155: #{decoder_forward.1} parent=123 // pred_region
          %1164 = dma.done %s1158, 16
        $region156: #{decoder_forward.1} parent=123 // pred_fallthru
          _
        %s1165 = sand.u32 %s41, 1
        %s1166 = scalar_lea.sflag [#allocation3], %s1165
        %s1167 = sand.u32 %s331, 1
        %s1168 = scalar_lea.vmem [#allocation14], %s1167
        // Predicated region
        $region157: #{decoder_forward.1} parent=123 // pred_check
          %p1169 = pneg %p344
        $region158: #{decoder_forward.1} parent=123 // pred_check_branch
          %1171 = sbr.rel (%p1169) target = $region160
        $region159: #{decoder_forward.1} parent=123 // pred_region
          %1172 = dma.done %s1166, 16
        $region160: #{decoder_forward.1} parent=123 // pred_fallthru
          _
        %s1173 = sand.u32 %s41, 1
        %s1174 = scalar_lea.sflag [#allocation3], %s1173
        %s1175 = sand.u32 %s357, 1
        %s1176 = scalar_lea.vmem [#allocation15], %s1175
        // Predicated region
        $region161: #{decoder_forward.1} parent=123 // pred_check
          %p1177 = pneg %p370
        $region162: #{decoder_forward.1} parent=123 // pred_check_branch
          %1179 = sbr.rel (%p1177) target = $region164
        $region163: #{decoder_forward.1} parent=123 // pred_region
          %1180 = dma.done %s1174, 16
        $region164: #{decoder_forward.1} parent=123 // pred_fallthru
          _
        %s1181 = sand.u32 %s41, 1
        %s1182 = scalar_lea.sflag [#allocation3], %s1181
        %s1183 = sand.u32 %s383, 1
        %s1184 = smul.addr %s1183, 128
        %s1185 = scalar_lea.vmem [#allocation16], %s1184
        // Predicated region
        $region165: #{decoder_forward.1} parent=123 // pred_check
          %p1186 = pneg %p396
        $region166: #{decoder_forward.1} parent=123 // pred_check_branch
          %1188 = sbr.rel (%p1186) target = $region168
        $region167: #{decoder_forward.1} parent=123 // pred_region
          %1189 = dma.done %s1182, 2048
        $region168: #{decoder_forward.1} parent=123 // pred_fallthru
          _
        %s1190 = sand.u32 %s41, 1
        %s1191 = scalar_lea.sflag [#allocation3], %s1190
        %s1192 = sand.u32 %s409, 1
        %s1193 = scalar_lea.vmem [#allocation17], %s1192
        // Predicated region
        $region169: #{decoder_forward.1} parent=123 // pred_check
          %p1194 = pneg %p422
        $region170: #{decoder_forward.1} parent=123 // pred_check_branch
          %1196 = sbr.rel (%p1194) target = $region172
        $region171: #{decoder_forward.1} parent=123 // pred_region
          %1197 = dma.done %s1191, 16
        $region172: #{decoder_forward.1} parent=123 // pred_fallthru
          _
        %s1198 = sand.u32 %s41, 1
        %s1199 = scalar_lea.sflag [#allocation3], %s1198
        %s1200 = sand.u32 %s435, 1
        %s1201 = smul.addr %s1200, 256
        %s1202 = scalar_lea.vmem [#allocation18], %s1201
        // Predicated region
        $region173: #{decoder_forward.1} parent=123 // pred_check
          %p1203 = pneg %p448
        $region174: #{decoder_forward.1} parent=123 // pred_check_branch
          %1205 = sbr.rel (%p1203) target = $region176
        $region175: #{decoder_forward.1} parent=123 // pred_region
          %1206 = dma.done %s1199, 4096
        $region176: #{decoder_forward.1} parent=123 // pred_fallthru
          _
        %s1207 = sand.u32 %s41, 1
        %s1208 = scalar_lea.sflag [#allocation3], %s1207
        %s1209 = sand.u32 %s487, 1
        %s1210 = smul.addr %s1209, 128
        %s1211 = scalar_lea.vmem [#allocation19], %s1210
        // Predicated region
        $region177: #{decoder_forward.1} parent=123 // pred_check
          %p1212 = pneg %p500
        $region178: #{decoder_forward.1} parent=123 // pred_check_branch
          %1214 = sbr.rel (%p1212) target = $region180
        $region179: #{decoder_forward.1} parent=123 // pred_region
          %1215 = dma.done %s1208, 2048
        $region180: #{decoder_forward.1} parent=123 // pred_fallthru
          _
        %s1216 = sand.u32 %s41, 1
        %s1217 = scalar_lea.sflag [#allocation3], %s1216
        %s1218 = sand.u32 %s513, 1
        %s1219 = scalar_lea.vmem [#allocation20], %s1218
        // Predicated region
        $region181: #{decoder_forward.1} parent=123 // pred_check
          %p1220 = pneg %p526
        $region182: #{decoder_forward.1} parent=123 // pred_check_branch
          %1222 = sbr.rel (%p1220) target = $region184
        $region183: #{decoder_forward.1} parent=123 // pred_region
          %1223 = dma.done %s1217, 16
        $region184: #{decoder_forward.1} parent=123 // pred_fallthru
          _
        %s1224 = sand.u32 %s41, 1
        %s1225 = scalar_lea.sflag [#allocation3], %s1224
        %s1226 = sand.u32 %s539, 1
        %s1227 = scalar_lea.vmem [#allocation21], %s1226
        // Predicated region
        $region185: #{decoder_forward.1} parent=123 // pred_check
          %p1228 = pneg %p552
        $region186: #{decoder_forward.1} parent=123 // pred_check_branch
          %1230 = sbr.rel (%p1228) target = $region188
        $region187: #{decoder_forward.1} parent=123 // pred_region
          %1231 = dma.done %s1225, 16
        $region188: #{decoder_forward.1} parent=123 // pred_fallthru
          _
        %s1232 = sand.u32 %s41, 1
        %s1233 = scalar_lea.sflag [#allocation3], %s1232
        %s1234 = sand.u32 %s565, 1
        %s1235 = scalar_lea.vmem [#allocation22], %s1234
        // Predicated region
        $region189: #{decoder_forward.1} parent=123 // pred_check
          %p1236 = pneg %p578
        $region190: #{decoder_forward.1} parent=123 // pred_check_branch
          %1238 = sbr.rel (%p1236) target = $region192
        $region191: #{decoder_forward.1} parent=123 // pred_region
          %1239 = dma.done %s1233, 16
        $region192: #{decoder_forward.1} parent=123 // pred_fallthru
          _
        %s1240 = sand.u32 %s41, 1
        %s1241 = scalar_lea.sflag [#allocation3], %s1240
        %s1242 = sand.u32 %s591, 1
        %s1243 = smul.addr %s1242, 128
        %s1244 = scalar_lea.vmem [#allocation23], %s1243
        // Predicated region
        $region193: #{decoder_forward.1} parent=123 // pred_check
          %p1245 = pneg %p604
        $region194: #{decoder_forward.1} parent=123 // pred_check_branch
          %1247 = sbr.rel (%p1245) target = $region196
        $region195: #{decoder_forward.1} parent=123 // pred_region
          %1248 = dma.done %s1241, 2048
        $region196: #{decoder_forward.1} parent=123 // pred_fallthru
          _
        %s1249 = sand.u32 %s41, 1
        %s1250 = scalar_lea.sflag [#allocation3], %s1249
        %s1251 = sand.u32 %s617, 1
        %s1252 = scalar_lea.vmem [#allocation24], %s1251
        // Predicated region
        $region197: #{decoder_forward.1} parent=123 // pred_check
          %p1253 = pneg %p630
        $region198: #{decoder_forward.1} parent=123 // pred_check_branch
          %1255 = sbr.rel (%p1253) target = $region200
        $region199: #{decoder_forward.1} parent=123 // pred_region
          %1256 = dma.done %s1250, 16
        $region200: #{decoder_forward.1} parent=123 // pred_fallthru
          _
        %s1257 = sand.u32 %s41, 1
        %s1258 = scalar_lea.sflag [#allocation3], %s1257
        %s1259 = sand.u32 %s643, 1
        %s1260 = smul.addr %s1259, 128
        %s1261 = scalar_lea.vmem [#allocation25], %s1260
        // Predicated region
        $region201: #{decoder_forward.1} parent=123 // pred_check
          %p1262 = pneg %p656
        $region202: #{decoder_forward.1} parent=123 // pred_check_branch
          %1264 = sbr.rel (%p1262) target = $region204
        $region203: #{decoder_forward.1} parent=123 // pred_region
          %1265 = dma.done %s1258, 2048
        $region204: #{decoder_forward.1} parent=123 // pred_fallthru
          _
        %s1266 = sand.u32 %s41, 1
        %s1267 = scalar_lea.sflag [#allocation3], %s1266
        %s1268 = sand.u32 %s669, 1
        %s1269 = scalar_lea.vmem [#allocation26], %s1268
        // Predicated region
        $region205: #{decoder_forward.1} parent=123 // pred_check
          %p1270 = pneg %p682
        $region206: #{decoder_forward.1} parent=123 // pred_check_branch
          %1272 = sbr.rel (%p1270) target = $region208
        $region207: #{decoder_forward.1} parent=123 // pred_region
          %1273 = dma.done %s1267, 16
        $region208: #{decoder_forward.1} parent=123 // pred_fallthru
          _
        %p1274 = pneg %p57
        %p1275 = pneg %p54
        %p1276 = pneg %p78
        %p1277 = pneg %p75
        %p1278 = pneg %p99
        %p1279 = pneg %p96
        %p1280 = pneg %p120
        %p1281 = pneg %p117
        %p1282 = pneg %p141
        %p1283 = pneg %p138
        %p1284 = pneg %p162
        %p1285 = pneg %p159
        %p1286 = scmp.lt.s32.totalorder %s41, 1
        %s1287 = scalar_select %p1286, %s41, 1
        %s1288 = scalar_lea.vmem %s6, %s1287
        %p1289 = pneg %p188
        %p1290 = pneg %p185
        %s1291 = sand.u32 %s41, 1
        %s1292 = scalar_lea.sflag [#allocation3], %s1291
        %s1293 = sand.u32 %s201, 1
        %s1294 = scalar_lea.vmem [#allocation10], %s1293
        %p1295 = pneg %p214
        %p1296 = pneg %p211
        %p1297 = scmp.lt.s32.totalorder %s41, 1
        %s1298 = scalar_select %p1297, %s41, 1
        %s1299 = smul.addr %s1298, 48
        %s1300 = smul.addr %s1299, 8
        %s1301 = scalar_lea.vmem %s8, %s1300
        %p1302 = pneg %p240
        %p1303 = pneg %p237
        %s1304 = sand.u32 %s41, 1
        %s1305 = scalar_lea.sflag [#allocation3], %s1304
        %s1306 = sand.u32 %s253, 1
        %s1307 = smul.addr %s1306, 3
        %s1308 = scalar_lea.vmem [#allocation11], %s1307
        %p1309 = pneg %p266
        %p1310 = pneg %p263
        %s1311 = sand.u32 %s41, 1
        %s1312 = scalar_lea.sflag [#allocation3], %s1311
        %s1313 = sand.u32 %s279, 1
        %s1314 = smul.addr %s1313, 128
        %s1315 = scalar_lea.vmem [#allocation12], %s1314
        %p1316 = pneg %p292
        %p1317 = pneg %p289
        %s1318 = sand.u32 %s41, 1
        %s1319 = scalar_lea.sflag [#allocation3], %s1318
        %s1320 = sand.u32 %s305, 1
        %s1321 = scalar_lea.vmem [#allocation13], %s1320
        %p1322 = pneg %p318
        %p1323 = pneg %p315
        %s1324 = sand.u32 %s41, 1
        %s1325 = scalar_lea.sflag [#allocation3], %s1324
        %s1326 = sand.u32 %s331, 1
        %s1327 = scalar_lea.vmem [#allocation14], %s1326
        %p1328 = pneg %p344
        %p1329 = pneg %p341
        %s1330 = sand.u32 %s41, 1
        %s1331 = scalar_lea.sflag [#allocation3], %s1330
        %s1332 = sand.u32 %s357, 1
        %s1333 = scalar_lea.vmem [#allocation15], %s1332
        %p1334 = pneg %p370
        %p1335 = pneg %p367
        %s1336 = sand.u32 %s41, 1
        %s1337 = scalar_lea.sflag [#allocation3], %s1336
        %s1338 = sand.u32 %s383, 1
        %s1339 = smul.addr %s1338, 128
        %s1340 = scalar_lea.vmem [#allocation16], %s1339
        %p1341 = pneg %p396
        %p1342 = pneg %p393
        %s1343 = sand.u32 %s41, 1
        %s1344 = scalar_lea.sflag [#allocation3], %s1343
        %s1345 = sand.u32 %s409, 1
        %s1346 = scalar_lea.vmem [#allocation17], %s1345
        %p1347 = pneg %p422
        %p1348 = pneg %p419
        %s1349 = sand.u32 %s41, 1
        %s1350 = scalar_lea.sflag [#allocation3], %s1349
        %s1351 = sand.u32 %s435, 1
        %s1352 = smul.addr %s1351, 256
        %s1353 = scalar_lea.vmem [#allocation18], %s1352
        %p1354 = pneg %p448
        %p1355 = pneg %p445
        %p1356 = scmp.lt.s32.totalorder %s41, 1
        %s1357 = scalar_select %p1356, %s41, 1
        %s1358 = smul.addr %s1357, 2
        %s1359 = scalar_lea.vmem %s17, %s1358
        %p1360 = pneg %p474
        %p1361 = pneg %p471
        %s1362 = sand.u32 %s41, 1
        %s1363 = scalar_lea.sflag [#allocation3], %s1362
        %s1364 = sand.u32 %s487, 1
        %s1365 = smul.addr %s1364, 128
        %s1366 = scalar_lea.vmem [#allocation19], %s1365
        %p1367 = pneg %p500
        %p1368 = pneg %p497
        %s1369 = sand.u32 %s41, 1
        %s1370 = scalar_lea.sflag [#allocation3], %s1369
        %s1371 = sand.u32 %s513, 1
        %s1372 = scalar_lea.vmem [#allocation20], %s1371
        %p1373 = pneg %p526
        %p1374 = pneg %p523
        %s1375 = sand.u32 %s41, 1
        %s1376 = scalar_lea.sflag [#allocation3], %s1375
        %s1377 = sand.u32 %s539, 1
        %s1378 = scalar_lea.vmem [#allocation21], %s1377
        %p1379 = pneg %p552
        %p1380 = pneg %p549
        %s1381 = sand.u32 %s41, 1
        %s1382 = scalar_lea.sflag [#allocation3], %s1381
        %s1383 = sand.u32 %s565, 1
        %s1384 = scalar_lea.vmem [#allocation22], %s1383
        %p1385 = pneg %p578
        %p1386 = pneg %p575
        %s1387 = sand.u32 %s41, 1
        %s1388 = scalar_lea.sflag [#allocation3], %s1387
        %s1389 = sand.u32 %s591, 1
        %s1390 = smul.addr %s1389, 128
        %s1391 = scalar_lea.vmem [#allocation23], %s1390
        %p1392 = pneg %p604
        %p1393 = pneg %p601
        %s1394 = sand.u32 %s41, 1
        %s1395 = scalar_lea.sflag [#allocation3], %s1394
        %s1396 = sand.u32 %s617, 1
        %s1397 = scalar_lea.vmem [#allocation24], %s1396
        %p1398 = pneg %p630
        %p1399 = pneg %p627
        %s1400 = sand.u32 %s41, 1
        %s1401 = scalar_lea.sflag [#allocation3], %s1400
        %s1402 = sand.u32 %s643, 1
        %s1403 = smul.addr %s1402, 128
        %s1404 = scalar_lea.vmem [#allocation25], %s1403
        %p1405 = pneg %p656
        %p1406 = pneg %p653
        %s1407 = sand.u32 %s41, 1
        %s1408 = scalar_lea.sflag [#allocation3], %s1407
        %s1409 = sand.u32 %s669, 1
        %s1410 = scalar_lea.vmem [#allocation26], %s1409
        %p1411 = pneg %p682
        %p1412 = pneg %p679
        %p1413 = pneg %p703
        %p1414 = pneg %p700
        %p1415 = scmp.lt.s32.totalorder %s41, 1
        %s1416 = scalar_select %p1415, %s41, 1
        %s1417 = scalar_lea.vmem %s6, %s1416
        %p1418 = scmp.lt.s32.totalorder %s41, 1
        %s1419 = scalar_select %p1418, %s41, 1
        %s1420 = smul.addr %s1419, 48
        %s1421 = smul.addr %s1420, 8
        %s1422 = scalar_lea.vmem %s8, %s1421
        %p1423 = scmp.lt.s32.totalorder %s41, 1
        %s1424 = scalar_select %p1423, %s41, 1
        %s1425 = smul.addr %s1424, 2
        %s1426 = scalar_lea.vmem %s17, %s1425
        %p1427 = scmp.eq.s32.totalorder %s41, 0
        // Predicated region
        $region209: #{decoder_forward.1} parent=123 // pred_check
          %p1428 = pneg %p1427
        $region210: #{decoder_forward.1} parent=123 // pred_check_branch
          %1430 = sbr.rel (%p1428) target = $region212
        $region211: #{decoder_forward.1} parent=123 // pred_region
          %v1431 = vld [vmem:[#allocation2] sm:$0xff]
          %1432 = vst [vmem:[#allocation27] sm:$0xff] %v1431
        $region212: #{decoder_forward.1} parent=123 // pred_fallthru
          _
        %v1433 = vld [vmem:[#allocation27] sm:$0xff]
        %v1434 = vld [vmem:[#allocation5] sm:$0xff]
        %v1435 = vld [vmem:[%s1417] sm:$0x1]
        %v1436 = vld [vmem:[%s1134] sm:$0x1]
        %1437 = vadd.xlane.f32.xlu0 %v1433
        %v1438 = vpop.xlane.xlu0 %1437
        %v1439 = vrcp.pop 128.0
        %v1440 = vmul.f32 %v1438, %v1439
        %v1441 = vsub.f32 %v1433, %v1440
        %v1442 = vmul.f32 %v1441, %v1441
        %1443 = vadd.xlane.f32.xlu0 %v1442
        %v1444 = vpop.xlane.xlu0 %1443
        %v1445 = vmul.f32 %v1444, 0.007874016
        %v1446 = vrsqrt.pop %v1445
        %v1447 = vmul.f32 %v1445, %v1446
        %vm1448 = vcmp.eq.f32.partialorder %v1445, inf
        %v1449 = vsel %vm1448, %v1445, %v1447
        %vm1450 = vcmp.eq.f32.partialorder %v1445, 0.0
        %v1451 = vand.u32 %v1445, 2147483648
        %v1452 = vsel %vm1450, %v1451, %v1449
        %v1453 = vadd.f32 %v1452, 1e-06
        %v1454 = vrcp.pop %v1453
        %v1455 = vmul.f32 %v1441, %v1454
        %v1457 = vlaneseq
        %v1458 = vshrl.u32 %v1457, 7
        %v1459 = vsub.s32 0, %v1458
        %v1460 = vrot.slane %v1435, %v1459
        %v1462 = vmul.f32 %v1460, %v1455
        %v1464 = vlaneseq
        %v1465 = vshrl.u32 %v1464, 7
        %v1466 = vsub.s32 0, %v1465
        %v1467 = vrot.slane %v1436, %v1466
        %v1469 = vadd.f32 %v1462, %v1467
        %v1470 = vld [vmem:[%s1422] sm:$0xff]
        %v1471 = vld [vmem:[%s1422 + $0x8] sm:$0xff]
        %v1472 = vld [vmem:[%s1422 + $0x10] sm:$0xff]
        %v1473 = vld [vmem:[%s1422 + $0x18] sm:$0xff]
        %v1474 = vld [vmem:[%s1422 + $0x20] sm:$0xff]
        %v1475 = vld [vmem:[%s1422 + $0x28] sm:$0xff]
        %v1476 = vld [vmem:[%s1422 + $0x30] sm:$0xff]
        %v1477 = vld [vmem:[%s1422 + $0x38] sm:$0xff]
        %v1478 = vld [vmem:[%s1422 + $0x40] sm:$0xff]
        %v1479 = vld [vmem:[%s1422 + $0x48] sm:$0xff]
        %v1480 = vld [vmem:[%s1422 + $0x50] sm:$0xff]
        %v1481 = vld [vmem:[%s1422 + $0x58] sm:$0xff]
        %v1482 = vld [vmem:[%s1422 + $0x60] sm:$0xff]
        %v1483 = vld [vmem:[%s1422 + $0x68] sm:$0xff]
        %v1484 = vld [vmem:[%s1422 + $0x70] sm:$0xff]
        %v1485 = vld [vmem:[%s1422 + $0x78] sm:$0xff]
        %v1486 = vld [vmem:[%s1422 + $0x80] sm:$0xff]
        %v1487 = vld [vmem:[%s1422 + $0x88] sm:$0xff]
        %v1488 = vld [vmem:[%s1422 + $0x90] sm:$0xff]
        %v1489 = vld [vmem:[%s1422 + $0x98] sm:$0xff]
        %v1490 = vld [vmem:[%s1422 + $0xa0] sm:$0xff]
        %v1491 = vld [vmem:[%s1422 + $0xa8] sm:$0xff]
        %v1492 = vld [vmem:[%s1422 + $0xb0] sm:$0xff]
        %v1493 = vld [vmem:[%s1422 + $0xb8] sm:$0xff]
        %v1494 = vld [vmem:[%s1422 + $0xc0] sm:$0xff]
        %v1495 = vld [vmem:[%s1422 + $0xc8] sm:$0xff]
        %v1496 = vld [vmem:[%s1422 + $0xd0] sm:$0xff]
        %v1497 = vld [vmem:[%s1422 + $0xd8] sm:$0xff]
        %v1498 = vld [vmem:[%s1422 + $0xe0] sm:$0xff]
        %v1499 = vld [vmem:[%s1422 + $0xe8] sm:$0xff]
        %v1500 = vld [vmem:[%s1422 + $0xf0] sm:$0xff]
        %v1501 = vld [vmem:[%s1422 + $0xf8] sm:$0xff]
        %v1502 = vld [vmem:[%s1422 + $0x100] sm:$0xff]
        %v1503 = vld [vmem:[%s1422 + $0x108] sm:$0xff]
        %v1504 = vld [vmem:[%s1422 + $0x110] sm:$0xff]
        %v1505 = vld [vmem:[%s1422 + $0x118] sm:$0xff]
        %v1506 = vld [vmem:[%s1422 + $0x120] sm:$0xff]
        %v1507 = vld [vmem:[%s1422 + $0x128] sm:$0xff]
        %v1508 = vld [vmem:[%s1422 + $0x130] sm:$0xff]
        %v1509 = vld [vmem:[%s1422 + $0x138] sm:$0xff]
        %v1510 = vld [vmem:[%s1422 + $0x140] sm:$0xff]
        %v1511 = vld [vmem:[%s1422 + $0x148] sm:$0xff]
        %v1512 = vld [vmem:[%s1422 + $0x150] sm:$0xff]
        %v1513 = vld [vmem:[%s1422 + $0x158] sm:$0xff]
        %v1514 = vld [vmem:[%s1422 + $0x160] sm:$0xff]
        %v1515 = vld [vmem:[%s1422 + $0x168] sm:$0xff]
        %v1516 = vld [vmem:[%s1422 + $0x170] sm:$0xff]
        %v1517 = vld [vmem:[%s1422 + $0x178] sm:$0xff]
        %v1518 = vld [vmem:[%s1143] sm:$0x7]
        %v1520 = vlaneseq
        %v1521 = vshrl.u32 %v1520, 7
        %v1522 = vsub.s32 0, %v1521
        %v1523 = vrot.slane %v1518, %v1522
        %v1524 = vlaneseq
        %v1525 = vshrl.u32 %v1524, 7
        %v1526 = vsub.s32 1, %v1525
        %v1527 = vrot.slane %v1518, %v1526
        %v1528 = vlaneseq
        %v1529 = vshrl.u32 %v1528, 7
        %v1530 = vsub.s32 2, %v1529
        %v1531 = vrot.slane %v1518, %v1530
        %1535 = vmatprep.subr.mxu0 %v1516
        %1536 = vmatpush1.msra.mxu0 %v1515
        %1537 = vmatprep.subr.mxu0 %v1513
        %1538 = vmatpush1.msra.mxu0 %v1512
        %1539 = vmatprep.subr.mxu0 %v1510
        %1540 = vmatpush1.msra.mxu0 %v1509
        %1541 = vmatprep.subr.mxu0 %v1507
        %1542 = vmatpush1.msra.mxu0 %v1506
        %1543 = vmatprep.subr.mxu0 %v1504
        %1544 = vmatpush1.msra.mxu0 %v1503
        %1545 = vmatprep.subr.mxu0 %v1501
        %1546 = vmatpush1.msra.mxu0 %v1500
        %1547 = vmatprep.subr.mxu0 %v1498
        %1548 = vmatpush1.msra.mxu0 %v1497
        %1549 = vmatprep.subr.mxu0 %v1495
        %1550 = vmatpush1.msra.mxu0 %v1494
        %1551 = vmatprep.subr.mxu0 %v1492
        %1552 = vmatpush1.msra.mxu0 %v1491
        %1553 = vmatprep.subr.mxu0 %v1489
        %1554 = vmatpush1.msra.mxu0 %v1488
        %1555 = vmatprep.subr.mxu0 %v1486
        %1556 = vmatpush1.msra.mxu0 %v1485
        %1557 = vmatprep.subr.mxu0 %v1483
        %1558 = vmatpush1.msra.mxu0 %v1482
        %1559 = vmatprep.subr.mxu0 %v1480
        %1560 = vmatpush1.msra.mxu0 %v1479
        %1561 = vmatprep.subr.mxu0 %v1477
        %1562 = vmatpush1.msra.mxu0 %v1476
        %1563 = vmatprep.subr.mxu0 %v1474
        %1564 = vmatpush1.msra.mxu0 %v1473
        %1565 = vmatprep.subr.mxu0 %v1471
        %1566 = vmatpush1.msra.mxu0 %v1470
        %1567 = vmatprep.subr.mxu0 0.0
        %1568 = vmatpush2.msra.mxu0 0.0
        %1569 = vmatprep.subr.mxu0 0.0
        %1570 = vmatpush2.msra.mxu0 0.0
        %1571 = vmatprep.subr.mxu0 0.0
        %1572 = vmatpush2.msra.mxu0 0.0
        %1573 = vmatprep.subr.mxu0 0.0
        %1574 = vmatpush2.msra.mxu0 0.0
        %1575 = vmatprep.subr.mxu0 0.0
        %1576 = vmatpush2.msra.mxu0 0.0
        %1577 = vmatprep.subr.mxu0 0.0
        %1578 = vmatpush2.msra.mxu0 0.0
        %1579 = vmatprep.subr.mxu0 0.0
        %1580 = vmatpush2.msra.mxu0 0.0
        %1581 = vmatprep.subr.mxu0 0.0
        %1582 = vmatpush2.msra.mxu0 0.0
        %1583 = vmatprep.subr.mxu0 0.0
        %1584 = vmatpush2.msra.mxu0 0.0
        %1585 = vmatprep.subr.mxu0 0.0
        %1586 = vmatpush2.msra.mxu0 0.0
        %1587 = vmatprep.subr.mxu0 0.0
        %1588 = vmatpush2.msra.mxu0 0.0
        %1589 = vmatprep.subr.mxu0 0.0
        %1590 = vmatpush2.msra.mxu0 0.0
        %1591 = vmatprep.subr.mxu0 0.0
        %1592 = vmatpush2.msra.mxu0 0.0
        %1593 = vmatprep.subr.mxu0 0.0
        %1594 = vmatpush2.msra.mxu0 0.0
        %1595 = vmatprep.subr.mxu0 0.0
        %1596 = vmatpush2.msra.mxu0 0.0
        %1597 = vmatprep.subr.mxu0 0.0
        %1598 = vmatpush2.msra.mxu0 0.0
        %1599 = vmatprep.mubr.f32.mxu0 0.0
        %1600 = vmatmul.mubr.f32.gmra.mxu0 %v1469
        %v1601 = vpop.f32.mrf.mxu0
        %v1602 = vadd.f32 %v1523, %v1601
        %v1603 = vpop.f32.mrf.mxu0
        %v1604 = vadd.f32 %v1527, %v1603
        %1605 = vdwg.mxu0
        %1606 = vmatprep.subr.mxu0 0.0
        %1607 = vmatpush1.msra.mxu0 %v1517
        %1608 = vmatprep.subr.mxu0 0.0
        %1609 = vmatpush1.msra.mxu0 %v1514
        %1610 = vmatprep.subr.mxu0 0.0
        %1611 = vmatpush1.msra.mxu0 %v1511
        %1612 = vmatprep.subr.mxu0 0.0
        %1613 = vmatpush1.msra.mxu0 %v1508
        %1614 = vmatprep.subr.mxu0 0.0
        %1615 = vmatpush1.msra.mxu0 %v1505
        %1616 = vmatprep.subr.mxu0 0.0
        %1617 = vmatpush1.msra.mxu0 %v1502
        %1618 = vmatprep.subr.mxu0 0.0
        %1619 = vmatpush1.msra.mxu0 %v1499
        %1620 = vmatprep.subr.mxu0 0.0
        %1621 = vmatpush1.msra.mxu0 %v1496
        %1622 = vmatprep.subr.mxu0 0.0
        %1623 = vmatpush1.msra.mxu0 %v1493
        %1624 = vmatprep.subr.mxu0 0.0
        %1625 = vmatpush1.msra.mxu0 %v1490
        %1626 = vmatprep.subr.mxu0 0.0
        %1627 = vmatpush1.msra.mxu0 %v1487
        %1628 = vmatprep.subr.mxu0 0.0
        %1629 = vmatpush1.msra.mxu0 %v1484
        %1630 = vmatprep.subr.mxu0 0.0
        %1631 = vmatpush1.msra.mxu0 %v1481
        %1632 = vmatprep.subr.mxu0 0.0
        %1633 = vmatpush1.msra.mxu0 %v1478
        %1634 = vmatprep.subr.mxu0 0.0
        %1635 = vmatpush1.msra.mxu0 %v1475
        %1636 = vmatprep.subr.mxu0 0.0
        %1637 = vmatpush1.msra.mxu0 %v1472
        %1638 = vmatprep.subr.mxu0 0.0
        %1639 = vmatpush2.msra.mxu0 0.0
        %1640 = vmatprep.subr.mxu0 0.0
        %1641 = vmatpush2.msra.mxu0 0.0
        %1642 = vmatprep.subr.mxu0 0.0
        %1643 = vmatpush2.msra.mxu0 0.0
        %1644 = vmatprep.subr.mxu0 0.0
        %1645 = vmatpush2.msra.mxu0 0.0
        %1646 = vmatprep.subr.mxu0 0.0
        %1647 = vmatpush2.msra.mxu0 0.0
        %1648 = vmatprep.subr.mxu0 0.0
        %1649 = vmatpush2.msra.mxu0 0.0
        %1650 = vmatprep.subr.mxu0 0.0
        %1651 = vmatpush2.msra.mxu0 0.0
        %1652 = vmatprep.subr.mxu0 0.0
        %1653 = vmatpush2.msra.mxu0 0.0
        %1654 = vmatprep.subr.mxu0 0.0
        %1655 = vmatpush2.msra.mxu0 0.0
        %1656 = vmatprep.subr.mxu0 0.0
        %1657 = vmatpush2.msra.mxu0 0.0
        %1658 = vmatprep.subr.mxu0 0.0
        %1659 = vmatpush2.msra.mxu0 0.0
        %1660 = vmatprep.subr.mxu0 0.0
        %1661 = vmatpush2.msra.mxu0 0.0
        %1662 = vmatprep.subr.mxu0 0.0
        %1663 = vmatpush2.msra.mxu0 0.0
        %1664 = vmatprep.subr.mxu0 0.0
        %1665 = vmatpush2.msra.mxu0 0.0
        %1666 = vmatprep.subr.mxu0 0.0
        %1667 = vmatpush2.msra.mxu0 0.0
        %1668 = vmatprep.subr.mxu0 0.0
        %1669 = vmatpush2.msra.mxu0 0.0
        %1670 = vmatprep.mubr.f32.mxu0 0.0
        %1671 = vmatmul.mubr.f32.gmra.mxu0 %v1469
        %v1672 = vpop.f32.mrf.mxu0
        %v1673 = vadd.f32 %v1531, %v1672
        %v1674 = vpop.f32.mrf.mxu0
        %1675 = vdwg.mxu0
        %v1676 = vmul.f32 %v1602, 0.25
        %v1677 = vld [vmem:[%s2] sm:$0xff]
        %v1678 = vld [vmem:[%s2 + $0x8] sm:$0xff]
        %v1679 = vld [vmem:[%s2 + $0x10] sm:$0xff]
        %v1680 = vld [vmem:[%s2 + $0x18] sm:$0xff]
        %v1681 = vld [vmem:[%s2 + $0x20] sm:$0xff]
        %v1682 = vld [vmem:[%s2 + $0x28] sm:$0xff]
        %v1683 = vld [vmem:[%s2 + $0x30] sm:$0xff]
        %v1684 = vld [vmem:[%s2 + $0x38] sm:$0xff]
        %v1685 = vld [vmem:[%s1152] sm:$0xff]
        %v1686 = vld [vmem:[%s1152 + $0x8] sm:$0xff]
        %v1687 = vld [vmem:[%s1152 + $0x10] sm:$0xff]
        %v1688 = vld [vmem:[%s1152 + $0x18] sm:$0xff]
        %v1689 = vld [vmem:[%s1152 + $0x20] sm:$0xff]
        %v1690 = vld [vmem:[%s1152 + $0x28] sm:$0xff]
        %v1691 = vld [vmem:[%s1152 + $0x30] sm:$0xff]
        %v1692 = vld [vmem:[%s1152 + $0x38] sm:$0xff]
        %v1693 = vld [vmem:[%s1152 + $0x40] sm:$0xff]
        %v1694 = vld [vmem:[%s1152 + $0x48] sm:$0xff]
        %v1695 = vld [vmem:[%s1152 + $0x50] sm:$0xff]
        %v1696 = vld [vmem:[%s1152 + $0x58] sm:$0xff]
        %v1697 = vld [vmem:[%s1152 + $0x60] sm:$0xff]
        %v1698 = vld [vmem:[%s1152 + $0x68] sm:$0xff]
        %v1699 = vld [vmem:[%s1152 + $0x70] sm:$0xff]
        %v1700 = vld [vmem:[%s1152 + $0x78] sm:$0xff]
        %v1701 = vld [vmem:[%s1160] sm:$0x1]
        %vm1702 = vcmask 130048
        %v1704 = vsel %vm1702, %v1676, 0
        %v1707 = vsel %vm1702, %v1604, 0
        %1709 = vmatprep.subr.mxu0 0.0
        %1710 = vmatpush1.xpose.msra.mxu0 0.0
        %1711 = vmatprep.subr.mxu0 0.0
        %1712 = vmatpush1.xpose.msra.mxu0 0.0
        %1713 = vmatprep.subr.mxu0 0.0
        %1714 = vmatpush1.xpose.msra.mxu0 0.0
        %1715 = vmatprep.subr.mxu0 0.0
        %1716 = vmatpush1.xpose.msra.mxu0 0.0
        %1717 = vmatprep.subr.mxu0 0.0
        %1718 = vmatpush1.xpose.msra.mxu0 0.0
        %1719 = vmatprep.subr.mxu0 0.0
        %1720 = vmatpush1.xpose.msra.mxu0 0.0
        %1721 = vmatprep.subr.mxu0 0.0
        %1722 = vmatpush1.xpose.msra.mxu0 0.0
        %1723 = vmatprep.subr.mxu0 0.0
        %1724 = vmatpush1.xpose.msra.mxu0 0.0
        %1725 = vmatprep.subr.mxu0 0.0
        %1726 = vmatpush1.xpose.msra.mxu0 0.0
        %1727 = vmatprep.subr.mxu0 0.0
        %1728 = vmatpush1.xpose.msra.mxu0 0.0
        %1729 = vmatprep.subr.mxu0 0.0
        %1730 = vmatpush1.xpose.msra.mxu0 0.0
        %1731 = vmatprep.subr.mxu0 0.0
        %1732 = vmatpush1.xpose.msra.mxu0 0.0
        %1733 = vmatprep.subr.mxu0 0.0
        %1734 = vmatpush1.xpose.msra.mxu0 0.0
        %1735 = vmatprep.subr.mxu0 0.0
        %1736 = vmatpush1.xpose.msra.mxu0 0.0
        %1737 = vmatprep.subr.mxu0 0.0
        %1738 = vmatpush1.xpose.msra.mxu0 0.0
        %1739 = vmatprep.subr.mxu0 0.0
        %1740 = vmatpush1.xpose.msra.mxu0 %v1707
        %1741 = vmatprep.subr.mxu0 0.0
        %1742 = vmatpush2.xpose.msra.mxu0 0.0
        %1743 = vmatprep.subr.mxu0 0.0
        %1744 = vmatpush2.xpose.msra.mxu0 0.0
        %1745 = vmatprep.subr.mxu0 0.0
        %1746 = vmatpush2.xpose.msra.mxu0 0.0
        %1747 = vmatprep.subr.mxu0 0.0
        %1748 = vmatpush2.xpose.msra.mxu0 0.0
        %1749 = vmatprep.subr.mxu0 0.0
        %1750 = vmatpush2.xpose.msra.mxu0 0.0
        %1751 = vmatprep.subr.mxu0 0.0
        %1752 = vmatpush2.xpose.msra.mxu0 0.0
        %1753 = vmatprep.subr.mxu0 0.0
        %1754 = vmatpush2.xpose.msra.mxu0 0.0
        %1755 = vmatprep.subr.mxu0 0.0
        %1756 = vmatpush2.xpose.msra.mxu0 0.0
        %1757 = vmatprep.subr.mxu0 0.0
        %1758 = vmatpush2.xpose.msra.mxu0 0.0
        %1759 = vmatprep.subr.mxu0 0.0
        %1760 = vmatpush2.xpose.msra.mxu0 0.0
        %1761 = vmatprep.subr.mxu0 0.0
        %1762 = vmatpush2.xpose.msra.mxu0 0.0
        %1763 = vmatprep.subr.mxu0 0.0
        %1764 = vmatpush2.xpose.msra.mxu0 0.0
        %1765 = vmatprep.subr.mxu0 0.0
        %1766 = vmatpush2.xpose.msra.mxu0 0.0
        %1767 = vmatprep.subr.mxu0 0.0
        %1768 = vmatpush2.xpose.msra.mxu0 0.0
        %1769 = vmatprep.subr.mxu0 0.0
        %1770 = vmatpush2.xpose.msra.mxu0 0.0
        %1771 = vmatprep.subr.mxu0 0.0
        %1772 = vmatpush2.xpose.msra.mxu0 0.0
        %1773 = vmatprep.mubr.f32.mxu0 0.0
        %1774 = vmatmul.mubr.f32.gmra.mxu0 %v1704
        %v1775 = vpop.f32.mrf.mxu0
        %v1776 = vadd.f32 %v1677, %v1775
        %v1777 = vpop.f32.mrf.mxu0
        %1778 = vdwg.mxu0
        %vm1779 = vcmask 64512
        %v1780 = vsel %vm1779, %v1776, -inf
        %1781 = vmax.xlane.f32.xlu0 %v1780
        %v1782 = vpop.xlane.xlu0 %1781
        %v1783 = vsub.f32 %v1776, %v1782
        %v1784 = vmul.f32 %v1783, 1.442695
        %v1785 = vpow.pop %v1784
        %v1786 = vsel %vm1779, %v1785, 0.0
        %1787 = vadd.xlane.f32.xlu0 %v1786
        %v1788 = vpop.xlane.xlu0 %1787
        %v1789 = vrcp.pop %v1788
        %v1790 = vmul.f32 %v1785, %v1789
        %v1792 = vsel %vm1779, %v1790, 0
        %1794 = vmatprep.subr.mxu0 0.0
        %1795 = vmatpush1.msra.mxu0 0.0
        %1796 = vmatprep.subr.mxu0 0.0
        %1797 = vmatpush1.msra.mxu0 0.0
        %1798 = vmatprep.subr.mxu0 0.0
        %1799 = vmatpush1.msra.mxu0 0.0
        %1800 = vmatprep.subr.mxu0 0.0
        %1801 = vmatpush1.msra.mxu0 0.0
        %1802 = vmatprep.subr.mxu0 0.0
        %1803 = vmatpush1.msra.mxu0 0.0
        %1804 = vmatprep.subr.mxu0 0.0
        %1805 = vmatpush1.msra.mxu0 0.0
        %1806 = vmatprep.subr.mxu0 0.0
        %1807 = vmatpush1.msra.mxu0 0.0
        %1808 = vmatprep.subr.mxu0 0.0
        %1809 = vmatpush1.msra.mxu0 0.0
        %1810 = vmatprep.subr.mxu0 0.0
        %1811 = vmatpush1.msra.mxu0 0.0
        %1812 = vmatprep.subr.mxu0 0.0
        %1813 = vmatpush1.msra.mxu0 0.0
        %1814 = vmatprep.subr.mxu0 0.0
        %1815 = vmatpush1.msra.mxu0 0.0
        %1816 = vmatprep.subr.mxu0 0.0
        %1817 = vmatpush1.msra.mxu0 0.0
        %1818 = vmatprep.subr.mxu0 0.0
        %1819 = vmatpush1.msra.mxu0 0.0
        %1820 = vmatprep.subr.mxu0 0.0
        %1821 = vmatpush1.msra.mxu0 0.0
        %1822 = vmatprep.subr.mxu0 0.0
        %1823 = vmatpush1.msra.mxu0 0.0
        %1824 = vmatprep.subr.mxu0 0.0
        %1825 = vmatpush1.msra.mxu0 %v1673
        %1826 = vmatprep.subr.mxu0 0.0
        %1827 = vmatpush2.msra.mxu0 0.0
        %1828 = vmatprep.subr.mxu0 0.0
        %1829 = vmatpush2.msra.mxu0 0.0
        %1830 = vmatprep.subr.mxu0 0.0
        %1831 = vmatpush2.msra.mxu0 0.0
        %1832 = vmatprep.subr.mxu0 0.0
        %1833 = vmatpush2.msra.mxu0 0.0
        %1834 = vmatprep.subr.mxu0 0.0
        %1835 = vmatpush2.msra.mxu0 0.0
        %1836 = vmatprep.subr.mxu0 0.0
        %1837 = vmatpush2.msra.mxu0 0.0
        %1838 = vmatprep.subr.mxu0 0.0
        %1839 = vmatpush2.msra.mxu0 0.0
        %1840 = vmatprep.subr.mxu0 0.0
        %1841 = vmatpush2.msra.mxu0 0.0
        %1842 = vmatprep.subr.mxu0 0.0
        %1843 = vmatpush2.msra.mxu0 0.0
        %1844 = vmatprep.subr.mxu0 0.0
        %1845 = vmatpush2.msra.mxu0 0.0
        %1846 = vmatprep.subr.mxu0 0.0
        %1847 = vmatpush2.msra.mxu0 0.0
        %1848 = vmatprep.subr.mxu0 0.0
        %1849 = vmatpush2.msra.mxu0 0.0
        %1850 = vmatprep.subr.mxu0 0.0
        %1851 = vmatpush2.msra.mxu0 0.0
        %1852 = vmatprep.subr.mxu0 0.0
        %1853 = vmatpush2.msra.mxu0 0.0
        %1854 = vmatprep.subr.mxu0 0.0
        %1855 = vmatpush2.msra.mxu0 0.0
        %1856 = vmatprep.subr.mxu0 0.0
        %1857 = vmatpush2.msra.mxu0 0.0
        %1858 = vmatprep.mubr.f32.mxu0 0.0
        %1859 = vmatmul.mubr.f32.gmra.mxu0 %v1792
        %v1860 = vpop.f32.mrf.mxu0
        %v1861 = vadd.f32 0.0, %v1860
        %v1862 = vpop.f32.mrf.mxu0
        %1863 = vdwg.mxu0
        %1864 = vrot.lane.b32.xlu0 %v1676, 112
        %v1865 = vpop.permute.xlu0 %1864
        %1866 = vrot.lane.b32.xlu0 %v1604, 112
        %v1867 = vpop.permute.xlu0 %1866
        %v1868 = vsel %vm1702, %v1865, 0
        %v1870 = vsel %vm1702, %v1867, 0
        %1872 = vmatprep.subr.mxu0 0.0
        %1873 = vmatpush1.xpose.msra.mxu0 0.0
        %1874 = vmatprep.subr.mxu0 0.0
        %1875 = vmatpush1.xpose.msra.mxu0 0.0
        %1876 = vmatprep.subr.mxu0 0.0
        %1877 = vmatpush1.xpose.msra.mxu0 0.0
        %1878 = vmatprep.subr.mxu0 0.0
        %1879 = vmatpush1.xpose.msra.mxu0 0.0
        %1880 = vmatprep.subr.mxu0 0.0
        %1881 = vmatpush1.xpose.msra.mxu0 0.0
        %1882 = vmatprep.subr.mxu0 0.0
        %1883 = vmatpush1.xpose.msra.mxu0 0.0
        %1884 = vmatprep.subr.mxu0 0.0
        %1885 = vmatpush1.xpose.msra.mxu0 0.0
        %1886 = vmatprep.subr.mxu0 0.0
        %1887 = vmatpush1.xpose.msra.mxu0 0.0
        %1888 = vmatprep.subr.mxu0 0.0
        %1889 = vmatpush1.xpose.msra.mxu0 0.0
        %1890 = vmatprep.subr.mxu0 0.0
        %1891 = vmatpush1.xpose.msra.mxu0 0.0
        %1892 = vmatprep.subr.mxu0 0.0
        %1893 = vmatpush1.xpose.msra.mxu0 0.0
        %1894 = vmatprep.subr.mxu0 0.0
        %1895 = vmatpush1.xpose.msra.mxu0 0.0
        %1896 = vmatprep.subr.mxu0 0.0
        %1897 = vmatpush1.xpose.msra.mxu0 0.0
        %1898 = vmatprep.subr.mxu0 0.0
        %1899 = vmatpush1.xpose.msra.mxu0 0.0
        %1900 = vmatprep.subr.mxu0 0.0
        %1901 = vmatpush1.xpose.msra.mxu0 0.0
        %1902 = vmatprep.subr.mxu0 0.0
        %1903 = vmatpush1.xpose.msra.mxu0 %v1870
        %1904 = vmatprep.subr.mxu0 0.0
        %1905 = vmatpush2.xpose.msra.mxu0 0.0
        %1906 = vmatprep.subr.mxu0 0.0
        %1907 = vmatpush2.xpose.msra.mxu0 0.0
        %1908 = vmatprep.subr.mxu0 0.0
        %1909 = vmatpush2.xpose.msra.mxu0 0.0
        %1910 = vmatprep.subr.mxu0 0.0
        %1911 = vmatpush2.xpose.msra.mxu0 0.0
        %1912 = vmatprep.subr.mxu0 0.0
        %1913 = vmatpush2.xpose.msra.mxu0 0.0
        %1914 = vmatprep.subr.mxu0 0.0
        %1915 = vmatpush2.xpose.msra.mxu0 0.0
        %1916 = vmatprep.subr.mxu0 0.0
        %1917 = vmatpush2.xpose.msra.mxu0 0.0
        %1918 = vmatprep.subr.mxu0 0.0
        %1919 = vmatpush2.xpose.msra.mxu0 0.0
        %1920 = vmatprep.subr.mxu0 0.0
        %1921 = vmatpush2.xpose.msra.mxu0 0.0
        %1922 = vmatprep.subr.mxu0 0.0
        %1923 = vmatpush2.xpose.msra.mxu0 0.0
        %1924 = vmatprep.subr.mxu0 0.0
        %1925 = vmatpush2.xpose.msra.mxu0 0.0
        %1926 = vmatprep.subr.mxu0 0.0
        %1927 = vmatpush2.xpose.msra.mxu0 0.0
        %1928 = vmatprep.subr.mxu0 0.0
        %1929 = vmatpush2.xpose.msra.mxu0 0.0
        %1930 = vmatprep.subr.mxu0 0.0
        %1931 = vmatpush2.xpose.msra.mxu0 0.0
        %1932 = vmatprep.subr.mxu0 0.0
        %1933 = vmatpush2.xpose.msra.mxu0 0.0
        %1934 = vmatprep.subr.mxu0 0.0
        %1935 = vmatpush2.xpose.msra.mxu0 0.0
        %1936 = vmatprep.mubr.f32.mxu0 0.0
        %1937 = vmatmul.mubr.f32.gmra.mxu0 %v1868
        %v1938 = vpop.f32.mrf.mxu0
        %v1939 = vadd.f32 %v1678, %v1938
        %v1940 = vpop.f32.mrf.mxu0
        %1941 = vdwg.mxu0
        %v1942 = vsel %vm1779, %v1939, -inf
        %1943 = vmax.xlane.f32.xlu0 %v1942
        %v1944 = vpop.xlane.xlu0 %1943
        %v1945 = vsub.f32 %v1939, %v1944
        %v1946 = vmul.f32 %v1945, 1.442695
        %v1947 = vpow.pop %v1946
        %v1948 = vsel %vm1779, %v1947, 0.0
        %1949 = vadd.xlane.f32.xlu0 %v1948
        %v1950 = vpop.xlane.xlu0 %1949
        %v1951 = vrcp.pop %v1950
        %v1952 = vmul.f32 %v1947, %v1951
        %1954 = vrot.lane.b32.xlu0 %v1673, 112
        %v1955 = vpop.permute.xlu0 %1954
        %v1958 = vsel %vm1779, %v1952, 0
        %1960 = vmatprep.subr.mxu0 0.0
        %1961 = vmatpush1.msra.mxu0 0.0
        %1962 = vmatprep.subr.mxu0 0.0
        %1963 = vmatpush1.msra.mxu0 0.0
        %1964 = vmatprep.subr.mxu0 0.0
        %1965 = vmatpush1.msra.mxu0 0.0
        %1966 = vmatprep.subr.mxu0 0.0
        %1967 = vmatpush1.msra.mxu0 0.0
        %1968 = vmatprep.subr.mxu0 0.0
        %1969 = vmatpush1.msra.mxu0 0.0
        %1970 = vmatprep.subr.mxu0 0.0
        %1971 = vmatpush1.msra.mxu0 0.0
        %1972 = vmatprep.subr.mxu0 0.0
        %1973 = vmatpush1.msra.mxu0 0.0
        %1974 = vmatprep.subr.mxu0 0.0
        %1975 = vmatpush1.msra.mxu0 0.0
        %1976 = vmatprep.subr.mxu0 0.0
        %1977 = vmatpush1.msra.mxu0 0.0
        %1978 = vmatprep.subr.mxu0 0.0
        %1979 = vmatpush1.msra.mxu0 0.0
        %1980 = vmatprep.subr.mxu0 0.0
        %1981 = vmatpush1.msra.mxu0 0.0
        %1982 = vmatprep.subr.mxu0 0.0
        %1983 = vmatpush1.msra.mxu0 0.0
        %1984 = vmatprep.subr.mxu0 0.0
        %1985 = vmatpush1.msra.mxu0 0.0
        %1986 = vmatprep.subr.mxu0 0.0
        %1987 = vmatpush1.msra.mxu0 0.0
        %1988 = vmatprep.subr.mxu0 0.0
        %1989 = vmatpush1.msra.mxu0 0.0
        %1990 = vmatprep.subr.mxu0 0.0
        %1991 = vmatpush1.msra.mxu0 %v1955
        %1992 = vmatprep.subr.mxu0 0.0
        %1993 = vmatpush2.msra.mxu0 0.0
        %1994 = vmatprep.subr.mxu0 0.0
        %1995 = vmatpush2.msra.mxu0 0.0
        %1996 = vmatprep.subr.mxu0 0.0
        %1997 = vmatpush2.msra.mxu0 0.0
        %1998 = vmatprep.subr.mxu0 0.0
        %1999 = vmatpush2.msra.mxu0 0.0
        %2000 = vmatprep.subr.mxu0 0.0
        %2001 = vmatpush2.msra.mxu0 0.0
        %2002 = vmatprep.subr.mxu0 0.0
        %2003 = vmatpush2.msra.mxu0 0.0
        %2004 = vmatprep.subr.mxu0 0.0
        %2005 = vmatpush2.msra.mxu0 0.0
        %2006 = vmatprep.subr.mxu0 0.0
        %2007 = vmatpush2.msra.mxu0 0.0
        %2008 = vmatprep.subr.mxu0 0.0
        %2009 = vmatpush2.msra.mxu0 0.0
        %2010 = vmatprep.subr.mxu0 0.0
        %2011 = vmatpush2.msra.mxu0 0.0
        %2012 = vmatprep.subr.mxu0 0.0
        %2013 = vmatpush2.msra.mxu0 0.0
        %2014 = vmatprep.subr.mxu0 0.0
        %2015 = vmatpush2.msra.mxu0 0.0
        %2016 = vmatprep.subr.mxu0 0.0
        %2017 = vmatpush2.msra.mxu0 0.0
        %2018 = vmatprep.subr.mxu0 0.0
        %2019 = vmatpush2.msra.mxu0 0.0
        %2020 = vmatprep.subr.mxu0 0.0
        %2021 = vmatpush2.msra.mxu0 0.0
        %2022 = vmatprep.subr.mxu0 0.0
        %2023 = vmatpush2.msra.mxu0 0.0
        %2024 = vmatprep.mubr.f32.mxu0 0.0
        %2025 = vmatmul.mubr.f32.gmra.mxu0 %v1958
        %v2026 = vpop.f32.mrf.mxu0
        %v2027 = vadd.f32 0.0, %v2026
        %v2028 = vpop.f32.mrf.mxu0
        %2029 = vdwg.mxu0
        %v2031 = vsel %vm1702, %v2027, 0
        %2033 = vmatprep.subr.mxu0 0.0
        %2034 = vmatpush1.msra.mxu0 0.0
        %2035 = vmatprep.subr.mxu0 0.0
        %2036 = vmatpush1.msra.mxu0 0.0
        %2037 = vmatprep.subr.mxu0 0.0
        %2038 = vmatpush1.msra.mxu0 0.0
        %2039 = vmatprep.subr.mxu0 0.0
        %2040 = vmatpush1.msra.mxu0 0.0
        %2041 = vmatprep.subr.mxu0 0.0
        %2042 = vmatpush1.msra.mxu0 0.0
        %2043 = vmatprep.subr.mxu0 0.0
        %2044 = vmatpush1.msra.mxu0 0.0
        %2045 = vmatprep.subr.mxu0 0.0
        %2046 = vmatpush1.msra.mxu0 0.0
        %2047 = vmatprep.subr.mxu0 0.0
        %2048 = vmatpush1.msra.mxu0 0.0
        %2049 = vmatprep.subr.mxu0 0.0
        %2050 = vmatpush1.msra.mxu0 0.0
        %2051 = vmatprep.subr.mxu0 0.0
        %2052 = vmatpush1.msra.mxu0 0.0
        %2053 = vmatprep.subr.mxu0 0.0
        %2054 = vmatpush1.msra.mxu0 0.0
        %2055 = vmatprep.subr.mxu0 0.0
        %2056 = vmatpush1.msra.mxu0 0.0
        %2057 = vmatprep.subr.mxu0 0.0
        %2058 = vmatpush1.msra.mxu0 0.0
        %2059 = vmatprep.subr.mxu0 0.0
        %2060 = vmatpush1.msra.mxu0 0.0
        %2061 = vmatprep.subr.mxu0 0.0
        %2062 = vmatpush1.msra.mxu0 %v1688
        %2063 = vmatprep.subr.mxu0 0.0
        %2064 = vmatpush1.msra.mxu0 %v1687
        %2065 = vmatprep.subr.mxu0 0.0
        %2066 = vmatpush2.msra.mxu0 0.0
        %2067 = vmatprep.subr.mxu0 0.0
        %2068 = vmatpush2.msra.mxu0 0.0
        %2069 = vmatprep.subr.mxu0 0.0
        %2070 = vmatpush2.msra.mxu0 0.0
        %2071 = vmatprep.subr.mxu0 0.0
        %2072 = vmatpush2.msra.mxu0 0.0
        %2073 = vmatprep.subr.mxu0 0.0
        %2074 = vmatpush2.msra.mxu0 0.0
        %2075 = vmatprep.subr.mxu0 0.0
        %2076 = vmatpush2.msra.mxu0 0.0
        %2077 = vmatprep.subr.mxu0 0.0
        %2078 = vmatpush2.msra.mxu0 0.0
        %2079 = vmatprep.subr.mxu0 0.0
        %2080 = vmatpush2.msra.mxu0 0.0
        %2081 = vmatprep.subr.mxu0 0.0
        %2082 = vmatpush2.msra.mxu0 0.0
        %2083 = vmatprep.subr.mxu0 0.0
        %2084 = vmatpush2.msra.mxu0 0.0
        %2085 = vmatprep.subr.mxu0 0.0
        %2086 = vmatpush2.msra.mxu0 0.0
        %2087 = vmatprep.subr.mxu0 0.0
        %2088 = vmatpush2.msra.mxu0 0.0
        %2089 = vmatprep.subr.mxu0 0.0
        %2090 = vmatpush2.msra.mxu0 0.0
        %2091 = vmatprep.subr.mxu0 0.0
        %2092 = vmatpush2.msra.mxu0 0.0
        %2093 = vmatprep.subr.mxu0 0.0
        %2094 = vmatpush2.msra.mxu0 0.0
        %2095 = vmatprep.subr.mxu0 0.0
        %2096 = vmatpush2.msra.mxu0 0.0
        %2097 = vmatprep.mubr.f32.mxu0 0.0
        %2098 = vmatmul.mubr.f32.gmra.mxu0 %v2031
        %v2099 = vpop.f32.mrf.mxu0
        %v2100 = vadd.f32 0.0, %v2099
        %v2101 = vpop.f32.mrf.mxu0
        %2102 = vdwg.mxu0
        %v2104 = vsel %vm1702, %v1861, 0
        %2106 = vmatprep.subr.mxu0 0.0
        %2107 = vmatpush1.msra.mxu0 0.0
        %2108 = vmatprep.subr.mxu0 0.0
        %2109 = vmatpush1.msra.mxu0 0.0
        %2110 = vmatprep.subr.mxu0 0.0
        %2111 = vmatpush1.msra.mxu0 0.0
        %2112 = vmatprep.subr.mxu0 0.0
        %2113 = vmatpush1.msra.mxu0 0.0
        %2114 = vmatprep.subr.mxu0 0.0
        %2115 = vmatpush1.msra.mxu0 0.0
        %2116 = vmatprep.subr.mxu0 0.0
        %2117 = vmatpush1.msra.mxu0 0.0
        %2118 = vmatprep.subr.mxu0 0.0
        %2119 = vmatpush1.msra.mxu0 0.0
        %2120 = vmatprep.subr.mxu0 0.0
        %2121 = vmatpush1.msra.mxu0 0.0
        %2122 = vmatprep.subr.mxu0 0.0
        %2123 = vmatpush1.msra.mxu0 0.0
        %2124 = vmatprep.subr.mxu0 0.0
        %2125 = vmatpush1.msra.mxu0 0.0
        %2126 = vmatprep.subr.mxu0 0.0
        %2127 = vmatpush1.msra.mxu0 0.0
        %2128 = vmatprep.subr.mxu0 0.0
        %2129 = vmatpush1.msra.mxu0 0.0
        %2130 = vmatprep.subr.mxu0 0.0
        %2131 = vmatpush1.msra.mxu0 0.0
        %2132 = vmatprep.subr.mxu0 0.0
        %2133 = vmatpush1.msra.mxu0 0.0
        %2134 = vmatprep.subr.mxu0 0.0
        %2135 = vmatpush1.msra.mxu0 %v1686
        %2136 = vmatprep.subr.mxu0 0.0
        %2137 = vmatpush1.msra.mxu0 %v1685
        %2138 = vmatprep.subr.mxu0 0.0
        %2139 = vmatpush2.msra.mxu0 0.0
        %2140 = vmatprep.subr.mxu0 0.0
        %2141 = vmatpush2.msra.mxu0 0.0
        %2142 = vmatprep.subr.mxu0 0.0
        %2143 = vmatpush2.msra.mxu0 0.0
        %2144 = vmatprep.subr.mxu0 0.0
        %2145 = vmatpush2.msra.mxu0 0.0
        %2146 = vmatprep.subr.mxu0 0.0
        %2147 = vmatpush2.msra.mxu0 0.0
        %2148 = vmatprep.subr.mxu0 0.0
        %2149 = vmatpush2.msra.mxu0 0.0
        %2150 = vmatprep.subr.mxu0 0.0
        %2151 = vmatpush2.msra.mxu0 0.0
        %2152 = vmatprep.subr.mxu0 0.0
        %2153 = vmatpush2.msra.mxu0 0.0
        %2154 = vmatprep.subr.mxu0 0.0
        %2155 = vmatpush2.msra.mxu0 0.0
        %2156 = vmatprep.subr.mxu0 0.0
        %2157 = vmatpush2.msra.mxu0 0.0
        %2158 = vmatprep.subr.mxu0 0.0
        %2159 = vmatpush2.msra.mxu0 0.0
        %2160 = vmatprep.subr.mxu0 0.0
        %2161 = vmatpush2.msra.mxu0 0.0
        %2162 = vmatprep.subr.mxu0 0.0
        %2163 = vmatpush2.msra.mxu0 0.0
        %2164 = vmatprep.subr.mxu0 0.0
        %2165 = vmatpush2.msra.mxu0 0.0
        %2166 = vmatprep.subr.mxu0 0.0
        %2167 = vmatpush2.msra.mxu0 0.0
        %2168 = vmatprep.subr.mxu0 0.0
        %2169 = vmatpush2.msra.mxu0 0.0
        %2170 = vmatprep.mubr.f32.mxu0 0.0
        %2171 = vmatmul.mubr.f32.gmra.mxu0 %v2104
        %v2172 = vpop.f32.mrf.mxu0
        %v2173 = vadd.f32 %v2100, %v2172
        %v2174 = vpop.f32.mrf.mxu0
        %2175 = vdwg.mxu0
        %2176 = vrot.lane.b32.xlu0 %v1676, 96
        %v2177 = vpop.permute.xlu0 %2176
        %2178 = vrot.lane.b32.xlu0 %v1604, 96
        %v2179 = vpop.permute.xlu0 %2178
        %v2180 = vsel %vm1702, %v2177, 0
        %v2182 = vsel %vm1702, %v2179, 0
        %2184 = vmatprep.subr.mxu0 0.0
        %2185 = vmatpush1.xpose.msra.mxu0 0.0
        %2186 = vmatprep.subr.mxu0 0.0
        %2187 = vmatpush1.xpose.msra.mxu0 0.0
        %2188 = vmatprep.subr.mxu0 0.0
        %2189 = vmatpush1.xpose.msra.mxu0 0.0
        %2190 = vmatprep.subr.mxu0 0.0
        %2191 = vmatpush1.xpose.msra.mxu0 0.0
        %2192 = vmatprep.subr.mxu0 0.0
        %2193 = vmatpush1.xpose.msra.mxu0 0.0
        %2194 = vmatprep.subr.mxu0 0.0
        %2195 = vmatpush1.xpose.msra.mxu0 0.0
        %2196 = vmatprep.subr.mxu0 0.0
        %2197 = vmatpush1.xpose.msra.mxu0 0.0
        %2198 = vmatprep.subr.mxu0 0.0
        %2199 = vmatpush1.xpose.msra.mxu0 0.0
        %2200 = vmatprep.subr.mxu0 0.0
        %2201 = vmatpush1.xpose.msra.mxu0 0.0
        %2202 = vmatprep.subr.mxu0 0.0
        %2203 = vmatpush1.xpose.msra.mxu0 0.0
        %2204 = vmatprep.subr.mxu0 0.0
        %2205 = vmatpush1.xpose.msra.mxu0 0.0
        %2206 = vmatprep.subr.mxu0 0.0
        %2207 = vmatpush1.xpose.msra.mxu0 0.0
        %2208 = vmatprep.subr.mxu0 0.0
        %2209 = vmatpush1.xpose.msra.mxu0 0.0
        %2210 = vmatprep.subr.mxu0 0.0
        %2211 = vmatpush1.xpose.msra.mxu0 0.0
        %2212 = vmatprep.subr.mxu0 0.0
        %2213 = vmatpush1.xpose.msra.mxu0 0.0
        %2214 = vmatprep.subr.mxu0 0.0
        %2215 = vmatpush1.xpose.msra.mxu0 %v2182
        %2216 = vmatprep.subr.mxu0 0.0
        %2217 = vmatpush2.xpose.msra.mxu0 0.0
        %2218 = vmatprep.subr.mxu0 0.0
        %2219 = vmatpush2.xpose.msra.mxu0 0.0
        %2220 = vmatprep.subr.mxu0 0.0
        %2221 = vmatpush2.xpose.msra.mxu0 0.0
        %2222 = vmatprep.subr.mxu0 0.0
        %2223 = vmatpush2.xpose.msra.mxu0 0.0
        %2224 = vmatprep.subr.mxu0 0.0
        %2225 = vmatpush2.xpose.msra.mxu0 0.0
        %2226 = vmatprep.subr.mxu0 0.0
        %2227 = vmatpush2.xpose.msra.mxu0 0.0
        %2228 = vmatprep.subr.mxu0 0.0
        %2229 = vmatpush2.xpose.msra.mxu0 0.0
        %2230 = vmatprep.subr.mxu0 0.0
        %2231 = vmatpush2.xpose.msra.mxu0 0.0
        %2232 = vmatprep.subr.mxu0 0.0
        %2233 = vmatpush2.xpose.msra.mxu0 0.0
        %2234 = vmatprep.subr.mxu0 0.0
        %2235 = vmatpush2.xpose.msra.mxu0 0.0
        %2236 = vmatprep.subr.mxu0 0.0
        %2237 = vmatpush2.xpose.msra.mxu0 0.0
        %2238 = vmatprep.subr.mxu0 0.0
        %2239 = vmatpush2.xpose.msra.mxu0 0.0
        %2240 = vmatprep.subr.mxu0 0.0
        %2241 = vmatpush2.xpose.msra.mxu0 0.0
        %2242 = vmatprep.subr.mxu0 0.0
        %2243 = vmatpush2.xpose.msra.mxu0 0.0
        %2244 = vmatprep.subr.mxu0 0.0
        %2245 = vmatpush2.xpose.msra.mxu0 0.0
        %2246 = vmatprep.subr.mxu0 0.0
        %2247 = vmatpush2.xpose.msra.mxu0 0.0
        %2248 = vmatprep.mubr.f32.mxu0 0.0
        %2249 = vmatmul.mubr.f32.gmra.mxu0 %v2180
        %v2250 = vpop.f32.mrf.mxu0
        %v2251 = vadd.f32 %v1679, %v2250
        %v2252 = vpop.f32.mrf.mxu0
        %2253 = vdwg.mxu0
        %v2254 = vsel %vm1779, %v2251, -inf
        %2255 = vmax.xlane.f32.xlu0 %v2254
        %v2256 = vpop.xlane.xlu0 %2255
        %v2257 = vsub.f32 %v2251, %v2256
        %v2258 = vmul.f32 %v2257, 1.442695
        %v2259 = vpow.pop %v2258
        %v2260 = vsel %vm1779, %v2259, 0.0
        %2261 = vadd.xlane.f32.xlu0 %v2260
        %v2262 = vpop.xlane.xlu0 %2261
        %v2263 = vrcp.pop %v2262
        %v2264 = vmul.f32 %v2259, %v2263
        %2265 = vrot.lane.b32.xlu0 %v1673, 96
        %v2266 = vpop.permute.xlu0 %2265
        %v2269 = vsel %vm1779, %v2264, 0
        %2271 = vmatprep.subr.mxu0 0.0
        %2272 = vmatpush1.msra.mxu0 0.0
        %2273 = vmatprep.subr.mxu0 0.0
        %2274 = vmatpush1.msra.mxu0 0.0
        %2275 = vmatprep.subr.mxu0 0.0
        %2276 = vmatpush1.msra.mxu0 0.0
        %2277 = vmatprep.subr.mxu0 0.0
        %2278 = vmatpush1.msra.mxu0 0.0
        %2279 = vmatprep.subr.mxu0 0.0
        %2280 = vmatpush1.msra.mxu0 0.0
        %2281 = vmatprep.subr.mxu0 0.0
        %2282 = vmatpush1.msra.mxu0 0.0
        %2283 = vmatprep.subr.mxu0 0.0
        %2284 = vmatpush1.msra.mxu0 0.0
        %2285 = vmatprep.subr.mxu0 0.0
        %2286 = vmatpush1.msra.mxu0 0.0
        %2287 = vmatprep.subr.mxu0 0.0
        %2288 = vmatpush1.msra.mxu0 0.0
        %2289 = vmatprep.subr.mxu0 0.0
        %2290 = vmatpush1.msra.mxu0 0.0
        %2291 = vmatprep.subr.mxu0 0.0
        %2292 = vmatpush1.msra.mxu0 0.0
        %2293 = vmatprep.subr.mxu0 0.0
        %2294 = vmatpush1.msra.mxu0 0.0
        %2295 = vmatprep.subr.mxu0 0.0
        %2296 = vmatpush1.msra.mxu0 0.0
        %2297 = vmatprep.subr.mxu0 0.0
        %2298 = vmatpush1.msra.mxu0 0.0
        %2299 = vmatprep.subr.mxu0 0.0
        %2300 = vmatpush1.msra.mxu0 0.0
        %2301 = vmatprep.subr.mxu0 0.0
        %2302 = vmatpush1.msra.mxu0 %v2266
        %2303 = vmatprep.subr.mxu0 0.0
        %2304 = vmatpush2.msra.mxu0 0.0
        %2305 = vmatprep.subr.mxu0 0.0
        %2306 = vmatpush2.msra.mxu0 0.0
        %2307 = vmatprep.subr.mxu0 0.0
        %2308 = vmatpush2.msra.mxu0 0.0
        %2309 = vmatprep.subr.mxu0 0.0
        %2310 = vmatpush2.msra.mxu0 0.0
        %2311 = vmatprep.subr.mxu0 0.0
        %2312 = vmatpush2.msra.mxu0 0.0
        %2313 = vmatprep.subr.mxu0 0.0
        %2314 = vmatpush2.msra.mxu0 0.0
        %2315 = vmatprep.subr.mxu0 0.0
        %2316 = vmatpush2.msra.mxu0 0.0
        %2317 = vmatprep.subr.mxu0 0.0
        %2318 = vmatpush2.msra.mxu0 0.0
        %2319 = vmatprep.subr.mxu0 0.0
        %2320 = vmatpush2.msra.mxu0 0.0
        %2321 = vmatprep.subr.mxu0 0.0
        %2322 = vmatpush2.msra.mxu0 0.0
        %2323 = vmatprep.subr.mxu0 0.0
        %2324 = vmatpush2.msra.mxu0 0.0
        %2325 = vmatprep.subr.mxu0 0.0
        %2326 = vmatpush2.msra.mxu0 0.0
        %2327 = vmatprep.subr.mxu0 0.0
        %2328 = vmatpush2.msra.mxu0 0.0
        %2329 = vmatprep.subr.mxu0 0.0
        %2330 = vmatpush2.msra.mxu0 0.0
        %2331 = vmatprep.subr.mxu0 0.0
        %2332 = vmatpush2.msra.mxu0 0.0
        %2333 = vmatprep.subr.mxu0 0.0
        %2334 = vmatpush2.msra.mxu0 0.0
        %2335 = vmatprep.mubr.f32.mxu0 0.0
        %2336 = vmatmul.mubr.f32.gmra.mxu0 %v2269
        %v2337 = vpop.f32.mrf.mxu0
        %v2338 = vadd.f32 0.0, %v2337
        %v2339 = vpop.f32.mrf.mxu0
        %2340 = vdwg.mxu0
        %v2342 = vsel %vm1702, %v2338, 0
        %2344 = vmatprep.subr.mxu0 0.0
        %2345 = vmatpush1.msra.mxu0 0.0
        %2346 = vmatprep.subr.mxu0 0.0
        %2347 = vmatpush1.msra.mxu0 0.0
        %2348 = vmatprep.subr.mxu0 0.0
        %2349 = vmatpush1.msra.mxu0 0.0
        %2350 = vmatprep.subr.mxu0 0.0
        %2351 = vmatpush1.msra.mxu0 0.0
        %2352 = vmatprep.subr.mxu0 0.0
        %2353 = vmatpush1.msra.mxu0 0.0
        %2354 = vmatprep.subr.mxu0 0.0
        %2355 = vmatpush1.msra.mxu0 0.0
        %2356 = vmatprep.subr.mxu0 0.0
        %2357 = vmatpush1.msra.mxu0 0.0
        %2358 = vmatprep.subr.mxu0 0.0
        %2359 = vmatpush1.msra.mxu0 0.0
        %2360 = vmatprep.subr.mxu0 0.0
        %2361 = vmatpush1.msra.mxu0 0.0
        %2362 = vmatprep.subr.mxu0 0.0
        %2363 = vmatpush1.msra.mxu0 0.0
        %2364 = vmatprep.subr.mxu0 0.0
        %2365 = vmatpush1.msra.mxu0 0.0
        %2366 = vmatprep.subr.mxu0 0.0
        %2367 = vmatpush1.msra.mxu0 0.0
        %2368 = vmatprep.subr.mxu0 0.0
        %2369 = vmatpush1.msra.mxu0 0.0
        %2370 = vmatprep.subr.mxu0 0.0
        %2371 = vmatpush1.msra.mxu0 0.0
        %2372 = vmatprep.subr.mxu0 0.0
        %2373 = vmatpush1.msra.mxu0 %v1690
        %2374 = vmatprep.subr.mxu0 0.0
        %2375 = vmatpush1.msra.mxu0 %v1689
        %2376 = vmatprep.subr.mxu0 0.0
        %2377 = vmatpush2.msra.mxu0 0.0
        %2378 = vmatprep.subr.mxu0 0.0
        %2379 = vmatpush2.msra.mxu0 0.0
        %2380 = vmatprep.subr.mxu0 0.0
        %2381 = vmatpush2.msra.mxu0 0.0
        %2382 = vmatprep.subr.mxu0 0.0
        %2383 = vmatpush2.msra.mxu0 0.0
        %2384 = vmatprep.subr.mxu0 0.0
        %2385 = vmatpush2.msra.mxu0 0.0
        %2386 = vmatprep.subr.mxu0 0.0
        %2387 = vmatpush2.msra.mxu0 0.0
        %2388 = vmatprep.subr.mxu0 0.0
        %2389 = vmatpush2.msra.mxu0 0.0
        %2390 = vmatprep.subr.mxu0 0.0
        %2391 = vmatpush2.msra.mxu0 0.0
        %2392 = vmatprep.subr.mxu0 0.0
        %2393 = vmatpush2.msra.mxu0 0.0
        %2394 = vmatprep.subr.mxu0 0.0
        %2395 = vmatpush2.msra.mxu0 0.0
        %2396 = vmatprep.subr.mxu0 0.0
        %2397 = vmatpush2.msra.mxu0 0.0
        %2398 = vmatprep.subr.mxu0 0.0
        %2399 = vmatpush2.msra.mxu0 0.0
        %2400 = vmatprep.subr.mxu0 0.0
        %2401 = vmatpush2.msra.mxu0 0.0
        %2402 = vmatprep.subr.mxu0 0.0
        %2403 = vmatpush2.msra.mxu0 0.0
        %2404 = vmatprep.subr.mxu0 0.0
        %2405 = vmatpush2.msra.mxu0 0.0
        %2406 = vmatprep.subr.mxu0 0.0
        %2407 = vmatpush2.msra.mxu0 0.0
        %2408 = vmatprep.mubr.f32.mxu0 0.0
        %2409 = vmatmul.mubr.f32.gmra.mxu0 %v2342
        %v2410 = vpop.f32.mrf.mxu0
        %v2411 = vadd.f32 0.0, %v2410
        %v2412 = vpop.f32.mrf.mxu0
        %2413 = vdwg.mxu0
        %v2414 = vadd.f32 %v2173, %v2411
        %2415 = vrot.lane.b32.xlu0 %v1676, 80
        %v2416 = vpop.permute.xlu0 %2415
        %2417 = vrot.lane.b32.xlu0 %v1604, 80
        %v2418 = vpop.permute.xlu0 %2417
        %v2419 = vsel %vm1702, %v2416, 0
        %v2421 = vsel %vm1702, %v2418, 0
        %2423 = vmatprep.subr.mxu0 0.0
        %2424 = vmatpush1.xpose.msra.mxu0 0.0
        %2425 = vmatprep.subr.mxu0 0.0
        %2426 = vmatpush1.xpose.msra.mxu0 0.0
        %2427 = vmatprep.subr.mxu0 0.0
        %2428 = vmatpush1.xpose.msra.mxu0 0.0
        %2429 = vmatprep.subr.mxu0 0.0
        %2430 = vmatpush1.xpose.msra.mxu0 0.0
        %2431 = vmatprep.subr.mxu0 0.0
        %2432 = vmatpush1.xpose.msra.mxu0 0.0
        %2433 = vmatprep.subr.mxu0 0.0
        %2434 = vmatpush1.xpose.msra.mxu0 0.0
        %2435 = vmatprep.subr.mxu0 0.0
        %2436 = vmatpush1.xpose.msra.mxu0 0.0
        %2437 = vmatprep.subr.mxu0 0.0
        %2438 = vmatpush1.xpose.msra.mxu0 0.0
        %2439 = vmatprep.subr.mxu0 0.0
        %2440 = vmatpush1.xpose.msra.mxu0 0.0
        %2441 = vmatprep.subr.mxu0 0.0
        %2442 = vmatpush1.xpose.msra.mxu0 0.0
        %2443 = vmatprep.subr.mxu0 0.0
        %2444 = vmatpush1.xpose.msra.mxu0 0.0
        %2445 = vmatprep.subr.mxu0 0.0
        %2446 = vmatpush1.xpose.msra.mxu0 0.0
        %2447 = vmatprep.subr.mxu0 0.0
        %2448 = vmatpush1.xpose.msra.mxu0 0.0
        %2449 = vmatprep.subr.mxu0 0.0
        %2450 = vmatpush1.xpose.msra.mxu0 0.0
        %2451 = vmatprep.subr.mxu0 0.0
        %2452 = vmatpush1.xpose.msra.mxu0 0.0
        %2453 = vmatprep.subr.mxu0 0.0
        %2454 = vmatpush1.xpose.msra.mxu0 %v2421
        %2455 = vmatprep.subr.mxu0 0.0
        %2456 = vmatpush2.xpose.msra.mxu0 0.0
        %2457 = vmatprep.subr.mxu0 0.0
        %2458 = vmatpush2.xpose.msra.mxu0 0.0
        %2459 = vmatprep.subr.mxu0 0.0
        %2460 = vmatpush2.xpose.msra.mxu0 0.0
        %2461 = vmatprep.subr.mxu0 0.0
        %2462 = vmatpush2.xpose.msra.mxu0 0.0
        %2463 = vmatprep.subr.mxu0 0.0
        %2464 = vmatpush2.xpose.msra.mxu0 0.0
        %2465 = vmatprep.subr.mxu0 0.0
        %2466 = vmatpush2.xpose.msra.mxu0 0.0
        %2467 = vmatprep.subr.mxu0 0.0
        %2468 = vmatpush2.xpose.msra.mxu0 0.0
        %2469 = vmatprep.subr.mxu0 0.0
        %2470 = vmatpush2.xpose.msra.mxu0 0.0
        %2471 = vmatprep.subr.mxu0 0.0
        %2472 = vmatpush2.xpose.msra.mxu0 0.0
        %2473 = vmatprep.subr.mxu0 0.0
        %2474 = vmatpush2.xpose.msra.mxu0 0.0
        %2475 = vmatprep.subr.mxu0 0.0
        %2476 = vmatpush2.xpose.msra.mxu0 0.0
        %2477 = vmatprep.subr.mxu0 0.0
        %2478 = vmatpush2.xpose.msra.mxu0 0.0
        %2479 = vmatprep.subr.mxu0 0.0
        %2480 = vmatpush2.xpose.msra.mxu0 0.0
        %2481 = vmatprep.subr.mxu0 0.0
        %2482 = vmatpush2.xpose.msra.mxu0 0.0
        %2483 = vmatprep.subr.mxu0 0.0
        %2484 = vmatpush2.xpose.msra.mxu0 0.0
        %2485 = vmatprep.subr.mxu0 0.0
        %2486 = vmatpush2.xpose.msra.mxu0 0.0
        %2487 = vmatprep.mubr.f32.mxu0 0.0
        %2488 = vmatmul.mubr.f32.gmra.mxu0 %v2419
        %v2489 = vpop.f32.mrf.mxu0
        %v2490 = vadd.f32 %v1680, %v2489
        %v2491 = vpop.f32.mrf.mxu0
        %2492 = vdwg.mxu0
        %v2493 = vsel %vm1779, %v2490, -inf
        %2494 = vmax.xlane.f32.xlu0 %v2493
        %v2495 = vpop.xlane.xlu0 %2494
        %v2496 = vsub.f32 %v2490, %v2495
        %v2497 = vmul.f32 %v2496, 1.442695
        %v2498 = vpow.pop %v2497
        %v2499 = vsel %vm1779, %v2498, 0.0
        %2500 = vadd.xlane.f32.xlu0 %v2499
        %v2501 = vpop.xlane.xlu0 %2500
        %v2502 = vrcp.pop %v2501
        %v2503 = vmul.f32 %v2498, %v2502
        %2504 = vrot.lane.b32.xlu0 %v1673, 80
        %v2505 = vpop.permute.xlu0 %2504
        %v2508 = vsel %vm1779, %v2503, 0
        %2510 = vmatprep.subr.mxu0 0.0
        %2511 = vmatpush1.msra.mxu0 0.0
        %2512 = vmatprep.subr.mxu0 0.0
        %2513 = vmatpush1.msra.mxu0 0.0
        %2514 = vmatprep.subr.mxu0 0.0
        %2515 = vmatpush1.msra.mxu0 0.0
        %2516 = vmatprep.subr.mxu0 0.0
        %2517 = vmatpush1.msra.mxu0 0.0
        %2518 = vmatprep.subr.mxu0 0.0
        %2519 = vmatpush1.msra.mxu0 0.0
        %2520 = vmatprep.subr.mxu0 0.0
        %2521 = vmatpush1.msra.mxu0 0.0
        %2522 = vmatprep.subr.mxu0 0.0
        %2523 = vmatpush1.msra.mxu0 0.0
        %2524 = vmatprep.subr.mxu0 0.0
        %2525 = vmatpush1.msra.mxu0 0.0
        %2526 = vmatprep.subr.mxu0 0.0
        %2527 = vmatpush1.msra.mxu0 0.0
        %2528 = vmatprep.subr.mxu0 0.0
        %2529 = vmatpush1.msra.mxu0 0.0
        %2530 = vmatprep.subr.mxu0 0.0
        %2531 = vmatpush1.msra.mxu0 0.0
        %2532 = vmatprep.subr.mxu0 0.0
        %2533 = vmatpush1.msra.mxu0 0.0
        %2534 = vmatprep.subr.mxu0 0.0
        %2535 = vmatpush1.msra.mxu0 0.0
        %2536 = vmatprep.subr.mxu0 0.0
        %2537 = vmatpush1.msra.mxu0 0.0
        %2538 = vmatprep.subr.mxu0 0.0
        %2539 = vmatpush1.msra.mxu0 0.0
        %2540 = vmatprep.subr.mxu0 0.0
        %2541 = vmatpush1.msra.mxu0 %v2505
        %2542 = vmatprep.subr.mxu0 0.0
        %2543 = vmatpush2.msra.mxu0 0.0
        %2544 = vmatprep.subr.mxu0 0.0
        %2545 = vmatpush2.msra.mxu0 0.0
        %2546 = vmatprep.subr.mxu0 0.0
        %2547 = vmatpush2.msra.mxu0 0.0
        %2548 = vmatprep.subr.mxu0 0.0
        %2549 = vmatpush2.msra.mxu0 0.0
        %2550 = vmatprep.subr.mxu0 0.0
        %2551 = vmatpush2.msra.mxu0 0.0
        %2552 = vmatprep.subr.mxu0 0.0
        %2553 = vmatpush2.msra.mxu0 0.0
        %2554 = vmatprep.subr.mxu0 0.0
        %2555 = vmatpush2.msra.mxu0 0.0
        %2556 = vmatprep.subr.mxu0 0.0
        %2557 = vmatpush2.msra.mxu0 0.0
        %2558 = vmatprep.subr.mxu0 0.0
        %2559 = vmatpush2.msra.mxu0 0.0
        %2560 = vmatprep.subr.mxu0 0.0
        %2561 = vmatpush2.msra.mxu0 0.0
        %2562 = vmatprep.subr.mxu0 0.0
        %2563 = vmatpush2.msra.mxu0 0.0
        %2564 = vmatprep.subr.mxu0 0.0
        %2565 = vmatpush2.msra.mxu0 0.0
        %2566 = vmatprep.subr.mxu0 0.0
        %2567 = vmatpush2.msra.mxu0 0.0
        %2568 = vmatprep.subr.mxu0 0.0
        %2569 = vmatpush2.msra.mxu0 0.0
        %2570 = vmatprep.subr.mxu0 0.0
        %2571 = vmatpush2.msra.mxu0 0.0
        %2572 = vmatprep.subr.mxu0 0.0
        %2573 = vmatpush2.msra.mxu0 0.0
        %2574 = vmatprep.mubr.f32.mxu0 0.0
        %2575 = vmatmul.mubr.f32.gmra.mxu0 %v2508
        %v2576 = vpop.f32.mrf.mxu0
        %v2577 = vadd.f32 0.0, %v2576
        %v2578 = vpop.f32.mrf.mxu0
        %2579 = vdwg.mxu0
        %v2581 = vsel %vm1702, %v2577, 0
        %2583 = vmatprep.subr.mxu0 0.0
        %2584 = vmatpush1.msra.mxu0 0.0
        %2585 = vmatprep.subr.mxu0 0.0
        %2586 = vmatpush1.msra.mxu0 0.0
        %2587 = vmatprep.subr.mxu0 0.0
        %2588 = vmatpush1.msra.mxu0 0.0
        %2589 = vmatprep.subr.mxu0 0.0
        %2590 = vmatpush1.msra.mxu0 0.0
        %2591 = vmatprep.subr.mxu0 0.0
        %2592 = vmatpush1.msra.mxu0 0.0
        %2593 = vmatprep.subr.mxu0 0.0
        %2594 = vmatpush1.msra.mxu0 0.0
        %2595 = vmatprep.subr.mxu0 0.0
        %2596 = vmatpush1.msra.mxu0 0.0
        %2597 = vmatprep.subr.mxu0 0.0
        %2598 = vmatpush1.msra.mxu0 0.0
        %2599 = vmatprep.subr.mxu0 0.0
        %2600 = vmatpush1.msra.mxu0 0.0
        %2601 = vmatprep.subr.mxu0 0.0
        %2602 = vmatpush1.msra.mxu0 0.0
        %2603 = vmatprep.subr.mxu0 0.0
        %2604 = vmatpush1.msra.mxu0 0.0
        %2605 = vmatprep.subr.mxu0 0.0
        %2606 = vmatpush1.msra.mxu0 0.0
        %2607 = vmatprep.subr.mxu0 0.0
        %2608 = vmatpush1.msra.mxu0 0.0
        %2609 = vmatprep.subr.mxu0 0.0
        %2610 = vmatpush1.msra.mxu0 0.0
        %2611 = vmatprep.subr.mxu0 0.0
        %2612 = vmatpush1.msra.mxu0 %v1692
        %2613 = vmatprep.subr.mxu0 0.0
        %2614 = vmatpush1.msra.mxu0 %v1691
        %2615 = vmatprep.subr.mxu0 0.0
        %2616 = vmatpush2.msra.mxu0 0.0
        %2617 = vmatprep.subr.mxu0 0.0
        %2618 = vmatpush2.msra.mxu0 0.0
        %2619 = vmatprep.subr.mxu0 0.0
        %2620 = vmatpush2.msra.mxu0 0.0
        %2621 = vmatprep.subr.mxu0 0.0
        %2622 = vmatpush2.msra.mxu0 0.0
        %2623 = vmatprep.subr.mxu0 0.0
        %2624 = vmatpush2.msra.mxu0 0.0
        %2625 = vmatprep.subr.mxu0 0.0
        %2626 = vmatpush2.msra.mxu0 0.0
        %2627 = vmatprep.subr.mxu0 0.0
        %2628 = vmatpush2.msra.mxu0 0.0
        %2629 = vmatprep.subr.mxu0 0.0
        %2630 = vmatpush2.msra.mxu0 0.0
        %2631 = vmatprep.subr.mxu0 0.0
        %2632 = vmatpush2.msra.mxu0 0.0
        %2633 = vmatprep.subr.mxu0 0.0
        %2634 = vmatpush2.msra.mxu0 0.0
        %2635 = vmatprep.subr.mxu0 0.0
        %2636 = vmatpush2.msra.mxu0 0.0
        %2637 = vmatprep.subr.mxu0 0.0
        %2638 = vmatpush2.msra.mxu0 0.0
        %2639 = vmatprep.subr.mxu0 0.0
        %2640 = vmatpush2.msra.mxu0 0.0
        %2641 = vmatprep.subr.mxu0 0.0
        %2642 = vmatpush2.msra.mxu0 0.0
        %2643 = vmatprep.subr.mxu0 0.0
        %2644 = vmatpush2.msra.mxu0 0.0
        %2645 = vmatprep.subr.mxu0 0.0
        %2646 = vmatpush2.msra.mxu0 0.0
        %2647 = vmatprep.mubr.f32.mxu0 0.0
        %2648 = vmatmul.mubr.f32.gmra.mxu0 %v2581
        %v2649 = vpop.f32.mrf.mxu0
        %v2650 = vadd.f32 0.0, %v2649
        %v2651 = vpop.f32.mrf.mxu0
        %2652 = vdwg.mxu0
        %v2653 = vadd.f32 %v2414, %v2650
        %2654 = vrot.lane.b32.xlu0 %v1676, 64
        %v2655 = vpop.permute.xlu0 %2654
        %2656 = vrot.lane.b32.xlu0 %v1604, 64
        %v2657 = vpop.permute.xlu0 %2656
        %v2658 = vsel %vm1702, %v2655, 0
        %v2660 = vsel %vm1702, %v2657, 0
        %2662 = vmatprep.subr.mxu0 0.0
        %2663 = vmatpush1.xpose.msra.mxu0 0.0
        %2664 = vmatprep.subr.mxu0 0.0
        %2665 = vmatpush1.xpose.msra.mxu0 0.0
        %2666 = vmatprep.subr.mxu0 0.0
        %2667 = vmatpush1.xpose.msra.mxu0 0.0
        %2668 = vmatprep.subr.mxu0 0.0
        %2669 = vmatpush1.xpose.msra.mxu0 0.0
        %2670 = vmatprep.subr.mxu0 0.0
        %2671 = vmatpush1.xpose.msra.mxu0 0.0
        %2672 = vmatprep.subr.mxu0 0.0
        %2673 = vmatpush1.xpose.msra.mxu0 0.0
        %2674 = vmatprep.subr.mxu0 0.0
        %2675 = vmatpush1.xpose.msra.mxu0 0.0
        %2676 = vmatprep.subr.mxu0 0.0
        %2677 = vmatpush1.xpose.msra.mxu0 0.0
        %2678 = vmatprep.subr.mxu0 0.0
        %2679 = vmatpush1.xpose.msra.mxu0 0.0
        %2680 = vmatprep.subr.mxu0 0.0
        %2681 = vmatpush1.xpose.msra.mxu0 0.0
        %2682 = vmatprep.subr.mxu0 0.0
        %2683 = vmatpush1.xpose.msra.mxu0 0.0
        %2684 = vmatprep.subr.mxu0 0.0
        %2685 = vmatpush1.xpose.msra.mxu0 0.0
        %2686 = vmatprep.subr.mxu0 0.0
        %2687 = vmatpush1.xpose.msra.mxu0 0.0
        %2688 = vmatprep.subr.mxu0 0.0
        %2689 = vmatpush1.xpose.msra.mxu0 0.0
        %2690 = vmatprep.subr.mxu0 0.0
        %2691 = vmatpush1.xpose.msra.mxu0 0.0
        %2692 = vmatprep.subr.mxu0 0.0
        %2693 = vmatpush1.xpose.msra.mxu0 %v2660
        %2694 = vmatprep.subr.mxu0 0.0
        %2695 = vmatpush2.xpose.msra.mxu0 0.0
        %2696 = vmatprep.subr.mxu0 0.0
        %2697 = vmatpush2.xpose.msra.mxu0 0.0
        %2698 = vmatprep.subr.mxu0 0.0
        %2699 = vmatpush2.xpose.msra.mxu0 0.0
        %2700 = vmatprep.subr.mxu0 0.0
        %2701 = vmatpush2.xpose.msra.mxu0 0.0
        %2702 = vmatprep.subr.mxu0 0.0
        %2703 = vmatpush2.xpose.msra.mxu0 0.0
        %2704 = vmatprep.subr.mxu0 0.0
        %2705 = vmatpush2.xpose.msra.mxu0 0.0
        %2706 = vmatprep.subr.mxu0 0.0
        %2707 = vmatpush2.xpose.msra.mxu0 0.0
        %2708 = vmatprep.subr.mxu0 0.0
        %2709 = vmatpush2.xpose.msra.mxu0 0.0
        %2710 = vmatprep.subr.mxu0 0.0
        %2711 = vmatpush2.xpose.msra.mxu0 0.0
        %2712 = vmatprep.subr.mxu0 0.0
        %2713 = vmatpush2.xpose.msra.mxu0 0.0
        %2714 = vmatprep.subr.mxu0 0.0
        %2715 = vmatpush2.xpose.msra.mxu0 0.0
        %2716 = vmatprep.subr.mxu0 0.0
        %2717 = vmatpush2.xpose.msra.mxu0 0.0
        %2718 = vmatprep.subr.mxu0 0.0
        %2719 = vmatpush2.xpose.msra.mxu0 0.0
        %2720 = vmatprep.subr.mxu0 0.0
        %2721 = vmatpush2.xpose.msra.mxu0 0.0
        %2722 = vmatprep.subr.mxu0 0.0
        %2723 = vmatpush2.xpose.msra.mxu0 0.0
        %2724 = vmatprep.subr.mxu0 0.0
        %2725 = vmatpush2.xpose.msra.mxu0 0.0
        %2726 = vmatprep.mubr.f32.mxu0 0.0
        %2727 = vmatmul.mubr.f32.gmra.mxu0 %v2658
        %v2728 = vpop.f32.mrf.mxu0
        %v2729 = vadd.f32 %v1681, %v2728
        %v2730 = vpop.f32.mrf.mxu0
        %2731 = vdwg.mxu0
        %v2732 = vsel %vm1779, %v2729, -inf
        %2733 = vmax.xlane.f32.xlu0 %v2732
        %v2734 = vpop.xlane.xlu0 %2733
        %v2735 = vsub.f32 %v2729, %v2734
        %v2736 = vmul.f32 %v2735, 1.442695
        %v2737 = vpow.pop %v2736
        %v2738 = vsel %vm1779, %v2737, 0.0
        %2739 = vadd.xlane.f32.xlu0 %v2738
        %v2740 = vpop.xlane.xlu0 %2739
        %v2741 = vrcp.pop %v2740
        %v2742 = vmul.f32 %v2737, %v2741
        %2743 = vrot.lane.b32.xlu0 %v1673, 64
        %v2744 = vpop.permute.xlu0 %2743
        %v2747 = vsel %vm1779, %v2742, 0
        %2749 = vmatprep.subr.mxu0 0.0
        %2750 = vmatpush1.msra.mxu0 0.0
        %2751 = vmatprep.subr.mxu0 0.0
        %2752 = vmatpush1.msra.mxu0 0.0
        %2753 = vmatprep.subr.mxu0 0.0
        %2754 = vmatpush1.msra.mxu0 0.0
        %2755 = vmatprep.subr.mxu0 0.0
        %2756 = vmatpush1.msra.mxu0 0.0
        %2757 = vmatprep.subr.mxu0 0.0
        %2758 = vmatpush1.msra.mxu0 0.0
        %2759 = vmatprep.subr.mxu0 0.0
        %2760 = vmatpush1.msra.mxu0 0.0
        %2761 = vmatprep.subr.mxu0 0.0
        %2762 = vmatpush1.msra.mxu0 0.0
        %2763 = vmatprep.subr.mxu0 0.0
        %2764 = vmatpush1.msra.mxu0 0.0
        %2765 = vmatprep.subr.mxu0 0.0
        %2766 = vmatpush1.msra.mxu0 0.0
        %2767 = vmatprep.subr.mxu0 0.0
        %2768 = vmatpush1.msra.mxu0 0.0
        %2769 = vmatprep.subr.mxu0 0.0
        %2770 = vmatpush1.msra.mxu0 0.0
        %2771 = vmatprep.subr.mxu0 0.0
        %2772 = vmatpush1.msra.mxu0 0.0
        %2773 = vmatprep.subr.mxu0 0.0
        %2774 = vmatpush1.msra.mxu0 0.0
        %2775 = vmatprep.subr.mxu0 0.0
        %2776 = vmatpush1.msra.mxu0 0.0
        %2777 = vmatprep.subr.mxu0 0.0
        %2778 = vmatpush1.msra.mxu0 0.0
        %2779 = vmatprep.subr.mxu0 0.0
        %2780 = vmatpush1.msra.mxu0 %v2744
        %2781 = vmatprep.subr.mxu0 0.0
        %2782 = vmatpush2.msra.mxu0 0.0
        %2783 = vmatprep.subr.mxu0 0.0
        %2784 = vmatpush2.msra.mxu0 0.0
        %2785 = vmatprep.subr.mxu0 0.0
        %2786 = vmatpush2.msra.mxu0 0.0
        %2787 = vmatprep.subr.mxu0 0.0
        %2788 = vmatpush2.msra.mxu0 0.0
        %2789 = vmatprep.subr.mxu0 0.0
        %2790 = vmatpush2.msra.mxu0 0.0
        %2791 = vmatprep.subr.mxu0 0.0
        %2792 = vmatpush2.msra.mxu0 0.0
        %2793 = vmatprep.subr.mxu0 0.0
        %2794 = vmatpush2.msra.mxu0 0.0
        %2795 = vmatprep.subr.mxu0 0.0
        %2796 = vmatpush2.msra.mxu0 0.0
        %2797 = vmatprep.subr.mxu0 0.0
        %2798 = vmatpush2.msra.mxu0 0.0
        %2799 = vmatprep.subr.mxu0 0.0
        %2800 = vmatpush2.msra.mxu0 0.0
        %2801 = vmatprep.subr.mxu0 0.0
        %2802 = vmatpush2.msra.mxu0 0.0
        %2803 = vmatprep.subr.mxu0 0.0
        %2804 = vmatpush2.msra.mxu0 0.0
        %2805 = vmatprep.subr.mxu0 0.0
        %2806 = vmatpush2.msra.mxu0 0.0
        %2807 = vmatprep.subr.mxu0 0.0
        %2808 = vmatpush2.msra.mxu0 0.0
        %2809 = vmatprep.subr.mxu0 0.0
        %2810 = vmatpush2.msra.mxu0 0.0
        %2811 = vmatprep.subr.mxu0 0.0
        %2812 = vmatpush2.msra.mxu0 0.0
        %2813 = vmatprep.mubr.f32.mxu0 0.0
        %2814 = vmatmul.mubr.f32.gmra.mxu0 %v2747
        %v2815 = vpop.f32.mrf.mxu0
        %v2816 = vadd.f32 0.0, %v2815
        %v2817 = vpop.f32.mrf.mxu0
        %2818 = vdwg.mxu0
        %v2820 = vsel %vm1702, %v2816, 0
        %2822 = vmatprep.subr.mxu0 0.0
        %2823 = vmatpush1.msra.mxu0 0.0
        %2824 = vmatprep.subr.mxu0 0.0
        %2825 = vmatpush1.msra.mxu0 0.0
        %2826 = vmatprep.subr.mxu0 0.0
        %2827 = vmatpush1.msra.mxu0 0.0
        %2828 = vmatprep.subr.mxu0 0.0
        %2829 = vmatpush1.msra.mxu0 0.0
        %2830 = vmatprep.subr.mxu0 0.0
        %2831 = vmatpush1.msra.mxu0 0.0
        %2832 = vmatprep.subr.mxu0 0.0
        %2833 = vmatpush1.msra.mxu0 0.0
        %2834 = vmatprep.subr.mxu0 0.0
        %2835 = vmatpush1.msra.mxu0 0.0
        %2836 = vmatprep.subr.mxu0 0.0
        %2837 = vmatpush1.msra.mxu0 0.0
        %2838 = vmatprep.subr.mxu0 0.0
        %2839 = vmatpush1.msra.mxu0 0.0
        %2840 = vmatprep.subr.mxu0 0.0
        %2841 = vmatpush1.msra.mxu0 0.0
        %2842 = vmatprep.subr.mxu0 0.0
        %2843 = vmatpush1.msra.mxu0 0.0
        %2844 = vmatprep.subr.mxu0 0.0
        %2845 = vmatpush1.msra.mxu0 0.0
        %2846 = vmatprep.subr.mxu0 0.0
        %2847 = vmatpush1.msra.mxu0 0.0
        %2848 = vmatprep.subr.mxu0 0.0
        %2849 = vmatpush1.msra.mxu0 0.0
        %2850 = vmatprep.subr.mxu0 0.0
        %2851 = vmatpush1.msra.mxu0 %v1694
        %2852 = vmatprep.subr.mxu0 0.0
        %2853 = vmatpush1.msra.mxu0 %v1693
        %2854 = vmatprep.subr.mxu0 0.0
        %2855 = vmatpush2.msra.mxu0 0.0
        %2856 = vmatprep.subr.mxu0 0.0
        %2857 = vmatpush2.msra.mxu0 0.0
        %2858 = vmatprep.subr.mxu0 0.0
        %2859 = vmatpush2.msra.mxu0 0.0
        %2860 = vmatprep.subr.mxu0 0.0
        %2861 = vmatpush2.msra.mxu0 0.0
        %2862 = vmatprep.subr.mxu0 0.0
        %2863 = vmatpush2.msra.mxu0 0.0
        %2864 = vmatprep.subr.mxu0 0.0
        %2865 = vmatpush2.msra.mxu0 0.0
        %2866 = vmatprep.subr.mxu0 0.0
        %2867 = vmatpush2.msra.mxu0 0.0
        %2868 = vmatprep.subr.mxu0 0.0
        %2869 = vmatpush2.msra.mxu0 0.0
        %2870 = vmatprep.subr.mxu0 0.0
        %2871 = vmatpush2.msra.mxu0 0.0
        %2872 = vmatprep.subr.mxu0 0.0
        %2873 = vmatpush2.msra.mxu0 0.0
        %2874 = vmatprep.subr.mxu0 0.0
        %2875 = vmatpush2.msra.mxu0 0.0
        %2876 = vmatprep.subr.mxu0 0.0
        %2877 = vmatpush2.msra.mxu0 0.0
        %2878 = vmatprep.subr.mxu0 0.0
        %2879 = vmatpush2.msra.mxu0 0.0
        %2880 = vmatprep.subr.mxu0 0.0
        %2881 = vmatpush2.msra.mxu0 0.0
        %2882 = vmatprep.subr.mxu0 0.0
        %2883 = vmatpush2.msra.mxu0 0.0
        %2884 = vmatprep.subr.mxu0 0.0
        %2885 = vmatpush2.msra.mxu0 0.0
        %2886 = vmatprep.mubr.f32.mxu0 0.0
        %2887 = vmatmul.mubr.f32.gmra.mxu0 %v2820
        %v2888 = vpop.f32.mrf.mxu0
        %v2889 = vadd.f32 0.0, %v2888
        %v2890 = vpop.f32.mrf.mxu0
        %2891 = vdwg.mxu0
        %v2892 = vadd.f32 %v2653, %v2889
        %2893 = vrot.lane.b32.xlu0 %v1676, 48
        %v2894 = vpop.permute.xlu0 %2893
        %2895 = vrot.lane.b32.xlu0 %v1604, 48
        %v2896 = vpop.permute.xlu0 %2895
        %v2897 = vsel %vm1702, %v2894, 0
        %v2899 = vsel %vm1702, %v2896, 0
        %2901 = vmatprep.subr.mxu0 0.0
        %2902 = vmatpush1.xpose.msra.mxu0 0.0
        %2903 = vmatprep.subr.mxu0 0.0
        %2904 = vmatpush1.xpose.msra.mxu0 0.0
        %2905 = vmatprep.subr.mxu0 0.0
        %2906 = vmatpush1.xpose.msra.mxu0 0.0
        %2907 = vmatprep.subr.mxu0 0.0
        %2908 = vmatpush1.xpose.msra.mxu0 0.0
        %2909 = vmatprep.subr.mxu0 0.0
        %2910 = vmatpush1.xpose.msra.mxu0 0.0
        %2911 = vmatprep.subr.mxu0 0.0
        %2912 = vmatpush1.xpose.msra.mxu0 0.0
        %2913 = vmatprep.subr.mxu0 0.0
        %2914 = vmatpush1.xpose.msra.mxu0 0.0
        %2915 = vmatprep.subr.mxu0 0.0
        %2916 = vmatpush1.xpose.msra.mxu0 0.0
        %2917 = vmatprep.subr.mxu0 0.0
        %2918 = vmatpush1.xpose.msra.mxu0 0.0
        %2919 = vmatprep.subr.mxu0 0.0
        %2920 = vmatpush1.xpose.msra.mxu0 0.0
        %2921 = vmatprep.subr.mxu0 0.0
        %2922 = vmatpush1.xpose.msra.mxu0 0.0
        %2923 = vmatprep.subr.mxu0 0.0
        %2924 = vmatpush1.xpose.msra.mxu0 0.0
        %2925 = vmatprep.subr.mxu0 0.0
        %2926 = vmatpush1.xpose.msra.mxu0 0.0
        %2927 = vmatprep.subr.mxu0 0.0
        %2928 = vmatpush1.xpose.msra.mxu0 0.0
        %2929 = vmatprep.subr.mxu0 0.0
        %2930 = vmatpush1.xpose.msra.mxu0 0.0
        %2931 = vmatprep.subr.mxu0 0.0
        %2932 = vmatpush1.xpose.msra.mxu0 %v2899
        %2933 = vmatprep.subr.mxu0 0.0
        %2934 = vmatpush2.xpose.msra.mxu0 0.0
        %2935 = vmatprep.subr.mxu0 0.0
        %2936 = vmatpush2.xpose.msra.mxu0 0.0
        %2937 = vmatprep.subr.mxu0 0.0
        %2938 = vmatpush2.xpose.msra.mxu0 0.0
        %2939 = vmatprep.subr.mxu0 0.0
        %2940 = vmatpush2.xpose.msra.mxu0 0.0
        %2941 = vmatprep.subr.mxu0 0.0
        %2942 = vmatpush2.xpose.msra.mxu0 0.0
        %2943 = vmatprep.subr.mxu0 0.0
        %2944 = vmatpush2.xpose.msra.mxu0 0.0
        %2945 = vmatprep.subr.mxu0 0.0
        %2946 = vmatpush2.xpose.msra.mxu0 0.0
        %2947 = vmatprep.subr.mxu0 0.0
        %2948 = vmatpush2.xpose.msra.mxu0 0.0
        %2949 = vmatprep.subr.mxu0 0.0
        %2950 = vmatpush2.xpose.msra.mxu0 0.0
        %2951 = vmatprep.subr.mxu0 0.0
        %2952 = vmatpush2.xpose.msra.mxu0 0.0
        %2953 = vmatprep.subr.mxu0 0.0
        %2954 = vmatpush2.xpose.msra.mxu0 0.0
        %2955 = vmatprep.subr.mxu0 0.0
        %2956 = vmatpush2.xpose.msra.mxu0 0.0
        %2957 = vmatprep.subr.mxu0 0.0
        %2958 = vmatpush2.xpose.msra.mxu0 0.0
        %2959 = vmatprep.subr.mxu0 0.0
        %2960 = vmatpush2.xpose.msra.mxu0 0.0
        %2961 = vmatprep.subr.mxu0 0.0
        %2962 = vmatpush2.xpose.msra.mxu0 0.0
        %2963 = vmatprep.subr.mxu0 0.0
        %2964 = vmatpush2.xpose.msra.mxu0 0.0
        %2965 = vmatprep.mubr.f32.mxu0 0.0
        %2966 = vmatmul.mubr.f32.gmra.mxu0 %v2897
        %v2967 = vpop.f32.mrf.mxu0
        %v2968 = vadd.f32 %v1682, %v2967
        %v2969 = vpop.f32.mrf.mxu0
        %2970 = vdwg.mxu0
        %v2971 = vsel %vm1779, %v2968, -inf
        %2972 = vmax.xlane.f32.xlu0 %v2971
        %v2973 = vpop.xlane.xlu0 %2972
        %v2974 = vsub.f32 %v2968, %v2973
        %v2975 = vmul.f32 %v2974, 1.442695
        %v2976 = vpow.pop %v2975
        %v2977 = vsel %vm1779, %v2976, 0.0
        %2978 = vadd.xlane.f32.xlu0 %v2977
        %v2979 = vpop.xlane.xlu0 %2978
        %v2980 = vrcp.pop %v2979
        %v2981 = vmul.f32 %v2976, %v2980
        %2982 = vrot.lane.b32.xlu0 %v1673, 48
        %v2983 = vpop.permute.xlu0 %2982
        %v2986 = vsel %vm1779, %v2981, 0
        %2988 = vmatprep.subr.mxu0 0.0
        %2989 = vmatpush1.msra.mxu0 0.0
        %2990 = vmatprep.subr.mxu0 0.0
        %2991 = vmatpush1.msra.mxu0 0.0
        %2992 = vmatprep.subr.mxu0 0.0
        %2993 = vmatpush1.msra.mxu0 0.0
        %2994 = vmatprep.subr.mxu0 0.0
        %2995 = vmatpush1.msra.mxu0 0.0
        %2996 = vmatprep.subr.mxu0 0.0
        %2997 = vmatpush1.msra.mxu0 0.0
        %2998 = vmatprep.subr.mxu0 0.0
        %2999 = vmatpush1.msra.mxu0 0.0
        %3000 = vmatprep.subr.mxu0 0.0
        %3001 = vmatpush1.msra.mxu0 0.0
        %3002 = vmatprep.subr.mxu0 0.0
        %3003 = vmatpush1.msra.mxu0 0.0
        %3004 = vmatprep.subr.mxu0 0.0
        %3005 = vmatpush1.msra.mxu0 0.0
        %3006 = vmatprep.subr.mxu0 0.0
        %3007 = vmatpush1.msra.mxu0 0.0
        %3008 = vmatprep.subr.mxu0 0.0
        %3009 = vmatpush1.msra.mxu0 0.0
        %3010 = vmatprep.subr.mxu0 0.0
        %3011 = vmatpush1.msra.mxu0 0.0
        %3012 = vmatprep.subr.mxu0 0.0
        %3013 = vmatpush1.msra.mxu0 0.0
        %3014 = vmatprep.subr.mxu0 0.0
        %3015 = vmatpush1.msra.mxu0 0.0
        %3016 = vmatprep.subr.mxu0 0.0
        %3017 = vmatpush1.msra.mxu0 0.0
        %3018 = vmatprep.subr.mxu0 0.0
        %3019 = vmatpush1.msra.mxu0 %v2983
        %3020 = vmatprep.subr.mxu0 0.0
        %3021 = vmatpush2.msra.mxu0 0.0
        %3022 = vmatprep.subr.mxu0 0.0
        %3023 = vmatpush2.msra.mxu0 0.0
        %3024 = vmatprep.subr.mxu0 0.0
        %3025 = vmatpush2.msra.mxu0 0.0
        %3026 = vmatprep.subr.mxu0 0.0
        %3027 = vmatpush2.msra.mxu0 0.0
        %3028 = vmatprep.subr.mxu0 0.0
        %3029 = vmatpush2.msra.mxu0 0.0
        %3030 = vmatprep.subr.mxu0 0.0
        %3031 = vmatpush2.msra.mxu0 0.0
        %3032 = vmatprep.subr.mxu0 0.0
        %3033 = vmatpush2.msra.mxu0 0.0
        %3034 = vmatprep.subr.mxu0 0.0
        %3035 = vmatpush2.msra.mxu0 0.0
        %3036 = vmatprep.subr.mxu0 0.0
        %3037 = vmatpush2.msra.mxu0 0.0
        %3038 = vmatprep.subr.mxu0 0.0
        %3039 = vmatpush2.msra.mxu0 0.0
        %3040 = vmatprep.subr.mxu0 0.0
        %3041 = vmatpush2.msra.mxu0 0.0
        %3042 = vmatprep.subr.mxu0 0.0
        %3043 = vmatpush2.msra.mxu0 0.0
        %3044 = vmatprep.subr.mxu0 0.0
        %3045 = vmatpush2.msra.mxu0 0.0
        %3046 = vmatprep.subr.mxu0 0.0
        %3047 = vmatpush2.msra.mxu0 0.0
        %3048 = vmatprep.subr.mxu0 0.0
        %3049 = vmatpush2.msra.mxu0 0.0
        %3050 = vmatprep.subr.mxu0 0.0
        %3051 = vmatpush2.msra.mxu0 0.0
        %3052 = vmatprep.mubr.f32.mxu0 0.0
        %3053 = vmatmul.mubr.f32.gmra.mxu0 %v2986
        %v3054 = vpop.f32.mrf.mxu0
        %v3055 = vadd.f32 0.0, %v3054
        %v3056 = vpop.f32.mrf.mxu0
        %3057 = vdwg.mxu0
        %v3059 = vsel %vm1702, %v3055, 0
        %3061 = vmatprep.subr.mxu0 0.0
        %3062 = vmatpush1.msra.mxu0 0.0
        %3063 = vmatprep.subr.mxu0 0.0
        %3064 = vmatpush1.msra.mxu0 0.0
        %3065 = vmatprep.subr.mxu0 0.0
        %3066 = vmatpush1.msra.mxu0 0.0
        %3067 = vmatprep.subr.mxu0 0.0
        %3068 = vmatpush1.msra.mxu0 0.0
        %3069 = vmatprep.subr.mxu0 0.0
        %3070 = vmatpush1.msra.mxu0 0.0
        %3071 = vmatprep.subr.mxu0 0.0
        %3072 = vmatpush1.msra.mxu0 0.0
        %3073 = vmatprep.subr.mxu0 0.0
        %3074 = vmatpush1.msra.mxu0 0.0
        %3075 = vmatprep.subr.mxu0 0.0
        %3076 = vmatpush1.msra.mxu0 0.0
        %3077 = vmatprep.subr.mxu0 0.0
        %3078 = vmatpush1.msra.mxu0 0.0
        %3079 = vmatprep.subr.mxu0 0.0
        %3080 = vmatpush1.msra.mxu0 0.0
        %3081 = vmatprep.subr.mxu0 0.0
        %3082 = vmatpush1.msra.mxu0 0.0
        %3083 = vmatprep.subr.mxu0 0.0
        %3084 = vmatpush1.msra.mxu0 0.0
        %3085 = vmatprep.subr.mxu0 0.0
        %3086 = vmatpush1.msra.mxu0 0.0
        %3087 = vmatprep.subr.mxu0 0.0
        %3088 = vmatpush1.msra.mxu0 0.0
        %3089 = vmatprep.subr.mxu0 0.0
        %3090 = vmatpush1.msra.mxu0 %v1696
        %3091 = vmatprep.subr.mxu0 0.0
        %3092 = vmatpush1.msra.mxu0 %v1695
        %3093 = vmatprep.subr.mxu0 0.0
        %3094 = vmatpush2.msra.mxu0 0.0
        %3095 = vmatprep.subr.mxu0 0.0
        %3096 = vmatpush2.msra.mxu0 0.0
        %3097 = vmatprep.subr.mxu0 0.0
        %3098 = vmatpush2.msra.mxu0 0.0
        %3099 = vmatprep.subr.mxu0 0.0
        %3100 = vmatpush2.msra.mxu0 0.0
        %3101 = vmatprep.subr.mxu0 0.0
        %3102 = vmatpush2.msra.mxu0 0.0
        %3103 = vmatprep.subr.mxu0 0.0
        %3104 = vmatpush2.msra.mxu0 0.0
        %3105 = vmatprep.subr.mxu0 0.0
        %3106 = vmatpush2.msra.mxu0 0.0
        %3107 = vmatprep.subr.mxu0 0.0
        %3108 = vmatpush2.msra.mxu0 0.0
        %3109 = vmatprep.subr.mxu0 0.0
        %3110 = vmatpush2.msra.mxu0 0.0
        %3111 = vmatprep.subr.mxu0 0.0
        %3112 = vmatpush2.msra.mxu0 0.0
        %3113 = vmatprep.subr.mxu0 0.0
        %3114 = vmatpush2.msra.mxu0 0.0
        %3115 = vmatprep.subr.mxu0 0.0
        %3116 = vmatpush2.msra.mxu0 0.0
        %3117 = vmatprep.subr.mxu0 0.0
        %3118 = vmatpush2.msra.mxu0 0.0
        %3119 = vmatprep.subr.mxu0 0.0
        %3120 = vmatpush2.msra.mxu0 0.0
        %3121 = vmatprep.subr.mxu0 0.0
        %3122 = vmatpush2.msra.mxu0 0.0
        %3123 = vmatprep.subr.mxu0 0.0
        %3124 = vmatpush2.msra.mxu0 0.0
        %3125 = vmatprep.mubr.f32.mxu0 0.0
        %3126 = vmatmul.mubr.f32.gmra.mxu0 %v3059
        %v3127 = vpop.f32.mrf.mxu0
        %v3128 = vadd.f32 0.0, %v3127
        %v3129 = vpop.f32.mrf.mxu0
        %3130 = vdwg.mxu0
        %v3131 = vadd.f32 %v2892, %v3128
        %3132 = vrot.lane.b32.xlu0 %v1676, 32
        %v3133 = vpop.permute.xlu0 %3132
        %3134 = vrot.lane.b32.xlu0 %v1604, 32
        %v3135 = vpop.permute.xlu0 %3134
        %v3136 = vsel %vm1702, %v3133, 0
        %v3138 = vsel %vm1702, %v3135, 0
        %3140 = vmatprep.subr.mxu0 0.0
        %3141 = vmatpush1.xpose.msra.mxu0 0.0
        %3142 = vmatprep.subr.mxu0 0.0
        %3143 = vmatpush1.xpose.msra.mxu0 0.0
        %3144 = vmatprep.subr.mxu0 0.0
        %3145 = vmatpush1.xpose.msra.mxu0 0.0
        %3146 = vmatprep.subr.mxu0 0.0
        %3147 = vmatpush1.xpose.msra.mxu0 0.0
        %3148 = vmatprep.subr.mxu0 0.0
        %3149 = vmatpush1.xpose.msra.mxu0 0.0
        %3150 = vmatprep.subr.mxu0 0.0
        %3151 = vmatpush1.xpose.msra.mxu0 0.0
        %3152 = vmatprep.subr.mxu0 0.0
        %3153 = vmatpush1.xpose.msra.mxu0 0.0
        %3154 = vmatprep.subr.mxu0 0.0
        %3155 = vmatpush1.xpose.msra.mxu0 0.0
        %3156 = vmatprep.subr.mxu0 0.0
        %3157 = vmatpush1.xpose.msra.mxu0 0.0
        %3158 = vmatprep.subr.mxu0 0.0
        %3159 = vmatpush1.xpose.msra.mxu0 0.0
        %3160 = vmatprep.subr.mxu0 0.0
        %3161 = vmatpush1.xpose.msra.mxu0 0.0
        %3162 = vmatprep.subr.mxu0 0.0
        %3163 = vmatpush1.xpose.msra.mxu0 0.0
        %3164 = vmatprep.subr.mxu0 0.0
        %3165 = vmatpush1.xpose.msra.mxu0 0.0
        %3166 = vmatprep.subr.mxu0 0.0
        %3167 = vmatpush1.xpose.msra.mxu0 0.0
        %3168 = vmatprep.subr.mxu0 0.0
        %3169 = vmatpush1.xpose.msra.mxu0 0.0
        %3170 = vmatprep.subr.mxu0 0.0
        %3171 = vmatpush1.xpose.msra.mxu0 %v3138
        %3172 = vmatprep.subr.mxu0 0.0
        %3173 = vmatpush2.xpose.msra.mxu0 0.0
        %3174 = vmatprep.subr.mxu0 0.0
        %3175 = vmatpush2.xpose.msra.mxu0 0.0
        %3176 = vmatprep.subr.mxu0 0.0
        %3177 = vmatpush2.xpose.msra.mxu0 0.0
        %3178 = vmatprep.subr.mxu0 0.0
        %3179 = vmatpush2.xpose.msra.mxu0 0.0
        %3180 = vmatprep.subr.mxu0 0.0
        %3181 = vmatpush2.xpose.msra.mxu0 0.0
        %3182 = vmatprep.subr.mxu0 0.0
        %3183 = vmatpush2.xpose.msra.mxu0 0.0
        %3184 = vmatprep.subr.mxu0 0.0
        %3185 = vmatpush2.xpose.msra.mxu0 0.0
        %3186 = vmatprep.subr.mxu0 0.0
        %3187 = vmatpush2.xpose.msra.mxu0 0.0
        %3188 = vmatprep.subr.mxu0 0.0
        %3189 = vmatpush2.xpose.msra.mxu0 0.0
        %3190 = vmatprep.subr.mxu0 0.0
        %3191 = vmatpush2.xpose.msra.mxu0 0.0
        %3192 = vmatprep.subr.mxu0 0.0
        %3193 = vmatpush2.xpose.msra.mxu0 0.0
        %3194 = vmatprep.subr.mxu0 0.0
        %3195 = vmatpush2.xpose.msra.mxu0 0.0
        %3196 = vmatprep.subr.mxu0 0.0
        %3197 = vmatpush2.xpose.msra.mxu0 0.0
        %3198 = vmatprep.subr.mxu0 0.0
        %3199 = vmatpush2.xpose.msra.mxu0 0.0
        %3200 = vmatprep.subr.mxu0 0.0
        %3201 = vmatpush2.xpose.msra.mxu0 0.0
        %3202 = vmatprep.subr.mxu0 0.0
        %3203 = vmatpush2.xpose.msra.mxu0 0.0
        %3204 = vmatprep.mubr.f32.mxu0 0.0
        %3205 = vmatmul.mubr.f32.gmra.mxu0 %v3136
        %v3206 = vpop.f32.mrf.mxu0
        %v3207 = vadd.f32 %v1683, %v3206
        %v3208 = vpop.f32.mrf.mxu0
        %3209 = vdwg.mxu0
        %v3210 = vsel %vm1779, %v3207, -inf
        %3211 = vmax.xlane.f32.xlu0 %v3210
        %v3212 = vpop.xlane.xlu0 %3211
        %v3213 = vsub.f32 %v3207, %v3212
        %v3214 = vmul.f32 %v3213, 1.442695
        %v3215 = vpow.pop %v3214
        %v3216 = vsel %vm1779, %v3215, 0.0
        %3217 = vadd.xlane.f32.xlu0 %v3216
        %v3218 = vpop.xlane.xlu0 %3217
        %v3219 = vrcp.pop %v3218
        %v3220 = vmul.f32 %v3215, %v3219
        %3221 = vrot.lane.b32.xlu0 %v1673, 32
        %v3222 = vpop.permute.xlu0 %3221
        %v3225 = vsel %vm1779, %v3220, 0
        %3227 = vmatprep.subr.mxu0 0.0
        %3228 = vmatpush1.msra.mxu0 0.0
        %3229 = vmatprep.subr.mxu0 0.0
        %3230 = vmatpush1.msra.mxu0 0.0
        %3231 = vmatprep.subr.mxu0 0.0
        %3232 = vmatpush1.msra.mxu0 0.0
        %3233 = vmatprep.subr.mxu0 0.0
        %3234 = vmatpush1.msra.mxu0 0.0
        %3235 = vmatprep.subr.mxu0 0.0
        %3236 = vmatpush1.msra.mxu0 0.0
        %3237 = vmatprep.subr.mxu0 0.0
        %3238 = vmatpush1.msra.mxu0 0.0
        %3239 = vmatprep.subr.mxu0 0.0
        %3240 = vmatpush1.msra.mxu0 0.0
        %3241 = vmatprep.subr.mxu0 0.0
        %3242 = vmatpush1.msra.mxu0 0.0
        %3243 = vmatprep.subr.mxu0 0.0
        %3244 = vmatpush1.msra.mxu0 0.0
        %3245 = vmatprep.subr.mxu0 0.0
        %3246 = vmatpush1.msra.mxu0 0.0
        %3247 = vmatprep.subr.mxu0 0.0
        %3248 = vmatpush1.msra.mxu0 0.0
        %3249 = vmatprep.subr.mxu0 0.0
        %3250 = vmatpush1.msra.mxu0 0.0
        %3251 = vmatprep.subr.mxu0 0.0
        %3252 = vmatpush1.msra.mxu0 0.0
        %3253 = vmatprep.subr.mxu0 0.0
        %3254 = vmatpush1.msra.mxu0 0.0
        %3255 = vmatprep.subr.mxu0 0.0
        %3256 = vmatpush1.msra.mxu0 0.0
        %3257 = vmatprep.subr.mxu0 0.0
        %3258 = vmatpush1.msra.mxu0 %v3222
        %3259 = vmatprep.subr.mxu0 0.0
        %3260 = vmatpush2.msra.mxu0 0.0
        %3261 = vmatprep.subr.mxu0 0.0
        %3262 = vmatpush2.msra.mxu0 0.0
        %3263 = vmatprep.subr.mxu0 0.0
        %3264 = vmatpush2.msra.mxu0 0.0
        %3265 = vmatprep.subr.mxu0 0.0
        %3266 = vmatpush2.msra.mxu0 0.0
        %3267 = vmatprep.subr.mxu0 0.0
        %3268 = vmatpush2.msra.mxu0 0.0
        %3269 = vmatprep.subr.mxu0 0.0
        %3270 = vmatpush2.msra.mxu0 0.0
        %3271 = vmatprep.subr.mxu0 0.0
        %3272 = vmatpush2.msra.mxu0 0.0
        %3273 = vmatprep.subr.mxu0 0.0
        %3274 = vmatpush2.msra.mxu0 0.0
        %3275 = vmatprep.subr.mxu0 0.0
        %3276 = vmatpush2.msra.mxu0 0.0
        %3277 = vmatprep.subr.mxu0 0.0
        %3278 = vmatpush2.msra.mxu0 0.0
        %3279 = vmatprep.subr.mxu0 0.0
        %3280 = vmatpush2.msra.mxu0 0.0
        %3281 = vmatprep.subr.mxu0 0.0
        %3282 = vmatpush2.msra.mxu0 0.0
        %3283 = vmatprep.subr.mxu0 0.0
        %3284 = vmatpush2.msra.mxu0 0.0
        %3285 = vmatprep.subr.mxu0 0.0
        %3286 = vmatpush2.msra.mxu0 0.0
        %3287 = vmatprep.subr.mxu0 0.0
        %3288 = vmatpush2.msra.mxu0 0.0
        %3289 = vmatprep.subr.mxu0 0.0
        %3290 = vmatpush2.msra.mxu0 0.0
        %3291 = vmatprep.mubr.f32.mxu0 0.0
        %3292 = vmatmul.mubr.f32.gmra.mxu0 %v3225
        %v3293 = vpop.f32.mrf.mxu0
        %v3294 = vadd.f32 0.0, %v3293
        %v3295 = vpop.f32.mrf.mxu0
        %3296 = vdwg.mxu0
        %v3298 = vsel %vm1702, %v3294, 0
        %3300 = vmatprep.subr.mxu0 0.0
        %3301 = vmatpush1.msra.mxu0 0.0
        %3302 = vmatprep.subr.mxu0 0.0
        %3303 = vmatpush1.msra.mxu0 0.0
        %3304 = vmatprep.subr.mxu0 0.0
        %3305 = vmatpush1.msra.mxu0 0.0
        %3306 = vmatprep.subr.mxu0 0.0
        %3307 = vmatpush1.msra.mxu0 0.0
        %3308 = vmatprep.subr.mxu0 0.0
        %3309 = vmatpush1.msra.mxu0 0.0
        %3310 = vmatprep.subr.mxu0 0.0
        %3311 = vmatpush1.msra.mxu0 0.0
        %3312 = vmatprep.subr.mxu0 0.0
        %3313 = vmatpush1.msra.mxu0 0.0
        %3314 = vmatprep.subr.mxu0 0.0
        %3315 = vmatpush1.msra.mxu0 0.0
        %3316 = vmatprep.subr.mxu0 0.0
        %3317 = vmatpush1.msra.mxu0 0.0
        %3318 = vmatprep.subr.mxu0 0.0
        %3319 = vmatpush1.msra.mxu0 0.0
        %3320 = vmatprep.subr.mxu0 0.0
        %3321 = vmatpush1.msra.mxu0 0.0
        %3322 = vmatprep.subr.mxu0 0.0
        %3323 = vmatpush1.msra.mxu0 0.0
        %3324 = vmatprep.subr.mxu0 0.0
        %3325 = vmatpush1.msra.mxu0 0.0
        %3326 = vmatprep.subr.mxu0 0.0
        %3327 = vmatpush1.msra.mxu0 0.0
        %3328 = vmatprep.subr.mxu0 0.0
        %3329 = vmatpush1.msra.mxu0 %v1698
        %3330 = vmatprep.subr.mxu0 0.0
        %3331 = vmatpush1.msra.mxu0 %v1697
        %3332 = vmatprep.subr.mxu0 0.0
        %3333 = vmatpush2.msra.mxu0 0.0
        %3334 = vmatprep.subr.mxu0 0.0
        %3335 = vmatpush2.msra.mxu0 0.0
        %3336 = vmatprep.subr.mxu0 0.0
        %3337 = vmatpush2.msra.mxu0 0.0
        %3338 = vmatprep.subr.mxu0 0.0
        %3339 = vmatpush2.msra.mxu0 0.0
        %3340 = vmatprep.subr.mxu0 0.0
        %3341 = vmatpush2.msra.mxu0 0.0
        %3342 = vmatprep.subr.mxu0 0.0
        %3343 = vmatpush2.msra.mxu0 0.0
        %3344 = vmatprep.subr.mxu0 0.0
        %3345 = vmatpush2.msra.mxu0 0.0
        %3346 = vmatprep.subr.mxu0 0.0
        %3347 = vmatpush2.msra.mxu0 0.0
        %3348 = vmatprep.subr.mxu0 0.0
        %3349 = vmatpush2.msra.mxu0 0.0
        %3350 = vmatprep.subr.mxu0 0.0
        %3351 = vmatpush2.msra.mxu0 0.0
        %3352 = vmatprep.subr.mxu0 0.0
        %3353 = vmatpush2.msra.mxu0 0.0
        %3354 = vmatprep.subr.mxu0 0.0
        %3355 = vmatpush2.msra.mxu0 0.0
        %3356 = vmatprep.subr.mxu0 0.0
        %3357 = vmatpush2.msra.mxu0 0.0
        %3358 = vmatprep.subr.mxu0 0.0
        %3359 = vmatpush2.msra.mxu0 0.0
        %3360 = vmatprep.subr.mxu0 0.0
        %3361 = vmatpush2.msra.mxu0 0.0
        %3362 = vmatprep.subr.mxu0 0.0
        %3363 = vmatpush2.msra.mxu0 0.0
        %3364 = vmatprep.mubr.f32.mxu0 0.0
        %3365 = vmatmul.mubr.f32.gmra.mxu0 %v3298
        %v3366 = vpop.f32.mrf.mxu0
        %v3367 = vadd.f32 0.0, %v3366
        %v3368 = vpop.f32.mrf.mxu0
        %3369 = vdwg.mxu0
        %v3370 = vadd.f32 %v3131, %v3367
        %3371 = vrot.lane.b32.xlu0 %v1676, 16
        %v3372 = vpop.permute.xlu0 %3371
        %3373 = vrot.lane.b32.xlu0 %v1604, 16
        %v3374 = vpop.permute.xlu0 %3373
        %v3375 = vsel %vm1702, %v3372, 0
        %v3377 = vsel %vm1702, %v3374, 0
        %3379 = vmatprep.subr.mxu0 0.0
        %3380 = vmatpush1.xpose.msra.mxu0 0.0
        %3381 = vmatprep.subr.mxu0 0.0
        %3382 = vmatpush1.xpose.msra.mxu0 0.0
        %3383 = vmatprep.subr.mxu0 0.0
        %3384 = vmatpush1.xpose.msra.mxu0 0.0
        %3385 = vmatprep.subr.mxu0 0.0
        %3386 = vmatpush1.xpose.msra.mxu0 0.0
        %3387 = vmatprep.subr.mxu0 0.0
        %3388 = vmatpush1.xpose.msra.mxu0 0.0
        %3389 = vmatprep.subr.mxu0 0.0
        %3390 = vmatpush1.xpose.msra.mxu0 0.0
        %3391 = vmatprep.subr.mxu0 0.0
        %3392 = vmatpush1.xpose.msra.mxu0 0.0
        %3393 = vmatprep.subr.mxu0 0.0
        %3394 = vmatpush1.xpose.msra.mxu0 0.0
        %3395 = vmatprep.subr.mxu0 0.0
        %3396 = vmatpush1.xpose.msra.mxu0 0.0
        %3397 = vmatprep.subr.mxu0 0.0
        %3398 = vmatpush1.xpose.msra.mxu0 0.0
        %3399 = vmatprep.subr.mxu0 0.0
        %3400 = vmatpush1.xpose.msra.mxu0 0.0
        %3401 = vmatprep.subr.mxu0 0.0
        %3402 = vmatpush1.xpose.msra.mxu0 0.0
        %3403 = vmatprep.subr.mxu0 0.0
        %3404 = vmatpush1.xpose.msra.mxu0 0.0
        %3405 = vmatprep.subr.mxu0 0.0
        %3406 = vmatpush1.xpose.msra.mxu0 0.0
        %3407 = vmatprep.subr.mxu0 0.0
        %3408 = vmatpush1.xpose.msra.mxu0 0.0
        %3409 = vmatprep.subr.mxu0 0.0
        %3410 = vmatpush1.xpose.msra.mxu0 %v3377
        %3411 = vmatprep.subr.mxu0 0.0
        %3412 = vmatpush2.xpose.msra.mxu0 0.0
        %3413 = vmatprep.subr.mxu0 0.0
        %3414 = vmatpush2.xpose.msra.mxu0 0.0
        %3415 = vmatprep.subr.mxu0 0.0
        %3416 = vmatpush2.xpose.msra.mxu0 0.0
        %3417 = vmatprep.subr.mxu0 0.0
        %3418 = vmatpush2.xpose.msra.mxu0 0.0
        %3419 = vmatprep.subr.mxu0 0.0
        %3420 = vmatpush2.xpose.msra.mxu0 0.0
        %3421 = vmatprep.subr.mxu0 0.0
        %3422 = vmatpush2.xpose.msra.mxu0 0.0
        %3423 = vmatprep.subr.mxu0 0.0
        %3424 = vmatpush2.xpose.msra.mxu0 0.0
        %3425 = vmatprep.subr.mxu0 0.0
        %3426 = vmatpush2.xpose.msra.mxu0 0.0
        %3427 = vmatprep.subr.mxu0 0.0
        %3428 = vmatpush2.xpose.msra.mxu0 0.0
        %3429 = vmatprep.subr.mxu0 0.0
        %3430 = vmatpush2.xpose.msra.mxu0 0.0
        %3431 = vmatprep.subr.mxu0 0.0
        %3432 = vmatpush2.xpose.msra.mxu0 0.0
        %3433 = vmatprep.subr.mxu0 0.0
        %3434 = vmatpush2.xpose.msra.mxu0 0.0
        %3435 = vmatprep.subr.mxu0 0.0
        %3436 = vmatpush2.xpose.msra.mxu0 0.0
        %3437 = vmatprep.subr.mxu0 0.0
        %3438 = vmatpush2.xpose.msra.mxu0 0.0
        %3439 = vmatprep.subr.mxu0 0.0
        %3440 = vmatpush2.xpose.msra.mxu0 0.0
        %3441 = vmatprep.subr.mxu0 0.0
        %3442 = vmatpush2.xpose.msra.mxu0 0.0
        %3443 = vmatprep.mubr.f32.mxu0 0.0
        %3444 = vmatmul.mubr.f32.gmra.mxu0 %v3375
        %v3445 = vpop.f32.mrf.mxu0
        %v3446 = vadd.f32 %v1684, %v3445
        %v3447 = vpop.f32.mrf.mxu0
        %3448 = vdwg.mxu0
        %v3449 = vsel %vm1779, %v3446, -inf
        %3450 = vmax.xlane.f32.xlu0 %v3449
        %v3451 = vpop.xlane.xlu0 %3450
        %v3452 = vsub.f32 %v3446, %v3451
        %v3453 = vmul.f32 %v3452, 1.442695
        %v3454 = vpow.pop %v3453
        %v3455 = vsel %vm1779, %v3454, 0.0
        %3456 = vadd.xlane.f32.xlu0 %v3455
        %v3457 = vpop.xlane.xlu0 %3456
        %v3458 = vrcp.pop %v3457
        %v3459 = vmul.f32 %v3454, %v3458
        %3460 = vrot.lane.b32.xlu0 %v1673, 16
        %v3461 = vpop.permute.xlu0 %3460
        %v3464 = vsel %vm1779, %v3459, 0
        %3466 = vmatprep.subr.mxu0 0.0
        %3467 = vmatpush1.msra.mxu0 0.0
        %3468 = vmatprep.subr.mxu0 0.0
        %3469 = vmatpush1.msra.mxu0 0.0
        %3470 = vmatprep.subr.mxu0 0.0
        %3471 = vmatpush1.msra.mxu0 0.0
        %3472 = vmatprep.subr.mxu0 0.0
        %3473 = vmatpush1.msra.mxu0 0.0
        %3474 = vmatprep.subr.mxu0 0.0
        %3475 = vmatpush1.msra.mxu0 0.0
        %3476 = vmatprep.subr.mxu0 0.0
        %3477 = vmatpush1.msra.mxu0 0.0
        %3478 = vmatprep.subr.mxu0 0.0
        %3479 = vmatpush1.msra.mxu0 0.0
        %3480 = vmatprep.subr.mxu0 0.0
        %3481 = vmatpush1.msra.mxu0 0.0
        %3482 = vmatprep.subr.mxu0 0.0
        %3483 = vmatpush1.msra.mxu0 0.0
        %3484 = vmatprep.subr.mxu0 0.0
        %3485 = vmatpush1.msra.mxu0 0.0
        %3486 = vmatprep.subr.mxu0 0.0
        %3487 = vmatpush1.msra.mxu0 0.0
        %3488 = vmatprep.subr.mxu0 0.0
        %3489 = vmatpush1.msra.mxu0 0.0
        %3490 = vmatprep.subr.mxu0 0.0
        %3491 = vmatpush1.msra.mxu0 0.0
        %3492 = vmatprep.subr.mxu0 0.0
        %3493 = vmatpush1.msra.mxu0 0.0
        %3494 = vmatprep.subr.mxu0 0.0
        %3495 = vmatpush1.msra.mxu0 0.0
        %3496 = vmatprep.subr.mxu0 0.0
        %3497 = vmatpush1.msra.mxu0 %v3461
        %3498 = vmatprep.subr.mxu0 0.0
        %3499 = vmatpush2.msra.mxu0 0.0
        %3500 = vmatprep.subr.mxu0 0.0
        %3501 = vmatpush2.msra.mxu0 0.0
        %3502 = vmatprep.subr.mxu0 0.0
        %3503 = vmatpush2.msra.mxu0 0.0
        %3504 = vmatprep.subr.mxu0 0.0
        %3505 = vmatpush2.msra.mxu0 0.0
        %3506 = vmatprep.subr.mxu0 0.0
        %3507 = vmatpush2.msra.mxu0 0.0
        %3508 = vmatprep.subr.mxu0 0.0
        %3509 = vmatpush2.msra.mxu0 0.0
        %3510 = vmatprep.subr.mxu0 0.0
        %3511 = vmatpush2.msra.mxu0 0.0
        %3512 = vmatprep.subr.mxu0 0.0
        %3513 = vmatpush2.msra.mxu0 0.0
        %3514 = vmatprep.subr.mxu0 0.0
        %3515 = vmatpush2.msra.mxu0 0.0
        %3516 = vmatprep.subr.mxu0 0.0
        %3517 = vmatpush2.msra.mxu0 0.0
        %3518 = vmatprep.subr.mxu0 0.0
        %3519 = vmatpush2.msra.mxu0 0.0
        %3520 = vmatprep.subr.mxu0 0.0
        %3521 = vmatpush2.msra.mxu0 0.0
        %3522 = vmatprep.subr.mxu0 0.0
        %3523 = vmatpush2.msra.mxu0 0.0
        %3524 = vmatprep.subr.mxu0 0.0
        %3525 = vmatpush2.msra.mxu0 0.0
        %3526 = vmatprep.subr.mxu0 0.0
        %3527 = vmatpush2.msra.mxu0 0.0
        %3528 = vmatprep.subr.mxu0 0.0
        %3529 = vmatpush2.msra.mxu0 0.0
        %3530 = vmatprep.mubr.f32.mxu0 0.0
        %3531 = vmatmul.mubr.f32.gmra.mxu0 %v3464
        %v3532 = vpop.f32.mrf.mxu0
        %v3533 = vadd.f32 0.0, %v3532
        %v3534 = vpop.f32.mrf.mxu0
        %3535 = vdwg.mxu0
        %v3537 = vsel %vm1702, %v3533, 0
        %3539 = vmatprep.subr.mxu0 0.0
        %3540 = vmatpush1.msra.mxu0 0.0
        %3541 = vmatprep.subr.mxu0 0.0
        %3542 = vmatpush1.msra.mxu0 0.0
        %3543 = vmatprep.subr.mxu0 0.0
        %3544 = vmatpush1.msra.mxu0 0.0
        %3545 = vmatprep.subr.mxu0 0.0
        %3546 = vmatpush1.msra.mxu0 0.0
        %3547 = vmatprep.subr.mxu0 0.0
        %3548 = vmatpush1.msra.mxu0 0.0
        %3549 = vmatprep.subr.mxu0 0.0
        %3550 = vmatpush1.msra.mxu0 0.0
        %3551 = vmatprep.subr.mxu0 0.0
        %3552 = vmatpush1.msra.mxu0 0.0
        %3553 = vmatprep.subr.mxu0 0.0
        %3554 = vmatpush1.msra.mxu0 0.0
        %3555 = vmatprep.subr.mxu0 0.0
        %3556 = vmatpush1.msra.mxu0 0.0
        %3557 = vmatprep.subr.mxu0 0.0
        %3558 = vmatpush1.msra.mxu0 0.0
        %3559 = vmatprep.subr.mxu0 0.0
        %3560 = vmatpush1.msra.mxu0 0.0
        %3561 = vmatprep.subr.mxu0 0.0
        %3562 = vmatpush1.msra.mxu0 0.0
        %3563 = vmatprep.subr.mxu0 0.0
        %3564 = vmatpush1.msra.mxu0 0.0
        %3565 = vmatprep.subr.mxu0 0.0
        %3566 = vmatpush1.msra.mxu0 0.0
        %3567 = vmatprep.subr.mxu0 0.0
        %3568 = vmatpush1.msra.mxu0 %v1700
        %3569 = vmatprep.subr.mxu0 0.0
        %3570 = vmatpush1.msra.mxu0 %v1699
        %3571 = vmatprep.subr.mxu0 0.0
        %3572 = vmatpush2.msra.mxu0 0.0
        %3573 = vmatprep.subr.mxu0 0.0
        %3574 = vmatpush2.msra.mxu0 0.0
        %3575 = vmatprep.subr.mxu0 0.0
        %3576 = vmatpush2.msra.mxu0 0.0
        %3577 = vmatprep.subr.mxu0 0.0
        %3578 = vmatpush2.msra.mxu0 0.0
        %3579 = vmatprep.subr.mxu0 0.0
        %3580 = vmatpush2.msra.mxu0 0.0
        %3581 = vmatprep.subr.mxu0 0.0
        %3582 = vmatpush2.msra.mxu0 0.0
        %3583 = vmatprep.subr.mxu0 0.0
        %3584 = vmatpush2.msra.mxu0 0.0
        %3585 = vmatprep.subr.mxu0 0.0
        %3586 = vmatpush2.msra.mxu0 0.0
        %3587 = vmatprep.subr.mxu0 0.0
        %3588 = vmatpush2.msra.mxu0 0.0
        %3589 = vmatprep.subr.mxu0 0.0
        %3590 = vmatpush2.msra.mxu0 0.0
        %3591 = vmatprep.subr.mxu0 0.0
        %3592 = vmatpush2.msra.mxu0 0.0
        %3593 = vmatprep.subr.mxu0 0.0
        %3594 = vmatpush2.msra.mxu0 0.0
        %3595 = vmatprep.subr.mxu0 0.0
        %3596 = vmatpush2.msra.mxu0 0.0
        %3597 = vmatprep.subr.mxu0 0.0
        %3598 = vmatpush2.msra.mxu0 0.0
        %3599 = vmatprep.subr.mxu0 0.0
        %3600 = vmatpush2.msra.mxu0 0.0
        %3601 = vmatprep.subr.mxu0 0.0
        %3602 = vmatpush2.msra.mxu0 0.0
        %3603 = vmatprep.mubr.f32.mxu0 0.0
        %3604 = vmatmul.mubr.f32.gmra.mxu0 %v3537
        %v3605 = vpop.f32.mrf.mxu0
        %v3606 = vadd.f32 0.0, %v3605
        %v3607 = vpop.f32.mrf.mxu0
        %3608 = vdwg.mxu0
        %v3609 = vadd.f32 %v3370, %v3606
        %v3611 = vlaneseq
        %v3612 = vshrl.u32 %v3611, 7
        %v3613 = vsub.s32 0, %v3612
        %v3614 = vrot.slane %v1701, %v3613
        %v3616 = vadd.f32 %v3609, %v3614
        %v3617 = vadd.f32 %v1433, %v3616
        %v3618 = vld [vmem:[%s1168] sm:$0x1]
        %v3619 = vld [vmem:[%s1176] sm:$0x1]
        %3620 = vadd.xlane.f32.xlu0 %v3617
        %v3621 = vpop.xlane.xlu0 %3620
        %v3622 = vmul.f32 %v3621, %v1439
        %v3623 = vsub.f32 %v3617, %v3622
        %v3624 = vmul.f32 %v3623, %v3623
        %3625 = vadd.xlane.f32.xlu0 %v3624
        %v3626 = vpop.xlane.xlu0 %3625
        %v3627 = vmul.f32 %v3626, 0.007874016
        %v3628 = vrsqrt.pop %v3627
        %v3629 = vmul.f32 %v3627, %v3628
        %vm3630 = vcmp.eq.f32.partialorder %v3627, inf
        %v3631 = vsel %vm3630, %v3627, %v3629
        %vm3632 = vcmp.eq.f32.partialorder %v3627, 0.0
        %v3633 = vand.u32 %v3627, 2147483648
        %v3634 = vsel %vm3632, %v3633, %v3631
        %v3635 = vadd.f32 %v3634, 1e-06
        %v3636 = vrcp.pop %v3635
        %v3637 = vmul.f32 %v3623, %v3636
        %v3639 = vlaneseq
        %v3640 = vshrl.u32 %v3639, 7
        %v3641 = vsub.s32 0, %v3640
        %v3642 = vrot.slane %v3618, %v3641
        %v3644 = vmul.f32 %v3642, %v3637
        %v3646 = vlaneseq
        %v3647 = vshrl.u32 %v3646, 7
        %v3648 = vsub.s32 0, %v3647
        %v3649 = vrot.slane %v3619, %v3648
        %v3651 = vadd.f32 %v3644, %v3649
        %v3652 = vld [vmem:[%s1185] sm:$0xff]
        %v3653 = vld [vmem:[%s1185 + $0x8] sm:$0xff]
        %v3654 = vld [vmem:[%s1185 + $0x10] sm:$0xff]
        %v3655 = vld [vmem:[%s1185 + $0x18] sm:$0xff]
        %v3656 = vld [vmem:[%s1185 + $0x20] sm:$0xff]
        %v3657 = vld [vmem:[%s1185 + $0x28] sm:$0xff]
        %v3658 = vld [vmem:[%s1185 + $0x30] sm:$0xff]
        %v3659 = vld [vmem:[%s1185 + $0x38] sm:$0xff]
        %v3660 = vld [vmem:[%s1185 + $0x40] sm:$0xff]
        %v3661 = vld [vmem:[%s1185 + $0x48] sm:$0xff]
        %v3662 = vld [vmem:[%s1185 + $0x50] sm:$0xff]
        %v3663 = vld [vmem:[%s1185 + $0x58] sm:$0xff]
        %v3664 = vld [vmem:[%s1185 + $0x60] sm:$0xff]
        %v3665 = vld [vmem:[%s1185 + $0x68] sm:$0xff]
        %v3666 = vld [vmem:[%s1185 + $0x70] sm:$0xff]
        %v3667 = vld [vmem:[%s1185 + $0x78] sm:$0xff]
        %v3668 = vld [vmem:[%s1193] sm:$0x1]
        %v3670 = vlaneseq
        %v3671 = vshrl.u32 %v3670, 7
        %v3672 = vsub.s32 0, %v3671
        %v3673 = vrot.slane %v3668, %v3672
        %3675 = vmatprep.subr.mxu0 0.0
        %3676 = vmatpush1.msra.mxu0 %v3667
        %3677 = vmatprep.subr.mxu0 0.0
        %3678 = vmatpush1.msra.mxu0 %v3666
        %3679 = vmatprep.subr.mxu0 0.0
        %3680 = vmatpush1.msra.mxu0 %v3665
        %3681 = vmatprep.subr.mxu0 0.0
        %3682 = vmatpush1.msra.mxu0 %v3664
        %3683 = vmatprep.subr.mxu0 0.0
        %3684 = vmatpush1.msra.mxu0 %v3663
        %3685 = vmatprep.subr.mxu0 0.0
        %3686 = vmatpush1.msra.mxu0 %v3662
        %3687 = vmatprep.subr.mxu0 0.0
        %3688 = vmatpush1.msra.mxu0 %v3661
        %3689 = vmatprep.subr.mxu0 0.0
        %3690 = vmatpush1.msra.mxu0 %v3660
        %3691 = vmatprep.subr.mxu0 0.0
        %3692 = vmatpush1.msra.mxu0 %v3659
        %3693 = vmatprep.subr.mxu0 0.0
        %3694 = vmatpush1.msra.mxu0 %v3658
        %3695 = vmatprep.subr.mxu0 0.0
        %3696 = vmatpush1.msra.mxu0 %v3657
        %3697 = vmatprep.subr.mxu0 0.0
        %3698 = vmatpush1.msra.mxu0 %v3656
        %3699 = vmatprep.subr.mxu0 0.0
        %3700 = vmatpush1.msra.mxu0 %v3655
        %3701 = vmatprep.subr.mxu0 0.0
        %3702 = vmatpush1.msra.mxu0 %v3654
        %3703 = vmatprep.subr.mxu0 0.0
        %3704 = vmatpush1.msra.mxu0 %v3653
        %3705 = vmatprep.subr.mxu0 0.0
        %3706 = vmatpush1.msra.mxu0 %v3652
        %3707 = vmatprep.subr.mxu0 0.0
        %3708 = vmatpush2.msra.mxu0 0.0
        %3709 = vmatprep.subr.mxu0 0.0
        %3710 = vmatpush2.msra.mxu0 0.0
        %3711 = vmatprep.subr.mxu0 0.0
        %3712 = vmatpush2.msra.mxu0 0.0
        %3713 = vmatprep.subr.mxu0 0.0
        %3714 = vmatpush2.msra.mxu0 0.0
        %3715 = vmatprep.subr.mxu0 0.0
        %3716 = vmatpush2.msra.mxu0 0.0
        %3717 = vmatprep.subr.mxu0 0.0
        %3718 = vmatpush2.msra.mxu0 0.0
        %3719 = vmatprep.subr.mxu0 0.0
        %3720 = vmatpush2.msra.mxu0 0.0
        %3721 = vmatprep.subr.mxu0 0.0
        %3722 = vmatpush2.msra.mxu0 0.0
        %3723 = vmatprep.subr.mxu0 0.0
        %3724 = vmatpush2.msra.mxu0 0.0
        %3725 = vmatprep.subr.mxu0 0.0
        %3726 = vmatpush2.msra.mxu0 0.0
        %3727 = vmatprep.subr.mxu0 0.0
        %3728 = vmatpush2.msra.mxu0 0.0
        %3729 = vmatprep.subr.mxu0 0.0
        %3730 = vmatpush2.msra.mxu0 0.0
        %3731 = vmatprep.subr.mxu0 0.0
        %3732 = vmatpush2.msra.mxu0 0.0
        %3733 = vmatprep.subr.mxu0 0.0
        %3734 = vmatpush2.msra.mxu0 0.0
        %3735 = vmatprep.subr.mxu0 0.0
        %3736 = vmatpush2.msra.mxu0 0.0
        %3737 = vmatprep.subr.mxu0 0.0
        %3738 = vmatpush2.msra.mxu0 0.0
        %3739 = vmatprep.mubr.f32.mxu0 0.0
        %3740 = vmatmul.mubr.f32.gmra.mxu0 %v3651
        %v3741 = vpop.f32.mrf.mxu0
        %v3742 = vadd.f32 %v3673, %v3741
        %v3743 = vpop.f32.mrf.mxu0
        %3744 = vdwg.mxu0
        %v3745 = vmul.f32 %v3742, 0.25
        %v3746 = vld [vmem:[%s1202] sm:$0xff]
        %v3747 = vld [vmem:[%s1202 + $0x8] sm:$0xff]
        %v3748 = vld [vmem:[%s1202 + $0x10] sm:$0xff]
        %v3749 = vld [vmem:[%s1202 + $0x18] sm:$0xff]
        %v3750 = vld [vmem:[%s1202 + $0x20] sm:$0xff]
        %v3751 = vld [vmem:[%s1202 + $0x28] sm:$0xff]
        %v3752 = vld [vmem:[%s1202 + $0x30] sm:$0xff]
        %v3753 = vld [vmem:[%s1202 + $0x38] sm:$0xff]
        %v3754 = vld [vmem:[%s1202 + $0x40] sm:$0xff]
        %v3755 = vld [vmem:[%s1202 + $0x48] sm:$0xff]
        %v3756 = vld [vmem:[%s1202 + $0x50] sm:$0xff]
        %v3757 = vld [vmem:[%s1202 + $0x58] sm:$0xff]
        %v3758 = vld [vmem:[%s1202 + $0x60] sm:$0xff]
        %v3759 = vld [vmem:[%s1202 + $0x68] sm:$0xff]
        %v3760 = vld [vmem:[%s1202 + $0x70] sm:$0xff]
        %v3761 = vld [vmem:[%s1202 + $0x78] sm:$0xff]
        %v3762 = vld [vmem:[%s1202 + $0x80] sm:$0xff]
        %v3763 = vld [vmem:[%s1202 + $0x88] sm:$0xff]
        %v3764 = vld [vmem:[%s1202 + $0x90] sm:$0xff]
        %v3765 = vld [vmem:[%s1202 + $0x98] sm:$0xff]
        %v3766 = vld [vmem:[%s1202 + $0xa0] sm:$0xff]
        %v3767 = vld [vmem:[%s1202 + $0xa8] sm:$0xff]
        %v3768 = vld [vmem:[%s1202 + $0xb0] sm:$0xff]
        %v3769 = vld [vmem:[%s1202 + $0xb8] sm:$0xff]
        %v3770 = vld [vmem:[%s1202 + $0xc0] sm:$0xff]
        %v3771 = vld [vmem:[%s1202 + $0xc8] sm:$0xff]
        %v3772 = vld [vmem:[%s1202 + $0xd0] sm:$0xff]
        %v3773 = vld [vmem:[%s1202 + $0xd8] sm:$0xff]
        %v3774 = vld [vmem:[%s1202 + $0xe0] sm:$0xff]
        %v3775 = vld [vmem:[%s1202 + $0xe8] sm:$0xff]
        %v3776 = vld [vmem:[%s1202 + $0xf0] sm:$0xff]
        %v3777 = vld [vmem:[%s1202 + $0xf8] sm:$0xff]
        %v3778 = vld [vmem:[%s1426] sm:$0x3]
        %v3780 = vlaneseq
        %v3781 = vshrl.u32 %v3780, 7
        %v3782 = vsub.s32 0, %v3781
        %v3783 = vrot.slane %v3778, %v3782
        %v3784 = vlaneseq
        %v3785 = vshrl.u32 %v3784, 7
        %v3786 = vsub.s32 1, %v3785
        %v3787 = vrot.slane %v3778, %v3786
        %3790 = vmatprep.subr.mxu0 %v3777
        %3791 = vmatpush1.msra.mxu0 %v3776
        %3792 = vmatprep.subr.mxu0 %v3775
        %3793 = vmatpush1.msra.mxu0 %v3774
        %3794 = vmatprep.subr.mxu0 %v3773
        %3795 = vmatpush1.msra.mxu0 %v3772
        %3796 = vmatprep.subr.mxu0 %v3771
        %3797 = vmatpush1.msra.mxu0 %v3770
        %3798 = vmatprep.subr.mxu0 %v3769
        %3799 = vmatpush1.msra.mxu0 %v3768
        %3800 = vmatprep.subr.mxu0 %v3767
        %3801 = vmatpush1.msra.mxu0 %v3766
        %3802 = vmatprep.subr.mxu0 %v3765
        %3803 = vmatpush1.msra.mxu0 %v3764
        %3804 = vmatprep.subr.mxu0 %v3763
        %3805 = vmatpush1.msra.mxu0 %v3762
        %3806 = vmatprep.subr.mxu0 %v3761
        %3807 = vmatpush1.msra.mxu0 %v3760
        %3808 = vmatprep.subr.mxu0 %v3759
        %3809 = vmatpush1.msra.mxu0 %v3758
        %3810 = vmatprep.subr.mxu0 %v3757
        %3811 = vmatpush1.msra.mxu0 %v3756
        %3812 = vmatprep.subr.mxu0 %v3755
        %3813 = vmatpush1.msra.mxu0 %v3754
        %3814 = vmatprep.subr.mxu0 %v3753
        %3815 = vmatpush1.msra.mxu0 %v3752
        %3816 = vmatprep.subr.mxu0 %v3751
        %3817 = vmatpush1.msra.mxu0 %v3750
        %3818 = vmatprep.subr.mxu0 %v3749
        %3819 = vmatpush1.msra.mxu0 %v3748
        %3820 = vmatprep.subr.mxu0 %v3747
        %3821 = vmatpush1.msra.mxu0 %v3746
        %3822 = vmatprep.subr.mxu0 0.0
        %3823 = vmatpush2.msra.mxu0 0.0
        %3824 = vmatprep.subr.mxu0 0.0
        %3825 = vmatpush2.msra.mxu0 0.0
        %3826 = vmatprep.subr.mxu0 0.0
        %3827 = vmatpush2.msra.mxu0 0.0
        %3828 = vmatprep.subr.mxu0 0.0
        %3829 = vmatpush2.msra.mxu0 0.0
        %3830 = vmatprep.subr.mxu0 0.0
        %3831 = vmatpush2.msra.mxu0 0.0
        %3832 = vmatprep.subr.mxu0 0.0
        %3833 = vmatpush2.msra.mxu0 0.0
        %3834 = vmatprep.subr.mxu0 0.0
        %3835 = vmatpush2.msra.mxu0 0.0
        %3836 = vmatprep.subr.mxu0 0.0
        %3837 = vmatpush2.msra.mxu0 0.0
        %3838 = vmatprep.subr.mxu0 0.0
        %3839 = vmatpush2.msra.mxu0 0.0
        %3840 = vmatprep.subr.mxu0 0.0
        %3841 = vmatpush2.msra.mxu0 0.0
        %3842 = vmatprep.subr.mxu0 0.0
        %3843 = vmatpush2.msra.mxu0 0.0
        %3844 = vmatprep.subr.mxu0 0.0
        %3845 = vmatpush2.msra.mxu0 0.0
        %3846 = vmatprep.subr.mxu0 0.0
        %3847 = vmatpush2.msra.mxu0 0.0
        %3848 = vmatprep.subr.mxu0 0.0
        %3849 = vmatpush2.msra.mxu0 0.0
        %3850 = vmatprep.subr.mxu0 0.0
        %3851 = vmatpush2.msra.mxu0 0.0
        %3852 = vmatprep.subr.mxu0 0.0
        %3853 = vmatpush2.msra.mxu0 0.0
        %3854 = vmatprep.mubr.f32.mxu0 0.0
        %3855 = vmatmul.mubr.f32.gmra.mxu0 %v1434
        %v3856 = vpop.f32.mrf.mxu0
        %v3857 = vadd.f32 %v3783, %v3856
        %v3858 = vpop.f32.mrf.mxu0
        %v3859 = vadd.f32 %v3787, %v3858
        %3860 = vdwg.mxu0
        %v3861 = vld [vmem:[%s3] sm:$0xff]
        %v3862 = vld [vmem:[%s3 + $0x8] sm:$0xff]
        %v3863 = vld [vmem:[%s3 + $0x10] sm:$0xff]
        %v3864 = vld [vmem:[%s3 + $0x18] sm:$0xff]
        %v3865 = vld [vmem:[%s3 + $0x20] sm:$0xff]
        %v3866 = vld [vmem:[%s3 + $0x28] sm:$0xff]
        %v3867 = vld [vmem:[%s3 + $0x30] sm:$0xff]
        %v3868 = vld [vmem:[%s3 + $0x38] sm:$0xff]
        %v3869 = vld [vmem:[%s1211] sm:$0xff]
        %v3870 = vld [vmem:[%s1211 + $0x8] sm:$0xff]
        %v3871 = vld [vmem:[%s1211 + $0x10] sm:$0xff]
        %v3872 = vld [vmem:[%s1211 + $0x18] sm:$0xff]
        %v3873 = vld [vmem:[%s1211 + $0x20] sm:$0xff]
        %v3874 = vld [vmem:[%s1211 + $0x28] sm:$0xff]
        %v3875 = vld [vmem:[%s1211 + $0x30] sm:$0xff]
        %v3876 = vld [vmem:[%s1211 + $0x38] sm:$0xff]
        %v3877 = vld [vmem:[%s1211 + $0x40] sm:$0xff]
        %v3878 = vld [vmem:[%s1211 + $0x48] sm:$0xff]
        %v3879 = vld [vmem:[%s1211 + $0x50] sm:$0xff]
        %v3880 = vld [vmem:[%s1211 + $0x58] sm:$0xff]
        %v3881 = vld [vmem:[%s1211 + $0x60] sm:$0xff]
        %v3882 = vld [vmem:[%s1211 + $0x68] sm:$0xff]
        %v3883 = vld [vmem:[%s1211 + $0x70] sm:$0xff]
        %v3884 = vld [vmem:[%s1211 + $0x78] sm:$0xff]
        %v3885 = vld [vmem:[%s1219] sm:$0x1]
        %v3887 = vsel %vm1702, %v3745, 0
        %v3890 = vsel %vm1702, %v3857, 0
        %3892 = vmatprep.subr.mxu0 0.0
        %3893 = vmatpush1.xpose.msra.mxu0 0.0
        %3894 = vmatprep.subr.mxu0 0.0
        %3895 = vmatpush1.xpose.msra.mxu0 0.0
        %3896 = vmatprep.subr.mxu0 0.0
        %3897 = vmatpush1.xpose.msra.mxu0 0.0
        %3898 = vmatprep.subr.mxu0 0.0
        %3899 = vmatpush1.xpose.msra.mxu0 0.0
        %3900 = vmatprep.subr.mxu0 0.0
        %3901 = vmatpush1.xpose.msra.mxu0 0.0
        %3902 = vmatprep.subr.mxu0 0.0
        %3903 = vmatpush1.xpose.msra.mxu0 0.0
        %3904 = vmatprep.subr.mxu0 0.0
        %3905 = vmatpush1.xpose.msra.mxu0 0.0
        %3906 = vmatprep.subr.mxu0 0.0
        %3907 = vmatpush1.xpose.msra.mxu0 0.0
        %3908 = vmatprep.subr.mxu0 0.0
        %3909 = vmatpush1.xpose.msra.mxu0 0.0
        %3910 = vmatprep.subr.mxu0 0.0
        %3911 = vmatpush1.xpose.msra.mxu0 0.0
        %3912 = vmatprep.subr.mxu0 0.0
        %3913 = vmatpush1.xpose.msra.mxu0 0.0
        %3914 = vmatprep.subr.mxu0 0.0
        %3915 = vmatpush1.xpose.msra.mxu0 0.0
        %3916 = vmatprep.subr.mxu0 0.0
        %3917 = vmatpush1.xpose.msra.mxu0 0.0
        %3918 = vmatprep.subr.mxu0 0.0
        %3919 = vmatpush1.xpose.msra.mxu0 0.0
        %3920 = vmatprep.subr.mxu0 0.0
        %3921 = vmatpush1.xpose.msra.mxu0 0.0
        %3922 = vmatprep.subr.mxu0 0.0
        %3923 = vmatpush1.xpose.msra.mxu0 %v3890
        %3924 = vmatprep.subr.mxu0 0.0
        %3925 = vmatpush2.xpose.msra.mxu0 0.0
        %3926 = vmatprep.subr.mxu0 0.0
        %3927 = vmatpush2.xpose.msra.mxu0 0.0
        %3928 = vmatprep.subr.mxu0 0.0
        %3929 = vmatpush2.xpose.msra.mxu0 0.0
        %3930 = vmatprep.subr.mxu0 0.0
        %3931 = vmatpush2.xpose.msra.mxu0 0.0
        %3932 = vmatprep.subr.mxu0 0.0
        %3933 = vmatpush2.xpose.msra.mxu0 0.0
        %3934 = vmatprep.subr.mxu0 0.0
        %3935 = vmatpush2.xpose.msra.mxu0 0.0
        %3936 = vmatprep.subr.mxu0 0.0
        %3937 = vmatpush2.xpose.msra.mxu0 0.0
        %3938 = vmatprep.subr.mxu0 0.0
        %3939 = vmatpush2.xpose.msra.mxu0 0.0
        %3940 = vmatprep.subr.mxu0 0.0
        %3941 = vmatpush2.xpose.msra.mxu0 0.0
        %3942 = vmatprep.subr.mxu0 0.0
        %3943 = vmatpush2.xpose.msra.mxu0 0.0
        %3944 = vmatprep.subr.mxu0 0.0
        %3945 = vmatpush2.xpose.msra.mxu0 0.0
        %3946 = vmatprep.subr.mxu0 0.0
        %3947 = vmatpush2.xpose.msra.mxu0 0.0
        %3948 = vmatprep.subr.mxu0 0.0
        %3949 = vmatpush2.xpose.msra.mxu0 0.0
        %3950 = vmatprep.subr.mxu0 0.0
        %3951 = vmatpush2.xpose.msra.mxu0 0.0
        %3952 = vmatprep.subr.mxu0 0.0
        %3953 = vmatpush2.xpose.msra.mxu0 0.0
        %3954 = vmatprep.subr.mxu0 0.0
        %3955 = vmatpush2.xpose.msra.mxu0 0.0
        %3956 = vmatprep.mubr.f32.mxu0 0.0
        %3957 = vmatmul.mubr.f32.gmra.mxu0 %v3887
        %v3958 = vpop.f32.mrf.mxu0
        %v3959 = vadd.f32 %v3861, %v3958
        %v3960 = vpop.f32.mrf.mxu0
        %3961 = vdwg.mxu0
        %v3962 = vsel %vm1779, %v3959, -inf
        %3963 = vmax.xlane.f32.xlu0 %v3962
        %v3964 = vpop.xlane.xlu0 %3963
        %v3965 = vsub.f32 %v3959, %v3964
        %v3966 = vmul.f32 %v3965, 1.442695
        %v3967 = vpow.pop %v3966
        %v3968 = vsel %vm1779, %v3967, 0.0
        %3969 = vadd.xlane.f32.xlu0 %v3968
        %v3970 = vpop.xlane.xlu0 %3969
        %v3971 = vrcp.pop %v3970
        %v3972 = vmul.f32 %v3967, %v3971
        %v3974 = vsel %vm1779, %v3972, 0
        %3976 = vmatprep.subr.mxu0 0.0
        %3977 = vmatpush1.msra.mxu0 0.0
        %3978 = vmatprep.subr.mxu0 0.0
        %3979 = vmatpush1.msra.mxu0 0.0
        %3980 = vmatprep.subr.mxu0 0.0
        %3981 = vmatpush1.msra.mxu0 0.0
        %3982 = vmatprep.subr.mxu0 0.0
        %3983 = vmatpush1.msra.mxu0 0.0
        %3984 = vmatprep.subr.mxu0 0.0
        %3985 = vmatpush1.msra.mxu0 0.0
        %3986 = vmatprep.subr.mxu0 0.0
        %3987 = vmatpush1.msra.mxu0 0.0
        %3988 = vmatprep.subr.mxu0 0.0
        %3989 = vmatpush1.msra.mxu0 0.0
        %3990 = vmatprep.subr.mxu0 0.0
        %3991 = vmatpush1.msra.mxu0 0.0
        %3992 = vmatprep.subr.mxu0 0.0
        %3993 = vmatpush1.msra.mxu0 0.0
        %3994 = vmatprep.subr.mxu0 0.0
        %3995 = vmatpush1.msra.mxu0 0.0
        %3996 = vmatprep.subr.mxu0 0.0
        %3997 = vmatpush1.msra.mxu0 0.0
        %3998 = vmatprep.subr.mxu0 0.0
        %3999 = vmatpush1.msra.mxu0 0.0
        %4000 = vmatprep.subr.mxu0 0.0
        %4001 = vmatpush1.msra.mxu0 0.0
        %4002 = vmatprep.subr.mxu0 0.0
        %4003 = vmatpush1.msra.mxu0 0.0
        %4004 = vmatprep.subr.mxu0 0.0
        %4005 = vmatpush1.msra.mxu0 0.0
        %4006 = vmatprep.subr.mxu0 0.0
        %4007 = vmatpush1.msra.mxu0 %v3859
        %4008 = vmatprep.subr.mxu0 0.0
        %4009 = vmatpush2.msra.mxu0 0.0
        %4010 = vmatprep.subr.mxu0 0.0
        %4011 = vmatpush2.msra.mxu0 0.0
        %4012 = vmatprep.subr.mxu0 0.0
        %4013 = vmatpush2.msra.mxu0 0.0
        %4014 = vmatprep.subr.mxu0 0.0
        %4015 = vmatpush2.msra.mxu0 0.0
        %4016 = vmatprep.subr.mxu0 0.0
        %4017 = vmatpush2.msra.mxu0 0.0
        %4018 = vmatprep.subr.mxu0 0.0
        %4019 = vmatpush2.msra.mxu0 0.0
        %4020 = vmatprep.subr.mxu0 0.0
        %4021 = vmatpush2.msra.mxu0 0.0
        %4022 = vmatprep.subr.mxu0 0.0
        %4023 = vmatpush2.msra.mxu0 0.0
        %4024 = vmatprep.subr.mxu0 0.0
        %4025 = vmatpush2.msra.mxu0 0.0
        %4026 = vmatprep.subr.mxu0 0.0
        %4027 = vmatpush2.msra.mxu0 0.0
        %4028 = vmatprep.subr.mxu0 0.0
        %4029 = vmatpush2.msra.mxu0 0.0
        %4030 = vmatprep.subr.mxu0 0.0
        %4031 = vmatpush2.msra.mxu0 0.0
        %4032 = vmatprep.subr.mxu0 0.0
        %4033 = vmatpush2.msra.mxu0 0.0
        %4034 = vmatprep.subr.mxu0 0.0
        %4035 = vmatpush2.msra.mxu0 0.0
        %4036 = vmatprep.subr.mxu0 0.0
        %4037 = vmatpush2.msra.mxu0 0.0
        %4038 = vmatprep.subr.mxu0 0.0
        %4039 = vmatpush2.msra.mxu0 0.0
        %4040 = vmatprep.mubr.f32.mxu0 0.0
        %4041 = vmatmul.mubr.f32.gmra.mxu0 %v3974
        %v4042 = vpop.f32.mrf.mxu0
        %v4043 = vadd.f32 0.0, %v4042
        %v4044 = vpop.f32.mrf.mxu0
        %4045 = vdwg.mxu0
        %4046 = vrot.lane.b32.xlu0 %v3745, 112
        %v4047 = vpop.permute.xlu0 %4046
        %4048 = vrot.lane.b32.xlu0 %v3857, 112
        %v4049 = vpop.permute.xlu0 %4048
        %v4050 = vsel %vm1702, %v4047, 0
        %v4052 = vsel %vm1702, %v4049, 0
        %4054 = vmatprep.subr.mxu0 0.0
        %4055 = vmatpush1.xpose.msra.mxu0 0.0
        %4056 = vmatprep.subr.mxu0 0.0
        %4057 = vmatpush1.xpose.msra.mxu0 0.0
        %4058 = vmatprep.subr.mxu0 0.0
        %4059 = vmatpush1.xpose.msra.mxu0 0.0
        %4060 = vmatprep.subr.mxu0 0.0
        %4061 = vmatpush1.xpose.msra.mxu0 0.0
        %4062 = vmatprep.subr.mxu0 0.0
        %4063 = vmatpush1.xpose.msra.mxu0 0.0
        %4064 = vmatprep.subr.mxu0 0.0
        %4065 = vmatpush1.xpose.msra.mxu0 0.0
        %4066 = vmatprep.subr.mxu0 0.0
        %4067 = vmatpush1.xpose.msra.mxu0 0.0
        %4068 = vmatprep.subr.mxu0 0.0
        %4069 = vmatpush1.xpose.msra.mxu0 0.0
        %4070 = vmatprep.subr.mxu0 0.0
        %4071 = vmatpush1.xpose.msra.mxu0 0.0
        %4072 = vmatprep.subr.mxu0 0.0
        %4073 = vmatpush1.xpose.msra.mxu0 0.0
        %4074 = vmatprep.subr.mxu0 0.0
        %4075 = vmatpush1.xpose.msra.mxu0 0.0
        %4076 = vmatprep.subr.mxu0 0.0
        %4077 = vmatpush1.xpose.msra.mxu0 0.0
        %4078 = vmatprep.subr.mxu0 0.0
        %4079 = vmatpush1.xpose.msra.mxu0 0.0
        %4080 = vmatprep.subr.mxu0 0.0
        %4081 = vmatpush1.xpose.msra.mxu0 0.0
        %4082 = vmatprep.subr.mxu0 0.0
        %4083 = vmatpush1.xpose.msra.mxu0 0.0
        %4084 = vmatprep.subr.mxu0 0.0
        %4085 = vmatpush1.xpose.msra.mxu0 %v4052
        %4086 = vmatprep.subr.mxu0 0.0
        %4087 = vmatpush2.xpose.msra.mxu0 0.0
        %4088 = vmatprep.subr.mxu0 0.0
        %4089 = vmatpush2.xpose.msra.mxu0 0.0
        %4090 = vmatprep.subr.mxu0 0.0
        %4091 = vmatpush2.xpose.msra.mxu0 0.0
        %4092 = vmatprep.subr.mxu0 0.0
        %4093 = vmatpush2.xpose.msra.mxu0 0.0
        %4094 = vmatprep.subr.mxu0 0.0
        %4095 = vmatpush2.xpose.msra.mxu0 0.0
        %4096 = vmatprep.subr.mxu0 0.0
        %4097 = vmatpush2.xpose.msra.mxu0 0.0
        %4098 = vmatprep.subr.mxu0 0.0
        %4099 = vmatpush2.xpose.msra.mxu0 0.0
        %4100 = vmatprep.subr.mxu0 0.0
        %4101 = vmatpush2.xpose.msra.mxu0 0.0
        %4102 = vmatprep.subr.mxu0 0.0
        %4103 = vmatpush2.xpose.msra.mxu0 0.0
        %4104 = vmatprep.subr.mxu0 0.0
        %4105 = vmatpush2.xpose.msra.mxu0 0.0
        %4106 = vmatprep.subr.mxu0 0.0
        %4107 = vmatpush2.xpose.msra.mxu0 0.0
        %4108 = vmatprep.subr.mxu0 0.0
        %4109 = vmatpush2.xpose.msra.mxu0 0.0
        %4110 = vmatprep.subr.mxu0 0.0
        %4111 = vmatpush2.xpose.msra.mxu0 0.0
        %4112 = vmatprep.subr.mxu0 0.0
        %4113 = vmatpush2.xpose.msra.mxu0 0.0
        %4114 = vmatprep.subr.mxu0 0.0
        %4115 = vmatpush2.xpose.msra.mxu0 0.0
        %4116 = vmatprep.subr.mxu0 0.0
        %4117 = vmatpush2.xpose.msra.mxu0 0.0
        %4118 = vmatprep.mubr.f32.mxu0 0.0
        %4119 = vmatmul.mubr.f32.gmra.mxu0 %v4050
        %v4120 = vpop.f32.mrf.mxu0
        %v4121 = vadd.f32 %v3862, %v4120
        %v4122 = vpop.f32.mrf.mxu0
        %4123 = vdwg.mxu0
        %v4124 = vsel %vm1779, %v4121, -inf
        %4125 = vmax.xlane.f32.xlu0 %v4124
        %v4126 = vpop.xlane.xlu0 %4125
        %v4127 = vsub.f32 %v4121, %v4126
        %v4128 = vmul.f32 %v4127, 1.442695
        %v4129 = vpow.pop %v4128
        %v4130 = vsel %vm1779, %v4129, 0.0
        %4131 = vadd.xlane.f32.xlu0 %v4130
        %v4132 = vpop.xlane.xlu0 %4131
        %v4133 = vrcp.pop %v4132
        %v4134 = vmul.f32 %v4129, %v4133
        %4136 = vrot.lane.b32.xlu0 %v3859, 112
        %v4137 = vpop.permute.xlu0 %4136
        %v4140 = vsel %vm1779, %v4134, 0
        %4142 = vmatprep.subr.mxu0 0.0
        %4143 = vmatpush1.msra.mxu0 0.0
        %4144 = vmatprep.subr.mxu0 0.0
        %4145 = vmatpush1.msra.mxu0 0.0
        %4146 = vmatprep.subr.mxu0 0.0
        %4147 = vmatpush1.msra.mxu0 0.0
        %4148 = vmatprep.subr.mxu0 0.0
        %4149 = vmatpush1.msra.mxu0 0.0
        %4150 = vmatprep.subr.mxu0 0.0
        %4151 = vmatpush1.msra.mxu0 0.0
        %4152 = vmatprep.subr.mxu0 0.0
        %4153 = vmatpush1.msra.mxu0 0.0
        %4154 = vmatprep.subr.mxu0 0.0
        %4155 = vmatpush1.msra.mxu0 0.0
        %4156 = vmatprep.subr.mxu0 0.0
        %4157 = vmatpush1.msra.mxu0 0.0
        %4158 = vmatprep.subr.mxu0 0.0
        %4159 = vmatpush1.msra.mxu0 0.0
        %4160 = vmatprep.subr.mxu0 0.0
        %4161 = vmatpush1.msra.mxu0 0.0
        %4162 = vmatprep.subr.mxu0 0.0
        %4163 = vmatpush1.msra.mxu0 0.0
        %4164 = vmatprep.subr.mxu0 0.0
        %4165 = vmatpush1.msra.mxu0 0.0
        %4166 = vmatprep.subr.mxu0 0.0
        %4167 = vmatpush1.msra.mxu0 0.0
        %4168 = vmatprep.subr.mxu0 0.0
        %4169 = vmatpush1.msra.mxu0 0.0
        %4170 = vmatprep.subr.mxu0 0.0
        %4171 = vmatpush1.msra.mxu0 0.0
        %4172 = vmatprep.subr.mxu0 0.0
        %4173 = vmatpush1.msra.mxu0 %v4137
        %4174 = vmatprep.subr.mxu0 0.0
        %4175 = vmatpush2.msra.mxu0 0.0
        %4176 = vmatprep.subr.mxu0 0.0
        %4177 = vmatpush2.msra.mxu0 0.0
        %4178 = vmatprep.subr.mxu0 0.0
        %4179 = vmatpush2.msra.mxu0 0.0
        %4180 = vmatprep.subr.mxu0 0.0
        %4181 = vmatpush2.msra.mxu0 0.0
        %4182 = vmatprep.subr.mxu0 0.0
        %4183 = vmatpush2.msra.mxu0 0.0
        %4184 = vmatprep.subr.mxu0 0.0
        %4185 = vmatpush2.msra.mxu0 0.0
        %4186 = vmatprep.subr.mxu0 0.0
        %4187 = vmatpush2.msra.mxu0 0.0
        %4188 = vmatprep.subr.mxu0 0.0
        %4189 = vmatpush2.msra.mxu0 0.0
        %4190 = vmatprep.subr.mxu0 0.0
        %4191 = vmatpush2.msra.mxu0 0.0
        %4192 = vmatprep.subr.mxu0 0.0
        %4193 = vmatpush2.msra.mxu0 0.0
        %4194 = vmatprep.subr.mxu0 0.0
        %4195 = vmatpush2.msra.mxu0 0.0
        %4196 = vmatprep.subr.mxu0 0.0
        %4197 = vmatpush2.msra.mxu0 0.0
        %4198 = vmatprep.subr.mxu0 0.0
        %4199 = vmatpush2.msra.mxu0 0.0
        %4200 = vmatprep.subr.mxu0 0.0
        %4201 = vmatpush2.msra.mxu0 0.0
        %4202 = vmatprep.subr.mxu0 0.0
        %4203 = vmatpush2.msra.mxu0 0.0
        %4204 = vmatprep.subr.mxu0 0.0
        %4205 = vmatpush2.msra.mxu0 0.0
        %4206 = vmatprep.mubr.f32.mxu0 0.0
        %4207 = vmatmul.mubr.f32.gmra.mxu0 %v4140
        %v4208 = vpop.f32.mrf.mxu0
        %v4209 = vadd.f32 0.0, %v4208
        %v4210 = vpop.f32.mrf.mxu0
        %4211 = vdwg.mxu0
        %v4213 = vsel %vm1702, %v4209, 0
        %4215 = vmatprep.subr.mxu0 0.0
        %4216 = vmatpush1.msra.mxu0 0.0
        %4217 = vmatprep.subr.mxu0 0.0
        %4218 = vmatpush1.msra.mxu0 0.0
        %4219 = vmatprep.subr.mxu0 0.0
        %4220 = vmatpush1.msra.mxu0 0.0
        %4221 = vmatprep.subr.mxu0 0.0
        %4222 = vmatpush1.msra.mxu0 0.0
        %4223 = vmatprep.subr.mxu0 0.0
        %4224 = vmatpush1.msra.mxu0 0.0
        %4225 = vmatprep.subr.mxu0 0.0
        %4226 = vmatpush1.msra.mxu0 0.0
        %4227 = vmatprep.subr.mxu0 0.0
        %4228 = vmatpush1.msra.mxu0 0.0
        %4229 = vmatprep.subr.mxu0 0.0
        %4230 = vmatpush1.msra.mxu0 0.0
        %4231 = vmatprep.subr.mxu0 0.0
        %4232 = vmatpush1.msra.mxu0 0.0
        %4233 = vmatprep.subr.mxu0 0.0
        %4234 = vmatpush1.msra.mxu0 0.0
        %4235 = vmatprep.subr.mxu0 0.0
        %4236 = vmatpush1.msra.mxu0 0.0
        %4237 = vmatprep.subr.mxu0 0.0
        %4238 = vmatpush1.msra.mxu0 0.0
        %4239 = vmatprep.subr.mxu0 0.0
        %4240 = vmatpush1.msra.mxu0 0.0
        %4241 = vmatprep.subr.mxu0 0.0
        %4242 = vmatpush1.msra.mxu0 0.0
        %4243 = vmatprep.subr.mxu0 0.0
        %4244 = vmatpush1.msra.mxu0 %v3872
        %4245 = vmatprep.subr.mxu0 0.0
        %4246 = vmatpush1.msra.mxu0 %v3871
        %4247 = vmatprep.subr.mxu0 0.0
        %4248 = vmatpush2.msra.mxu0 0.0
        %4249 = vmatprep.subr.mxu0 0.0
        %4250 = vmatpush2.msra.mxu0 0.0
        %4251 = vmatprep.subr.mxu0 0.0
        %4252 = vmatpush2.msra.mxu0 0.0
        %4253 = vmatprep.subr.mxu0 0.0
        %4254 = vmatpush2.msra.mxu0 0.0
        %4255 = vmatprep.subr.mxu0 0.0
        %4256 = vmatpush2.msra.mxu0 0.0
        %4257 = vmatprep.subr.mxu0 0.0
        %4258 = vmatpush2.msra.mxu0 0.0
        %4259 = vmatprep.subr.mxu0 0.0
        %4260 = vmatpush2.msra.mxu0 0.0
        %4261 = vmatprep.subr.mxu0 0.0
        %4262 = vmatpush2.msra.mxu0 0.0
        %4263 = vmatprep.subr.mxu0 0.0
        %4264 = vmatpush2.msra.mxu0 0.0
        %4265 = vmatprep.subr.mxu0 0.0
        %4266 = vmatpush2.msra.mxu0 0.0
        %4267 = vmatprep.subr.mxu0 0.0
        %4268 = vmatpush2.msra.mxu0 0.0
        %4269 = vmatprep.subr.mxu0 0.0
        %4270 = vmatpush2.msra.mxu0 0.0
        %4271 = vmatprep.subr.mxu0 0.0
        %4272 = vmatpush2.msra.mxu0 0.0
        %4273 = vmatprep.subr.mxu0 0.0
        %4274 = vmatpush2.msra.mxu0 0.0
        %4275 = vmatprep.subr.mxu0 0.0
        %4276 = vmatpush2.msra.mxu0 0.0
        %4277 = vmatprep.subr.mxu0 0.0
        %4278 = vmatpush2.msra.mxu0 0.0
        %4279 = vmatprep.mubr.f32.mxu0 0.0
        %4280 = vmatmul.mubr.f32.gmra.mxu0 %v4213
        %v4281 = vpop.f32.mrf.mxu0
        %v4282 = vadd.f32 0.0, %v4281
        %v4283 = vpop.f32.mrf.mxu0
        %4284 = vdwg.mxu0
        %v4286 = vsel %vm1702, %v4043, 0
        %4288 = vmatprep.subr.mxu0 0.0
        %4289 = vmatpush1.msra.mxu0 0.0
        %4290 = vmatprep.subr.mxu0 0.0
        %4291 = vmatpush1.msra.mxu0 0.0
        %4292 = vmatprep.subr.mxu0 0.0
        %4293 = vmatpush1.msra.mxu0 0.0
        %4294 = vmatprep.subr.mxu0 0.0
        %4295 = vmatpush1.msra.mxu0 0.0
        %4296 = vmatprep.subr.mxu0 0.0
        %4297 = vmatpush1.msra.mxu0 0.0
        %4298 = vmatprep.subr.mxu0 0.0
        %4299 = vmatpush1.msra.mxu0 0.0
        %4300 = vmatprep.subr.mxu0 0.0
        %4301 = vmatpush1.msra.mxu0 0.0
        %4302 = vmatprep.subr.mxu0 0.0
        %4303 = vmatpush1.msra.mxu0 0.0
        %4304 = vmatprep.subr.mxu0 0.0
        %4305 = vmatpush1.msra.mxu0 0.0
        %4306 = vmatprep.subr.mxu0 0.0
        %4307 = vmatpush1.msra.mxu0 0.0
        %4308 = vmatprep.subr.mxu0 0.0
        %4309 = vmatpush1.msra.mxu0 0.0
        %4310 = vmatprep.subr.mxu0 0.0
        %4311 = vmatpush1.msra.mxu0 0.0
        %4312 = vmatprep.subr.mxu0 0.0
        %4313 = vmatpush1.msra.mxu0 0.0
        %4314 = vmatprep.subr.mxu0 0.0
        %4315 = vmatpush1.msra.mxu0 0.0
        %4316 = vmatprep.subr.mxu0 0.0
        %4317 = vmatpush1.msra.mxu0 %v3870
        %4318 = vmatprep.subr.mxu0 0.0
        %4319 = vmatpush1.msra.mxu0 %v3869
        %4320 = vmatprep.subr.mxu0 0.0
        %4321 = vmatpush2.msra.mxu0 0.0
        %4322 = vmatprep.subr.mxu0 0.0
        %4323 = vmatpush2.msra.mxu0 0.0
        %4324 = vmatprep.subr.mxu0 0.0
        %4325 = vmatpush2.msra.mxu0 0.0
        %4326 = vmatprep.subr.mxu0 0.0
        %4327 = vmatpush2.msra.mxu0 0.0
        %4328 = vmatprep.subr.mxu0 0.0
        %4329 = vmatpush2.msra.mxu0 0.0
        %4330 = vmatprep.subr.mxu0 0.0
        %4331 = vmatpush2.msra.mxu0 0.0
        %4332 = vmatprep.subr.mxu0 0.0
        %4333 = vmatpush2.msra.mxu0 0.0
        %4334 = vmatprep.subr.mxu0 0.0
        %4335 = vmatpush2.msra.mxu0 0.0
        %4336 = vmatprep.subr.mxu0 0.0
        %4337 = vmatpush2.msra.mxu0 0.0
        %4338 = vmatprep.subr.mxu0 0.0
        %4339 = vmatpush2.msra.mxu0 0.0
        %4340 = vmatprep.subr.mxu0 0.0
        %4341 = vmatpush2.msra.mxu0 0.0
        %4342 = vmatprep.subr.mxu0 0.0
        %4343 = vmatpush2.msra.mxu0 0.0
        %4344 = vmatprep.subr.mxu0 0.0
        %4345 = vmatpush2.msra.mxu0 0.0
        %4346 = vmatprep.subr.mxu0 0.0
        %4347 = vmatpush2.msra.mxu0 0.0
        %4348 = vmatprep.subr.mxu0 0.0
        %4349 = vmatpush2.msra.mxu0 0.0
        %4350 = vmatprep.subr.mxu0 0.0
        %4351 = vmatpush2.msra.mxu0 0.0
        %4352 = vmatprep.mubr.f32.mxu0 0.0
        %4353 = vmatmul.mubr.f32.gmra.mxu0 %v4286
        %v4354 = vpop.f32.mrf.mxu0
        %v4355 = vadd.f32 %v4282, %v4354
        %v4356 = vpop.f32.mrf.mxu0
        %4357 = vdwg.mxu0
        %4358 = vrot.lane.b32.xlu0 %v3745, 96
        %v4359 = vpop.permute.xlu0 %4358
        %4360 = vrot.lane.b32.xlu0 %v3857, 96
        %v4361 = vpop.permute.xlu0 %4360
        %v4362 = vsel %vm1702, %v4359, 0
        %v4364 = vsel %vm1702, %v4361, 0
        %4366 = vmatprep.subr.mxu0 0.0
        %4367 = vmatpush1.xpose.msra.mxu0 0.0
        %4368 = vmatprep.subr.mxu0 0.0
        %4369 = vmatpush1.xpose.msra.mxu0 0.0
        %4370 = vmatprep.subr.mxu0 0.0
        %4371 = vmatpush1.xpose.msra.mxu0 0.0
        %4372 = vmatprep.subr.mxu0 0.0
        %4373 = vmatpush1.xpose.msra.mxu0 0.0
        %4374 = vmatprep.subr.mxu0 0.0
        %4375 = vmatpush1.xpose.msra.mxu0 0.0
        %4376 = vmatprep.subr.mxu0 0.0
        %4377 = vmatpush1.xpose.msra.mxu0 0.0
        %4378 = vmatprep.subr.mxu0 0.0
        %4379 = vmatpush1.xpose.msra.mxu0 0.0
        %4380 = vmatprep.subr.mxu0 0.0
        %4381 = vmatpush1.xpose.msra.mxu0 0.0
        %4382 = vmatprep.subr.mxu0 0.0
        %4383 = vmatpush1.xpose.msra.mxu0 0.0
        %4384 = vmatprep.subr.mxu0 0.0
        %4385 = vmatpush1.xpose.msra.mxu0 0.0
        %4386 = vmatprep.subr.mxu0 0.0
        %4387 = vmatpush1.xpose.msra.mxu0 0.0
        %4388 = vmatprep.subr.mxu0 0.0
        %4389 = vmatpush1.xpose.msra.mxu0 0.0
        %4390 = vmatprep.subr.mxu0 0.0
        %4391 = vmatpush1.xpose.msra.mxu0 0.0
        %4392 = vmatprep.subr.mxu0 0.0
        %4393 = vmatpush1.xpose.msra.mxu0 0.0
        %4394 = vmatprep.subr.mxu0 0.0
        %4395 = vmatpush1.xpose.msra.mxu0 0.0
        %4396 = vmatprep.subr.mxu0 0.0
        %4397 = vmatpush1.xpose.msra.mxu0 %v4364
        %4398 = vmatprep.subr.mxu0 0.0
        %4399 = vmatpush2.xpose.msra.mxu0 0.0
        %4400 = vmatprep.subr.mxu0 0.0
        %4401 = vmatpush2.xpose.msra.mxu0 0.0
        %4402 = vmatprep.subr.mxu0 0.0
        %4403 = vmatpush2.xpose.msra.mxu0 0.0
        %4404 = vmatprep.subr.mxu0 0.0
        %4405 = vmatpush2.xpose.msra.mxu0 0.0
        %4406 = vmatprep.subr.mxu0 0.0
        %4407 = vmatpush2.xpose.msra.mxu0 0.0
        %4408 = vmatprep.subr.mxu0 0.0
        %4409 = vmatpush2.xpose.msra.mxu0 0.0
        %4410 = vmatprep.subr.mxu0 0.0
        %4411 = vmatpush2.xpose.msra.mxu0 0.0
        %4412 = vmatprep.subr.mxu0 0.0
        %4413 = vmatpush2.xpose.msra.mxu0 0.0
        %4414 = vmatprep.subr.mxu0 0.0
        %4415 = vmatpush2.xpose.msra.mxu0 0.0
        %4416 = vmatprep.subr.mxu0 0.0
        %4417 = vmatpush2.xpose.msra.mxu0 0.0
        %4418 = vmatprep.subr.mxu0 0.0
        %4419 = vmatpush2.xpose.msra.mxu0 0.0
        %4420 = vmatprep.subr.mxu0 0.0
        %4421 = vmatpush2.xpose.msra.mxu0 0.0
        %4422 = vmatprep.subr.mxu0 0.0
        %4423 = vmatpush2.xpose.msra.mxu0 0.0
        %4424 = vmatprep.subr.mxu0 0.0
        %4425 = vmatpush2.xpose.msra.mxu0 0.0
        %4426 = vmatprep.subr.mxu0 0.0
        %4427 = vmatpush2.xpose.msra.mxu0 0.0
        %4428 = vmatprep.subr.mxu0 0.0
        %4429 = vmatpush2.xpose.msra.mxu0 0.0
        %4430 = vmatprep.mubr.f32.mxu0 0.0
        %4431 = vmatmul.mubr.f32.gmra.mxu0 %v4362
        %v4432 = vpop.f32.mrf.mxu0
        %v4433 = vadd.f32 %v3863, %v4432
        %v4434 = vpop.f32.mrf.mxu0
        %4435 = vdwg.mxu0
        %v4436 = vsel %vm1779, %v4433, -inf
        %4437 = vmax.xlane.f32.xlu0 %v4436
        %v4438 = vpop.xlane.xlu0 %4437
        %v4439 = vsub.f32 %v4433, %v4438
        %v4440 = vmul.f32 %v4439, 1.442695
        %v4441 = vpow.pop %v4440
        %v4442 = vsel %vm1779, %v4441, 0.0
        %4443 = vadd.xlane.f32.xlu0 %v4442
        %v4444 = vpop.xlane.xlu0 %4443
        %v4445 = vrcp.pop %v4444
        %v4446 = vmul.f32 %v4441, %v4445
        %4447 = vrot.lane.b32.xlu0 %v3859, 96
        %v4448 = vpop.permute.xlu0 %4447
        %v4451 = vsel %vm1779, %v4446, 0
        %4453 = vmatprep.subr.mxu0 0.0
        %4454 = vmatpush1.msra.mxu0 0.0
        %4455 = vmatprep.subr.mxu0 0.0
        %4456 = vmatpush1.msra.mxu0 0.0
        %4457 = vmatprep.subr.mxu0 0.0
        %4458 = vmatpush1.msra.mxu0 0.0
        %4459 = vmatprep.subr.mxu0 0.0
        %4460 = vmatpush1.msra.mxu0 0.0
        %4461 = vmatprep.subr.mxu0 0.0
        %4462 = vmatpush1.msra.mxu0 0.0
        %4463 = vmatprep.subr.mxu0 0.0
        %4464 = vmatpush1.msra.mxu0 0.0
        %4465 = vmatprep.subr.mxu0 0.0
        %4466 = vmatpush1.msra.mxu0 0.0
        %4467 = vmatprep.subr.mxu0 0.0
        %4468 = vmatpush1.msra.mxu0 0.0
        %4469 = vmatprep.subr.mxu0 0.0
        %4470 = vmatpush1.msra.mxu0 0.0
        %4471 = vmatprep.subr.mxu0 0.0
        %4472 = vmatpush1.msra.mxu0 0.0
        %4473 = vmatprep.subr.mxu0 0.0
        %4474 = vmatpush1.msra.mxu0 0.0
        %4475 = vmatprep.subr.mxu0 0.0
        %4476 = vmatpush1.msra.mxu0 0.0
        %4477 = vmatprep.subr.mxu0 0.0
        %4478 = vmatpush1.msra.mxu0 0.0
        %4479 = vmatprep.subr.mxu0 0.0
        %4480 = vmatpush1.msra.mxu0 0.0
        %4481 = vmatprep.subr.mxu0 0.0
        %4482 = vmatpush1.msra.mxu0 0.0
        %4483 = vmatprep.subr.mxu0 0.0
        %4484 = vmatpush1.msra.mxu0 %v4448
        %4485 = vmatprep.subr.mxu0 0.0
        %4486 = vmatpush2.msra.mxu0 0.0
        %4487 = vmatprep.subr.mxu0 0.0
        %4488 = vmatpush2.msra.mxu0 0.0
        %4489 = vmatprep.subr.mxu0 0.0
        %4490 = vmatpush2.msra.mxu0 0.0
        %4491 = vmatprep.subr.mxu0 0.0
        %4492 = vmatpush2.msra.mxu0 0.0
        %4493 = vmatprep.subr.mxu0 0.0
        %4494 = vmatpush2.msra.mxu0 0.0
        %4495 = vmatprep.subr.mxu0 0.0
        %4496 = vmatpush2.msra.mxu0 0.0
        %4497 = vmatprep.subr.mxu0 0.0
        %4498 = vmatpush2.msra.mxu0 0.0
        %4499 = vmatprep.subr.mxu0 0.0
        %4500 = vmatpush2.msra.mxu0 0.0
        %4501 = vmatprep.subr.mxu0 0.0
        %4502 = vmatpush2.msra.mxu0 0.0
        %4503 = vmatprep.subr.mxu0 0.0
        %4504 = vmatpush2.msra.mxu0 0.0
        %4505 = vmatprep.subr.mxu0 0.0
        %4506 = vmatpush2.msra.mxu0 0.0
        %4507 = vmatprep.subr.mxu0 0.0
        %4508 = vmatpush2.msra.mxu0 0.0
        %4509 = vmatprep.subr.mxu0 0.0
        %4510 = vmatpush2.msra.mxu0 0.0
        %4511 = vmatprep.subr.mxu0 0.0
        %4512 = vmatpush2.msra.mxu0 0.0
        %4513 = vmatprep.subr.mxu0 0.0
        %4514 = vmatpush2.msra.mxu0 0.0
        %4515 = vmatprep.subr.mxu0 0.0
        %4516 = vmatpush2.msra.mxu0 0.0
        %4517 = vmatprep.mubr.f32.mxu0 0.0
        %4518 = vmatmul.mubr.f32.gmra.mxu0 %v4451
        %v4519 = vpop.f32.mrf.mxu0
        %v4520 = vadd.f32 0.0, %v4519
        %v4521 = vpop.f32.mrf.mxu0
        %4522 = vdwg.mxu0
        %v4524 = vsel %vm1702, %v4520, 0
        %4526 = vmatprep.subr.mxu0 0.0
        %4527 = vmatpush1.msra.mxu0 0.0
        %4528 = vmatprep.subr.mxu0 0.0
        %4529 = vmatpush1.msra.mxu0 0.0
        %4530 = vmatprep.subr.mxu0 0.0
        %4531 = vmatpush1.msra.mxu0 0.0
        %4532 = vmatprep.subr.mxu0 0.0
        %4533 = vmatpush1.msra.mxu0 0.0
        %4534 = vmatprep.subr.mxu0 0.0
        %4535 = vmatpush1.msra.mxu0 0.0
        %4536 = vmatprep.subr.mxu0 0.0
        %4537 = vmatpush1.msra.mxu0 0.0
        %4538 = vmatprep.subr.mxu0 0.0
        %4539 = vmatpush1.msra.mxu0 0.0
        %4540 = vmatprep.subr.mxu0 0.0
        %4541 = vmatpush1.msra.mxu0 0.0
        %4542 = vmatprep.subr.mxu0 0.0
        %4543 = vmatpush1.msra.mxu0 0.0
        %4544 = vmatprep.subr.mxu0 0.0
        %4545 = vmatpush1.msra.mxu0 0.0
        %4546 = vmatprep.subr.mxu0 0.0
        %4547 = vmatpush1.msra.mxu0 0.0
        %4548 = vmatprep.subr.mxu0 0.0
        %4549 = vmatpush1.msra.mxu0 0.0
        %4550 = vmatprep.subr.mxu0 0.0
        %4551 = vmatpush1.msra.mxu0 0.0
        %4552 = vmatprep.subr.mxu0 0.0
        %4553 = vmatpush1.msra.mxu0 0.0
        %4554 = vmatprep.subr.mxu0 0.0
        %4555 = vmatpush1.msra.mxu0 %v3874
        %4556 = vmatprep.subr.mxu0 0.0
        %4557 = vmatpush1.msra.mxu0 %v3873
        %4558 = vmatprep.subr.mxu0 0.0
        %4559 = vmatpush2.msra.mxu0 0.0
        %4560 = vmatprep.subr.mxu0 0.0
        %4561 = vmatpush2.msra.mxu0 0.0
        %4562 = vmatprep.subr.mxu0 0.0
        %4563 = vmatpush2.msra.mxu0 0.0
        %4564 = vmatprep.subr.mxu0 0.0
        %4565 = vmatpush2.msra.mxu0 0.0
        %4566 = vmatprep.subr.mxu0 0.0
        %4567 = vmatpush2.msra.mxu0 0.0
        %4568 = vmatprep.subr.mxu0 0.0
        %4569 = vmatpush2.msra.mxu0 0.0
        %4570 = vmatprep.subr.mxu0 0.0
        %4571 = vmatpush2.msra.mxu0 0.0
        %4572 = vmatprep.subr.mxu0 0.0
        %4573 = vmatpush2.msra.mxu0 0.0
        %4574 = vmatprep.subr.mxu0 0.0
        %4575 = vmatpush2.msra.mxu0 0.0
        %4576 = vmatprep.subr.mxu0 0.0
        %4577 = vmatpush2.msra.mxu0 0.0
        %4578 = vmatprep.subr.mxu0 0.0
        %4579 = vmatpush2.msra.mxu0 0.0
        %4580 = vmatprep.subr.mxu0 0.0
        %4581 = vmatpush2.msra.mxu0 0.0
        %4582 = vmatprep.subr.mxu0 0.0
        %4583 = vmatpush2.msra.mxu0 0.0
        %4584 = vmatprep.subr.mxu0 0.0
        %4585 = vmatpush2.msra.mxu0 0.0
        %4586 = vmatprep.subr.mxu0 0.0
        %4587 = vmatpush2.msra.mxu0 0.0
        %4588 = vmatprep.subr.mxu0 0.0
        %4589 = vmatpush2.msra.mxu0 0.0
        %4590 = vmatprep.mubr.f32.mxu0 0.0
        %4591 = vmatmul.mubr.f32.gmra.mxu0 %v4524
        %v4592 = vpop.f32.mrf.mxu0
        %v4593 = vadd.f32 0.0, %v4592
        %v4594 = vpop.f32.mrf.mxu0
        %4595 = vdwg.mxu0
        %v4596 = vadd.f32 %v4355, %v4593
        %4597 = vrot.lane.b32.xlu0 %v3745, 80
        %v4598 = vpop.permute.xlu0 %4597
        %4599 = vrot.lane.b32.xlu0 %v3857, 80
        %v4600 = vpop.permute.xlu0 %4599
        %v4601 = vsel %vm1702, %v4598, 0
        %v4603 = vsel %vm1702, %v4600, 0
        %4605 = vmatprep.subr.mxu0 0.0
        %4606 = vmatpush1.xpose.msra.mxu0 0.0
        %4607 = vmatprep.subr.mxu0 0.0
        %4608 = vmatpush1.xpose.msra.mxu0 0.0
        %4609 = vmatprep.subr.mxu0 0.0
        %4610 = vmatpush1.xpose.msra.mxu0 0.0
        %4611 = vmatprep.subr.mxu0 0.0
        %4612 = vmatpush1.xpose.msra.mxu0 0.0
        %4613 = vmatprep.subr.mxu0 0.0
        %4614 = vmatpush1.xpose.msra.mxu0 0.0
        %4615 = vmatprep.subr.mxu0 0.0
        %4616 = vmatpush1.xpose.msra.mxu0 0.0
        %4617 = vmatprep.subr.mxu0 0.0
        %4618 = vmatpush1.xpose.msra.mxu0 0.0
        %4619 = vmatprep.subr.mxu0 0.0
        %4620 = vmatpush1.xpose.msra.mxu0 0.0
        %4621 = vmatprep.subr.mxu0 0.0
        %4622 = vmatpush1.xpose.msra.mxu0 0.0
        %4623 = vmatprep.subr.mxu0 0.0
        %4624 = vmatpush1.xpose.msra.mxu0 0.0
        %4625 = vmatprep.subr.mxu0 0.0
        %4626 = vmatpush1.xpose.msra.mxu0 0.0
        %4627 = vmatprep.subr.mxu0 0.0
        %4628 = vmatpush1.xpose.msra.mxu0 0.0
        %4629 = vmatprep.subr.mxu0 0.0
        %4630 = vmatpush1.xpose.msra.mxu0 0.0
        %4631 = vmatprep.subr.mxu0 0.0
        %4632 = vmatpush1.xpose.msra.mxu0 0.0
        %4633 = vmatprep.subr.mxu0 0.0
        %4634 = vmatpush1.xpose.msra.mxu0 0.0
        %4635 = vmatprep.subr.mxu0 0.0
        %4636 = vmatpush1.xpose.msra.mxu0 %v4603
        %4637 = vmatprep.subr.mxu0 0.0
        %4638 = vmatpush2.xpose.msra.mxu0 0.0
        %4639 = vmatprep.subr.mxu0 0.0
        %4640 = vmatpush2.xpose.msra.mxu0 0.0
        %4641 = vmatprep.subr.mxu0 0.0
        %4642 = vmatpush2.xpose.msra.mxu0 0.0
        %4643 = vmatprep.subr.mxu0 0.0
        %4644 = vmatpush2.xpose.msra.mxu0 0.0
        %4645 = vmatprep.subr.mxu0 0.0
        %4646 = vmatpush2.xpose.msra.mxu0 0.0
        %4647 = vmatprep.subr.mxu0 0.0
        %4648 = vmatpush2.xpose.msra.mxu0 0.0
        %4649 = vmatprep.subr.mxu0 0.0
        %4650 = vmatpush2.xpose.msra.mxu0 0.0
        %4651 = vmatprep.subr.mxu0 0.0
        %4652 = vmatpush2.xpose.msra.mxu0 0.0
        %4653 = vmatprep.subr.mxu0 0.0
        %4654 = vmatpush2.xpose.msra.mxu0 0.0
        %4655 = vmatprep.subr.mxu0 0.0
        %4656 = vmatpush2.xpose.msra.mxu0 0.0
        %4657 = vmatprep.subr.mxu0 0.0
        %4658 = vmatpush2.xpose.msra.mxu0 0.0
        %4659 = vmatprep.subr.mxu0 0.0
        %4660 = vmatpush2.xpose.msra.mxu0 0.0
        %4661 = vmatprep.subr.mxu0 0.0
        %4662 = vmatpush2.xpose.msra.mxu0 0.0
        %4663 = vmatprep.subr.mxu0 0.0
        %4664 = vmatpush2.xpose.msra.mxu0 0.0
        %4665 = vmatprep.subr.mxu0 0.0
        %4666 = vmatpush2.xpose.msra.mxu0 0.0
        %4667 = vmatprep.subr.mxu0 0.0
        %4668 = vmatpush2.xpose.msra.mxu0 0.0
        %4669 = vmatprep.mubr.f32.mxu0 0.0
        %4670 = vmatmul.mubr.f32.gmra.mxu0 %v4601
        %v4671 = vpop.f32.mrf.mxu0
        %v4672 = vadd.f32 %v3864, %v4671
        %v4673 = vpop.f32.mrf.mxu0
        %4674 = vdwg.mxu0
        %v4675 = vsel %vm1779, %v4672, -inf
        %4676 = vmax.xlane.f32.xlu0 %v4675
        %v4677 = vpop.xlane.xlu0 %4676
        %v4678 = vsub.f32 %v4672, %v4677
        %v4679 = vmul.f32 %v4678, 1.442695
        %v4680 = vpow.pop %v4679
        %v4681 = vsel %vm1779, %v4680, 0.0
        %4682 = vadd.xlane.f32.xlu0 %v4681
        %v4683 = vpop.xlane.xlu0 %4682
        %v4684 = vrcp.pop %v4683
        %v4685 = vmul.f32 %v4680, %v4684
        %4686 = vrot.lane.b32.xlu0 %v3859, 80
        %v4687 = vpop.permute.xlu0 %4686
        %v4690 = vsel %vm1779, %v4685, 0
        %4692 = vmatprep.subr.mxu0 0.0
        %4693 = vmatpush1.msra.mxu0 0.0
        %4694 = vmatprep.subr.mxu0 0.0
        %4695 = vmatpush1.msra.mxu0 0.0
        %4696 = vmatprep.subr.mxu0 0.0
        %4697 = vmatpush1.msra.mxu0 0.0
        %4698 = vmatprep.subr.mxu0 0.0
        %4699 = vmatpush1.msra.mxu0 0.0
        %4700 = vmatprep.subr.mxu0 0.0
        %4701 = vmatpush1.msra.mxu0 0.0
        %4702 = vmatprep.subr.mxu0 0.0
        %4703 = vmatpush1.msra.mxu0 0.0
        %4704 = vmatprep.subr.mxu0 0.0
        %4705 = vmatpush1.msra.mxu0 0.0
        %4706 = vmatprep.subr.mxu0 0.0
        %4707 = vmatpush1.msra.mxu0 0.0
        %4708 = vmatprep.subr.mxu0 0.0
        %4709 = vmatpush1.msra.mxu0 0.0
        %4710 = vmatprep.subr.mxu0 0.0
        %4711 = vmatpush1.msra.mxu0 0.0
        %4712 = vmatprep.subr.mxu0 0.0
        %4713 = vmatpush1.msra.mxu0 0.0
        %4714 = vmatprep.subr.mxu0 0.0
        %4715 = vmatpush1.msra.mxu0 0.0
        %4716 = vmatprep.subr.mxu0 0.0
        %4717 = vmatpush1.msra.mxu0 0.0
        %4718 = vmatprep.subr.mxu0 0.0
        %4719 = vmatpush1.msra.mxu0 0.0
        %4720 = vmatprep.subr.mxu0 0.0
        %4721 = vmatpush1.msra.mxu0 0.0
        %4722 = vmatprep.subr.mxu0 0.0
        %4723 = vmatpush1.msra.mxu0 %v4687
        %4724 = vmatprep.subr.mxu0 0.0
        %4725 = vmatpush2.msra.mxu0 0.0
        %4726 = vmatprep.subr.mxu0 0.0
        %4727 = vmatpush2.msra.mxu0 0.0
        %4728 = vmatprep.subr.mxu0 0.0
        %4729 = vmatpush2.msra.mxu0 0.0
        %4730 = vmatprep.subr.mxu0 0.0
        %4731 = vmatpush2.msra.mxu0 0.0
        %4732 = vmatprep.subr.mxu0 0.0
        %4733 = vmatpush2.msra.mxu0 0.0
        %4734 = vmatprep.subr.mxu0 0.0
        %4735 = vmatpush2.msra.mxu0 0.0
        %4736 = vmatprep.subr.mxu0 0.0
        %4737 = vmatpush2.msra.mxu0 0.0
        %4738 = vmatprep.subr.mxu0 0.0
        %4739 = vmatpush2.msra.mxu0 0.0
        %4740 = vmatprep.subr.mxu0 0.0
        %4741 = vmatpush2.msra.mxu0 0.0
        %4742 = vmatprep.subr.mxu0 0.0
        %4743 = vmatpush2.msra.mxu0 0.0
        %4744 = vmatprep.subr.mxu0 0.0
        %4745 = vmatpush2.msra.mxu0 0.0
        %4746 = vmatprep.subr.mxu0 0.0
        %4747 = vmatpush2.msra.mxu0 0.0
        %4748 = vmatprep.subr.mxu0 0.0
        %4749 = vmatpush2.msra.mxu0 0.0
        %4750 = vmatprep.subr.mxu0 0.0
        %4751 = vmatpush2.msra.mxu0 0.0
        %4752 = vmatprep.subr.mxu0 0.0
        %4753 = vmatpush2.msra.mxu0 0.0
        %4754 = vmatprep.subr.mxu0 0.0
        %4755 = vmatpush2.msra.mxu0 0.0
        %4756 = vmatprep.mubr.f32.mxu0 0.0
        %4757 = vmatmul.mubr.f32.gmra.mxu0 %v4690
        %v4758 = vpop.f32.mrf.mxu0
        %v4759 = vadd.f32 0.0, %v4758
        %v4760 = vpop.f32.mrf.mxu0
        %4761 = vdwg.mxu0
        %v4763 = vsel %vm1702, %v4759, 0
        %4765 = vmatprep.subr.mxu0 0.0
        %4766 = vmatpush1.msra.mxu0 0.0
        %4767 = vmatprep.subr.mxu0 0.0
        %4768 = vmatpush1.msra.mxu0 0.0
        %4769 = vmatprep.subr.mxu0 0.0
        %4770 = vmatpush1.msra.mxu0 0.0
        %4771 = vmatprep.subr.mxu0 0.0
        %4772 = vmatpush1.msra.mxu0 0.0
        %4773 = vmatprep.subr.mxu0 0.0
        %4774 = vmatpush1.msra.mxu0 0.0
        %4775 = vmatprep.subr.mxu0 0.0
        %4776 = vmatpush1.msra.mxu0 0.0
        %4777 = vmatprep.subr.mxu0 0.0
        %4778 = vmatpush1.msra.mxu0 0.0
        %4779 = vmatprep.subr.mxu0 0.0
        %4780 = vmatpush1.msra.mxu0 0.0
        %4781 = vmatprep.subr.mxu0 0.0
        %4782 = vmatpush1.msra.mxu0 0.0
        %4783 = vmatprep.subr.mxu0 0.0
        %4784 = vmatpush1.msra.mxu0 0.0
        %4785 = vmatprep.subr.mxu0 0.0
        %4786 = vmatpush1.msra.mxu0 0.0
        %4787 = vmatprep.subr.mxu0 0.0
        %4788 = vmatpush1.msra.mxu0 0.0
        %4789 = vmatprep.subr.mxu0 0.0
        %4790 = vmatpush1.msra.mxu0 0.0
        %4791 = vmatprep.subr.mxu0 0.0
        %4792 = vmatpush1.msra.mxu0 0.0
        %4793 = vmatprep.subr.mxu0 0.0
        %4794 = vmatpush1.msra.mxu0 %v3876
        %4795 = vmatprep.subr.mxu0 0.0
        %4796 = vmatpush1.msra.mxu0 %v3875
        %4797 = vmatprep.subr.mxu0 0.0
        %4798 = vmatpush2.msra.mxu0 0.0
        %4799 = vmatprep.subr.mxu0 0.0
        %4800 = vmatpush2.msra.mxu0 0.0
        %4801 = vmatprep.subr.mxu0 0.0
        %4802 = vmatpush2.msra.mxu0 0.0
        %4803 = vmatprep.subr.mxu0 0.0
        %4804 = vmatpush2.msra.mxu0 0.0
        %4805 = vmatprep.subr.mxu0 0.0
        %4806 = vmatpush2.msra.mxu0 0.0
        %4807 = vmatprep.subr.mxu0 0.0
        %4808 = vmatpush2.msra.mxu0 0.0
        %4809 = vmatprep.subr.mxu0 0.0
        %4810 = vmatpush2.msra.mxu0 0.0
        %4811 = vmatprep.subr.mxu0 0.0
        %4812 = vmatpush2.msra.mxu0 0.0
        %4813 = vmatprep.subr.mxu0 0.0
        %4814 = vmatpush2.msra.mxu0 0.0
        %4815 = vmatprep.subr.mxu0 0.0
        %4816 = vmatpush2.msra.mxu0 0.0
        %4817 = vmatprep.subr.mxu0 0.0
        %4818 = vmatpush2.msra.mxu0 0.0
        %4819 = vmatprep.subr.mxu0 0.0
        %4820 = vmatpush2.msra.mxu0 0.0
        %4821 = vmatprep.subr.mxu0 0.0
        %4822 = vmatpush2.msra.mxu0 0.0
        %4823 = vmatprep.subr.mxu0 0.0
        %4824 = vmatpush2.msra.mxu0 0.0
        %4825 = vmatprep.subr.mxu0 0.0
        %4826 = vmatpush2.msra.mxu0 0.0
        %4827 = vmatprep.subr.mxu0 0.0
        %4828 = vmatpush2.msra.mxu0 0.0
        %4829 = vmatprep.mubr.f32.mxu0 0.0
        %4830 = vmatmul.mubr.f32.gmra.mxu0 %v4763
        %v4831 = vpop.f32.mrf.mxu0
        %v4832 = vadd.f32 0.0, %v4831
        %v4833 = vpop.f32.mrf.mxu0
        %4834 = vdwg.mxu0
        %v4835 = vadd.f32 %v4596, %v4832
        %4836 = vrot.lane.b32.xlu0 %v3745, 64
        %v4837 = vpop.permute.xlu0 %4836
        %4838 = vrot.lane.b32.xlu0 %v3857, 64
        %v4839 = vpop.permute.xlu0 %4838
        %v4840 = vsel %vm1702, %v4837, 0
        %v4842 = vsel %vm1702, %v4839, 0
        %4844 = vmatprep.subr.mxu0 0.0
        %4845 = vmatpush1.xpose.msra.mxu0 0.0
        %4846 = vmatprep.subr.mxu0 0.0
        %4847 = vmatpush1.xpose.msra.mxu0 0.0
        %4848 = vmatprep.subr.mxu0 0.0
        %4849 = vmatpush1.xpose.msra.mxu0 0.0
        %4850 = vmatprep.subr.mxu0 0.0
        %4851 = vmatpush1.xpose.msra.mxu0 0.0
        %4852 = vmatprep.subr.mxu0 0.0
        %4853 = vmatpush1.xpose.msra.mxu0 0.0
        %4854 = vmatprep.subr.mxu0 0.0
        %4855 = vmatpush1.xpose.msra.mxu0 0.0
        %4856 = vmatprep.subr.mxu0 0.0
        %4857 = vmatpush1.xpose.msra.mxu0 0.0
        %4858 = vmatprep.subr.mxu0 0.0
        %4859 = vmatpush1.xpose.msra.mxu0 0.0
        %4860 = vmatprep.subr.mxu0 0.0
        %4861 = vmatpush1.xpose.msra.mxu0 0.0
        %4862 = vmatprep.subr.mxu0 0.0
        %4863 = vmatpush1.xpose.msra.mxu0 0.0
        %4864 = vmatprep.subr.mxu0 0.0
        %4865 = vmatpush1.xpose.msra.mxu0 0.0
        %4866 = vmatprep.subr.mxu0 0.0
        %4867 = vmatpush1.xpose.msra.mxu0 0.0
        %4868 = vmatprep.subr.mxu0 0.0
        %4869 = vmatpush1.xpose.msra.mxu0 0.0
        %4870 = vmatprep.subr.mxu0 0.0
        %4871 = vmatpush1.xpose.msra.mxu0 0.0
        %4872 = vmatprep.subr.mxu0 0.0
        %4873 = vmatpush1.xpose.msra.mxu0 0.0
        %4874 = vmatprep.subr.mxu0 0.0
        %4875 = vmatpush1.xpose.msra.mxu0 %v4842
        %4876 = vmatprep.subr.mxu0 0.0
        %4877 = vmatpush2.xpose.msra.mxu0 0.0
        %4878 = vmatprep.subr.mxu0 0.0
        %4879 = vmatpush2.xpose.msra.mxu0 0.0
        %4880 = vmatprep.subr.mxu0 0.0
        %4881 = vmatpush2.xpose.msra.mxu0 0.0
        %4882 = vmatprep.subr.mxu0 0.0
        %4883 = vmatpush2.xpose.msra.mxu0 0.0
        %4884 = vmatprep.subr.mxu0 0.0
        %4885 = vmatpush2.xpose.msra.mxu0 0.0
        %4886 = vmatprep.subr.mxu0 0.0
        %4887 = vmatpush2.xpose.msra.mxu0 0.0
        %4888 = vmatprep.subr.mxu0 0.0
        %4889 = vmatpush2.xpose.msra.mxu0 0.0
        %4890 = vmatprep.subr.mxu0 0.0
        %4891 = vmatpush2.xpose.msra.mxu0 0.0
        %4892 = vmatprep.subr.mxu0 0.0
        %4893 = vmatpush2.xpose.msra.mxu0 0.0
        %4894 = vmatprep.subr.mxu0 0.0
        %4895 = vmatpush2.xpose.msra.mxu0 0.0
        %4896 = vmatprep.subr.mxu0 0.0
        %4897 = vmatpush2.xpose.msra.mxu0 0.0
        %4898 = vmatprep.subr.mxu0 0.0
        %4899 = vmatpush2.xpose.msra.mxu0 0.0
        %4900 = vmatprep.subr.mxu0 0.0
        %4901 = vmatpush2.xpose.msra.mxu0 0.0
        %4902 = vmatprep.subr.mxu0 0.0
        %4903 = vmatpush2.xpose.msra.mxu0 0.0
        %4904 = vmatprep.subr.mxu0 0.0
        %4905 = vmatpush2.xpose.msra.mxu0 0.0
        %4906 = vmatprep.subr.mxu0 0.0
        %4907 = vmatpush2.xpose.msra.mxu0 0.0
        %4908 = vmatprep.mubr.f32.mxu0 0.0
        %4909 = vmatmul.mubr.f32.gmra.mxu0 %v4840
        %v4910 = vpop.f32.mrf.mxu0
        %v4911 = vadd.f32 %v3865, %v4910
        %v4912 = vpop.f32.mrf.mxu0
        %4913 = vdwg.mxu0
        %v4914 = vsel %vm1779, %v4911, -inf
        %4915 = vmax.xlane.f32.xlu0 %v4914
        %v4916 = vpop.xlane.xlu0 %4915
        %v4917 = vsub.f32 %v4911, %v4916
        %v4918 = vmul.f32 %v4917, 1.442695
        %v4919 = vpow.pop %v4918
        %v4920 = vsel %vm1779, %v4919, 0.0
        %4921 = vadd.xlane.f32.xlu0 %v4920
        %v4922 = vpop.xlane.xlu0 %4921
        %v4923 = vrcp.pop %v4922
        %v4924 = vmul.f32 %v4919, %v4923
        %4925 = vrot.lane.b32.xlu0 %v3859, 64
        %v4926 = vpop.permute.xlu0 %4925
        %v4929 = vsel %vm1779, %v4924, 0
        %4931 = vmatprep.subr.mxu0 0.0
        %4932 = vmatpush1.msra.mxu0 0.0
        %4933 = vmatprep.subr.mxu0 0.0
        %4934 = vmatpush1.msra.mxu0 0.0
        %4935 = vmatprep.subr.mxu0 0.0
        %4936 = vmatpush1.msra.mxu0 0.0
        %4937 = vmatprep.subr.mxu0 0.0
        %4938 = vmatpush1.msra.mxu0 0.0
        %4939 = vmatprep.subr.mxu0 0.0
        %4940 = vmatpush1.msra.mxu0 0.0
        %4941 = vmatprep.subr.mxu0 0.0
        %4942 = vmatpush1.msra.mxu0 0.0
        %4943 = vmatprep.subr.mxu0 0.0
        %4944 = vmatpush1.msra.mxu0 0.0
        %4945 = vmatprep.subr.mxu0 0.0
        %4946 = vmatpush1.msra.mxu0 0.0
        %4947 = vmatprep.subr.mxu0 0.0
        %4948 = vmatpush1.msra.mxu0 0.0
        %4949 = vmatprep.subr.mxu0 0.0
        %4950 = vmatpush1.msra.mxu0 0.0
        %4951 = vmatprep.subr.mxu0 0.0
        %4952 = vmatpush1.msra.mxu0 0.0
        %4953 = vmatprep.subr.mxu0 0.0
        %4954 = vmatpush1.msra.mxu0 0.0
        %4955 = vmatprep.subr.mxu0 0.0
        %4956 = vmatpush1.msra.mxu0 0.0
        %4957 = vmatprep.subr.mxu0 0.0
        %4958 = vmatpush1.msra.mxu0 0.0
        %4959 = vmatprep.subr.mxu0 0.0
        %4960 = vmatpush1.msra.mxu0 0.0
        %4961 = vmatprep.subr.mxu0 0.0
        %4962 = vmatpush1.msra.mxu0 %v4926
        %4963 = vmatprep.subr.mxu0 0.0
        %4964 = vmatpush2.msra.mxu0 0.0
        %4965 = vmatprep.subr.mxu0 0.0
        %4966 = vmatpush2.msra.mxu0 0.0
        %4967 = vmatprep.subr.mxu0 0.0
        %4968 = vmatpush2.msra.mxu0 0.0
        %4969 = vmatprep.subr.mxu0 0.0
        %4970 = vmatpush2.msra.mxu0 0.0
        %4971 = vmatprep.subr.mxu0 0.0
        %4972 = vmatpush2.msra.mxu0 0.0
        %4973 = vmatprep.subr.mxu0 0.0
        %4974 = vmatpush2.msra.mxu0 0.0
        %4975 = vmatprep.subr.mxu0 0.0
        %4976 = vmatpush2.msra.mxu0 0.0
        %4977 = vmatprep.subr.mxu0 0.0
        %4978 = vmatpush2.msra.mxu0 0.0
        %4979 = vmatprep.subr.mxu0 0.0
        %4980 = vmatpush2.msra.mxu0 0.0
        %4981 = vmatprep.subr.mxu0 0.0
        %4982 = vmatpush2.msra.mxu0 0.0
        %4983 = vmatprep.subr.mxu0 0.0
        %4984 = vmatpush2.msra.mxu0 0.0
        %4985 = vmatprep.subr.mxu0 0.0
        %4986 = vmatpush2.msra.mxu0 0.0
        %4987 = vmatprep.subr.mxu0 0.0
        %4988 = vmatpush2.msra.mxu0 0.0
        %4989 = vmatprep.subr.mxu0 0.0
        %4990 = vmatpush2.msra.mxu0 0.0
        %4991 = vmatprep.subr.mxu0 0.0
        %4992 = vmatpush2.msra.mxu0 0.0
        %4993 = vmatprep.subr.mxu0 0.0
        %4994 = vmatpush2.msra.mxu0 0.0
        %4995 = vmatprep.mubr.f32.mxu0 0.0
        %4996 = vmatmul.mubr.f32.gmra.mxu0 %v4929
        %v4997 = vpop.f32.mrf.mxu0
        %v4998 = vadd.f32 0.0, %v4997
        %v4999 = vpop.f32.mrf.mxu0
        %5000 = vdwg.mxu0
        %v5002 = vsel %vm1702, %v4998, 0
        %5004 = vmatprep.subr.mxu0 0.0
        %5005 = vmatpush1.msra.mxu0 0.0
        %5006 = vmatprep.subr.mxu0 0.0
        %5007 = vmatpush1.msra.mxu0 0.0
        %5008 = vmatprep.subr.mxu0 0.0
        %5009 = vmatpush1.msra.mxu0 0.0
        %5010 = vmatprep.subr.mxu0 0.0
        %5011 = vmatpush1.msra.mxu0 0.0
        %5012 = vmatprep.subr.mxu0 0.0
        %5013 = vmatpush1.msra.mxu0 0.0
        %5014 = vmatprep.subr.mxu0 0.0
        %5015 = vmatpush1.msra.mxu0 0.0
        %5016 = vmatprep.subr.mxu0 0.0
        %5017 = vmatpush1.msra.mxu0 0.0
        %5018 = vmatprep.subr.mxu0 0.0
        %5019 = vmatpush1.msra.mxu0 0.0
        %5020 = vmatprep.subr.mxu0 0.0
        %5021 = vmatpush1.msra.mxu0 0.0
        %5022 = vmatprep.subr.mxu0 0.0
        %5023 = vmatpush1.msra.mxu0 0.0
        %5024 = vmatprep.subr.mxu0 0.0
        %5025 = vmatpush1.msra.mxu0 0.0
        %5026 = vmatprep.subr.mxu0 0.0
        %5027 = vmatpush1.msra.mxu0 0.0
        %5028 = vmatprep.subr.mxu0 0.0
        %5029 = vmatpush1.msra.mxu0 0.0
        %5030 = vmatprep.subr.mxu0 0.0
        %5031 = vmatpush1.msra.mxu0 0.0
        %5032 = vmatprep.subr.mxu0 0.0
        %5033 = vmatpush1.msra.mxu0 %v3878
        %5034 = vmatprep.subr.mxu0 0.0
        %5035 = vmatpush1.msra.mxu0 %v3877
        %5036 = vmatprep.subr.mxu0 0.0
        %5037 = vmatpush2.msra.mxu0 0.0
        %5038 = vmatprep.subr.mxu0 0.0
        %5039 = vmatpush2.msra.mxu0 0.0
        %5040 = vmatprep.subr.mxu0 0.0
        %5041 = vmatpush2.msra.mxu0 0.0
        %5042 = vmatprep.subr.mxu0 0.0
        %5043 = vmatpush2.msra.mxu0 0.0
        %5044 = vmatprep.subr.mxu0 0.0
        %5045 = vmatpush2.msra.mxu0 0.0
        %5046 = vmatprep.subr.mxu0 0.0
        %5047 = vmatpush2.msra.mxu0 0.0
        %5048 = vmatprep.subr.mxu0 0.0
        %5049 = vmatpush2.msra.mxu0 0.0
        %5050 = vmatprep.subr.mxu0 0.0
        %5051 = vmatpush2.msra.mxu0 0.0
        %5052 = vmatprep.subr.mxu0 0.0
        %5053 = vmatpush2.msra.mxu0 0.0
        %5054 = vmatprep.subr.mxu0 0.0
        %5055 = vmatpush2.msra.mxu0 0.0
        %5056 = vmatprep.subr.mxu0 0.0
        %5057 = vmatpush2.msra.mxu0 0.0
        %5058 = vmatprep.subr.mxu0 0.0
        %5059 = vmatpush2.msra.mxu0 0.0
        %5060 = vmatprep.subr.mxu0 0.0
        %5061 = vmatpush2.msra.mxu0 0.0
        %5062 = vmatprep.subr.mxu0 0.0
        %5063 = vmatpush2.msra.mxu0 0.0
        %5064 = vmatprep.subr.mxu0 0.0
        %5065 = vmatpush2.msra.mxu0 0.0
        %5066 = vmatprep.subr.mxu0 0.0
        %5067 = vmatpush2.msra.mxu0 0.0
        %5068 = vmatprep.mubr.f32.mxu0 0.0
        %5069 = vmatmul.mubr.f32.gmra.mxu0 %v5002
        %v5070 = vpop.f32.mrf.mxu0
        %v5071 = vadd.f32 0.0, %v5070
        %v5072 = vpop.f32.mrf.mxu0
        %5073 = vdwg.mxu0
        %v5074 = vadd.f32 %v4835, %v5071
        %5075 = vrot.lane.b32.xlu0 %v3745, 48
        %v5076 = vpop.permute.xlu0 %5075
        %5077 = vrot.lane.b32.xlu0 %v3857, 48
        %v5078 = vpop.permute.xlu0 %5077
        %v5079 = vsel %vm1702, %v5076, 0
        %v5081 = vsel %vm1702, %v5078, 0
        %5083 = vmatprep.subr.mxu0 0.0
        %5084 = vmatpush1.xpose.msra.mxu0 0.0
        %5085 = vmatprep.subr.mxu0 0.0
        %5086 = vmatpush1.xpose.msra.mxu0 0.0
        %5087 = vmatprep.subr.mxu0 0.0
        %5088 = vmatpush1.xpose.msra.mxu0 0.0
        %5089 = vmatprep.subr.mxu0 0.0
        %5090 = vmatpush1.xpose.msra.mxu0 0.0
        %5091 = vmatprep.subr.mxu0 0.0
        %5092 = vmatpush1.xpose.msra.mxu0 0.0
        %5093 = vmatprep.subr.mxu0 0.0
        %5094 = vmatpush1.xpose.msra.mxu0 0.0
        %5095 = vmatprep.subr.mxu0 0.0
        %5096 = vmatpush1.xpose.msra.mxu0 0.0
        %5097 = vmatprep.subr.mxu0 0.0
        %5098 = vmatpush1.xpose.msra.mxu0 0.0
        %5099 = vmatprep.subr.mxu0 0.0
        %5100 = vmatpush1.xpose.msra.mxu0 0.0
        %5101 = vmatprep.subr.mxu0 0.0
        %5102 = vmatpush1.xpose.msra.mxu0 0.0
        %5103 = vmatprep.subr.mxu0 0.0
        %5104 = vmatpush1.xpose.msra.mxu0 0.0
        %5105 = vmatprep.subr.mxu0 0.0
        %5106 = vmatpush1.xpose.msra.mxu0 0.0
        %5107 = vmatprep.subr.mxu0 0.0
        %5108 = vmatpush1.xpose.msra.mxu0 0.0
        %5109 = vmatprep.subr.mxu0 0.0
        %5110 = vmatpush1.xpose.msra.mxu0 0.0
        %5111 = vmatprep.subr.mxu0 0.0
        %5112 = vmatpush1.xpose.msra.mxu0 0.0
        %5113 = vmatprep.subr.mxu0 0.0
        %5114 = vmatpush1.xpose.msra.mxu0 %v5081
        %5115 = vmatprep.subr.mxu0 0.0
        %5116 = vmatpush2.xpose.msra.mxu0 0.0
        %5117 = vmatprep.subr.mxu0 0.0
        %5118 = vmatpush2.xpose.msra.mxu0 0.0
        %5119 = vmatprep.subr.mxu0 0.0
        %5120 = vmatpush2.xpose.msra.mxu0 0.0
        %5121 = vmatprep.subr.mxu0 0.0
        %5122 = vmatpush2.xpose.msra.mxu0 0.0
        %5123 = vmatprep.subr.mxu0 0.0
        %5124 = vmatpush2.xpose.msra.mxu0 0.0
        %5125 = vmatprep.subr.mxu0 0.0
        %5126 = vmatpush2.xpose.msra.mxu0 0.0
        %5127 = vmatprep.subr.mxu0 0.0
        %5128 = vmatpush2.xpose.msra.mxu0 0.0
        %5129 = vmatprep.subr.mxu0 0.0
        %5130 = vmatpush2.xpose.msra.mxu0 0.0
        %5131 = vmatprep.subr.mxu0 0.0
        %5132 = vmatpush2.xpose.msra.mxu0 0.0
        %5133 = vmatprep.subr.mxu0 0.0
        %5134 = vmatpush2.xpose.msra.mxu0 0.0
        %5135 = vmatprep.subr.mxu0 0.0
        %5136 = vmatpush2.xpose.msra.mxu0 0.0
        %5137 = vmatprep.subr.mxu0 0.0
        %5138 = vmatpush2.xpose.msra.mxu0 0.0
        %5139 = vmatprep.subr.mxu0 0.0
        %5140 = vmatpush2.xpose.msra.mxu0 0.0
        %5141 = vmatprep.subr.mxu0 0.0
        %5142 = vmatpush2.xpose.msra.mxu0 0.0
        %5143 = vmatprep.subr.mxu0 0.0
        %5144 = vmatpush2.xpose.msra.mxu0 0.0
        %5145 = vmatprep.subr.mxu0 0.0
        %5146 = vmatpush2.xpose.msra.mxu0 0.0
        %5147 = vmatprep.mubr.f32.mxu0 0.0
        %5148 = vmatmul.mubr.f32.gmra.mxu0 %v5079
        %v5149 = vpop.f32.mrf.mxu0
        %v5150 = vadd.f32 %v3866, %v5149
        %v5151 = vpop.f32.mrf.mxu0
        %5152 = vdwg.mxu0
        %v5153 = vsel %vm1779, %v5150, -inf
        %5154 = vmax.xlane.f32.xlu0 %v5153
        %v5155 = vpop.xlane.xlu0 %5154
        %v5156 = vsub.f32 %v5150, %v5155
        %v5157 = vmul.f32 %v5156, 1.442695
        %v5158 = vpow.pop %v5157
        %v5159 = vsel %vm1779, %v5158, 0.0
        %5160 = vadd.xlane.f32.xlu0 %v5159
        %v5161 = vpop.xlane.xlu0 %5160
        %v5162 = vrcp.pop %v5161
        %v5163 = vmul.f32 %v5158, %v5162
        %5164 = vrot.lane.b32.xlu0 %v3859, 48
        %v5165 = vpop.permute.xlu0 %5164
        %v5168 = vsel %vm1779, %v5163, 0
        %5170 = vmatprep.subr.mxu0 0.0
        %5171 = vmatpush1.msra.mxu0 0.0
        %5172 = vmatprep.subr.mxu0 0.0
        %5173 = vmatpush1.msra.mxu0 0.0
        %5174 = vmatprep.subr.mxu0 0.0
        %5175 = vmatpush1.msra.mxu0 0.0
        %5176 = vmatprep.subr.mxu0 0.0
        %5177 = vmatpush1.msra.mxu0 0.0
        %5178 = vmatprep.subr.mxu0 0.0
        %5179 = vmatpush1.msra.mxu0 0.0
        %5180 = vmatprep.subr.mxu0 0.0
        %5181 = vmatpush1.msra.mxu0 0.0
        %5182 = vmatprep.subr.mxu0 0.0
        %5183 = vmatpush1.msra.mxu0 0.0
        %5184 = vmatprep.subr.mxu0 0.0
        %5185 = vmatpush1.msra.mxu0 0.0
        %5186 = vmatprep.subr.mxu0 0.0
        %5187 = vmatpush1.msra.mxu0 0.0
        %5188 = vmatprep.subr.mxu0 0.0
        %5189 = vmatpush1.msra.mxu0 0.0
        %5190 = vmatprep.subr.mxu0 0.0
        %5191 = vmatpush1.msra.mxu0 0.0
        %5192 = vmatprep.subr.mxu0 0.0
        %5193 = vmatpush1.msra.mxu0 0.0
        %5194 = vmatprep.subr.mxu0 0.0
        %5195 = vmatpush1.msra.mxu0 0.0
        %5196 = vmatprep.subr.mxu0 0.0
        %5197 = vmatpush1.msra.mxu0 0.0
        %5198 = vmatprep.subr.mxu0 0.0
        %5199 = vmatpush1.msra.mxu0 0.0
        %5200 = vmatprep.subr.mxu0 0.0
        %5201 = vmatpush1.msra.mxu0 %v5165
        %5202 = vmatprep.subr.mxu0 0.0
        %5203 = vmatpush2.msra.mxu0 0.0
        %5204 = vmatprep.subr.mxu0 0.0
        %5205 = vmatpush2.msra.mxu0 0.0
        %5206 = vmatprep.subr.mxu0 0.0
        %5207 = vmatpush2.msra.mxu0 0.0
        %5208 = vmatprep.subr.mxu0 0.0
        %5209 = vmatpush2.msra.mxu0 0.0
        %5210 = vmatprep.subr.mxu0 0.0
        %5211 = vmatpush2.msra.mxu0 0.0
        %5212 = vmatprep.subr.mxu0 0.0
        %5213 = vmatpush2.msra.mxu0 0.0
        %5214 = vmatprep.subr.mxu0 0.0
        %5215 = vmatpush2.msra.mxu0 0.0
        %5216 = vmatprep.subr.mxu0 0.0
        %5217 = vmatpush2.msra.mxu0 0.0
        %5218 = vmatprep.subr.mxu0 0.0
        %5219 = vmatpush2.msra.mxu0 0.0
        %5220 = vmatprep.subr.mxu0 0.0
        %5221 = vmatpush2.msra.mxu0 0.0
        %5222 = vmatprep.subr.mxu0 0.0
        %5223 = vmatpush2.msra.mxu0 0.0
        %5224 = vmatprep.subr.mxu0 0.0
        %5225 = vmatpush2.msra.mxu0 0.0
        %5226 = vmatprep.subr.mxu0 0.0
        %5227 = vmatpush2.msra.mxu0 0.0
        %5228 = vmatprep.subr.mxu0 0.0
        %5229 = vmatpush2.msra.mxu0 0.0
        %5230 = vmatprep.subr.mxu0 0.0
        %5231 = vmatpush2.msra.mxu0 0.0
        %5232 = vmatprep.subr.mxu0 0.0
        %5233 = vmatpush2.msra.mxu0 0.0
        %5234 = vmatprep.mubr.f32.mxu0 0.0
        %5235 = vmatmul.mubr.f32.gmra.mxu0 %v5168
        %v5236 = vpop.f32.mrf.mxu0
        %v5237 = vadd.f32 0.0, %v5236
        %v5238 = vpop.f32.mrf.mxu0
        %5239 = vdwg.mxu0
        %v5241 = vsel %vm1702, %v5237, 0
        %5243 = vmatprep.subr.mxu0 0.0
        %5244 = vmatpush1.msra.mxu0 0.0
        %5245 = vmatprep.subr.mxu0 0.0
        %5246 = vmatpush1.msra.mxu0 0.0
        %5247 = vmatprep.subr.mxu0 0.0
        %5248 = vmatpush1.msra.mxu0 0.0
        %5249 = vmatprep.subr.mxu0 0.0
        %5250 = vmatpush1.msra.mxu0 0.0
        %5251 = vmatprep.subr.mxu0 0.0
        %5252 = vmatpush1.msra.mxu0 0.0
        %5253 = vmatprep.subr.mxu0 0.0
        %5254 = vmatpush1.msra.mxu0 0.0
        %5255 = vmatprep.subr.mxu0 0.0
        %5256 = vmatpush1.msra.mxu0 0.0
        %5257 = vmatprep.subr.mxu0 0.0
        %5258 = vmatpush1.msra.mxu0 0.0
        %5259 = vmatprep.subr.mxu0 0.0
        %5260 = vmatpush1.msra.mxu0 0.0
        %5261 = vmatprep.subr.mxu0 0.0
        %5262 = vmatpush1.msra.mxu0 0.0
        %5263 = vmatprep.subr.mxu0 0.0
        %5264 = vmatpush1.msra.mxu0 0.0
        %5265 = vmatprep.subr.mxu0 0.0
        %5266 = vmatpush1.msra.mxu0 0.0
        %5267 = vmatprep.subr.mxu0 0.0
        %5268 = vmatpush1.msra.mxu0 0.0
        %5269 = vmatprep.subr.mxu0 0.0
        %5270 = vmatpush1.msra.mxu0 0.0
        %5271 = vmatprep.subr.mxu0 0.0
        %5272 = vmatpush1.msra.mxu0 %v3880
        %5273 = vmatprep.subr.mxu0 0.0
        %5274 = vmatpush1.msra.mxu0 %v3879
        %5275 = vmatprep.subr.mxu0 0.0
        %5276 = vmatpush2.msra.mxu0 0.0
        %5277 = vmatprep.subr.mxu0 0.0
        %5278 = vmatpush2.msra.mxu0 0.0
        %5279 = vmatprep.subr.mxu0 0.0
        %5280 = vmatpush2.msra.mxu0 0.0
        %5281 = vmatprep.subr.mxu0 0.0
        %5282 = vmatpush2.msra.mxu0 0.0
        %5283 = vmatprep.subr.mxu0 0.0
        %5284 = vmatpush2.msra.mxu0 0.0
        %5285 = vmatprep.subr.mxu0 0.0
        %5286 = vmatpush2.msra.mxu0 0.0
        %5287 = vmatprep.subr.mxu0 0.0
        %5288 = vmatpush2.msra.mxu0 0.0
        %5289 = vmatprep.subr.mxu0 0.0
        %5290 = vmatpush2.msra.mxu0 0.0
        %5291 = vmatprep.subr.mxu0 0.0
        %5292 = vmatpush2.msra.mxu0 0.0
        %5293 = vmatprep.subr.mxu0 0.0
        %5294 = vmatpush2.msra.mxu0 0.0
        %5295 = vmatprep.subr.mxu0 0.0
        %5296 = vmatpush2.msra.mxu0 0.0
        %5297 = vmatprep.subr.mxu0 0.0
        %5298 = vmatpush2.msra.mxu0 0.0
        %5299 = vmatprep.subr.mxu0 0.0
        %5300 = vmatpush2.msra.mxu0 0.0
        %5301 = vmatprep.subr.mxu0 0.0
        %5302 = vmatpush2.msra.mxu0 0.0
        %5303 = vmatprep.subr.mxu0 0.0
        %5304 = vmatpush2.msra.mxu0 0.0
        %5305 = vmatprep.subr.mxu0 0.0
        %5306 = vmatpush2.msra.mxu0 0.0
        %5307 = vmatprep.mubr.f32.mxu0 0.0
        %5308 = vmatmul.mubr.f32.gmra.mxu0 %v5241
        %v5309 = vpop.f32.mrf.mxu0
        %v5310 = vadd.f32 0.0, %v5309
        %v5311 = vpop.f32.mrf.mxu0
        %5312 = vdwg.mxu0
        %v5313 = vadd.f32 %v5074, %v5310
        %5314 = vrot.lane.b32.xlu0 %v3745, 32
        %v5315 = vpop.permute.xlu0 %5314
        %5316 = vrot.lane.b32.xlu0 %v3857, 32
        %v5317 = vpop.permute.xlu0 %5316
        %v5318 = vsel %vm1702, %v5315, 0
        %v5320 = vsel %vm1702, %v5317, 0
        %5322 = vmatprep.subr.mxu0 0.0
        %5323 = vmatpush1.xpose.msra.mxu0 0.0
        %5324 = vmatprep.subr.mxu0 0.0
        %5325 = vmatpush1.xpose.msra.mxu0 0.0
        %5326 = vmatprep.subr.mxu0 0.0
        %5327 = vmatpush1.xpose.msra.mxu0 0.0
        %5328 = vmatprep.subr.mxu0 0.0
        %5329 = vmatpush1.xpose.msra.mxu0 0.0
        %5330 = vmatprep.subr.mxu0 0.0
        %5331 = vmatpush1.xpose.msra.mxu0 0.0
        %5332 = vmatprep.subr.mxu0 0.0
        %5333 = vmatpush1.xpose.msra.mxu0 0.0
        %5334 = vmatprep.subr.mxu0 0.0
        %5335 = vmatpush1.xpose.msra.mxu0 0.0
        %5336 = vmatprep.subr.mxu0 0.0
        %5337 = vmatpush1.xpose.msra.mxu0 0.0
        %5338 = vmatprep.subr.mxu0 0.0
        %5339 = vmatpush1.xpose.msra.mxu0 0.0
        %5340 = vmatprep.subr.mxu0 0.0
        %5341 = vmatpush1.xpose.msra.mxu0 0.0
        %5342 = vmatprep.subr.mxu0 0.0
        %5343 = vmatpush1.xpose.msra.mxu0 0.0
        %5344 = vmatprep.subr.mxu0 0.0
        %5345 = vmatpush1.xpose.msra.mxu0 0.0
        %5346 = vmatprep.subr.mxu0 0.0
        %5347 = vmatpush1.xpose.msra.mxu0 0.0
        %5348 = vmatprep.subr.mxu0 0.0
        %5349 = vmatpush1.xpose.msra.mxu0 0.0
        %5350 = vmatprep.subr.mxu0 0.0
        %5351 = vmatpush1.xpose.msra.mxu0 0.0
        %5352 = vmatprep.subr.mxu0 0.0
        %5353 = vmatpush1.xpose.msra.mxu0 %v5320
        %5354 = vmatprep.subr.mxu0 0.0
        %5355 = vmatpush2.xpose.msra.mxu0 0.0
        %5356 = vmatprep.subr.mxu0 0.0
        %5357 = vmatpush2.xpose.msra.mxu0 0.0
        %5358 = vmatprep.subr.mxu0 0.0
        %5359 = vmatpush2.xpose.msra.mxu0 0.0
        %5360 = vmatprep.subr.mxu0 0.0
        %5361 = vmatpush2.xpose.msra.mxu0 0.0
        %5362 = vmatprep.subr.mxu0 0.0
        %5363 = vmatpush2.xpose.msra.mxu0 0.0
        %5364 = vmatprep.subr.mxu0 0.0
        %5365 = vmatpush2.xpose.msra.mxu0 0.0
        %5366 = vmatprep.subr.mxu0 0.0
        %5367 = vmatpush2.xpose.msra.mxu0 0.0
        %5368 = vmatprep.subr.mxu0 0.0
        %5369 = vmatpush2.xpose.msra.mxu0 0.0
        %5370 = vmatprep.subr.mxu0 0.0
        %5371 = vmatpush2.xpose.msra.mxu0 0.0
        %5372 = vmatprep.subr.mxu0 0.0
        %5373 = vmatpush2.xpose.msra.mxu0 0.0
        %5374 = vmatprep.subr.mxu0 0.0
        %5375 = vmatpush2.xpose.msra.mxu0 0.0
        %5376 = vmatprep.subr.mxu0 0.0
        %5377 = vmatpush2.xpose.msra.mxu0 0.0
        %5378 = vmatprep.subr.mxu0 0.0
        %5379 = vmatpush2.xpose.msra.mxu0 0.0
        %5380 = vmatprep.subr.mxu0 0.0
        %5381 = vmatpush2.xpose.msra.mxu0 0.0
        %5382 = vmatprep.subr.mxu0 0.0
        %5383 = vmatpush2.xpose.msra.mxu0 0.0
        %5384 = vmatprep.subr.mxu0 0.0
        %5385 = vmatpush2.xpose.msra.mxu0 0.0
        %5386 = vmatprep.mubr.f32.mxu0 0.0
        %5387 = vmatmul.mubr.f32.gmra.mxu0 %v5318
        %v5388 = vpop.f32.mrf.mxu0
        %v5389 = vadd.f32 %v3867, %v5388
        %v5390 = vpop.f32.mrf.mxu0
        %5391 = vdwg.mxu0
        %v5392 = vsel %vm1779, %v5389, -inf
        %5393 = vmax.xlane.f32.xlu0 %v5392
        %v5394 = vpop.xlane.xlu0 %5393
        %v5395 = vsub.f32 %v5389, %v5394
        %v5396 = vmul.f32 %v5395, 1.442695
        %v5397 = vpow.pop %v5396
        %v5398 = vsel %vm1779, %v5397, 0.0
        %5399 = vadd.xlane.f32.xlu0 %v5398
        %v5400 = vpop.xlane.xlu0 %5399
        %v5401 = vrcp.pop %v5400
        %v5402 = vmul.f32 %v5397, %v5401
        %5403 = vrot.lane.b32.xlu0 %v3859, 32
        %v5404 = vpop.permute.xlu0 %5403
        %v5407 = vsel %vm1779, %v5402, 0
        %5409 = vmatprep.subr.mxu0 0.0
        %5410 = vmatpush1.msra.mxu0 0.0
        %5411 = vmatprep.subr.mxu0 0.0
        %5412 = vmatpush1.msra.mxu0 0.0
        %5413 = vmatprep.subr.mxu0 0.0
        %5414 = vmatpush1.msra.mxu0 0.0
        %5415 = vmatprep.subr.mxu0 0.0
        %5416 = vmatpush1.msra.mxu0 0.0
        %5417 = vmatprep.subr.mxu0 0.0
        %5418 = vmatpush1.msra.mxu0 0.0
        %5419 = vmatprep.subr.mxu0 0.0
        %5420 = vmatpush1.msra.mxu0 0.0
        %5421 = vmatprep.subr.mxu0 0.0
        %5422 = vmatpush1.msra.mxu0 0.0
        %5423 = vmatprep.subr.mxu0 0.0
        %5424 = vmatpush1.msra.mxu0 0.0
        %5425 = vmatprep.subr.mxu0 0.0
        %5426 = vmatpush1.msra.mxu0 0.0
        %5427 = vmatprep.subr.mxu0 0.0
        %5428 = vmatpush1.msra.mxu0 0.0
        %5429 = vmatprep.subr.mxu0 0.0
        %5430 = vmatpush1.msra.mxu0 0.0
        %5431 = vmatprep.subr.mxu0 0.0
        %5432 = vmatpush1.msra.mxu0 0.0
        %5433 = vmatprep.subr.mxu0 0.0
        %5434 = vmatpush1.msra.mxu0 0.0
        %5435 = vmatprep.subr.mxu0 0.0
        %5436 = vmatpush1.msra.mxu0 0.0
        %5437 = vmatprep.subr.mxu0 0.0
        %5438 = vmatpush1.msra.mxu0 0.0
        %5439 = vmatprep.subr.mxu0 0.0
        %5440 = vmatpush1.msra.mxu0 %v5404
        %5441 = vmatprep.subr.mxu0 0.0
        %5442 = vmatpush2.msra.mxu0 0.0
        %5443 = vmatprep.subr.mxu0 0.0
        %5444 = vmatpush2.msra.mxu0 0.0
        %5445 = vmatprep.subr.mxu0 0.0
        %5446 = vmatpush2.msra.mxu0 0.0
        %5447 = vmatprep.subr.mxu0 0.0
        %5448 = vmatpush2.msra.mxu0 0.0
        %5449 = vmatprep.subr.mxu0 0.0
        %5450 = vmatpush2.msra.mxu0 0.0
        %5451 = vmatprep.subr.mxu0 0.0
        %5452 = vmatpush2.msra.mxu0 0.0
        %5453 = vmatprep.subr.mxu0 0.0
        %5454 = vmatpush2.msra.mxu0 0.0
        %5455 = vmatprep.subr.mxu0 0.0
        %5456 = vmatpush2.msra.mxu0 0.0
        %5457 = vmatprep.subr.mxu0 0.0
        %5458 = vmatpush2.msra.mxu0 0.0
        %5459 = vmatprep.subr.mxu0 0.0
        %5460 = vmatpush2.msra.mxu0 0.0
        %5461 = vmatprep.subr.mxu0 0.0
        %5462 = vmatpush2.msra.mxu0 0.0
        %5463 = vmatprep.subr.mxu0 0.0
        %5464 = vmatpush2.msra.mxu0 0.0
        %5465 = vmatprep.subr.mxu0 0.0
        %5466 = vmatpush2.msra.mxu0 0.0
        %5467 = vmatprep.subr.mxu0 0.0
        %5468 = vmatpush2.msra.mxu0 0.0
        %5469 = vmatprep.subr.mxu0 0.0
        %5470 = vmatpush2.msra.mxu0 0.0
        %5471 = vmatprep.subr.mxu0 0.0
        %5472 = vmatpush2.msra.mxu0 0.0
        %5473 = vmatprep.mubr.f32.mxu0 0.0
        %5474 = vmatmul.mubr.f32.gmra.mxu0 %v5407
        %v5475 = vpop.f32.mrf.mxu0
        %v5476 = vadd.f32 0.0, %v5475
        %v5477 = vpop.f32.mrf.mxu0
        %5478 = vdwg.mxu0
        %v5480 = vsel %vm1702, %v5476, 0
        %5482 = vmatprep.subr.mxu0 0.0
        %5483 = vmatpush1.msra.mxu0 0.0
        %5484 = vmatprep.subr.mxu0 0.0
        %5485 = vmatpush1.msra.mxu0 0.0
        %5486 = vmatprep.subr.mxu0 0.0
        %5487 = vmatpush1.msra.mxu0 0.0
        %5488 = vmatprep.subr.mxu0 0.0
        %5489 = vmatpush1.msra.mxu0 0.0
        %5490 = vmatprep.subr.mxu0 0.0
        %5491 = vmatpush1.msra.mxu0 0.0
        %5492 = vmatprep.subr.mxu0 0.0
        %5493 = vmatpush1.msra.mxu0 0.0
        %5494 = vmatprep.subr.mxu0 0.0
        %5495 = vmatpush1.msra.mxu0 0.0
        %5496 = vmatprep.subr.mxu0 0.0
        %5497 = vmatpush1.msra.mxu0 0.0
        %5498 = vmatprep.subr.mxu0 0.0
        %5499 = vmatpush1.msra.mxu0 0.0
        %5500 = vmatprep.subr.mxu0 0.0
        %5501 = vmatpush1.msra.mxu0 0.0
        %5502 = vmatprep.subr.mxu0 0.0
        %5503 = vmatpush1.msra.mxu0 0.0
        %5504 = vmatprep.subr.mxu0 0.0
        %5505 = vmatpush1.msra.mxu0 0.0
        %5506 = vmatprep.subr.mxu0 0.0
        %5507 = vmatpush1.msra.mxu0 0.0
        %5508 = vmatprep.subr.mxu0 0.0
        %5509 = vmatpush1.msra.mxu0 0.0
        %5510 = vmatprep.subr.mxu0 0.0
        %5511 = vmatpush1.msra.mxu0 %v3882
        %5512 = vmatprep.subr.mxu0 0.0
        %5513 = vmatpush1.msra.mxu0 %v3881
        %5514 = vmatprep.subr.mxu0 0.0
        %5515 = vmatpush2.msra.mxu0 0.0
        %5516 = vmatprep.subr.mxu0 0.0
        %5517 = vmatpush2.msra.mxu0 0.0
        %5518 = vmatprep.subr.mxu0 0.0
        %5519 = vmatpush2.msra.mxu0 0.0
        %5520 = vmatprep.subr.mxu0 0.0
        %5521 = vmatpush2.msra.mxu0 0.0
        %5522 = vmatprep.subr.mxu0 0.0
        %5523 = vmatpush2.msra.mxu0 0.0
        %5524 = vmatprep.subr.mxu0 0.0
        %5525 = vmatpush2.msra.mxu0 0.0
        %5526 = vmatprep.subr.mxu0 0.0
        %5527 = vmatpush2.msra.mxu0 0.0
        %5528 = vmatprep.subr.mxu0 0.0
        %5529 = vmatpush2.msra.mxu0 0.0
        %5530 = vmatprep.subr.mxu0 0.0
        %5531 = vmatpush2.msra.mxu0 0.0
        %5532 = vmatprep.subr.mxu0 0.0
        %5533 = vmatpush2.msra.mxu0 0.0
        %5534 = vmatprep.subr.mxu0 0.0
        %5535 = vmatpush2.msra.mxu0 0.0
        %5536 = vmatprep.subr.mxu0 0.0
        %5537 = vmatpush2.msra.mxu0 0.0
        %5538 = vmatprep.subr.mxu0 0.0
        %5539 = vmatpush2.msra.mxu0 0.0
        %5540 = vmatprep.subr.mxu0 0.0
        %5541 = vmatpush2.msra.mxu0 0.0
        %5542 = vmatprep.subr.mxu0 0.0
        %5543 = vmatpush2.msra.mxu0 0.0
        %5544 = vmatprep.subr.mxu0 0.0
        %5545 = vmatpush2.msra.mxu0 0.0
        %5546 = vmatprep.mubr.f32.mxu0 0.0
        %5547 = vmatmul.mubr.f32.gmra.mxu0 %v5480
        %v5548 = vpop.f32.mrf.mxu0
        %v5549 = vadd.f32 0.0, %v5548
        %v5550 = vpop.f32.mrf.mxu0
        %5551 = vdwg.mxu0
        %v5552 = vadd.f32 %v5313, %v5549
        %5553 = vrot.lane.b32.xlu0 %v3745, 16
        %v5554 = vpop.permute.xlu0 %5553
        %5555 = vrot.lane.b32.xlu0 %v3857, 16
        %v5556 = vpop.permute.xlu0 %5555
        %v5557 = vsel %vm1702, %v5554, 0
        %v5559 = vsel %vm1702, %v5556, 0
        %5561 = vmatprep.subr.mxu0 0.0
        %5562 = vmatpush1.xpose.msra.mxu0 0.0
        %5563 = vmatprep.subr.mxu0 0.0
        %5564 = vmatpush1.xpose.msra.mxu0 0.0
        %5565 = vmatprep.subr.mxu0 0.0
        %5566 = vmatpush1.xpose.msra.mxu0 0.0
        %5567 = vmatprep.subr.mxu0 0.0
        %5568 = vmatpush1.xpose.msra.mxu0 0.0
        %5569 = vmatprep.subr.mxu0 0.0
        %5570 = vmatpush1.xpose.msra.mxu0 0.0
        %5571 = vmatprep.subr.mxu0 0.0
        %5572 = vmatpush1.xpose.msra.mxu0 0.0
        %5573 = vmatprep.subr.mxu0 0.0
        %5574 = vmatpush1.xpose.msra.mxu0 0.0
        %5575 = vmatprep.subr.mxu0 0.0
        %5576 = vmatpush1.xpose.msra.mxu0 0.0
        %5577 = vmatprep.subr.mxu0 0.0
        %5578 = vmatpush1.xpose.msra.mxu0 0.0
        %5579 = vmatprep.subr.mxu0 0.0
        %5580 = vmatpush1.xpose.msra.mxu0 0.0
        %5581 = vmatprep.subr.mxu0 0.0
        %5582 = vmatpush1.xpose.msra.mxu0 0.0
        %5583 = vmatprep.subr.mxu0 0.0
        %5584 = vmatpush1.xpose.msra.mxu0 0.0
        %5585 = vmatprep.subr.mxu0 0.0
        %5586 = vmatpush1.xpose.msra.mxu0 0.0
        %5587 = vmatprep.subr.mxu0 0.0
        %5588 = vmatpush1.xpose.msra.mxu0 0.0
        %5589 = vmatprep.subr.mxu0 0.0
        %5590 = vmatpush1.xpose.msra.mxu0 0.0
        %5591 = vmatprep.subr.mxu0 0.0
        %5592 = vmatpush1.xpose.msra.mxu0 %v5559
        %5593 = vmatprep.subr.mxu0 0.0
        %5594 = vmatpush2.xpose.msra.mxu0 0.0
        %5595 = vmatprep.subr.mxu0 0.0
        %5596 = vmatpush2.xpose.msra.mxu0 0.0
        %5597 = vmatprep.subr.mxu0 0.0
        %5598 = vmatpush2.xpose.msra.mxu0 0.0
        %5599 = vmatprep.subr.mxu0 0.0
        %5600 = vmatpush2.xpose.msra.mxu0 0.0
        %5601 = vmatprep.subr.mxu0 0.0
        %5602 = vmatpush2.xpose.msra.mxu0 0.0
        %5603 = vmatprep.subr.mxu0 0.0
        %5604 = vmatpush2.xpose.msra.mxu0 0.0
        %5605 = vmatprep.subr.mxu0 0.0
        %5606 = vmatpush2.xpose.msra.mxu0 0.0
        %5607 = vmatprep.subr.mxu0 0.0
        %5608 = vmatpush2.xpose.msra.mxu0 0.0
        %5609 = vmatprep.subr.mxu0 0.0
        %5610 = vmatpush2.xpose.msra.mxu0 0.0
        %5611 = vmatprep.subr.mxu0 0.0
        %5612 = vmatpush2.xpose.msra.mxu0 0.0
        %5613 = vmatprep.subr.mxu0 0.0
        %5614 = vmatpush2.xpose.msra.mxu0 0.0
        %5615 = vmatprep.subr.mxu0 0.0
        %5616 = vmatpush2.xpose.msra.mxu0 0.0
        %5617 = vmatprep.subr.mxu0 0.0
        %5618 = vmatpush2.xpose.msra.mxu0 0.0
        %5619 = vmatprep.subr.mxu0 0.0
        %5620 = vmatpush2.xpose.msra.mxu0 0.0
        %5621 = vmatprep.subr.mxu0 0.0
        %5622 = vmatpush2.xpose.msra.mxu0 0.0
        %5623 = vmatprep.subr.mxu0 0.0
        %5624 = vmatpush2.xpose.msra.mxu0 0.0
        %5625 = vmatprep.mubr.f32.mxu0 0.0
        %5626 = vmatmul.mubr.f32.gmra.mxu0 %v5557
        %v5627 = vpop.f32.mrf.mxu0
        %v5628 = vadd.f32 %v3868, %v5627
        %v5629 = vpop.f32.mrf.mxu0
        %5630 = vdwg.mxu0
        %v5631 = vsel %vm1779, %v5628, -inf
        %5632 = vmax.xlane.f32.xlu0 %v5631
        %v5633 = vpop.xlane.xlu0 %5632
        %v5634 = vsub.f32 %v5628, %v5633
        %v5635 = vmul.f32 %v5634, 1.442695
        %v5636 = vpow.pop %v5635
        %v5637 = vsel %vm1779, %v5636, 0.0
        %5638 = vadd.xlane.f32.xlu0 %v5637
        %v5639 = vpop.xlane.xlu0 %5638
        %v5640 = vrcp.pop %v5639
        %v5641 = vmul.f32 %v5636, %v5640
        %5642 = vrot.lane.b32.xlu0 %v3859, 16
        %v5643 = vpop.permute.xlu0 %5642
        %v5646 = vsel %vm1779, %v5641, 0
        %5648 = vmatprep.subr.mxu0 0.0
        %5649 = vmatpush1.msra.mxu0 0.0
        %5650 = vmatprep.subr.mxu0 0.0
        %5651 = vmatpush1.msra.mxu0 0.0
        %5652 = vmatprep.subr.mxu0 0.0
        %5653 = vmatpush1.msra.mxu0 0.0
        %5654 = vmatprep.subr.mxu0 0.0
        %5655 = vmatpush1.msra.mxu0 0.0
        %5656 = vmatprep.subr.mxu0 0.0
        %5657 = vmatpush1.msra.mxu0 0.0
        %5658 = vmatprep.subr.mxu0 0.0
        %5659 = vmatpush1.msra.mxu0 0.0
        %5660 = vmatprep.subr.mxu0 0.0
        %5661 = vmatpush1.msra.mxu0 0.0
        %5662 = vmatprep.subr.mxu0 0.0
        %5663 = vmatpush1.msra.mxu0 0.0
        %5664 = vmatprep.subr.mxu0 0.0
        %5665 = vmatpush1.msra.mxu0 0.0
        %5666 = vmatprep.subr.mxu0 0.0
        %5667 = vmatpush1.msra.mxu0 0.0
        %5668 = vmatprep.subr.mxu0 0.0
        %5669 = vmatpush1.msra.mxu0 0.0
        %5670 = vmatprep.subr.mxu0 0.0
        %5671 = vmatpush1.msra.mxu0 0.0
        %5672 = vmatprep.subr.mxu0 0.0
        %5673 = vmatpush1.msra.mxu0 0.0
        %5674 = vmatprep.subr.mxu0 0.0
        %5675 = vmatpush1.msra.mxu0 0.0
        %5676 = vmatprep.subr.mxu0 0.0
        %5677 = vmatpush1.msra.mxu0 0.0
        %5678 = vmatprep.subr.mxu0 0.0
        %5679 = vmatpush1.msra.mxu0 %v5643
        %5680 = vmatprep.subr.mxu0 0.0
        %5681 = vmatpush2.msra.mxu0 0.0
        %5682 = vmatprep.subr.mxu0 0.0
        %5683 = vmatpush2.msra.mxu0 0.0
        %5684 = vmatprep.subr.mxu0 0.0
        %5685 = vmatpush2.msra.mxu0 0.0
        %5686 = vmatprep.subr.mxu0 0.0
        %5687 = vmatpush2.msra.mxu0 0.0
        %5688 = vmatprep.subr.mxu0 0.0
        %5689 = vmatpush2.msra.mxu0 0.0
        %5690 = vmatprep.subr.mxu0 0.0
        %5691 = vmatpush2.msra.mxu0 0.0
        %5692 = vmatprep.subr.mxu0 0.0
        %5693 = vmatpush2.msra.mxu0 0.0
        %5694 = vmatprep.subr.mxu0 0.0
        %5695 = vmatpush2.msra.mxu0 0.0
        %5696 = vmatprep.subr.mxu0 0.0
        %5697 = vmatpush2.msra.mxu0 0.0
        %5698 = vmatprep.subr.mxu0 0.0
        %5699 = vmatpush2.msra.mxu0 0.0
        %5700 = vmatprep.subr.mxu0 0.0
        %5701 = vmatpush2.msra.mxu0 0.0
        %5702 = vmatprep.subr.mxu0 0.0
        %5703 = vmatpush2.msra.mxu0 0.0
        %5704 = vmatprep.subr.mxu0 0.0
        %5705 = vmatpush2.msra.mxu0 0.0
        %5706 = vmatprep.subr.mxu0 0.0
        %5707 = vmatpush2.msra.mxu0 0.0
        %5708 = vmatprep.subr.mxu0 0.0
        %5709 = vmatpush2.msra.mxu0 0.0
        %5710 = vmatprep.subr.mxu0 0.0
        %5711 = vmatpush2.msra.mxu0 0.0
        %5712 = vmatprep.mubr.f32.mxu0 0.0
        %5713 = vmatmul.mubr.f32.gmra.mxu0 %v5646
        %v5714 = vpop.f32.mrf.mxu0
        %v5715 = vadd.f32 0.0, %v5714
        %v5716 = vpop.f32.mrf.mxu0
        %5717 = vdwg.mxu0
        %v5719 = vsel %vm1702, %v5715, 0
        %5721 = vmatprep.subr.mxu0 0.0
        %5722 = vmatpush1.msra.mxu0 0.0
        %5723 = vmatprep.subr.mxu0 0.0
        %5724 = vmatpush1.msra.mxu0 0.0
        %5725 = vmatprep.subr.mxu0 0.0
        %5726 = vmatpush1.msra.mxu0 0.0
        %5727 = vmatprep.subr.mxu0 0.0
        %5728 = vmatpush1.msra.mxu0 0.0
        %5729 = vmatprep.subr.mxu0 0.0
        %5730 = vmatpush1.msra.mxu0 0.0
        %5731 = vmatprep.subr.mxu0 0.0
        %5732 = vmatpush1.msra.mxu0 0.0
        %5733 = vmatprep.subr.mxu0 0.0
        %5734 = vmatpush1.msra.mxu0 0.0
        %5735 = vmatprep.subr.mxu0 0.0
        %5736 = vmatpush1.msra.mxu0 0.0
        %5737 = vmatprep.subr.mxu0 0.0
        %5738 = vmatpush1.msra.mxu0 0.0
        %5739 = vmatprep.subr.mxu0 0.0
        %5740 = vmatpush1.msra.mxu0 0.0
        %5741 = vmatprep.subr.mxu0 0.0
        %5742 = vmatpush1.msra.mxu0 0.0
        %5743 = vmatprep.subr.mxu0 0.0
        %5744 = vmatpush1.msra.mxu0 0.0
        %5745 = vmatprep.subr.mxu0 0.0
        %5746 = vmatpush1.msra.mxu0 0.0
        %5747 = vmatprep.subr.mxu0 0.0
        %5748 = vmatpush1.msra.mxu0 0.0
        %5749 = vmatprep.subr.mxu0 0.0
        %5750 = vmatpush1.msra.mxu0 %v3884
        %5751 = vmatprep.subr.mxu0 0.0
        %5752 = vmatpush1.msra.mxu0 %v3883
        %5753 = vmatprep.subr.mxu0 0.0
        %5754 = vmatpush2.msra.mxu0 0.0
        %5755 = vmatprep.subr.mxu0 0.0
        %5756 = vmatpush2.msra.mxu0 0.0
        %5757 = vmatprep.subr.mxu0 0.0
        %5758 = vmatpush2.msra.mxu0 0.0
        %5759 = vmatprep.subr.mxu0 0.0
        %5760 = vmatpush2.msra.mxu0 0.0
        %5761 = vmatprep.subr.mxu0 0.0
        %5762 = vmatpush2.msra.mxu0 0.0
        %5763 = vmatprep.subr.mxu0 0.0
        %5764 = vmatpush2.msra.mxu0 0.0
        %5765 = vmatprep.subr.mxu0 0.0
        %5766 = vmatpush2.msra.mxu0 0.0
        %5767 = vmatprep.subr.mxu0 0.0
        %5768 = vmatpush2.msra.mxu0 0.0
        %5769 = vmatprep.subr.mxu0 0.0
        %5770 = vmatpush2.msra.mxu0 0.0
        %5771 = vmatprep.subr.mxu0 0.0
        %5772 = vmatpush2.msra.mxu0 0.0
        %5773 = vmatprep.subr.mxu0 0.0
        %5774 = vmatpush2.msra.mxu0 0.0
        %5775 = vmatprep.subr.mxu0 0.0
        %5776 = vmatpush2.msra.mxu0 0.0
        %5777 = vmatprep.subr.mxu0 0.0
        %5778 = vmatpush2.msra.mxu0 0.0
        %5779 = vmatprep.subr.mxu0 0.0
        %5780 = vmatpush2.msra.mxu0 0.0
        %5781 = vmatprep.subr.mxu0 0.0
        %5782 = vmatpush2.msra.mxu0 0.0
        %5783 = vmatprep.subr.mxu0 0.0
        %5784 = vmatpush2.msra.mxu0 0.0
        %5785 = vmatprep.mubr.f32.mxu0 0.0
        %5786 = vmatmul.mubr.f32.gmra.mxu0 %v5719
        %v5787 = vpop.f32.mrf.mxu0
        %v5788 = vadd.f32 0.0, %v5787
        %v5789 = vpop.f32.mrf.mxu0
        %5790 = vdwg.mxu0
        %v5791 = vadd.f32 %v5552, %v5788
        %v5793 = vlaneseq
        %v5794 = vshrl.u32 %v5793, 7
        %v5795 = vsub.s32 0, %v5794
        %v5796 = vrot.slane %v3885, %v5795
        %v5798 = vadd.f32 %v5791, %v5796
        %v5799 = vadd.f32 %v3617, %v5798
        %v5800 = vld [vmem:[%s1227] sm:$0x1]
        %v5801 = vld [vmem:[%s1235] sm:$0x1]
        %5802 = vadd.xlane.f32.xlu0 %v5799
        %v5803 = vpop.xlane.xlu0 %5802
        %v5804 = vmul.f32 %v5803, %v1439
        %v5805 = vsub.f32 %v5799, %v5804
        %v5806 = vmul.f32 %v5805, %v5805
        %5807 = vadd.xlane.f32.xlu0 %v5806
        %v5808 = vpop.xlane.xlu0 %5807
        %v5809 = vmul.f32 %v5808, 0.007874016
        %v5810 = vrsqrt.pop %v5809
        %v5811 = vmul.f32 %v5809, %v5810
        %vm5812 = vcmp.eq.f32.partialorder %v5809, inf
        %v5813 = vsel %vm5812, %v5809, %v5811
        %vm5814 = vcmp.eq.f32.partialorder %v5809, 0.0
        %v5815 = vand.u32 %v5809, 2147483648
        %v5816 = vsel %vm5814, %v5815, %v5813
        %v5817 = vadd.f32 %v5816, 1e-06
        %v5818 = vrcp.pop %v5817
        %v5819 = vmul.f32 %v5805, %v5818
        %v5821 = vlaneseq
        %v5822 = vshrl.u32 %v5821, 7
        %v5823 = vsub.s32 0, %v5822
        %v5824 = vrot.slane %v5800, %v5823
        %v5826 = vmul.f32 %v5824, %v5819
        %v5828 = vlaneseq
        %v5829 = vshrl.u32 %v5828, 7
        %v5830 = vsub.s32 0, %v5829
        %v5831 = vrot.slane %v5801, %v5830
        %v5833 = vadd.f32 %v5826, %v5831
        %v5834 = vld [vmem:[%s1244] sm:$0xff]
        %v5835 = vld [vmem:[%s1244 + $0x8] sm:$0xff]
        %v5836 = vld [vmem:[%s1244 + $0x10] sm:$0xff]
        %v5837 = vld [vmem:[%s1244 + $0x18] sm:$0xff]
        %v5838 = vld [vmem:[%s1244 + $0x20] sm:$0xff]
        %v5839 = vld [vmem:[%s1244 + $0x28] sm:$0xff]
        %v5840 = vld [vmem:[%s1244 + $0x30] sm:$0xff]
        %v5841 = vld [vmem:[%s1244 + $0x38] sm:$0xff]
        %v5842 = vld [vmem:[%s1244 + $0x40] sm:$0xff]
        %v5843 = vld [vmem:[%s1244 + $0x48] sm:$0xff]
        %v5844 = vld [vmem:[%s1244 + $0x50] sm:$0xff]
        %v5845 = vld [vmem:[%s1244 + $0x58] sm:$0xff]
        %v5846 = vld [vmem:[%s1244 + $0x60] sm:$0xff]
        %v5847 = vld [vmem:[%s1244 + $0x68] sm:$0xff]
        %v5848 = vld [vmem:[%s1244 + $0x70] sm:$0xff]
        %v5849 = vld [vmem:[%s1244 + $0x78] sm:$0xff]
        %v5850 = vld [vmem:[%s1252] sm:$0x1]
        %v5851 = vld [vmem:[%s1261] sm:$0xff]
        %v5852 = vld [vmem:[%s1261 + $0x8] sm:$0xff]
        %v5853 = vld [vmem:[%s1261 + $0x10] sm:$0xff]
        %v5854 = vld [vmem:[%s1261 + $0x18] sm:$0xff]
        %v5855 = vld [vmem:[%s1261 + $0x20] sm:$0xff]
        %v5856 = vld [vmem:[%s1261 + $0x28] sm:$0xff]
        %v5857 = vld [vmem:[%s1261 + $0x30] sm:$0xff]
        %v5858 = vld [vmem:[%s1261 + $0x38] sm:$0xff]
        %v5859 = vld [vmem:[%s1261 + $0x40] sm:$0xff]
        %v5860 = vld [vmem:[%s1261 + $0x48] sm:$0xff]
        %v5861 = vld [vmem:[%s1261 + $0x50] sm:$0xff]
        %v5862 = vld [vmem:[%s1261 + $0x58] sm:$0xff]
        %v5863 = vld [vmem:[%s1261 + $0x60] sm:$0xff]
        %v5864 = vld [vmem:[%s1261 + $0x68] sm:$0xff]
        %v5865 = vld [vmem:[%s1261 + $0x70] sm:$0xff]
        %v5866 = vld [vmem:[%s1261 + $0x78] sm:$0xff]
        %v5867 = vld [vmem:[%s1269] sm:$0x1]
        %v5869 = vlaneseq
        %v5870 = vshrl.u32 %v5869, 7
        %v5871 = vsub.s32 0, %v5870
        %v5872 = vrot.slane %v5850, %v5871
        %5874 = vmatprep.subr.mxu0 0.0
        %5875 = vmatpush1.msra.mxu0 %v5849
        %5876 = vmatprep.subr.mxu0 0.0
        %5877 = vmatpush1.msra.mxu0 %v5848
        %5878 = vmatprep.subr.mxu0 0.0
        %5879 = vmatpush1.msra.mxu0 %v5847
        %5880 = vmatprep.subr.mxu0 0.0
        %5881 = vmatpush1.msra.mxu0 %v5846
        %5882 = vmatprep.subr.mxu0 0.0
        %5883 = vmatpush1.msra.mxu0 %v5845
        %5884 = vmatprep.subr.mxu0 0.0
        %5885 = vmatpush1.msra.mxu0 %v5844
        %5886 = vmatprep.subr.mxu0 0.0
        %5887 = vmatpush1.msra.mxu0 %v5843
        %5888 = vmatprep.subr.mxu0 0.0
        %5889 = vmatpush1.msra.mxu0 %v5842
        %5890 = vmatprep.subr.mxu0 0.0
        %5891 = vmatpush1.msra.mxu0 %v5841
        %5892 = vmatprep.subr.mxu0 0.0
        %5893 = vmatpush1.msra.mxu0 %v5840
        %5894 = vmatprep.subr.mxu0 0.0
        %5895 = vmatpush1.msra.mxu0 %v5839
        %5896 = vmatprep.subr.mxu0 0.0
        %5897 = vmatpush1.msra.mxu0 %v5838
        %5898 = vmatprep.subr.mxu0 0.0
        %5899 = vmatpush1.msra.mxu0 %v5837
        %5900 = vmatprep.subr.mxu0 0.0
        %5901 = vmatpush1.msra.mxu0 %v5836
        %5902 = vmatprep.subr.mxu0 0.0
        %5903 = vmatpush1.msra.mxu0 %v5835
        %5904 = vmatprep.subr.mxu0 0.0
        %5905 = vmatpush1.msra.mxu0 %v5834
        %5906 = vmatprep.subr.mxu0 0.0
        %5907 = vmatpush2.msra.mxu0 0.0
        %5908 = vmatprep.subr.mxu0 0.0
        %5909 = vmatpush2.msra.mxu0 0.0
        %5910 = vmatprep.subr.mxu0 0.0
        %5911 = vmatpush2.msra.mxu0 0.0
        %5912 = vmatprep.subr.mxu0 0.0
        %5913 = vmatpush2.msra.mxu0 0.0
        %5914 = vmatprep.subr.mxu0 0.0
        %5915 = vmatpush2.msra.mxu0 0.0
        %5916 = vmatprep.subr.mxu0 0.0
        %5917 = vmatpush2.msra.mxu0 0.0
        %5918 = vmatprep.subr.mxu0 0.0
        %5919 = vmatpush2.msra.mxu0 0.0
        %5920 = vmatprep.subr.mxu0 0.0
        %5921 = vmatpush2.msra.mxu0 0.0
        %5922 = vmatprep.subr.mxu0 0.0
        %5923 = vmatpush2.msra.mxu0 0.0
        %5924 = vmatprep.subr.mxu0 0.0
        %5925 = vmatpush2.msra.mxu0 0.0
        %5926 = vmatprep.subr.mxu0 0.0
        %5927 = vmatpush2.msra.mxu0 0.0
        %5928 = vmatprep.subr.mxu0 0.0
        %5929 = vmatpush2.msra.mxu0 0.0
        %5930 = vmatprep.subr.mxu0 0.0
        %5931 = vmatpush2.msra.mxu0 0.0
        %5932 = vmatprep.subr.mxu0 0.0
        %5933 = vmatpush2.msra.mxu0 0.0
        %5934 = vmatprep.subr.mxu0 0.0
        %5935 = vmatpush2.msra.mxu0 0.0
        %5936 = vmatprep.subr.mxu0 0.0
        %5937 = vmatpush2.msra.mxu0 0.0
        %5938 = vmatprep.mubr.f32.mxu0 0.0
        %5939 = vmatmul.mubr.f32.gmra.mxu0 %v5833
        %v5940 = vpop.f32.mrf.mxu0
        %v5941 = vadd.f32 %v5872, %v5940
        %v5942 = vpop.f32.mrf.mxu0
        %5943 = vdwg.mxu0
        %v5944 = vmax.f32 %v5941, 0.0
        %v5946 = vlaneseq
        %v5947 = vshrl.u32 %v5946, 7
        %v5948 = vsub.s32 0, %v5947
        %v5949 = vrot.slane %v5867, %v5948
        %5951 = vmatprep.subr.mxu0 0.0
        %5952 = vmatpush1.msra.mxu0 %v5866
        %5953 = vmatprep.subr.mxu0 0.0
        %5954 = vmatpush1.msra.mxu0 %v5865
        %5955 = vmatprep.subr.mxu0 0.0
        %5956 = vmatpush1.msra.mxu0 %v5864
        %5957 = vmatprep.subr.mxu0 0.0
        %5958 = vmatpush1.msra.mxu0 %v5863
        %5959 = vmatprep.subr.mxu0 0.0
        %5960 = vmatpush1.msra.mxu0 %v5862
        %5961 = vmatprep.subr.mxu0 0.0
        %5962 = vmatpush1.msra.mxu0 %v5861
        %5963 = vmatprep.subr.mxu0 0.0
        %5964 = vmatpush1.msra.mxu0 %v5860
        %5965 = vmatprep.subr.mxu0 0.0
        %5966 = vmatpush1.msra.mxu0 %v5859
        %5967 = vmatprep.subr.mxu0 0.0
        %5968 = vmatpush1.msra.mxu0 %v5858
        %5969 = vmatprep.subr.mxu0 0.0
        %5970 = vmatpush1.msra.mxu0 %v5857
        %5971 = vmatprep.subr.mxu0 0.0
        %5972 = vmatpush1.msra.mxu0 %v5856
        %5973 = vmatprep.subr.mxu0 0.0
        %5974 = vmatpush1.msra.mxu0 %v5855
        %5975 = vmatprep.subr.mxu0 0.0
        %5976 = vmatpush1.msra.mxu0 %v5854
        %5977 = vmatprep.subr.mxu0 0.0
        %5978 = vmatpush1.msra.mxu0 %v5853
        %5979 = vmatprep.subr.mxu0 0.0
        %5980 = vmatpush1.msra.mxu0 %v5852
        %5981 = vmatprep.subr.mxu0 0.0
        %5982 = vmatpush1.msra.mxu0 %v5851
        %5983 = vmatprep.subr.mxu0 0.0
        %5984 = vmatpush2.msra.mxu0 0.0
        %5985 = vmatprep.subr.mxu0 0.0
        %5986 = vmatpush2.msra.mxu0 0.0
        %5987 = vmatprep.subr.mxu0 0.0
        %5988 = vmatpush2.msra.mxu0 0.0
        %5989 = vmatprep.subr.mxu0 0.0
        %5990 = vmatpush2.msra.mxu0 0.0
        %5991 = vmatprep.subr.mxu0 0.0
        %5992 = vmatpush2.msra.mxu0 0.0
        %5993 = vmatprep.subr.mxu0 0.0
        %5994 = vmatpush2.msra.mxu0 0.0
        %5995 = vmatprep.subr.mxu0 0.0
        %5996 = vmatpush2.msra.mxu0 0.0
        %5997 = vmatprep.subr.mxu0 0.0
        %5998 = vmatpush2.msra.mxu0 0.0
        %5999 = vmatprep.subr.mxu0 0.0
        %6000 = vmatpush2.msra.mxu0 0.0
        %6001 = vmatprep.subr.mxu0 0.0
        %6002 = vmatpush2.msra.mxu0 0.0
        %6003 = vmatprep.subr.mxu0 0.0
        %6004 = vmatpush2.msra.mxu0 0.0
        %6005 = vmatprep.subr.mxu0 0.0
        %6006 = vmatpush2.msra.mxu0 0.0
        %6007 = vmatprep.subr.mxu0 0.0
        %6008 = vmatpush2.msra.mxu0 0.0
        %6009 = vmatprep.subr.mxu0 0.0
        %6010 = vmatpush2.msra.mxu0 0.0
        %6011 = vmatprep.subr.mxu0 0.0
        %6012 = vmatpush2.msra.mxu0 0.0
        %6013 = vmatprep.subr.mxu0 0.0
        %6014 = vmatpush2.msra.mxu0 0.0
        %6015 = vmatprep.mubr.f32.mxu0 0.0
        %6016 = vmatmul.mubr.f32.gmra.mxu0 %v5944
        %v6017 = vpop.f32.mrf.mxu0
        %v6018 = vadd.f32 %v5949, %v6017
        %v6019 = vpop.f32.mrf.mxu0
        %6020 = vdwg.mxu0
        %v6021 = vadd.f32 %v5799, %v6018
        %6022 = vst [vmem:[#allocation27] sm:$0xff] %v6021
        %p6023 = scmp.eq.s32.totalorder %s41, 1
        // Predicated region
        $region213: #{decoder_forward.1} parent=123 // pred_check
          %p6024 = pneg %p6023
        $region214: #{decoder_forward.1} parent=123 // pred_check_branch
          %6026 = sbr.rel (%p6024) target = $region216
        $region215: #{decoder_forward.1} parent=123 // pred_region
          %v6027 = vld [vmem:[#allocation7] sm:$0x1]
          %v6028 = vld [vmem:[#allocation8] sm:$0x1]
          %6029 = vadd.xlane.f32.xlu0 %v6021
          %v6030 = vpop.xlane.xlu0 %6029
          %v6031 = vmul.f32 %v6030, %v1439
          %v6032 = vsub.f32 %v6021, %v6031
          %v6033 = vmul.f32 %v6032, %v6032
          %6034 = vadd.xlane.f32.xlu0 %v6033
          %v6035 = vpop.xlane.xlu0 %6034
          %v6036 = vmul.f32 %v6035, 0.007874016
          %v6037 = vrsqrt.pop %v6036
          %v6038 = vmul.f32 %v6036, %v6037
          %vm6039 = vcmp.eq.f32.partialorder %v6036, inf
          %v6040 = vsel %vm6039, %v6036, %v6038
          %vm6041 = vcmp.eq.f32.partialorder %v6036, 0.0
          %v6042 = vand.u32 %v6036, 2147483648
          %v6043 = vsel %vm6041, %v6042, %v6040
          %v6044 = vadd.f32 %v6043, 1e-06
          %v6045 = vrcp.pop %v6044
          %v6046 = vmul.f32 %v6032, %v6045
          %v6048 = vlaneseq
          %v6049 = vshrl.u32 %v6048, 7
          %v6050 = vsub.s32 0, %v6049
          %v6051 = vrot.slane %v6027, %v6050
          %v6053 = vmul.f32 %v6051, %v6046
          %v6055 = vlaneseq
          %v6056 = vshrl.u32 %v6055, 7
          %v6057 = vsub.s32 0, %v6056
          %v6058 = vrot.slane %v6028, %v6057
          %v6060 = vadd.f32 %v6053, %v6058
          %6061 = vst [vmem:[#allocation27] sm:$0xff] %v6060
        $region216: #{decoder_forward.1} parent=123 // pred_fallthru
          _
        // Predicated region
        $region217: #{decoder_forward.1} parent=123 // pred_check
          %p6062 = pneg %p700
        $region218: #{decoder_forward.1} parent=123 // pred_check_branch
          %6064 = sbr.rel (%p6062) target = $region220
        $region219: #{decoder_forward.1} parent=123 // pred_region
          %s6066 = ssub.s32 128, 128
          %6067 = vsyncadd [#allocation4], %s6066
          %s6069 = sshll.u32 [#allocation27], 4
          %s6070 = int_to_ptr.vmem [resolvable:$true] %s6069
          %6072 = dma.vmem_to_hbm [thread:$0]  %s6070, 128, %s26, [#allocation4]
        $region220: #{decoder_forward.1} parent=123 // pred_fallthru
          _
        // Predicated region
        $region221: #{decoder_forward.1} parent=123 // pred_check
          %p6073 = pneg %p700
        $region222: #{decoder_forward.1} parent=123 // pred_check_branch
          %6075 = sbr.rel (%p6073) target = $region224
        $region223: #{decoder_forward.1} parent=123 // pred_region
          %6076 = dma.done [#allocation4], 128
        $region224: #{decoder_forward.1} parent=123 // pred_fallthru
          _
      $region124: #{decoder_forward.1} parent=5 // pred_fallthru
        _
      %p6077 = scmp.le.s32.totalorder 2, %s36
      // Predicated region
      $region225: #{decoder_forward.1} parent=5 // pred_check
        %p6078 = pneg %p6077
      $region226: #{decoder_forward.1} parent=5 // pred_check_branch
        %6080 = sbr.rel (%p6078) target = $region228
      $region227: #{decoder_forward.1} parent=5 // pred_region
        %s6081 = ssub.s32 %s36, 2
      $region228: #{decoder_forward.1} parent=5 // pred_fallthru
        _
    $region6: #{decoder_forward.1} parent=1 // loop_footer
      %s40 = sadd.s32 1, %s36
    $region7: #{decoder_forward.1} parent=1 // loop_footer_branch
      %35 = sbr.rel target = $region3
    $region8: #{decoder_forward.1} parent=1 // loop_exit
      _
    %6082 = vsyncpa [#allocation3], 1
    %s6083 = scalar_lea.sflag [#allocation3], 1
    %6084 = vsyncpa %s6083, 1
    %6085 = vsyncpa [#allocation6], 1
    %6086 = vsyncpa [#allocation9], 1
    %6087 = vsyncpa [#allocation4], 1
    %s6088 = scalar_lea.sflag [#allocation4], 1
    %6089 = vsyncpa %s6088, 1

</llo_original>
